<compile_context>
chip_gen: v6e
topology: v6e:2x2x1
jax: 0.10.0
libtpu: 0.0.40
codegen_flags: <defaults>
</compile_context>

<pallas_src>
import functools

import jax
import jax.numpy as jnp
from jax.experimental import pallas as pl
from jax.experimental.pallas import tpu as pltpu


# ----------------------------------------------------------------------------
# In-kernel helpers (operate on values, not refs)
# ----------------------------------------------------------------------------
def _layernorm(x, g, b, eps):
    """fp32 layernorm over the last axis. x: (M, D), g/b: (1, D)."""
    mean = jnp.mean(x, axis=-1, keepdims=True)
    xc = x - mean
    var = jnp.mean(xc * xc, axis=-1, keepdims=True)
    return xc * jax.lax.rsqrt(var + eps) * g + b


def _softmax_rows(s):
    """Row softmax, plain fp32 (no approx reciprocal)."""
    m = jnp.max(s, axis=-1, keepdims=True)
    p = jnp.exp(s - m)
    return p / jnp.sum(p, axis=-1, keepdims=True)


def _transformer_block(x, l, wqkv_ref, bqkv_ref, wo_ref, wfc1_ref, bfc1_ref,
                       wfc2_ref, vec_ref, *, n_heads, eps):
    """One pre-LN transformer block on a resident (S, D) activation.

    Head-major weight layout -> only leading-dim ref indexing (no lane slices):
      wqkv_ref: (L*H*3, D, hd)   index (l*H + h)*3 + {0:q, 1:k, 2:v}
      bqkv_ref: (L*H, 3, hd)
      wo_ref:   (L*H, hd, D)
      wfc1_ref: (L, D, ME)   bfc1_ref: (L, 1, ME)   wfc2_ref: (L, ME, D)
      vec_ref:  (L, 6, D) rows = [ln1_g, ln1_b, b_proj, ln2_g, ln2_b, b_fc2]
    """
    S, D = x.shape
    hd = D // n_heads
    scale = 1.0 / float(hd) ** 0.5
    vec = vec_ref[l]                                    # (6, D)

    # ---- attention sub-block (pre-LN) ----
    h1 = _layernorm(x, vec[0:1], vec[1:2], eps)
    attn = jnp.zeros((S, D), jnp.float32)
    for h in range(n_heads):                            # static unroll
        base = (l * n_heads + h) * 3
        b = bqkv_ref[l * n_heads + h]                   # (3, hd)
        qh = jnp.dot(h1, wqkv_ref[base + 0], preferred_element_type=jnp.float32) + b[0:1]
        kh = jnp.dot(h1, wqkv_ref[base + 1], preferred_element_type=jnp.float32) + b[1:2]
        vh = jnp.dot(h1, wqkv_ref[base + 2], preferred_element_type=jnp.float32) + b[2:3]
        s = jax.lax.dot_general(qh, kh, (((1,), (1,)), ((), ())),
                                preferred_element_type=jnp.float32) * scale
        p = _softmax_rows(s)                            # (S, S)
        oh = jnp.dot(p, vh, preferred_element_type=jnp.float32)   # (S, hd)
        # concat-free head merge: accumulate into the output projection
        attn = attn + jnp.dot(oh, wo_ref[l * n_heads + h],
                              preferred_element_type=jnp.float32)
    x = x + attn + vec[2:3]

    # ---- MLP sub-block (pre-LN) ----
    # TODO(synk): config.activation is a free callable in the spec; tanh-GELU used.
    h2 = _layernorm(x, vec[3:4], vec[4:5], eps)
    hid = jax.nn.gelu(jnp.dot(h2, wfc1_ref[l], preferred_element_type=jnp.float32)
                      + bfc1_ref[l], approximate=True)
    x = x + jnp.dot(hid, wfc2_ref[l], preferred_element_type=jnp.float32) + vec[5:6]
    return x


# ----------------------------------------------------------------------------
# The single fused kernel: grid = (batch,)
# ----------------------------------------------------------------------------
def _encoder_kernel(
        x_ref,
        # TransformerBody weight stacks (whole-array, constant index_map)
        bw_qkv_ref, bb_qkv_ref, bw_o_ref, bw_fc1_ref, bb_fc1_ref, bw_fc2_ref, bvec_ref,
        # AttentionToTensor
        aq_ref, aw_kv_ref, ab_kv_ref, aw_o_ref, aw_fc1_ref, ab_fc1_ref, aw_fc2_ref, avec_ref,
        # ConvTransformerBlock
        cw_qkv_ref, cb_qkv_ref, cw_o_ref, cw_fc1_ref, cb_fc1_ref, cw_fc2_ref, cvec_ref,
        o_ref, *,
        body_layers, body_heads, a2t_heads, conv_layers, conv_heads, eps):
    x = x_ref[0]                                        # (N, E) residual stream

    # ---- TransformerBody (extra_embed has 0 channels -> concat is a no-op) ----
    for l in range(body_layers):                        # static unroll over layers
        x = _transformer_block(x, l, bw_qkv_ref, bb_qkv_ref, bw_o_ref,
                               bw_fc1_ref, bb_fc1_ref, bw_fc2_ref, bvec_ref,
                               n_heads=body_heads, eps=eps)

    # ---- AttentionToTensor ----
    # TODO(synk): AttentionToTensor internals not provided; implemented as
    # learned-query multi-head cross-attention + output proj + residual MLP.
    RC = aq_ref.shape[1]
    hd = aq_ref.shape[2]
    Eo = aw_o_ref.shape[2]
    scale = 1.0 / float(hd) ** 0.5
    a = jnp.zeros((RC, Eo), jnp.float32)
    for h in range(a2t_heads):                          # static unroll
        bkv = ab_kv_ref[h]                              # (2, hd): [b_k, b_v]
        kh = jnp.dot(x, aw_kv_ref[2 * h], preferred_element_type=jnp.float32) + bkv[0:1]
        vh = jnp.dot(x, aw_kv_ref[2 * h + 1], preferred_element_type=jnp.float32) + bkv[1:2]
        qh = aq_ref[h]                                  # (RC, hd) precomputed in wrapper
        s = jax.lax.dot_general(qh, kh, (((1,), (1,)), ((), ())),
                                preferred_element_type=jnp.float32) * scale
        p = _softmax_rows(s)                            # (RC, N)
        oh = jnp.dot(p, vh, preferred_element_type=jnp.float32)   # (RC, hd)
        a = a + jnp.dot(oh, aw_o_ref[h], preferred_element_type=jnp.float32)
    avec = avec_ref[...]                                # (2, Eo): [b_o, b_fc2]
    a = a + avec[0:1]
    hid = jax.nn.gelu(jnp.dot(a, aw_fc1_ref[...], preferred_element_type=jnp.float32)
                      + ab_fc1_ref[...], approximate=True)
    a = a + jnp.dot(hid, aw_fc2_ref[...], preferred_element_type=jnp.float32) + avec[1:2]

    # ---- ConvTransformerBlock over the flattened RxC grid ----
    # TODO(synk): exact ConvTransformerBlock conv-QKV structure not provided;
    # implemented as a pre-LN dense-QKV attention block over the flattened grid.
    for l in range(conv_layers):
        a = _transformer_block(a, l, cw_qkv_ref, cb_qkv_ref, cw_o_ref,
                               cw_fc1_ref, cb_fc1_ref, cw_fc2_ref, cvec_ref,
                               n_heads=conv_heads, eps=eps)

    o_ref[0] = a


# ----------------------------------------------------------------------------
# Full forward (one pallas_call)
# ----------------------------------------------------------------------------
_STACK_KEYS = ("w_qkv", "b_qkv", "w_o", "w_fc1", "b_fc1", "w_fc2", "vec")


def permutation_encoder_forward(params, x_perm, cfg):
    """x_perm: (B, N) int32 permutation indices -> (mus, logsigmas)."""
    B, N = x_perm.shape
    E = cfg["n_embed"]
    Eo = 2 * cfg["n_output_embed"]
    R, C = cfg["n_output_rows"], cfg["n_output_columns"]
    RC = R * C
    H_out = cfg["n_output_heads"]
    hd_out = Eo // H_out

    # 1. PermutationEmbedder: token embedding gather + positional add (JAX glue).
    x = jnp.take(params["tok_emb"], x_perm, axis=0) + params["pos_emb"][None, :N, :]

    # 2. Hoist the batch-invariant learned-query projection out of the kernel.
    a2t = params["a2t"]
    q_pre = jnp.dot(a2t["q_tokens"], a2t["w_q"]) + a2t["b_q"][None, :]      # (RC, Eo)
    q_pre = jnp.transpose(q_pre.reshape(RC, H_out, hd_out), (1, 0, 2))      # (H, RC, hd)

    body, conv = params["body"], params["conv_block"]
    body_ops = [body[k] for k in _STACK_KEYS]
    a2t_ops = [q_pre, a2t["w_kv"], a2t["b_kv"], a2t["w_o"],
               a2t["w_fc1"], a2t["b_fc1"], a2t["w_fc2"], a2t["vec"]]
    conv_ops = [conv[k] for k in _STACK_KEYS]
    operands = [x] + body_ops + a2t_ops + conv_ops

    def const_spec(a):
        nd = a.ndim
        return pl.BlockSpec(a.shape, lambda b, _nd=nd: (0,) * _nd)

    in_specs = ([pl.BlockSpec((1, N, E), lambda b: (b, 0, 0))]
                + [const_spec(a) for a in body_ops + a2t_ops + conv_ops])

    kern = functools.partial(
        _encoder_kernel,
        body_layers=cfg["n_layers"], body_heads=cfg["n_heads"],
        a2t_heads=H_out,
        conv_layers=1, conv_heads=cfg["conv_transformer_n_heads"],
        eps=cfg["ln_eps"])

    out = pl.pallas_call(
        kern,
        grid=(B,),
        out_shape=jax.ShapeDtypeStruct((B, RC, Eo), jnp.float32),
        in_specs=in_specs,
        out_specs=pl.BlockSpec((1, RC, Eo), lambda b: (b, 0, 0)),
        compiler_params=pltpu.CompilerParams(
            dimension_semantics=("parallel",)),
    )(*operands)

    # 3. (B, RC, Eo) -> (B, R, C, Eo); split last dim into interleaved (mu, logsigma)
    #    pairs, matching torch's  x.view(..., Eo//2, 2); x[...,0]; x[...,1].
    x = out.reshape(B, R, C, Eo).reshape(B, R, C, Eo // 2, 2)
    return x[..., 0], x[..., 1]


# ----------------------------------------------------------------------------
# Deterministic parameter initialization (synthetic; no checkpoint loading).
# Canonical per-layer tensors are generated first, then repacked head-major so
# the kernel only ever indexes leading dims.
# ----------------------------------------------------------------------------
def _pack_transformer_stack(key, n_layers, dim, n_heads, mult, std):
    hd = dim // n_heads
    hidden = mult * dim
    kq, kp, k1, k2 = jax.random.split(key, 4)
    w_qkv = jax.random.normal(kq, (n_layers, dim, 3 * dim), jnp.float32) * std
    w_proj = jax.random.normal(kp, (n_layers, dim, dim), jnp.float32) * std
    w_fc1 = jax.random.normal(k1, (n_layers, dim, hidden), jnp.float32) * std
    w_fc2 = jax.random.normal(k2, (n_layers, hidden, dim), jnp.float32) * std
    b_qkv = jnp.zeros((n_layers, 3 * dim), jnp.float32)
    b_proj = jnp.zeros((n_layers, dim), jnp.float32)
    b_fc1 = jnp.zeros((n_layers, hidden), jnp.float32)
    b_fc2 = jnp.zeros((n_layers, dim), jnp.float32)
    ln1_g = jnp.ones((n_layers, dim), jnp.float32)
    ln1_b = jnp.zeros((n_layers, dim), jnp.float32)
    ln2_g = jnp.ones((n_layers, dim), jnp.float32)
    ln2_b = jnp.zeros((n_layers, dim), jnp.float32)

    # Head-major repack: kernel index (l*H + h)*3 + {0:q,1:k,2:v}.
    w_qkv_h = jnp.transpose(w_qkv.reshape(n_layers, dim, 3, n_heads, hd),
                            (0, 3, 2, 1, 4)).reshape(n_layers * n_heads * 3, dim, hd)
    b_qkv_h = jnp.transpose(b_qkv.reshape(n_layers, 3, n_heads, hd),
                            (0, 2, 1, 3)).reshape(n_layers * n_heads, 3, hd)
    w_o_h = w_proj.reshape(n_layers * n_heads, hd, dim)
    vec = jnp.stack([ln1_g, ln1_b, b_proj, ln2_g, ln2_b, b_fc2], axis=1)   # (L, 6, D)
    return dict(w_qkv=w_qkv_h, b_qkv=b_qkv_h, w_o=w_o_h,
                w_fc1=w_fc1, b_fc1=b_fc1.reshape(n_layers, 1, hidden),
                w_fc2=w_fc2, vec=vec)


def _pack_a2t(key, n_embed, n_out_embed, n_heads, n_rows, n_cols, mult, std):
    rc = n_rows * n_cols
    hd = n_out_embed // n_heads
    hidden = mult * n_out_embed
    kt, kq, kk, kv, ko, k1, k2 = jax.random.split(key, 7)
    nrm = lambda k, s: jax.random.normal(k, s, jnp.float32) * std
    q_tokens = nrm(kt, (rc, n_out_embed))
    w_q = nrm(kq, (n_out_embed, n_out_embed))
    w_k = nrm(kk, (n_embed, n_out_embed))
    w_v = nrm(kv, (n_embed, n_out_embed))
    w_o = nrm(ko, (n_out_embed, n_out_embed))
    w_fc1 = nrm(k1, (n_out_embed, hidden))
    w_fc2 = nrm(k2, (hidden, n_out_embed))
    b_q = jnp.zeros((n_out_embed,), jnp.float32)
    b_k = jnp.zeros((n_out_embed,), jnp.float32)
    b_v = jnp.zeros((n_out_embed,), jnp.float32)
    b_o = jnp.zeros((n_out_embed,), jnp.float32)
    b_fc1 = jnp.zeros((hidden,), jnp.float32)
    b_fc2 = jnp.zeros((n_out_embed,), jnp.float32)

    wk_h = jnp.transpose(w_k.reshape(n_embed, n_heads, hd), (1, 0, 2))
    wv_h = jnp.transpose(w_v.reshape(n_embed, n_heads, hd), (1, 0, 2))
    w_kv = jnp.stack([wk_h, wv_h], axis=1).reshape(n_heads * 2, n_embed, hd)
    b_kv = jnp.stack([b_k.reshape(n_heads, hd), b_v.reshape(n_heads, hd)], axis=1)
    w_o_h = w_o.reshape(n_heads, hd, n_out_embed)
    vec = jnp.stack([b_o, b_fc2], axis=0)                                   # (2, Eo)
    return dict(q_tokens=q_tokens, w_q=w_q, b_q=b_q,
                w_kv=w_kv, b_kv=b_kv, w_o=w_o_h,
                w_fc1=w_fc1, b_fc1=b_fc1.reshape(1, hidden), w_fc2=w_fc2, vec=vec)


def init_params(key, cfg):
    std = cfg["init_std"]
    E = cfg["n_embed"]
    Eo = 2 * cfg["n_output_embed"]
    mult = cfg["linear_size_multiplier"]
    k_tok, k_pos, k_body, k_a2t, k_conv = jax.random.split(key, 5)
    return {
        "tok_emb": jax.random.normal(k_tok, (cfg["n_max_permutation_size"], E),
                                     jnp.float32) * std,
        "pos_emb": jax.random.normal(k_pos, (cfg["n_max_permutation_size"], E),
                                     jnp.float32) * std,
        "body": _pack_transformer_stack(k_body, cfg["n_layers"], E,
                                        cfg["n_heads"], mult, std),
        "a2t": _pack_a2t(k_a2t, E, Eo, cfg["n_output_heads"],
                         cfg["n_output_rows"], cfg["n_output_columns"], mult, std),
        "conv_block": _pack_transformer_stack(k_conv, 1, Eo,
                                              cfg["conv_transformer_n_heads"],
                                              mult, std),
    }


# ----------------------------------------------------------------------------
if __name__ == "__main__":
    cfg = dict(
        n_max_permutation_size=8,
        n_embed=32,
        n_heads=4,
        n_layers=2,
        attn_dropout=0.0,     # dropout == identity at inference
        resid_dropout=0.0,
        mlp_dropout=0.0,
        init_std=0.02,
        ln_eps=1e-5,
        n_output_heads=2,
        n_output_embed=16,
        n_output_rows=4,
        n_output_columns=4,
        conv_transformer_n_heads=4,
        linear_size_multiplier=4,
    )

    key = jax.random.PRNGKey(0)
    pkey, xkey = jax.random.split(key)
    params = init_params(pkey, cfg)

    B = 2
    N = cfg["n_max_permutation_size"]
    # input: batch of permutations of [0, N)
    x = jnp.stack(
        [jax.random.permutation(jax.random.fold_in(xkey, i), N) for i in range(B)]
    ).astype(jnp.int32)

    fwd = jax.jit(functools.partial(permutation_encoder_forward, cfg=cfg))
    mus, logsigmas = fwd(params, x)
    jax.block_until_ready((mus, logsigmas))

    expected = (B, cfg["n_output_rows"], cfg["n_output_columns"], cfg["n_output_embed"])
    assert mus.shape == expected, mus.shape
    assert logsigmas.shape == expected, logsigmas.shape
    assert mus.dtype == jnp.float32 and logsigmas.dtype == jnp.float32
    assert bool(jnp.all(jnp.isfinite(mus))) and bool(jnp.all(jnp.isfinite(logsigmas)))
    print("KERNEL_OK")
</pallas_src>

<mosaic_0001>
module attributes {stable_mosaic.version = 11 : i64} {
  func.func @_encoder_kernel(%arg0: i32, %arg1: memref<1x8x32xf32, #tpu.memory_space<vmem>>, %arg2: memref<24x32x8xf32, #tpu.memory_space<vmem>>, %arg3: memref<8x3x8xf32, #tpu.memory_space<vmem>>, %arg4: memref<8x8x32xf32, #tpu.memory_space<vmem>>, %arg5: memref<2x32x128xf32, #tpu.memory_space<vmem>>, %arg6: memref<2x1x128xf32, #tpu.memory_space<vmem>>, %arg7: memref<2x128x32xf32, #tpu.memory_space<vmem>>, %arg8: memref<2x6x32xf32, #tpu.memory_space<vmem>>, %arg9: memref<2x16x16xf32, #tpu.memory_space<vmem>>, %arg10: memref<4x32x16xf32, #tpu.memory_space<vmem>>, %arg11: memref<2x2x16xf32, #tpu.memory_space<vmem>>, %arg12: memref<2x16x32xf32, #tpu.memory_space<vmem>>, %arg13: memref<32x128xf32, #tpu.memory_space<vmem>>, %arg14: memref<1x128xf32, #tpu.memory_space<vmem>>, %arg15: memref<128x32xf32, #tpu.memory_space<vmem>>, %arg16: memref<2x32xf32, #tpu.memory_space<vmem>>, %arg17: memref<12x32x8xf32, #tpu.memory_space<vmem>>, %arg18: memref<4x3x8xf32, #tpu.memory_space<vmem>>, %arg19: memref<4x8x32xf32, #tpu.memory_space<vmem>>, %arg20: memref<1x32x128xf32, #tpu.memory_space<vmem>>, %arg21: memref<1x1x128xf32, #tpu.memory_space<vmem>>, %arg22: memref<1x128x32xf32, #tpu.memory_space<vmem>>, %arg23: memref<1x6x32xf32, #tpu.memory_space<vmem>>, %arg24: memref<1x16x32xf32, #tpu.memory_space<vmem>>) attributes {dimension_semantics = [#tpu.dimension_semantics<parallel>], iteration_bounds = array<i64: 2>, scalar_prefetch = 0 : i64, scratch_operands = 0 : i64, tpu.core_type = #tpu.core_type<tc>, window_params = [{transform_indices = @transform_0, window_bounds = array<i64: 1, 8, 32>}, {pipeline_mode = #tpu.pipeline_mode<synchronous>, transform_indices = @transform_1, window_bounds = array<i64: 24, 32, 8>}, {pipeline_mode = #tpu.pipeline_mode<synchronous>, transform_indices = @transform_2, window_bounds = array<i64: 8, 3, 8>}, {pipeline_mode = #tpu.pipeline_mode<synchronous>, transform_indices = @transform_3, window_bounds = array<i64: 8, 8, 32>}, {pipeline_mode = #tpu.pipeline_mode<synchronous>, transform_indices = @transform_4, window_bounds = array<i64: 2, 32, 128>}, {pipeline_mode = #tpu.pipeline_mode<synchronous>, transform_indices = @transform_5, window_bounds = array<i64: 2, 1, 128>}, {pipeline_mode = #tpu.pipeline_mode<synchronous>, transform_indices = @transform_6, window_bounds = array<i64: 2, 128, 32>}, {pipeline_mode = #tpu.pipeline_mode<synchronous>, transform_indices = @transform_7, window_bounds = array<i64: 2, 6, 32>}, {pipeline_mode = #tpu.pipeline_mode<synchronous>, transform_indices = @transform_8, window_bounds = array<i64: 2, 16, 16>}, {pipeline_mode = #tpu.pipeline_mode<synchronous>, transform_indices = @transform_9, window_bounds = array<i64: 4, 32, 16>}, {pipeline_mode = #tpu.pipeline_mode<synchronous>, transform_indices = @transform_10, window_bounds = array<i64: 2, 2, 16>}, {pipeline_mode = #tpu.pipeline_mode<synchronous>, transform_indices = @transform_11, window_bounds = array<i64: 2, 16, 32>}, {pipeline_mode = #tpu.pipeline_mode<synchronous>, transform_indices = @transform_12, window_bounds = array<i64: 32, 128>}, {pipeline_mode = #tpu.pipeline_mode<synchronous>, transform_indices = @transform_13, window_bounds = array<i64: 1, 128>}, {pipeline_mode = #tpu.pipeline_mode<synchronous>, transform_indices = @transform_14, window_bounds = array<i64: 128, 32>}, {pipeline_mode = #tpu.pipeline_mode<synchronous>, transform_indices = @transform_15, window_bounds = array<i64: 2, 32>}, {pipeline_mode = #tpu.pipeline_mode<synchronous>, transform_indices = @transform_16, window_bounds = array<i64: 12, 32, 8>}, {pipeline_mode = #tpu.pipeline_mode<synchronous>, transform_indices = @transform_17, window_bounds = array<i64: 4, 3, 8>}, {pipeline_mode = #tpu.pipeline_mode<synchronous>, transform_indices = @transform_18, window_bounds = array<i64: 4, 8, 32>}, {pipeline_mode = #tpu.pipeline_mode<synchronous>, transform_indices = @transform_19, window_bounds = array<i64: 1, 32, 128>}, {pipeline_mode = #tpu.pipeline_mode<synchronous>, transform_indices = @transform_20, window_bounds = array<i64: 1, 1, 128>}, {pipeline_mode = #tpu.pipeline_mode<synchronous>, transform_indices = @transform_21, window_bounds = array<i64: 1, 128, 32>}, {pipeline_mode = #tpu.pipeline_mode<synchronous>, transform_indices = @transform_22, window_bounds = array<i64: 1, 6, 32>}, {transform_indices = @transform_23, window_bounds = array<i64: 1, 16, 32>}]} {
    %c0 = arith.constant 0 : index
    %c0_0 = arith.constant 0 : index
    %c0_1 = arith.constant 0 : index
    %0 = vector.load %arg1[%c0, %c0_0, %c0_1] : memref<1x8x32xf32, #tpu.memory_space<vmem>>, vector<1x8x32xf32>
    %1 = vector.shape_cast %0 : vector<1x8x32xf32> to vector<8x32xf32>
    %c0_2 = arith.constant 0 : index
    %c0_3 = arith.constant 0 : index
    %c0_4 = arith.constant 0 : index
    %2 = vector.load %arg8[%c0_2, %c0_3, %c0_4] : memref<2x6x32xf32, #tpu.memory_space<vmem>>, vector<1x6x32xf32>
    %3 = vector.shape_cast %2 : vector<1x6x32xf32> to vector<6x32xf32>
    %4 = vector.extract_strided_slice %3 {offsets = [0, 0], sizes = [1, 32], strides = [1, 1]} : vector<6x32xf32> to vector<1x32xf32>
    %5 = vector.extract_strided_slice %3 {offsets = [1, 0], sizes = [1, 32], strides = [1, 1]} : vector<6x32xf32> to vector<1x32xf32>
    %cst = arith.constant dense<0.000000e+00> : vector<8xf32>
    %6 = vector.multi_reduction <add>, %1, %cst [1] : vector<8x32xf32> to vector<8xf32>
    %7 = vector.shape_cast %6 : vector<8xf32> to vector<8x1xf32>
    %cst_5 = arith.constant 3.200000e+01 : f32
    %8 = vector.broadcast %cst_5 : f32 to vector<8x1xf32>
    %9 = arith.divf %7, %8 : vector<8x1xf32>
    %10 = vector.broadcast %9 : vector<8x1xf32> to vector<8x32xf32>
    %11 = arith.subf %1, %10 : vector<8x32xf32>
    %12 = arith.mulf %11, %11 : vector<8x32xf32>
    %cst_6 = arith.constant dense<0.000000e+00> : vector<8xf32>
    %13 = vector.multi_reduction <add>, %12, %cst_6 [1] : vector<8x32xf32> to vector<8xf32>
    %14 = vector.shape_cast %13 : vector<8xf32> to vector<8x1xf32>
    %cst_7 = arith.constant 3.200000e+01 : f32
    %15 = vector.broadcast %cst_7 : f32 to vector<8x1xf32>
    %16 = arith.divf %14, %15 : vector<8x1xf32>
    %cst_8 = arith.constant 9.99999974E-6 : f32
    %17 = vector.broadcast %cst_8 : f32 to vector<8x1xf32>
    %18 = arith.addf %16, %17 : vector<8x1xf32>
    %19 = math.rsqrt %18 : vector<8x1xf32>
    %20 = vector.broadcast %19 : vector<8x1xf32> to vector<8x32xf32>
    %21 = arith.mulf %11, %20 : vector<8x32xf32>
    %22 = vector.broadcast %4 : vector<1x32xf32> to vector<8x32xf32>
    %23 = arith.mulf %21, %22 : vector<8x32xf32>
    %24 = vector.broadcast %5 : vector<1x32xf32> to vector<8x32xf32>
    %25 = arith.addf %23, %24 : vector<8x32xf32>
    %cst_9 = arith.constant 0.000000e+00 : f32
    %26 = vector.broadcast %cst_9 : f32 to vector<8x32xf32>
    %c0_10 = arith.constant 0 : index
    %c0_11 = arith.constant 0 : index
    %c0_12 = arith.constant 0 : index
    %27 = vector.load %arg3[%c0_10, %c0_11, %c0_12] : memref<8x3x8xf32, #tpu.memory_space<vmem>>, vector<1x3x8xf32>
    %28 = vector.shape_cast %27 : vector<1x3x8xf32> to vector<3x8xf32>
    %c0_13 = arith.constant 0 : index
    %c0_14 = arith.constant 0 : index
    %c0_15 = arith.constant 0 : index
    %29 = vector.load %arg2[%c0_13, %c0_14, %c0_15] : memref<24x32x8xf32, #tpu.memory_space<vmem>>, vector<1x32x8xf32>
    %30 = vector.shape_cast %29 : vector<1x32x8xf32> to vector<32x8xf32>
    %cst_16 = arith.constant dense<0.000000e+00> : vector<8x8xf32>
    %31 = tpu.matmul %25, %30, %cst_16 {dimension_numbers = #tpu.dot_dimension_numbers<[1], [0], [0], [1], [0, 0, 1, 1], [], []>} : vector<8x32xf32>, vector<32x8xf32>, vector<8x8xf32> -> vector<8x8xf32>
    %32 = vector.extract_strided_slice %28 {offsets = [0, 0], sizes = [1, 8], strides = [1, 1]} : vector<3x8xf32> to vector<1x8xf32>
    %33 = vector.broadcast %32 : vector<1x8xf32> to vector<8x8xf32>
    %34 = arith.addf %31, %33 : vector<8x8xf32>
    %c1 = arith.constant 1 : index
    %c0_17 = arith.constant 0 : index
    %c0_18 = arith.constant 0 : index
    %35 = vector.load %arg2[%c1, %c0_17, %c0_18] : memref<24x32x8xf32, #tpu.memory_space<vmem>>, vector<1x32x8xf32>
    %36 = vector.shape_cast %35 : vector<1x32x8xf32> to vector<32x8xf32>
    %cst_19 = arith.constant dense<0.000000e+00> : vector<8x8xf32>
    %37 = tpu.matmul %25, %36, %cst_19 {dimension_numbers = #tpu.dot_dimension_numbers<[1], [0], [0], [1], [0, 0, 1, 1], [], []>} : vector<8x32xf32>, vector<32x8xf32>, vector<8x8xf32> -> vector<8x8xf32>
    %38 = vector.extract_strided_slice %28 {offsets = [1, 0], sizes = [1, 8], strides = [1, 1]} : vector<3x8xf32> to vector<1x8xf32>
    %39 = vector.broadcast %38 : vector<1x8xf32> to vector<8x8xf32>
    %40 = arith.addf %37, %39 : vector<8x8xf32>
    %c2 = arith.constant 2 : index
    %c0_20 = arith.constant 0 : index
    %c0_21 = arith.constant 0 : index
    %41 = vector.load %arg2[%c2, %c0_20, %c0_21] : memref<24x32x8xf32, #tpu.memory_space<vmem>>, vector<1x32x8xf32>
    %42 = vector.shape_cast %41 : vector<1x32x8xf32> to vector<32x8xf32>
    %cst_22 = arith.constant dense<0.000000e+00> : vector<8x8xf32>
    %43 = tpu.matmul %25, %42, %cst_22 {dimension_numbers = #tpu.dot_dimension_numbers<[1], [0], [0], [1], [0, 0, 1, 1], [], []>} : vector<8x32xf32>, vector<32x8xf32>, vector<8x8xf32> -> vector<8x8xf32>
    %44 = vector.extract_strided_slice %28 {offsets = [2, 0], sizes = [1, 8], strides = [1, 1]} : vector<3x8xf32> to vector<1x8xf32>
    %45 = vector.broadcast %44 : vector<1x8xf32> to vector<8x8xf32>
    %46 = arith.addf %43, %45 : vector<8x8xf32>
    %cst_23 = arith.constant dense<0.000000e+00> : vector<8x8xf32>
    %47 = tpu.matmul %34, %40, %cst_23 {dimension_numbers = #tpu.dot_dimension_numbers<[1], [1], [0], [0], [0, 0, 1, 0], [], []>} : vector<8x8xf32>, vector<8x8xf32>, vector<8x8xf32> -> vector<8x8xf32>
    %cst_24 = arith.constant 0.353553385 : f32
    %48 = vector.broadcast %cst_24 : f32 to vector<8x8xf32>
    %49 = arith.mulf %47, %48 : vector<8x8xf32>
    %cst_25 = arith.constant dense<0xFF800000> : vector<8xf32>
    %50 = vector.multi_reduction <maximumf>, %49, %cst_25 [1] : vector<8x8xf32> to vector<8xf32>
    %51 = vector.shape_cast %50 : vector<8xf32> to vector<8x1xf32>
    %52 = vector.broadcast %51 : vector<8x1xf32> to vector<8x8xf32>
    %53 = arith.subf %49, %52 : vector<8x8xf32>
    %54 = math.exp %53 : vector<8x8xf32>
    %cst_26 = arith.constant dense<0.000000e+00> : vector<8xf32>
    %55 = vector.multi_reduction <add>, %54, %cst_26 [1] : vector<8x8xf32> to vector<8xf32>
    %56 = vector.shape_cast %55 : vector<8xf32> to vector<8x1xf32>
    %57 = vector.broadcast %56 : vector<8x1xf32> to vector<8x8xf32>
    %58 = arith.divf %54, %57 : vector<8x8xf32>
    %cst_27 = arith.constant dense<0.000000e+00> : vector<8x8xf32>
    %59 = tpu.matmul %58, %46, %cst_27 {dimension_numbers = #tpu.dot_dimension_numbers<[1], [0], [0], [1], [0, 0, 1, 1], [], []>} : vector<8x8xf32>, vector<8x8xf32>, vector<8x8xf32> -> vector<8x8xf32>
    %c0_28 = arith.constant 0 : index
    %c0_29 = arith.constant 0 : index
    %c0_30 = arith.constant 0 : index
    %60 = vector.load %arg4[%c0_28, %c0_29, %c0_30] : memref<8x8x32xf32, #tpu.memory_space<vmem>>, vector<1x8x32xf32>
    %61 = vector.shape_cast %60 : vector<1x8x32xf32> to vector<8x32xf32>
    %cst_31 = arith.constant dense<0.000000e+00> : vector<8x32xf32>
    %62 = tpu.matmul %59, %61, %cst_31 {dimension_numbers = #tpu.dot_dimension_numbers<[1], [0], [0], [1], [0, 0, 1, 1], [], []>} : vector<8x8xf32>, vector<8x32xf32>, vector<8x32xf32> -> vector<8x32xf32>
    %63 = arith.addf %26, %62 : vector<8x32xf32>
    %c1_32 = arith.constant 1 : index
    %c0_33 = arith.constant 0 : index
    %c0_34 = arith.constant 0 : index
    %64 = vector.load %arg3[%c1_32, %c0_33, %c0_34] : memref<8x3x8xf32, #tpu.memory_space<vmem>>, vector<1x3x8xf32>
    %65 = vector.shape_cast %64 : vector<1x3x8xf32> to vector<3x8xf32>
    %c3 = arith.constant 3 : index
    %c0_35 = arith.constant 0 : index
    %c0_36 = arith.constant 0 : index
    %66 = vector.load %arg2[%c3, %c0_35, %c0_36] : memref<24x32x8xf32, #tpu.memory_space<vmem>>, vector<1x32x8xf32>
    %67 = vector.shape_cast %66 : vector<1x32x8xf32> to vector<32x8xf32>
    %cst_37 = arith.constant dense<0.000000e+00> : vector<8x8xf32>
    %68 = tpu.matmul %25, %67, %cst_37 {dimension_numbers = #tpu.dot_dimension_numbers<[1], [0], [0], [1], [0, 0, 1, 1], [], []>} : vector<8x32xf32>, vector<32x8xf32>, vector<8x8xf32> -> vector<8x8xf32>
    %69 = vector.extract_strided_slice %65 {offsets = [0, 0], sizes = [1, 8], strides = [1, 1]} : vector<3x8xf32> to vector<1x8xf32>
    %70 = vector.broadcast %69 : vector<1x8xf32> to vector<8x8xf32>
    %71 = arith.addf %68, %70 : vector<8x8xf32>
    %c4 = arith.constant 4 : index
    %c0_38 = arith.constant 0 : index
    %c0_39 = arith.constant 0 : index
    %72 = vector.load %arg2[%c4, %c0_38, %c0_39] : memref<24x32x8xf32, #tpu.memory_space<vmem>>, vector<1x32x8xf32>
    %73 = vector.shape_cast %72 : vector<1x32x8xf32> to vector<32x8xf32>
    %cst_40 = arith.constant dense<0.000000e+00> : vector<8x8xf32>
    %74 = tpu.matmul %25, %73, %cst_40 {dimension_numbers = #tpu.dot_dimension_numbers<[1], [0], [0], [1], [0, 0, 1, 1], [], []>} : vector<8x32xf32>, vector<32x8xf32>, vector<8x8xf32> -> vector<8x8xf32>
    %75 = vector.extract_strided_slice %65 {offsets = [1, 0], sizes = [1, 8], strides = [1, 1]} : vector<3x8xf32> to vector<1x8xf32>
    %76 = vector.broadcast %75 : vector<1x8xf32> to vector<8x8xf32>
    %77 = arith.addf %74, %76 : vector<8x8xf32>
    %c5 = arith.constant 5 : index
    %c0_41 = arith.constant 0 : index
    %c0_42 = arith.constant 0 : index
    %78 = vector.load %arg2[%c5, %c0_41, %c0_42] : memref<24x32x8xf32, #tpu.memory_space<vmem>>, vector<1x32x8xf32>
    %79 = vector.shape_cast %78 : vector<1x32x8xf32> to vector<32x8xf32>
    %cst_43 = arith.constant dense<0.000000e+00> : vector<8x8xf32>
    %80 = tpu.matmul %25, %79, %cst_43 {dimension_numbers = #tpu.dot_dimension_numbers<[1], [0], [0], [1], [0, 0, 1, 1], [], []>} : vector<8x32xf32>, vector<32x8xf32>, vector<8x8xf32> -> vector<8x8xf32>
    %81 = vector.extract_strided_slice %65 {offsets = [2, 0], sizes = [1, 8], strides = [1, 1]} : vector<3x8xf32> to vector<1x8xf32>
    %82 = vector.broadcast %81 : vector<1x8xf32> to vector<8x8xf32>
    %83 = arith.addf %80, %82 : vector<8x8xf32>
    %cst_44 = arith.constant dense<0.000000e+00> : vector<8x8xf32>
    %84 = tpu.matmul %71, %77, %cst_44 {dimension_numbers = #tpu.dot_dimension_numbers<[1], [1], [0], [0], [0, 0, 1, 0], [], []>} : vector<8x8xf32>, vector<8x8xf32>, vector<8x8xf32> -> vector<8x8xf32>
    %cst_45 = arith.constant 0.353553385 : f32
    %85 = vector.broadcast %cst_45 : f32 to vector<8x8xf32>
    %86 = arith.mulf %84, %85 : vector<8x8xf32>
    %cst_46 = arith.constant dense<0xFF800000> : vector<8xf32>
    %87 = vector.multi_reduction <maximumf>, %86, %cst_46 [1] : vector<8x8xf32> to vector<8xf32>
    %88 = vector.shape_cast %87 : vector<8xf32> to vector<8x1xf32>
    %89 = vector.broadcast %88 : vector<8x1xf32> to vector<8x8xf32>
    %90 = arith.subf %86, %89 : vector<8x8xf32>
    %91 = math.exp %90 : vector<8x8xf32>
    %cst_47 = arith.constant dense<0.000000e+00> : vector<8xf32>
    %92 = vector.multi_reduction <add>, %91, %cst_47 [1] : vector<8x8xf32> to vector<8xf32>
    %93 = vector.shape_cast %92 : vector<8xf32> to vector<8x1xf32>
    %94 = vector.broadcast %93 : vector<8x1xf32> to vector<8x8xf32>
    %95 = arith.divf %91, %94 : vector<8x8xf32>
    %cst_48 = arith.constant dense<0.000000e+00> : vector<8x8xf32>
    %96 = tpu.matmul %95, %83, %cst_48 {dimension_numbers = #tpu.dot_dimension_numbers<[1], [0], [0], [1], [0, 0, 1, 1], [], []>} : vector<8x8xf32>, vector<8x8xf32>, vector<8x8xf32> -> vector<8x8xf32>
    %c1_49 = arith.constant 1 : index
    %c0_50 = arith.constant 0 : index
    %c0_51 = arith.constant 0 : index
    %97 = vector.load %arg4[%c1_49, %c0_50, %c0_51] : memref<8x8x32xf32, #tpu.memory_space<vmem>>, vector<1x8x32xf32>
    %98 = vector.shape_cast %97 : vector<1x8x32xf32> to vector<8x32xf32>
    %cst_52 = arith.constant dense<0.000000e+00> : vector<8x32xf32>
    %99 = tpu.matmul %96, %98, %cst_52 {dimension_numbers = #tpu.dot_dimension_numbers<[1], [0], [0], [1], [0, 0, 1, 1], [], []>} : vector<8x8xf32>, vector<8x32xf32>, vector<8x32xf32> -> vector<8x32xf32>
    %100 = arith.addf %63, %99 : vector<8x32xf32>
    %c2_53 = arith.constant 2 : index
    %c0_54 = arith.constant 0 : index
    %c0_55 = arith.constant 0 : index
    %101 = vector.load %arg3[%c2_53, %c0_54, %c0_55] : memref<8x3x8xf32, #tpu.memory_space<vmem>>, vector<1x3x8xf32>
    %102 = vector.shape_cast %101 : vector<1x3x8xf32> to vector<3x8xf32>
    %c6 = arith.constant 6 : index
    %c0_56 = arith.constant 0 : index
    %c0_57 = arith.constant 0 : index
    %103 = vector.load %arg2[%c6, %c0_56, %c0_57] : memref<24x32x8xf32, #tpu.memory_space<vmem>>, vector<1x32x8xf32>
    %104 = vector.shape_cast %103 : vector<1x32x8xf32> to vector<32x8xf32>
    %cst_58 = arith.constant dense<0.000000e+00> : vector<8x8xf32>
    %105 = tpu.matmul %25, %104, %cst_58 {dimension_numbers = #tpu.dot_dimension_numbers<[1], [0], [0], [1], [0, 0, 1, 1], [], []>} : vector<8x32xf32>, vector<32x8xf32>, vector<8x8xf32> -> vector<8x8xf32>
    %106 = vector.extract_strided_slice %102 {offsets = [0, 0], sizes = [1, 8], strides = [1, 1]} : vector<3x8xf32> to vector<1x8xf32>
    %107 = vector.broadcast %106 : vector<1x8xf32> to vector<8x8xf32>
    %108 = arith.addf %105, %107 : vector<8x8xf32>
    %c7 = arith.constant 7 : index
    %c0_59 = arith.constant 0 : index
    %c0_60 = arith.constant 0 : index
    %109 = vector.load %arg2[%c7, %c0_59, %c0_60] : memref<24x32x8xf32, #tpu.memory_space<vmem>>, vector<1x32x8xf32>
    %110 = vector.shape_cast %109 : vector<1x32x8xf32> to vector<32x8xf32>
    %cst_61 = arith.constant dense<0.000000e+00> : vector<8x8xf32>
    %111 = tpu.matmul %25, %110, %cst_61 {dimension_numbers = #tpu.dot_dimension_numbers<[1], [0], [0], [1], [0, 0, 1, 1], [], []>} : vector<8x32xf32>, vector<32x8xf32>, vector<8x8xf32> -> vector<8x8xf32>
    %112 = vector.extract_strided_slice %102 {offsets = [1, 0], sizes = [1, 8], strides = [1, 1]} : vector<3x8xf32> to vector<1x8xf32>
    %113 = vector.broadcast %112 : vector<1x8xf32> to vector<8x8xf32>
    %114 = arith.addf %111, %113 : vector<8x8xf32>
    %c8 = arith.constant 8 : index
    %c0_62 = arith.constant 0 : index
    %c0_63 = arith.constant 0 : index
    %115 = vector.load %arg2[%c8, %c0_62, %c0_63] : memref<24x32x8xf32, #tpu.memory_space<vmem>>, vector<1x32x8xf32>
    %116 = vector.shape_cast %115 : vector<1x32x8xf32> to vector<32x8xf32>
    %cst_64 = arith.constant dense<0.000000e+00> : vector<8x8xf32>
    %117 = tpu.matmul %25, %116, %cst_64 {dimension_numbers = #tpu.dot_dimension_numbers<[1], [0], [0], [1], [0, 0, 1, 1], [], []>} : vector<8x32xf32>, vector<32x8xf32>, vector<8x8xf32> -> vector<8x8xf32>
    %118 = vector.extract_strided_slice %102 {offsets = [2, 0], sizes = [1, 8], strides = [1, 1]} : vector<3x8xf32> to vector<1x8xf32>
    %119 = vector.broadcast %118 : vector<1x8xf32> to vector<8x8xf32>
    %120 = arith.addf %117, %119 : vector<8x8xf32>
    %cst_65 = arith.constant dense<0.000000e+00> : vector<8x8xf32>
    %121 = tpu.matmul %108, %114, %cst_65 {dimension_numbers = #tpu.dot_dimension_numbers<[1], [1], [0], [0], [0, 0, 1, 0], [], []>} : vector<8x8xf32>, vector<8x8xf32>, vector<8x8xf32> -> vector<8x8xf32>
    %cst_66 = arith.constant 0.353553385 : f32
    %122 = vector.broadcast %cst_66 : f32 to vector<8x8xf32>
    %123 = arith.mulf %121, %122 : vector<8x8xf32>
    %cst_67 = arith.constant dense<0xFF800000> : vector<8xf32>
    %124 = vector.multi_reduction <maximumf>, %123, %cst_67 [1] : vector<8x8xf32> to vector<8xf32>
    %125 = vector.shape_cast %124 : vector<8xf32> to vector<8x1xf32>
    %126 = vector.broadcast %125 : vector<8x1xf32> to vector<8x8xf32>
    %127 = arith.subf %123, %126 : vector<8x8xf32>
    %128 = math.exp %127 : vector<8x8xf32>
    %cst_68 = arith.constant dense<0.000000e+00> : vector<8xf32>
    %129 = vector.multi_reduction <add>, %128, %cst_68 [1] : vector<8x8xf32> to vector<8xf32>
    %130 = vector.shape_cast %129 : vector<8xf32> to vector<8x1xf32>
    %131 = vector.broadcast %130 : vector<8x1xf32> to vector<8x8xf32>
    %132 = arith.divf %128, %131 : vector<8x8xf32>
    %cst_69 = arith.constant dense<0.000000e+00> : vector<8x8xf32>
    %133 = tpu.matmul %132, %120, %cst_69 {dimension_numbers = #tpu.dot_dimension_numbers<[1], [0], [0], [1], [0, 0, 1, 1], [], []>} : vector<8x8xf32>, vector<8x8xf32>, vector<8x8xf32> -> vector<8x8xf32>
    %c2_70 = arith.constant 2 : index
    %c0_71 = arith.constant 0 : index
    %c0_72 = arith.constant 0 : index
    %134 = vector.load %arg4[%c2_70, %c0_71, %c0_72] : memref<8x8x32xf32, #tpu.memory_space<vmem>>, vector<1x8x32xf32>
    %135 = vector.shape_cast %134 : vector<1x8x32xf32> to vector<8x32xf32>
    %cst_73 = arith.constant dense<0.000000e+00> : vector<8x32xf32>
    %136 = tpu.matmul %133, %135, %cst_73 {dimension_numbers = #tpu.dot_dimension_numbers<[1], [0], [0], [1], [0, 0, 1, 1], [], []>} : vector<8x8xf32>, vector<8x32xf32>, vector<8x32xf32> -> vector<8x32xf32>
    %137 = arith.addf %100, %136 : vector<8x32xf32>
    %c3_74 = arith.constant 3 : index
    %c0_75 = arith.constant 0 : index
    %c0_76 = arith.constant 0 : index
    %138 = vector.load %arg3[%c3_74, %c0_75, %c0_76] : memref<8x3x8xf32, #tpu.memory_space<vmem>>, vector<1x3x8xf32>
    %139 = vector.shape_cast %138 : vector<1x3x8xf32> to vector<3x8xf32>
    %c9 = arith.constant 9 : index
    %c0_77 = arith.constant 0 : index
    %c0_78 = arith.constant 0 : index
    %140 = vector.load %arg2[%c9, %c0_77, %c0_78] : memref<24x32x8xf32, #tpu.memory_space<vmem>>, vector<1x32x8xf32>
    %141 = vector.shape_cast %140 : vector<1x32x8xf32> to vector<32x8xf32>
    %cst_79 = arith.constant dense<0.000000e+00> : vector<8x8xf32>
    %142 = tpu.matmul %25, %141, %cst_79 {dimension_numbers = #tpu.dot_dimension_numbers<[1], [0], [0], [1], [0, 0, 1, 1], [], []>} : vector<8x32xf32>, vector<32x8xf32>, vector<8x8xf32> -> vector<8x8xf32>
    %143 = vector.extract_strided_slice %139 {offsets = [0, 0], sizes = [1, 8], strides = [1, 1]} : vector<3x8xf32> to vector<1x8xf32>
    %144 = vector.broadcast %143 : vector<1x8xf32> to vector<8x8xf32>
    %145 = arith.addf %142, %144 : vector<8x8xf32>
    %c10 = arith.constant 10 : index
    %c0_80 = arith.constant 0 : index
    %c0_81 = arith.constant 0 : index
    %146 = vector.load %arg2[%c10, %c0_80, %c0_81] : memref<24x32x8xf32, #tpu.memory_space<vmem>>, vector<1x32x8xf32>
    %147 = vector.shape_cast %146 : vector<1x32x8xf32> to vector<32x8xf32>
    %cst_82 = arith.constant dense<0.000000e+00> : vector<8x8xf32>
    %148 = tpu.matmul %25, %147, %cst_82 {dimension_numbers = #tpu.dot_dimension_numbers<[1], [0], [0], [1], [0, 0, 1, 1], [], []>} : vector<8x32xf32>, vector<32x8xf32>, vector<8x8xf32> -> vector<8x8xf32>
    %149 = vector.extract_strided_slice %139 {offsets = [1, 0], sizes = [1, 8], strides = [1, 1]} : vector<3x8xf32> to vector<1x8xf32>
    %150 = vector.broadcast %149 : vector<1x8xf32> to vector<8x8xf32>
    %151 = arith.addf %148, %150 : vector<8x8xf32>
    %c11 = arith.constant 11 : index
    %c0_83 = arith.constant 0 : index
    %c0_84 = arith.constant 0 : index
    %152 = vector.load %arg2[%c11, %c0_83, %c0_84] : memref<24x32x8xf32, #tpu.memory_space<vmem>>, vector<1x32x8xf32>
    %153 = vector.shape_cast %152 : vector<1x32x8xf32> to vector<32x8xf32>
    %cst_85 = arith.constant dense<0.000000e+00> : vector<8x8xf32>
    %154 = tpu.matmul %25, %153, %cst_85 {dimension_numbers = #tpu.dot_dimension_numbers<[1], [0], [0], [1], [0, 0, 1, 1], [], []>} : vector<8x32xf32>, vector<32x8xf32>, vector<8x8xf32> -> vector<8x8xf32>
    %155 = vector.extract_strided_slice %139 {offsets = [2, 0], sizes = [1, 8], strides = [1, 1]} : vector<3x8xf32> to vector<1x8xf32>
    %156 = vector.broadcast %155 : vector<1x8xf32> to vector<8x8xf32>
    %157 = arith.addf %154, %156 : vector<8x8xf32>
    %cst_86 = arith.constant dense<0.000000e+00> : vector<8x8xf32>
    %158 = tpu.matmul %145, %151, %cst_86 {dimension_numbers = #tpu.dot_dimension_numbers<[1], [1], [0], [0], [0, 0, 1, 0], [], []>} : vector<8x8xf32>, vector<8x8xf32>, vector<8x8xf32> -> vector<8x8xf32>
    %cst_87 = arith.constant 0.353553385 : f32
    %159 = vector.broadcast %cst_87 : f32 to vector<8x8xf32>
    %160 = arith.mulf %158, %159 : vector<8x8xf32>
    %cst_88 = arith.constant dense<0xFF800000> : vector<8xf32>
    %161 = vector.multi_reduction <maximumf>, %160, %cst_88 [1] : vector<8x8xf32> to vector<8xf32>
    %162 = vector.shape_cast %161 : vector<8xf32> to vector<8x1xf32>
    %163 = vector.broadcast %162 : vector<8x1xf32> to vector<8x8xf32>
    %164 = arith.subf %160, %163 : vector<8x8xf32>
    %165 = math.exp %164 : vector<8x8xf32>
    %cst_89 = arith.constant dense<0.000000e+00> : vector<8xf32>
    %166 = vector.multi_reduction <add>, %165, %cst_89 [1] : vector<8x8xf32> to vector<8xf32>
    %167 = vector.shape_cast %166 : vector<8xf32> to vector<8x1xf32>
    %168 = vector.broadcast %167 : vector<8x1xf32> to vector<8x8xf32>
    %169 = arith.divf %165, %168 : vector<8x8xf32>
    %cst_90 = arith.constant dense<0.000000e+00> : vector<8x8xf32>
    %170 = tpu.matmul %169, %157, %cst_90 {dimension_numbers = #tpu.dot_dimension_numbers<[1], [0], [0], [1], [0, 0, 1, 1], [], []>} : vector<8x8xf32>, vector<8x8xf32>, vector<8x8xf32> -> vector<8x8xf32>
    %c3_91 = arith.constant 3 : index
    %c0_92 = arith.constant 0 : index
    %c0_93 = arith.constant 0 : index
    %171 = vector.load %arg4[%c3_91, %c0_92, %c0_93] : memref<8x8x32xf32, #tpu.memory_space<vmem>>, vector<1x8x32xf32>
    %172 = vector.shape_cast %171 : vector<1x8x32xf32> to vector<8x32xf32>
    %cst_94 = arith.constant dense<0.000000e+00> : vector<8x32xf32>
    %173 = tpu.matmul %170, %172, %cst_94 {dimension_numbers = #tpu.dot_dimension_numbers<[1], [0], [0], [1], [0, 0, 1, 1], [], []>} : vector<8x8xf32>, vector<8x32xf32>, vector<8x32xf32> -> vector<8x32xf32>
    %174 = arith.addf %137, %173 : vector<8x32xf32>
    %175 = arith.addf %1, %174 : vector<8x32xf32>
    %176 = vector.extract_strided_slice %3 {offsets = [2, 0], sizes = [1, 32], strides = [1, 1]} : vector<6x32xf32> to vector<1x32xf32>
    %177 = vector.broadcast %176 : vector<1x32xf32> to vector<8x32xf32>
    %178 = arith.addf %175, %177 : vector<8x32xf32>
    %179 = vector.extract_strided_slice %3 {offsets = [3, 0], sizes = [1, 32], strides = [1, 1]} : vector<6x32xf32> to vector<1x32xf32>
    %180 = vector.extract_strided_slice %3 {offsets = [4, 0], sizes = [1, 32], strides = [1, 1]} : vector<6x32xf32> to vector<1x32xf32>
    %cst_95 = arith.constant dense<0.000000e+00> : vector<8xf32>
    %181 = vector.multi_reduction <add>, %178, %cst_95 [1] : vector<8x32xf32> to vector<8xf32>
    %182 = vector.shape_cast %181 : vector<8xf32> to vector<8x1xf32>
    %cst_96 = arith.constant 3.200000e+01 : f32
    %183 = vector.broadcast %cst_96 : f32 to vector<8x1xf32>
    %184 = arith.divf %182, %183 : vector<8x1xf32>
    %185 = vector.broadcast %184 : vector<8x1xf32> to vector<8x32xf32>
    %186 = arith.subf %178, %185 : vector<8x32xf32>
    %187 = arith.mulf %186, %186 : vector<8x32xf32>
    %cst_97 = arith.constant dense<0.000000e+00> : vector<8xf32>
    %188 = vector.multi_reduction <add>, %187, %cst_97 [1] : vector<8x32xf32> to vector<8xf32>
    %189 = vector.shape_cast %188 : vector<8xf32> to vector<8x1xf32>
    %cst_98 = arith.constant 3.200000e+01 : f32
    %190 = vector.broadcast %cst_98 : f32 to vector<8x1xf32>
    %191 = arith.divf %189, %190 : vector<8x1xf32>
    %cst_99 = arith.constant 9.99999974E-6 : f32
    %192 = vector.broadcast %cst_99 : f32 to vector<8x1xf32>
    %193 = arith.addf %191, %192 : vector<8x1xf32>
    %194 = math.rsqrt %193 : vector<8x1xf32>
    %195 = vector.broadcast %194 : vector<8x1xf32> to vector<8x32xf32>
    %196 = arith.mulf %186, %195 : vector<8x32xf32>
    %197 = vector.broadcast %179 : vector<1x32xf32> to vector<8x32xf32>
    %198 = arith.mulf %196, %197 : vector<8x32xf32>
    %199 = vector.broadcast %180 : vector<1x32xf32> to vector<8x32xf32>
    %200 = arith.addf %198, %199 : vector<8x32xf32>
    %c0_100 = arith.constant 0 : index
    %c0_101 = arith.constant 0 : index
    %c0_102 = arith.constant 0 : index
    %201 = vector.load %arg5[%c0_100, %c0_101, %c0_102] : memref<2x32x128xf32, #tpu.memory_space<vmem>>, vector<1x32x128xf32>
    %202 = vector.shape_cast %201 : vector<1x32x128xf32> to vector<32x128xf32>
    %cst_103 = arith.constant dense<0.000000e+00> : vector<8x128xf32>
    %203 = tpu.matmul %200, %202, %cst_103 {dimension_numbers = #tpu.dot_dimension_numbers<[1], [0], [0], [1], [0, 0, 1, 1], [], []>} : vector<8x32xf32>, vector<32x128xf32>, vector<8x128xf32> -> vector<8x128xf32>
    %c0_104 = arith.constant 0 : index
    %c0_105 = arith.constant 0 : index
    %c0_106 = arith.constant 0 : index
    %204 = vector.load %arg6[%c0_104, %c0_105, %c0_106] : memref<2x1x128xf32, #tpu.memory_space<vmem>>, vector<1x1x128xf32>
    %205 = vector.shape_cast %204 : vector<1x1x128xf32> to vector<1x128xf32>
    %206 = vector.broadcast %205 : vector<1x128xf32> to vector<8x128xf32>
    %207 = arith.addf %203, %206 : vector<8x128xf32>
    %208 = arith.mulf %207, %207 : vector<8x128xf32>
    %209 = arith.mulf %207, %208 : vector<8x128xf32>
    %cst_107 = arith.constant 4.471500e-02 : f32
    %210 = vector.broadcast %cst_107 : f32 to vector<8x128xf32>
    %211 = arith.mulf %210, %209 : vector<8x128xf32>
    %212 = arith.addf %207, %211 : vector<8x128xf32>
    %cst_108 = arith.constant 0.797884583 : f32
    %213 = vector.broadcast %cst_108 : f32 to vector<8x128xf32>
    %214 = arith.mulf %213, %212 : vector<8x128xf32>
    %215 = math.tanh %214 : vector<8x128xf32>
    %cst_109 = arith.constant 1.000000e+00 : f32
    %216 = vector.broadcast %cst_109 : f32 to vector<8x128xf32>
    %217 = arith.addf %216, %215 : vector<8x128xf32>
    %cst_110 = arith.constant 5.000000e-01 : f32
    %218 = vector.broadcast %cst_110 : f32 to vector<8x128xf32>
    %219 = arith.mulf %218, %217 : vector<8x128xf32>
    %220 = arith.mulf %207, %219 : vector<8x128xf32>
    %c0_111 = arith.constant 0 : index
    %c0_112 = arith.constant 0 : index
    %c0_113 = arith.constant 0 : index
    %221 = vector.load %arg7[%c0_111, %c0_112, %c0_113] : memref<2x128x32xf32, #tpu.memory_space<vmem>>, vector<1x128x32xf32>
    %222 = vector.shape_cast %221 : vector<1x128x32xf32> to vector<128x32xf32>
    %cst_114 = arith.constant dense<0.000000e+00> : vector<8x32xf32>
    %223 = tpu.matmul %220, %222, %cst_114 {dimension_numbers = #tpu.dot_dimension_numbers<[1], [0], [0], [1], [0, 0, 1, 1], [], []>} : vector<8x128xf32>, vector<128x32xf32>, vector<8x32xf32> -> vector<8x32xf32>
    %224 = arith.addf %178, %223 : vector<8x32xf32>
    %225 = vector.extract_strided_slice %3 {offsets = [5, 0], sizes = [1, 32], strides = [1, 1]} : vector<6x32xf32> to vector<1x32xf32>
    %226 = vector.broadcast %225 : vector<1x32xf32> to vector<8x32xf32>
    %227 = arith.addf %224, %226 : vector<8x32xf32>
    %c1_115 = arith.constant 1 : index
    %c0_116 = arith.constant 0 : index
    %c0_117 = arith.constant 0 : index
    %228 = vector.load %arg8[%c1_115, %c0_116, %c0_117] : memref<2x6x32xf32, #tpu.memory_space<vmem>>, vector<1x6x32xf32>
    %229 = vector.shape_cast %228 : vector<1x6x32xf32> to vector<6x32xf32>
    %230 = vector.extract_strided_slice %229 {offsets = [0, 0], sizes = [1, 32], strides = [1, 1]} : vector<6x32xf32> to vector<1x32xf32>
    %231 = vector.extract_strided_slice %229 {offsets = [1, 0], sizes = [1, 32], strides = [1, 1]} : vector<6x32xf32> to vector<1x32xf32>
    %cst_118 = arith.constant dense<0.000000e+00> : vector<8xf32>
    %232 = vector.multi_reduction <add>, %227, %cst_118 [1] : vector<8x32xf32> to vector<8xf32>
    %233 = vector.shape_cast %232 : vector<8xf32> to vector<8x1xf32>
    %cst_119 = arith.constant 3.200000e+01 : f32
    %234 = vector.broadcast %cst_119 : f32 to vector<8x1xf32>
    %235 = arith.divf %233, %234 : vector<8x1xf32>
    %236 = vector.broadcast %235 : vector<8x1xf32> to vector<8x32xf32>
    %237 = arith.subf %227, %236 : vector<8x32xf32>
    %238 = arith.mulf %237, %237 : vector<8x32xf32>
    %cst_120 = arith.constant dense<0.000000e+00> : vector<8xf32>
    %239 = vector.multi_reduction <add>, %238, %cst_120 [1] : vector<8x32xf32> to vector<8xf32>
    %240 = vector.shape_cast %239 : vector<8xf32> to vector<8x1xf32>
    %cst_121 = arith.constant 3.200000e+01 : f32
    %241 = vector.broadcast %cst_121 : f32 to vector<8x1xf32>
    %242 = arith.divf %240, %241 : vector<8x1xf32>
    %cst_122 = arith.constant 9.99999974E-6 : f32
    %243 = vector.broadcast %cst_122 : f32 to vector<8x1xf32>
    %244 = arith.addf %242, %243 : vector<8x1xf32>
    %245 = math.rsqrt %244 : vector<8x1xf32>
    %246 = vector.broadcast %245 : vector<8x1xf32> to vector<8x32xf32>
    %247 = arith.mulf %237, %246 : vector<8x32xf32>
    %248 = vector.broadcast %230 : vector<1x32xf32> to vector<8x32xf32>
    %249 = arith.mulf %247, %248 : vector<8x32xf32>
    %250 = vector.broadcast %231 : vector<1x32xf32> to vector<8x32xf32>
    %251 = arith.addf %249, %250 : vector<8x32xf32>
    %cst_123 = arith.constant 0.000000e+00 : f32
    %252 = vector.broadcast %cst_123 : f32 to vector<8x32xf32>
    %c4_124 = arith.constant 4 : index
    %c0_125 = arith.constant 0 : index
    %c0_126 = arith.constant 0 : index
    %253 = vector.load %arg3[%c4_124, %c0_125, %c0_126] : memref<8x3x8xf32, #tpu.memory_space<vmem>>, vector<1x3x8xf32>
    %254 = vector.shape_cast %253 : vector<1x3x8xf32> to vector<3x8xf32>
    %c12 = arith.constant 12 : index
    %c0_127 = arith.constant 0 : index
    %c0_128 = arith.constant 0 : index
    %255 = vector.load %arg2[%c12, %c0_127, %c0_128] : memref<24x32x8xf32, #tpu.memory_space<vmem>>, vector<1x32x8xf32>
    %256 = vector.shape_cast %255 : vector<1x32x8xf32> to vector<32x8xf32>
    %cst_129 = arith.constant dense<0.000000e+00> : vector<8x8xf32>
    %257 = tpu.matmul %251, %256, %cst_129 {dimension_numbers = #tpu.dot_dimension_numbers<[1], [0], [0], [1], [0, 0, 1, 1], [], []>} : vector<8x32xf32>, vector<32x8xf32>, vector<8x8xf32> -> vector<8x8xf32>
    %258 = vector.extract_strided_slice %254 {offsets = [0, 0], sizes = [1, 8], strides = [1, 1]} : vector<3x8xf32> to vector<1x8xf32>
    %259 = vector.broadcast %258 : vector<1x8xf32> to vector<8x8xf32>
    %260 = arith.addf %257, %259 : vector<8x8xf32>
    %c13 = arith.constant 13 : index
    %c0_130 = arith.constant 0 : index
    %c0_131 = arith.constant 0 : index
    %261 = vector.load %arg2[%c13, %c0_130, %c0_131] : memref<24x32x8xf32, #tpu.memory_space<vmem>>, vector<1x32x8xf32>
    %262 = vector.shape_cast %261 : vector<1x32x8xf32> to vector<32x8xf32>
    %cst_132 = arith.constant dense<0.000000e+00> : vector<8x8xf32>
    %263 = tpu.matmul %251, %262, %cst_132 {dimension_numbers = #tpu.dot_dimension_numbers<[1], [0], [0], [1], [0, 0, 1, 1], [], []>} : vector<8x32xf32>, vector<32x8xf32>, vector<8x8xf32> -> vector<8x8xf32>
    %264 = vector.extract_strided_slice %254 {offsets = [1, 0], sizes = [1, 8], strides = [1, 1]} : vector<3x8xf32> to vector<1x8xf32>
    %265 = vector.broadcast %264 : vector<1x8xf32> to vector<8x8xf32>
    %266 = arith.addf %263, %265 : vector<8x8xf32>
    %c14 = arith.constant 14 : index
    %c0_133 = arith.constant 0 : index
    %c0_134 = arith.constant 0 : index
    %267 = vector.load %arg2[%c14, %c0_133, %c0_134] : memref<24x32x8xf32, #tpu.memory_space<vmem>>, vector<1x32x8xf32>
    %268 = vector.shape_cast %267 : vector<1x32x8xf32> to vector<32x8xf32>
    %cst_135 = arith.constant dense<0.000000e+00> : vector<8x8xf32>
    %269 = tpu.matmul %251, %268, %cst_135 {dimension_numbers = #tpu.dot_dimension_numbers<[1], [0], [0], [1], [0, 0, 1, 1], [], []>} : vector<8x32xf32>, vector<32x8xf32>, vector<8x8xf32> -> vector<8x8xf32>
    %270 = vector.extract_strided_slice %254 {offsets = [2, 0], sizes = [1, 8], strides = [1, 1]} : vector<3x8xf32> to vector<1x8xf32>
    %271 = vector.broadcast %270 : vector<1x8xf32> to vector<8x8xf32>
    %272 = arith.addf %269, %271 : vector<8x8xf32>
    %cst_136 = arith.constant dense<0.000000e+00> : vector<8x8xf32>
    %273 = tpu.matmul %260, %266, %cst_136 {dimension_numbers = #tpu.dot_dimension_numbers<[1], [1], [0], [0], [0, 0, 1, 0], [], []>} : vector<8x8xf32>, vector<8x8xf32>, vector<8x8xf32> -> vector<8x8xf32>
    %cst_137 = arith.constant 0.353553385 : f32
    %274 = vector.broadcast %cst_137 : f32 to vector<8x8xf32>
    %275 = arith.mulf %273, %274 : vector<8x8xf32>
    %cst_138 = arith.constant dense<0xFF800000> : vector<8xf32>
    %276 = vector.multi_reduction <maximumf>, %275, %cst_138 [1] : vector<8x8xf32> to vector<8xf32>
    %277 = vector.shape_cast %276 : vector<8xf32> to vector<8x1xf32>
    %278 = vector.broadcast %277 : vector<8x1xf32> to vector<8x8xf32>
    %279 = arith.subf %275, %278 : vector<8x8xf32>
    %280 = math.exp %279 : vector<8x8xf32>
    %cst_139 = arith.constant dense<0.000000e+00> : vector<8xf32>
    %281 = vector.multi_reduction <add>, %280, %cst_139 [1] : vector<8x8xf32> to vector<8xf32>
    %282 = vector.shape_cast %281 : vector<8xf32> to vector<8x1xf32>
    %283 = vector.broadcast %282 : vector<8x1xf32> to vector<8x8xf32>
    %284 = arith.divf %280, %283 : vector<8x8xf32>
    %cst_140 = arith.constant dense<0.000000e+00> : vector<8x8xf32>
    %285 = tpu.matmul %284, %272, %cst_140 {dimension_numbers = #tpu.dot_dimension_numbers<[1], [0], [0], [1], [0, 0, 1, 1], [], []>} : vector<8x8xf32>, vector<8x8xf32>, vector<8x8xf32> -> vector<8x8xf32>
    %c4_141 = arith.constant 4 : index
    %c0_142 = arith.constant 0 : index
    %c0_143 = arith.constant 0 : index
    %286 = vector.load %arg4[%c4_141, %c0_142, %c0_143] : memref<8x8x32xf32, #tpu.memory_space<vmem>>, vector<1x8x32xf32>
    %287 = vector.shape_cast %286 : vector<1x8x32xf32> to vector<8x32xf32>
    %cst_144 = arith.constant dense<0.000000e+00> : vector<8x32xf32>
    %288 = tpu.matmul %285, %287, %cst_144 {dimension_numbers = #tpu.dot_dimension_numbers<[1], [0], [0], [1], [0, 0, 1, 1], [], []>} : vector<8x8xf32>, vector<8x32xf32>, vector<8x32xf32> -> vector<8x32xf32>
    %289 = arith.addf %252, %288 : vector<8x32xf32>
    %c5_145 = arith.constant 5 : index
    %c0_146 = arith.constant 0 : index
    %c0_147 = arith.constant 0 : index
    %290 = vector.load %arg3[%c5_145, %c0_146, %c0_147] : memref<8x3x8xf32, #tpu.memory_space<vmem>>, vector<1x3x8xf32>
    %291 = vector.shape_cast %290 : vector<1x3x8xf32> to vector<3x8xf32>
    %c15 = arith.constant 15 : index
    %c0_148 = arith.constant 0 : index
    %c0_149 = arith.constant 0 : index
    %292 = vector.load %arg2[%c15, %c0_148, %c0_149] : memref<24x32x8xf32, #tpu.memory_space<vmem>>, vector<1x32x8xf32>
    %293 = vector.shape_cast %292 : vector<1x32x8xf32> to vector<32x8xf32>
    %cst_150 = arith.constant dense<0.000000e+00> : vector<8x8xf32>
    %294 = tpu.matmul %251, %293, %cst_150 {dimension_numbers = #tpu.dot_dimension_numbers<[1], [0], [0], [1], [0, 0, 1, 1], [], []>} : vector<8x32xf32>, vector<32x8xf32>, vector<8x8xf32> -> vector<8x8xf32>
    %295 = vector.extract_strided_slice %291 {offsets = [0, 0], sizes = [1, 8], strides = [1, 1]} : vector<3x8xf32> to vector<1x8xf32>
    %296 = vector.broadcast %295 : vector<1x8xf32> to vector<8x8xf32>
    %297 = arith.addf %294, %296 : vector<8x8xf32>
    %c16 = arith.constant 16 : index
    %c0_151 = arith.constant 0 : index
    %c0_152 = arith.constant 0 : index
    %298 = vector.load %arg2[%c16, %c0_151, %c0_152] : memref<24x32x8xf32, #tpu.memory_space<vmem>>, vector<1x32x8xf32>
    %299 = vector.shape_cast %298 : vector<1x32x8xf32> to vector<32x8xf32>
    %cst_153 = arith.constant dense<0.000000e+00> : vector<8x8xf32>
    %300 = tpu.matmul %251, %299, %cst_153 {dimension_numbers = #tpu.dot_dimension_numbers<[1], [0], [0], [1], [0, 0, 1, 1], [], []>} : vector<8x32xf32>, vector<32x8xf32>, vector<8x8xf32> -> vector<8x8xf32>
    %301 = vector.extract_strided_slice %291 {offsets = [1, 0], sizes = [1, 8], strides = [1, 1]} : vector<3x8xf32> to vector<1x8xf32>
    %302 = vector.broadcast %301 : vector<1x8xf32> to vector<8x8xf32>
    %303 = arith.addf %300, %302 : vector<8x8xf32>
    %c17 = arith.constant 17 : index
    %c0_154 = arith.constant 0 : index
    %c0_155 = arith.constant 0 : index
    %304 = vector.load %arg2[%c17, %c0_154, %c0_155] : memref<24x32x8xf32, #tpu.memory_space<vmem>>, vector<1x32x8xf32>
    %305 = vector.shape_cast %304 : vector<1x32x8xf32> to vector<32x8xf32>
    %cst_156 = arith.constant dense<0.000000e+00> : vector<8x8xf32>
    %306 = tpu.matmul %251, %305, %cst_156 {dimension_numbers = #tpu.dot_dimension_numbers<[1], [0], [0], [1], [0, 0, 1, 1], [], []>} : vector<8x32xf32>, vector<32x8xf32>, vector<8x8xf32> -> vector<8x8xf32>
    %307 = vector.extract_strided_slice %291 {offsets = [2, 0], sizes = [1, 8], strides = [1, 1]} : vector<3x8xf32> to vector<1x8xf32>
    %308 = vector.broadcast %307 : vector<1x8xf32> to vector<8x8xf32>
    %309 = arith.addf %306, %308 : vector<8x8xf32>
    %cst_157 = arith.constant dense<0.000000e+00> : vector<8x8xf32>
    %310 = tpu.matmul %297, %303, %cst_157 {dimension_numbers = #tpu.dot_dimension_numbers<[1], [1], [0], [0], [0, 0, 1, 0], [], []>} : vector<8x8xf32>, vector<8x8xf32>, vector<8x8xf32> -> vector<8x8xf32>
    %cst_158 = arith.constant 0.353553385 : f32
    %311 = vector.broadcast %cst_158 : f32 to vector<8x8xf32>
    %312 = arith.mulf %310, %311 : vector<8x8xf32>
    %cst_159 = arith.constant dense<0xFF800000> : vector<8xf32>
    %313 = vector.multi_reduction <maximumf>, %312, %cst_159 [1] : vector<8x8xf32> to vector<8xf32>
    %314 = vector.shape_cast %313 : vector<8xf32> to vector<8x1xf32>
    %315 = vector.broadcast %314 : vector<8x1xf32> to vector<8x8xf32>
    %316 = arith.subf %312, %315 : vector<8x8xf32>
    %317 = math.exp %316 : vector<8x8xf32>
    %cst_160 = arith.constant dense<0.000000e+00> : vector<8xf32>
    %318 = vector.multi_reduction <add>, %317, %cst_160 [1] : vector<8x8xf32> to vector<8xf32>
    %319 = vector.shape_cast %318 : vector<8xf32> to vector<8x1xf32>
    %320 = vector.broadcast %319 : vector<8x1xf32> to vector<8x8xf32>
    %321 = arith.divf %317, %320 : vector<8x8xf32>
    %cst_161 = arith.constant dense<0.000000e+00> : vector<8x8xf32>
    %322 = tpu.matmul %321, %309, %cst_161 {dimension_numbers = #tpu.dot_dimension_numbers<[1], [0], [0], [1], [0, 0, 1, 1], [], []>} : vector<8x8xf32>, vector<8x8xf32>, vector<8x8xf32> -> vector<8x8xf32>
    %c5_162 = arith.constant 5 : index
    %c0_163 = arith.constant 0 : index
    %c0_164 = arith.constant 0 : index
    %323 = vector.load %arg4[%c5_162, %c0_163, %c0_164] : memref<8x8x32xf32, #tpu.memory_space<vmem>>, vector<1x8x32xf32>
    %324 = vector.shape_cast %323 : vector<1x8x32xf32> to vector<8x32xf32>
    %cst_165 = arith.constant dense<0.000000e+00> : vector<8x32xf32>
    %325 = tpu.matmul %322, %324, %cst_165 {dimension_numbers = #tpu.dot_dimension_numbers<[1], [0], [0], [1], [0, 0, 1, 1], [], []>} : vector<8x8xf32>, vector<8x32xf32>, vector<8x32xf32> -> vector<8x32xf32>
    %326 = arith.addf %289, %325 : vector<8x32xf32>
    %c6_166 = arith.constant 6 : index
    %c0_167 = arith.constant 0 : index
    %c0_168 = arith.constant 0 : index
    %327 = vector.load %arg3[%c6_166, %c0_167, %c0_168] : memref<8x3x8xf32, #tpu.memory_space<vmem>>, vector<1x3x8xf32>
    %328 = vector.shape_cast %327 : vector<1x3x8xf32> to vector<3x8xf32>
    %c18 = arith.constant 18 : index
    %c0_169 = arith.constant 0 : index
    %c0_170 = arith.constant 0 : index
    %329 = vector.load %arg2[%c18, %c0_169, %c0_170] : memref<24x32x8xf32, #tpu.memory_space<vmem>>, vector<1x32x8xf32>
    %330 = vector.shape_cast %329 : vector<1x32x8xf32> to vector<32x8xf32>
    %cst_171 = arith.constant dense<0.000000e+00> : vector<8x8xf32>
    %331 = tpu.matmul %251, %330, %cst_171 {dimension_numbers = #tpu.dot_dimension_numbers<[1], [0], [0], [1], [0, 0, 1, 1], [], []>} : vector<8x32xf32>, vector<32x8xf32>, vector<8x8xf32> -> vector<8x8xf32>
    %332 = vector.extract_strided_slice %328 {offsets = [0, 0], sizes = [1, 8], strides = [1, 1]} : vector<3x8xf32> to vector<1x8xf32>
    %333 = vector.broadcast %332 : vector<1x8xf32> to vector<8x8xf32>
    %334 = arith.addf %331, %333 : vector<8x8xf32>
    %c19 = arith.constant 19 : index
    %c0_172 = arith.constant 0 : index
    %c0_173 = arith.constant 0 : index
    %335 = vector.load %arg2[%c19, %c0_172, %c0_173] : memref<24x32x8xf32, #tpu.memory_space<vmem>>, vector<1x32x8xf32>
    %336 = vector.shape_cast %335 : vector<1x32x8xf32> to vector<32x8xf32>
    %cst_174 = arith.constant dense<0.000000e+00> : vector<8x8xf32>
    %337 = tpu.matmul %251, %336, %cst_174 {dimension_numbers = #tpu.dot_dimension_numbers<[1], [0], [0], [1], [0, 0, 1, 1], [], []>} : vector<8x32xf32>, vector<32x8xf32>, vector<8x8xf32> -> vector<8x8xf32>
    %338 = vector.extract_strided_slice %328 {offsets = [1, 0], sizes = [1, 8], strides = [1, 1]} : vector<3x8xf32> to vector<1x8xf32>
    %339 = vector.broadcast %338 : vector<1x8xf32> to vector<8x8xf32>
    %340 = arith.addf %337, %339 : vector<8x8xf32>
    %c20 = arith.constant 20 : index
    %c0_175 = arith.constant 0 : index
    %c0_176 = arith.constant 0 : index
    %341 = vector.load %arg2[%c20, %c0_175, %c0_176] : memref<24x32x8xf32, #tpu.memory_space<vmem>>, vector<1x32x8xf32>
    %342 = vector.shape_cast %341 : vector<1x32x8xf32> to vector<32x8xf32>
    %cst_177 = arith.constant dense<0.000000e+00> : vector<8x8xf32>
    %343 = tpu.matmul %251, %342, %cst_177 {dimension_numbers = #tpu.dot_dimension_numbers<[1], [0], [0], [1], [0, 0, 1, 1], [], []>} : vector<8x32xf32>, vector<32x8xf32>, vector<8x8xf32> -> vector<8x8xf32>
    %344 = vector.extract_strided_slice %328 {offsets = [2, 0], sizes = [1, 8], strides = [1, 1]} : vector<3x8xf32> to vector<1x8xf32>
    %345 = vector.broadcast %344 : vector<1x8xf32> to vector<8x8xf32>
    %346 = arith.addf %343, %345 : vector<8x8xf32>
    %cst_178 = arith.constant dense<0.000000e+00> : vector<8x8xf32>
    %347 = tpu.matmul %334, %340, %cst_178 {dimension_numbers = #tpu.dot_dimension_numbers<[1], [1], [0], [0], [0, 0, 1, 0], [], []>} : vector<8x8xf32>, vector<8x8xf32>, vector<8x8xf32> -> vector<8x8xf32>
    %cst_179 = arith.constant 0.353553385 : f32
    %348 = vector.broadcast %cst_179 : f32 to vector<8x8xf32>
    %349 = arith.mulf %347, %348 : vector<8x8xf32>
    %cst_180 = arith.constant dense<0xFF800000> : vector<8xf32>
    %350 = vector.multi_reduction <maximumf>, %349, %cst_180 [1] : vector<8x8xf32> to vector<8xf32>
    %351 = vector.shape_cast %350 : vector<8xf32> to vector<8x1xf32>
    %352 = vector.broadcast %351 : vector<8x1xf32> to vector<8x8xf32>
    %353 = arith.subf %349, %352 : vector<8x8xf32>
    %354 = math.exp %353 : vector<8x8xf32>
    %cst_181 = arith.constant dense<0.000000e+00> : vector<8xf32>
    %355 = vector.multi_reduction <add>, %354, %cst_181 [1] : vector<8x8xf32> to vector<8xf32>
    %356 = vector.shape_cast %355 : vector<8xf32> to vector<8x1xf32>
    %357 = vector.broadcast %356 : vector<8x1xf32> to vector<8x8xf32>
    %358 = arith.divf %354, %357 : vector<8x8xf32>
    %cst_182 = arith.constant dense<0.000000e+00> : vector<8x8xf32>
    %359 = tpu.matmul %358, %346, %cst_182 {dimension_numbers = #tpu.dot_dimension_numbers<[1], [0], [0], [1], [0, 0, 1, 1], [], []>} : vector<8x8xf32>, vector<8x8xf32>, vector<8x8xf32> -> vector<8x8xf32>
    %c6_183 = arith.constant 6 : index
    %c0_184 = arith.constant 0 : index
    %c0_185 = arith.constant 0 : index
    %360 = vector.load %arg4[%c6_183, %c0_184, %c0_185] : memref<8x8x32xf32, #tpu.memory_space<vmem>>, vector<1x8x32xf32>
    %361 = vector.shape_cast %360 : vector<1x8x32xf32> to vector<8x32xf32>
    %cst_186 = arith.constant dense<0.000000e+00> : vector<8x32xf32>
    %362 = tpu.matmul %359, %361, %cst_186 {dimension_numbers = #tpu.dot_dimension_numbers<[1], [0], [0], [1], [0, 0, 1, 1], [], []>} : vector<8x8xf32>, vector<8x32xf32>, vector<8x32xf32> -> vector<8x32xf32>
    %363 = arith.addf %326, %362 : vector<8x32xf32>
    %c7_187 = arith.constant 7 : index
    %c0_188 = arith.constant 0 : index
    %c0_189 = arith.constant 0 : index
    %364 = vector.load %arg3[%c7_187, %c0_188, %c0_189] : memref<8x3x8xf32, #tpu.memory_space<vmem>>, vector<1x3x8xf32>
    %365 = vector.shape_cast %364 : vector<1x3x8xf32> to vector<3x8xf32>
    %c21 = arith.constant 21 : index
    %c0_190 = arith.constant 0 : index
    %c0_191 = arith.constant 0 : index
    %366 = vector.load %arg2[%c21, %c0_190, %c0_191] : memref<24x32x8xf32, #tpu.memory_space<vmem>>, vector<1x32x8xf32>
    %367 = vector.shape_cast %366 : vector<1x32x8xf32> to vector<32x8xf32>
    %cst_192 = arith.constant dense<0.000000e+00> : vector<8x8xf32>
    %368 = tpu.matmul %251, %367, %cst_192 {dimension_numbers = #tpu.dot_dimension_numbers<[1], [0], [0], [1], [0, 0, 1, 1], [], []>} : vector<8x32xf32>, vector<32x8xf32>, vector<8x8xf32> -> vector<8x8xf32>
    %369 = vector.extract_strided_slice %365 {offsets = [0, 0], sizes = [1, 8], strides = [1, 1]} : vector<3x8xf32> to vector<1x8xf32>
    %370 = vector.broadcast %369 : vector<1x8xf32> to vector<8x8xf32>
    %371 = arith.addf %368, %370 : vector<8x8xf32>
    %c22 = arith.constant 22 : index
    %c0_193 = arith.constant 0 : index
    %c0_194 = arith.constant 0 : index
    %372 = vector.load %arg2[%c22, %c0_193, %c0_194] : memref<24x32x8xf32, #tpu.memory_space<vmem>>, vector<1x32x8xf32>
    %373 = vector.shape_cast %372 : vector<1x32x8xf32> to vector<32x8xf32>
    %cst_195 = arith.constant dense<0.000000e+00> : vector<8x8xf32>
    %374 = tpu.matmul %251, %373, %cst_195 {dimension_numbers = #tpu.dot_dimension_numbers<[1], [0], [0], [1], [0, 0, 1, 1], [], []>} : vector<8x32xf32>, vector<32x8xf32>, vector<8x8xf32> -> vector<8x8xf32>
    %375 = vector.extract_strided_slice %365 {offsets = [1, 0], sizes = [1, 8], strides = [1, 1]} : vector<3x8xf32> to vector<1x8xf32>
    %376 = vector.broadcast %375 : vector<1x8xf32> to vector<8x8xf32>
    %377 = arith.addf %374, %376 : vector<8x8xf32>
    %c23 = arith.constant 23 : index
    %c0_196 = arith.constant 0 : index
    %c0_197 = arith.constant 0 : index
    %378 = vector.load %arg2[%c23, %c0_196, %c0_197] : memref<24x32x8xf32, #tpu.memory_space<vmem>>, vector<1x32x8xf32>
    %379 = vector.shape_cast %378 : vector<1x32x8xf32> to vector<32x8xf32>
    %cst_198 = arith.constant dense<0.000000e+00> : vector<8x8xf32>
    %380 = tpu.matmul %251, %379, %cst_198 {dimension_numbers = #tpu.dot_dimension_numbers<[1], [0], [0], [1], [0, 0, 1, 1], [], []>} : vector<8x32xf32>, vector<32x8xf32>, vector<8x8xf32> -> vector<8x8xf32>
    %381 = vector.extract_strided_slice %365 {offsets = [2, 0], sizes = [1, 8], strides = [1, 1]} : vector<3x8xf32> to vector<1x8xf32>
    %382 = vector.broadcast %381 : vector<1x8xf32> to vector<8x8xf32>
    %383 = arith.addf %380, %382 : vector<8x8xf32>
    %cst_199 = arith.constant dense<0.000000e+00> : vector<8x8xf32>
    %384 = tpu.matmul %371, %377, %cst_199 {dimension_numbers = #tpu.dot_dimension_numbers<[1], [1], [0], [0], [0, 0, 1, 0], [], []>} : vector<8x8xf32>, vector<8x8xf32>, vector<8x8xf32> -> vector<8x8xf32>
    %cst_200 = arith.constant 0.353553385 : f32
    %385 = vector.broadcast %cst_200 : f32 to vector<8x8xf32>
    %386 = arith.mulf %384, %385 : vector<8x8xf32>
    %cst_201 = arith.constant dense<0xFF800000> : vector<8xf32>
    %387 = vector.multi_reduction <maximumf>, %386, %cst_201 [1] : vector<8x8xf32> to vector<8xf32>
    %388 = vector.shape_cast %387 : vector<8xf32> to vector<8x1xf32>
    %389 = vector.broadcast %388 : vector<8x1xf32> to vector<8x8xf32>
    %390 = arith.subf %386, %389 : vector<8x8xf32>
    %391 = math.exp %390 : vector<8x8xf32>
    %cst_202 = arith.constant dense<0.000000e+00> : vector<8xf32>
    %392 = vector.multi_reduction <add>, %391, %cst_202 [1] : vector<8x8xf32> to vector<8xf32>
    %393 = vector.shape_cast %392 : vector<8xf32> to vector<8x1xf32>
    %394 = vector.broadcast %393 : vector<8x1xf32> to vector<8x8xf32>
    %395 = arith.divf %391, %394 : vector<8x8xf32>
    %cst_203 = arith.constant dense<0.000000e+00> : vector<8x8xf32>
    %396 = tpu.matmul %395, %383, %cst_203 {dimension_numbers = #tpu.dot_dimension_numbers<[1], [0], [0], [1], [0, 0, 1, 1], [], []>} : vector<8x8xf32>, vector<8x8xf32>, vector<8x8xf32> -> vector<8x8xf32>
    %c7_204 = arith.constant 7 : index
    %c0_205 = arith.constant 0 : index
    %c0_206 = arith.constant 0 : index
    %397 = vector.load %arg4[%c7_204, %c0_205, %c0_206] : memref<8x8x32xf32, #tpu.memory_space<vmem>>, vector<1x8x32xf32>
    %398 = vector.shape_cast %397 : vector<1x8x32xf32> to vector<8x32xf32>
    %cst_207 = arith.constant dense<0.000000e+00> : vector<8x32xf32>
    %399 = tpu.matmul %396, %398, %cst_207 {dimension_numbers = #tpu.dot_dimension_numbers<[1], [0], [0], [1], [0, 0, 1, 1], [], []>} : vector<8x8xf32>, vector<8x32xf32>, vector<8x32xf32> -> vector<8x32xf32>
    %400 = arith.addf %363, %399 : vector<8x32xf32>
    %401 = arith.addf %227, %400 : vector<8x32xf32>
    %402 = vector.extract_strided_slice %229 {offsets = [2, 0], sizes = [1, 32], strides = [1, 1]} : vector<6x32xf32> to vector<1x32xf32>
    %403 = vector.broadcast %402 : vector<1x32xf32> to vector<8x32xf32>
    %404 = arith.addf %401, %403 : vector<8x32xf32>
    %405 = vector.extract_strided_slice %229 {offsets = [3, 0], sizes = [1, 32], strides = [1, 1]} : vector<6x32xf32> to vector<1x32xf32>
    %406 = vector.extract_strided_slice %229 {offsets = [4, 0], sizes = [1, 32], strides = [1, 1]} : vector<6x32xf32> to vector<1x32xf32>
    %cst_208 = arith.constant dense<0.000000e+00> : vector<8xf32>
    %407 = vector.multi_reduction <add>, %404, %cst_208 [1] : vector<8x32xf32> to vector<8xf32>
    %408 = vector.shape_cast %407 : vector<8xf32> to vector<8x1xf32>
    %cst_209 = arith.constant 3.200000e+01 : f32
    %409 = vector.broadcast %cst_209 : f32 to vector<8x1xf32>
    %410 = arith.divf %408, %409 : vector<8x1xf32>
    %411 = vector.broadcast %410 : vector<8x1xf32> to vector<8x32xf32>
    %412 = arith.subf %404, %411 : vector<8x32xf32>
    %413 = arith.mulf %412, %412 : vector<8x32xf32>
    %cst_210 = arith.constant dense<0.000000e+00> : vector<8xf32>
    %414 = vector.multi_reduction <add>, %413, %cst_210 [1] : vector<8x32xf32> to vector<8xf32>
    %415 = vector.shape_cast %414 : vector<8xf32> to vector<8x1xf32>
    %cst_211 = arith.constant 3.200000e+01 : f32
    %416 = vector.broadcast %cst_211 : f32 to vector<8x1xf32>
    %417 = arith.divf %415, %416 : vector<8x1xf32>
    %cst_212 = arith.constant 9.99999974E-6 : f32
    %418 = vector.broadcast %cst_212 : f32 to vector<8x1xf32>
    %419 = arith.addf %417, %418 : vector<8x1xf32>
    %420 = math.rsqrt %419 : vector<8x1xf32>
    %421 = vector.broadcast %420 : vector<8x1xf32> to vector<8x32xf32>
    %422 = arith.mulf %412, %421 : vector<8x32xf32>
    %423 = vector.broadcast %405 : vector<1x32xf32> to vector<8x32xf32>
    %424 = arith.mulf %422, %423 : vector<8x32xf32>
    %425 = vector.broadcast %406 : vector<1x32xf32> to vector<8x32xf32>
    %426 = arith.addf %424, %425 : vector<8x32xf32>
    %c1_213 = arith.constant 1 : index
    %c0_214 = arith.constant 0 : index
    %c0_215 = arith.constant 0 : index
    %427 = vector.load %arg5[%c1_213, %c0_214, %c0_215] : memref<2x32x128xf32, #tpu.memory_space<vmem>>, vector<1x32x128xf32>
    %428 = vector.shape_cast %427 : vector<1x32x128xf32> to vector<32x128xf32>
    %cst_216 = arith.constant dense<0.000000e+00> : vector<8x128xf32>
    %429 = tpu.matmul %426, %428, %cst_216 {dimension_numbers = #tpu.dot_dimension_numbers<[1], [0], [0], [1], [0, 0, 1, 1], [], []>} : vector<8x32xf32>, vector<32x128xf32>, vector<8x128xf32> -> vector<8x128xf32>
    %c1_217 = arith.constant 1 : index
    %c0_218 = arith.constant 0 : index
    %c0_219 = arith.constant 0 : index
    %430 = vector.load %arg6[%c1_217, %c0_218, %c0_219] : memref<2x1x128xf32, #tpu.memory_space<vmem>>, vector<1x1x128xf32>
    %431 = vector.shape_cast %430 : vector<1x1x128xf32> to vector<1x128xf32>
    %432 = vector.broadcast %431 : vector<1x128xf32> to vector<8x128xf32>
    %433 = arith.addf %429, %432 : vector<8x128xf32>
    %434 = arith.mulf %433, %433 : vector<8x128xf32>
    %435 = arith.mulf %433, %434 : vector<8x128xf32>
    %cst_220 = arith.constant 4.471500e-02 : f32
    %436 = vector.broadcast %cst_220 : f32 to vector<8x128xf32>
    %437 = arith.mulf %436, %435 : vector<8x128xf32>
    %438 = arith.addf %433, %437 : vector<8x128xf32>
    %cst_221 = arith.constant 0.797884583 : f32
    %439 = vector.broadcast %cst_221 : f32 to vector<8x128xf32>
    %440 = arith.mulf %439, %438 : vector<8x128xf32>
    %441 = math.tanh %440 : vector<8x128xf32>
    %cst_222 = arith.constant 1.000000e+00 : f32
    %442 = vector.broadcast %cst_222 : f32 to vector<8x128xf32>
    %443 = arith.addf %442, %441 : vector<8x128xf32>
    %cst_223 = arith.constant 5.000000e-01 : f32
    %444 = vector.broadcast %cst_223 : f32 to vector<8x128xf32>
    %445 = arith.mulf %444, %443 : vector<8x128xf32>
    %446 = arith.mulf %433, %445 : vector<8x128xf32>
    %c1_224 = arith.constant 1 : index
    %c0_225 = arith.constant 0 : index
    %c0_226 = arith.constant 0 : index
    %447 = vector.load %arg7[%c1_224, %c0_225, %c0_226] : memref<2x128x32xf32, #tpu.memory_space<vmem>>, vector<1x128x32xf32>
    %448 = vector.shape_cast %447 : vector<1x128x32xf32> to vector<128x32xf32>
    %cst_227 = arith.constant dense<0.000000e+00> : vector<8x32xf32>
    %449 = tpu.matmul %446, %448, %cst_227 {dimension_numbers = #tpu.dot_dimension_numbers<[1], [0], [0], [1], [0, 0, 1, 1], [], []>} : vector<8x128xf32>, vector<128x32xf32>, vector<8x32xf32> -> vector<8x32xf32>
    %450 = arith.addf %404, %449 : vector<8x32xf32>
    %451 = vector.extract_strided_slice %229 {offsets = [5, 0], sizes = [1, 32], strides = [1, 1]} : vector<6x32xf32> to vector<1x32xf32>
    %452 = vector.broadcast %451 : vector<1x32xf32> to vector<8x32xf32>
    %453 = arith.addf %450, %452 : vector<8x32xf32>
    %cst_228 = arith.constant 0.000000e+00 : f32
    %454 = vector.broadcast %cst_228 : f32 to vector<16x32xf32>
    %c0_229 = arith.constant 0 : index
    %c0_230 = arith.constant 0 : index
    %c0_231 = arith.constant 0 : index
    %455 = vector.load %arg11[%c0_229, %c0_230, %c0_231] : memref<2x2x16xf32, #tpu.memory_space<vmem>>, vector<1x2x16xf32>
    %456 = vector.shape_cast %455 : vector<1x2x16xf32> to vector<2x16xf32>
    %c0_232 = arith.constant 0 : index
    %c0_233 = arith.constant 0 : index
    %c0_234 = arith.constant 0 : index
    %457 = vector.load %arg10[%c0_232, %c0_233, %c0_234] : memref<4x32x16xf32, #tpu.memory_space<vmem>>, vector<1x32x16xf32>
    %458 = vector.shape_cast %457 : vector<1x32x16xf32> to vector<32x16xf32>
    %cst_235 = arith.constant dense<0.000000e+00> : vector<8x16xf32>
    %459 = tpu.matmul %453, %458, %cst_235 {dimension_numbers = #tpu.dot_dimension_numbers<[1], [0], [0], [1], [0, 0, 1, 1], [], []>} : vector<8x32xf32>, vector<32x16xf32>, vector<8x16xf32> -> vector<8x16xf32>
    %460 = vector.extract_strided_slice %456 {offsets = [0, 0], sizes = [1, 16], strides = [1, 1]} : vector<2x16xf32> to vector<1x16xf32>
    %461 = vector.broadcast %460 : vector<1x16xf32> to vector<8x16xf32>
    %462 = arith.addf %459, %461 : vector<8x16xf32>
    %c1_236 = arith.constant 1 : index
    %c0_237 = arith.constant 0 : index
    %c0_238 = arith.constant 0 : index
    %463 = vector.load %arg10[%c1_236, %c0_237, %c0_238] : memref<4x32x16xf32, #tpu.memory_space<vmem>>, vector<1x32x16xf32>
    %464 = vector.shape_cast %463 : vector<1x32x16xf32> to vector<32x16xf32>
    %cst_239 = arith.constant dense<0.000000e+00> : vector<8x16xf32>
    %465 = tpu.matmul %453, %464, %cst_239 {dimension_numbers = #tpu.dot_dimension_numbers<[1], [0], [0], [1], [0, 0, 1, 1], [], []>} : vector<8x32xf32>, vector<32x16xf32>, vector<8x16xf32> -> vector<8x16xf32>
    %466 = vector.extract_strided_slice %456 {offsets = [1, 0], sizes = [1, 16], strides = [1, 1]} : vector<2x16xf32> to vector<1x16xf32>
    %467 = vector.broadcast %466 : vector<1x16xf32> to vector<8x16xf32>
    %468 = arith.addf %465, %467 : vector<8x16xf32>
    %c0_240 = arith.constant 0 : index
    %c0_241 = arith.constant 0 : index
    %c0_242 = arith.constant 0 : index
    %469 = vector.load %arg9[%c0_240, %c0_241, %c0_242] : memref<2x16x16xf32, #tpu.memory_space<vmem>>, vector<1x16x16xf32>
    %470 = vector.shape_cast %469 : vector<1x16x16xf32> to vector<16x16xf32>
    %cst_243 = arith.constant dense<0.000000e+00> : vector<16x8xf32>
    %471 = tpu.matmul %470, %462, %cst_243 {dimension_numbers = #tpu.dot_dimension_numbers<[1], [1], [0], [0], [0, 0, 1, 0], [], []>} : vector<16x16xf32>, vector<8x16xf32>, vector<16x8xf32> -> vector<16x8xf32>
    %cst_244 = arith.constant 2.500000e-01 : f32
    %472 = vector.broadcast %cst_244 : f32 to vector<16x8xf32>
    %473 = arith.mulf %471, %472 : vector<16x8xf32>
    %cst_245 = arith.constant dense<0xFF800000> : vector<16xf32>
    %474 = vector.multi_reduction <maximumf>, %473, %cst_245 [1] : vector<16x8xf32> to vector<16xf32>
    %475 = vector.shape_cast %474 : vector<16xf32> to vector<16x1xf32>
    %476 = vector.broadcast %475 : vector<16x1xf32> to vector<16x8xf32>
    %477 = arith.subf %473, %476 : vector<16x8xf32>
    %478 = math.exp %477 : vector<16x8xf32>
    %cst_246 = arith.constant dense<0.000000e+00> : vector<16xf32>
    %479 = vector.multi_reduction <add>, %478, %cst_246 [1] : vector<16x8xf32> to vector<16xf32>
    %480 = vector.shape_cast %479 : vector<16xf32> to vector<16x1xf32>
    %481 = vector.broadcast %480 : vector<16x1xf32> to vector<16x8xf32>
    %482 = arith.divf %478, %481 : vector<16x8xf32>
    %cst_247 = arith.constant dense<0.000000e+00> : vector<16x16xf32>
    %483 = tpu.matmul %482, %468, %cst_247 {dimension_numbers = #tpu.dot_dimension_numbers<[1], [0], [0], [1], [0, 0, 1, 1], [], []>} : vector<16x8xf32>, vector<8x16xf32>, vector<16x16xf32> -> vector<16x16xf32>
    %c0_248 = arith.constant 0 : index
    %c0_249 = arith.constant 0 : index
    %c0_250 = arith.constant 0 : index
    %484 = vector.load %arg12[%c0_248, %c0_249, %c0_250] : memref<2x16x32xf32, #tpu.memory_space<vmem>>, vector<1x16x32xf32>
    %485 = vector.shape_cast %484 : vector<1x16x32xf32> to vector<16x32xf32>
    %cst_251 = arith.constant dense<0.000000e+00> : vector<16x32xf32>
    %486 = tpu.matmul %483, %485, %cst_251 {dimension_numbers = #tpu.dot_dimension_numbers<[1], [0], [0], [1], [0, 0, 1, 1], [], []>} : vector<16x16xf32>, vector<16x32xf32>, vector<16x32xf32> -> vector<16x32xf32>
    %487 = arith.addf %454, %486 : vector<16x32xf32>
    %c1_252 = arith.constant 1 : index
    %c0_253 = arith.constant 0 : index
    %c0_254 = arith.constant 0 : index
    %488 = vector.load %arg11[%c1_252, %c0_253, %c0_254] : memref<2x2x16xf32, #tpu.memory_space<vmem>>, vector<1x2x16xf32>
    %489 = vector.shape_cast %488 : vector<1x2x16xf32> to vector<2x16xf32>
    %c2_255 = arith.constant 2 : index
    %c0_256 = arith.constant 0 : index
    %c0_257 = arith.constant 0 : index
    %490 = vector.load %arg10[%c2_255, %c0_256, %c0_257] : memref<4x32x16xf32, #tpu.memory_space<vmem>>, vector<1x32x16xf32>
    %491 = vector.shape_cast %490 : vector<1x32x16xf32> to vector<32x16xf32>
    %cst_258 = arith.constant dense<0.000000e+00> : vector<8x16xf32>
    %492 = tpu.matmul %453, %491, %cst_258 {dimension_numbers = #tpu.dot_dimension_numbers<[1], [0], [0], [1], [0, 0, 1, 1], [], []>} : vector<8x32xf32>, vector<32x16xf32>, vector<8x16xf32> -> vector<8x16xf32>
    %493 = vector.extract_strided_slice %489 {offsets = [0, 0], sizes = [1, 16], strides = [1, 1]} : vector<2x16xf32> to vector<1x16xf32>
    %494 = vector.broadcast %493 : vector<1x16xf32> to vector<8x16xf32>
    %495 = arith.addf %492, %494 : vector<8x16xf32>
    %c3_259 = arith.constant 3 : index
    %c0_260 = arith.constant 0 : index
    %c0_261 = arith.constant 0 : index
    %496 = vector.load %arg10[%c3_259, %c0_260, %c0_261] : memref<4x32x16xf32, #tpu.memory_space<vmem>>, vector<1x32x16xf32>
    %497 = vector.shape_cast %496 : vector<1x32x16xf32> to vector<32x16xf32>
    %cst_262 = arith.constant dense<0.000000e+00> : vector<8x16xf32>
    %498 = tpu.matmul %453, %497, %cst_262 {dimension_numbers = #tpu.dot_dimension_numbers<[1], [0], [0], [1], [0, 0, 1, 1], [], []>} : vector<8x32xf32>, vector<32x16xf32>, vector<8x16xf32> -> vector<8x16xf32>
    %499 = vector.extract_strided_slice %489 {offsets = [1, 0], sizes = [1, 16], strides = [1, 1]} : vector<2x16xf32> to vector<1x16xf32>
    %500 = vector.broadcast %499 : vector<1x16xf32> to vector<8x16xf32>
    %501 = arith.addf %498, %500 : vector<8x16xf32>
    %c1_263 = arith.constant 1 : index
    %c0_264 = arith.constant 0 : index
    %c0_265 = arith.constant 0 : index
    %502 = vector.load %arg9[%c1_263, %c0_264, %c0_265] : memref<2x16x16xf32, #tpu.memory_space<vmem>>, vector<1x16x16xf32>
    %503 = vector.shape_cast %502 : vector<1x16x16xf32> to vector<16x16xf32>
    %cst_266 = arith.constant dense<0.000000e+00> : vector<16x8xf32>
    %504 = tpu.matmul %503, %495, %cst_266 {dimension_numbers = #tpu.dot_dimension_numbers<[1], [1], [0], [0], [0, 0, 1, 0], [], []>} : vector<16x16xf32>, vector<8x16xf32>, vector<16x8xf32> -> vector<16x8xf32>
    %cst_267 = arith.constant 2.500000e-01 : f32
    %505 = vector.broadcast %cst_267 : f32 to vector<16x8xf32>
    %506 = arith.mulf %504, %505 : vector<16x8xf32>
    %cst_268 = arith.constant dense<0xFF800000> : vector<16xf32>
    %507 = vector.multi_reduction <maximumf>, %506, %cst_268 [1] : vector<16x8xf32> to vector<16xf32>
    %508 = vector.shape_cast %507 : vector<16xf32> to vector<16x1xf32>
    %509 = vector.broadcast %508 : vector<16x1xf32> to vector<16x8xf32>
    %510 = arith.subf %506, %509 : vector<16x8xf32>
    %511 = math.exp %510 : vector<16x8xf32>
    %cst_269 = arith.constant dense<0.000000e+00> : vector<16xf32>
    %512 = vector.multi_reduction <add>, %511, %cst_269 [1] : vector<16x8xf32> to vector<16xf32>
    %513 = vector.shape_cast %512 : vector<16xf32> to vector<16x1xf32>
    %514 = vector.broadcast %513 : vector<16x1xf32> to vector<16x8xf32>
    %515 = arith.divf %511, %514 : vector<16x8xf32>
    %cst_270 = arith.constant dense<0.000000e+00> : vector<16x16xf32>
    %516 = tpu.matmul %515, %501, %cst_270 {dimension_numbers = #tpu.dot_dimension_numbers<[1], [0], [0], [1], [0, 0, 1, 1], [], []>} : vector<16x8xf32>, vector<8x16xf32>, vector<16x16xf32> -> vector<16x16xf32>
    %c1_271 = arith.constant 1 : index
    %c0_272 = arith.constant 0 : index
    %c0_273 = arith.constant 0 : index
    %517 = vector.load %arg12[%c1_271, %c0_272, %c0_273] : memref<2x16x32xf32, #tpu.memory_space<vmem>>, vector<1x16x32xf32>
    %518 = vector.shape_cast %517 : vector<1x16x32xf32> to vector<16x32xf32>
    %cst_274 = arith.constant dense<0.000000e+00> : vector<16x32xf32>
    %519 = tpu.matmul %516, %518, %cst_274 {dimension_numbers = #tpu.dot_dimension_numbers<[1], [0], [0], [1], [0, 0, 1, 1], [], []>} : vector<16x16xf32>, vector<16x32xf32>, vector<16x32xf32> -> vector<16x32xf32>
    %520 = arith.addf %487, %519 : vector<16x32xf32>
    %c0_275 = arith.constant 0 : index
    %c0_276 = arith.constant 0 : index
    %521 = vector.load %arg16[%c0_275, %c0_276] : memref<2x32xf32, #tpu.memory_space<vmem>>, vector<2x32xf32>
    %522 = vector.extract_strided_slice %521 {offsets = [0, 0], sizes = [1, 32], strides = [1, 1]} : vector<2x32xf32> to vector<1x32xf32>
    %523 = vector.broadcast %522 : vector<1x32xf32> to vector<16x32xf32>
    %524 = arith.addf %520, %523 : vector<16x32xf32>
    %c0_277 = arith.constant 0 : index
    %c0_278 = arith.constant 0 : index
    %525 = vector.load %arg13[%c0_277, %c0_278] : memref<32x128xf32, #tpu.memory_space<vmem>>, vector<32x128xf32>
    %cst_279 = arith.constant dense<0.000000e+00> : vector<16x128xf32>
    %526 = tpu.matmul %524, %525, %cst_279 {dimension_numbers = #tpu.dot_dimension_numbers<[1], [0], [0], [1], [0, 0, 1, 1], [], []>} : vector<16x32xf32>, vector<32x128xf32>, vector<16x128xf32> -> vector<16x128xf32>
    %c0_280 = arith.constant 0 : index
    %c0_281 = arith.constant 0 : index
    %527 = vector.load %arg14[%c0_280, %c0_281] : memref<1x128xf32, #tpu.memory_space<vmem>>, vector<1x128xf32>
    %528 = vector.broadcast %527 : vector<1x128xf32> to vector<16x128xf32>
    %529 = arith.addf %526, %528 : vector<16x128xf32>
    %530 = arith.mulf %529, %529 : vector<16x128xf32>
    %531 = arith.mulf %529, %530 : vector<16x128xf32>
    %cst_282 = arith.constant 4.471500e-02 : f32
    %532 = vector.broadcast %cst_282 : f32 to vector<16x128xf32>
    %533 = arith.mulf %532, %531 : vector<16x128xf32>
    %534 = arith.addf %529, %533 : vector<16x128xf32>
    %cst_283 = arith.constant 0.797884583 : f32
    %535 = vector.broadcast %cst_283 : f32 to vector<16x128xf32>
    %536 = arith.mulf %535, %534 : vector<16x128xf32>
    %537 = math.tanh %536 : vector<16x128xf32>
    %cst_284 = arith.constant 1.000000e+00 : f32
    %538 = vector.broadcast %cst_284 : f32 to vector<16x128xf32>
    %539 = arith.addf %538, %537 : vector<16x128xf32>
    %cst_285 = arith.constant 5.000000e-01 : f32
    %540 = vector.broadcast %cst_285 : f32 to vector<16x128xf32>
    %541 = arith.mulf %540, %539 : vector<16x128xf32>
    %542 = arith.mulf %529, %541 : vector<16x128xf32>
    %c0_286 = arith.constant 0 : index
    %c0_287 = arith.constant 0 : index
    %543 = vector.load %arg15[%c0_286, %c0_287] : memref<128x32xf32, #tpu.memory_space<vmem>>, vector<128x32xf32>
    %cst_288 = arith.constant dense<0.000000e+00> : vector<16x32xf32>
    %544 = tpu.matmul %542, %543, %cst_288 {dimension_numbers = #tpu.dot_dimension_numbers<[1], [0], [0], [1], [0, 0, 1, 1], [], []>} : vector<16x128xf32>, vector<128x32xf32>, vector<16x32xf32> -> vector<16x32xf32>
    %545 = arith.addf %524, %544 : vector<16x32xf32>
    %546 = vector.extract_strided_slice %521 {offsets = [1, 0], sizes = [1, 32], strides = [1, 1]} : vector<2x32xf32> to vector<1x32xf32>
    %547 = vector.broadcast %546 : vector<1x32xf32> to vector<16x32xf32>
    %548 = arith.addf %545, %547 : vector<16x32xf32>
    %c0_289 = arith.constant 0 : index
    %c0_290 = arith.constant 0 : index
    %c0_291 = arith.constant 0 : index
    %549 = vector.load %arg23[%c0_289, %c0_290, %c0_291] : memref<1x6x32xf32, #tpu.memory_space<vmem>>, vector<1x6x32xf32>
    %550 = vector.shape_cast %549 : vector<1x6x32xf32> to vector<6x32xf32>
    %551 = vector.extract_strided_slice %550 {offsets = [0, 0], sizes = [1, 32], strides = [1, 1]} : vector<6x32xf32> to vector<1x32xf32>
    %552 = vector.extract_strided_slice %550 {offsets = [1, 0], sizes = [1, 32], strides = [1, 1]} : vector<6x32xf32> to vector<1x32xf32>
    %cst_292 = arith.constant dense<0.000000e+00> : vector<16xf32>
    %553 = vector.multi_reduction <add>, %548, %cst_292 [1] : vector<16x32xf32> to vector<16xf32>
    %554 = vector.shape_cast %553 : vector<16xf32> to vector<16x1xf32>
    %cst_293 = arith.constant 3.200000e+01 : f32
    %555 = vector.broadcast %cst_293 : f32 to vector<16x1xf32>
    %556 = arith.divf %554, %555 : vector<16x1xf32>
    %557 = vector.broadcast %556 : vector<16x1xf32> to vector<16x32xf32>
    %558 = arith.subf %548, %557 : vector<16x32xf32>
    %559 = arith.mulf %558, %558 : vector<16x32xf32>
    %cst_294 = arith.constant dense<0.000000e+00> : vector<16xf32>
    %560 = vector.multi_reduction <add>, %559, %cst_294 [1] : vector<16x32xf32> to vector<16xf32>
    %561 = vector.shape_cast %560 : vector<16xf32> to vector<16x1xf32>
    %cst_295 = arith.constant 3.200000e+01 : f32
    %562 = vector.broadcast %cst_295 : f32 to vector<16x1xf32>
    %563 = arith.divf %561, %562 : vector<16x1xf32>
    %cst_296 = arith.constant 9.99999974E-6 : f32
    %564 = vector.broadcast %cst_296 : f32 to vector<16x1xf32>
    %565 = arith.addf %563, %564 : vector<16x1xf32>
    %566 = math.rsqrt %565 : vector<16x1xf32>
    %567 = vector.broadcast %566 : vector<16x1xf32> to vector<16x32xf32>
    %568 = arith.mulf %558, %567 : vector<16x32xf32>
    %569 = vector.broadcast %551 : vector<1x32xf32> to vector<16x32xf32>
    %570 = arith.mulf %568, %569 : vector<16x32xf32>
    %571 = vector.broadcast %552 : vector<1x32xf32> to vector<16x32xf32>
    %572 = arith.addf %570, %571 : vector<16x32xf32>
    %cst_297 = arith.constant 0.000000e+00 : f32
    %573 = vector.broadcast %cst_297 : f32 to vector<16x32xf32>
    %c0_298 = arith.constant 0 : index
    %c0_299 = arith.constant 0 : index
    %c0_300 = arith.constant 0 : index
    %574 = vector.load %arg18[%c0_298, %c0_299, %c0_300] : memref<4x3x8xf32, #tpu.memory_space<vmem>>, vector<1x3x8xf32>
    %575 = vector.shape_cast %574 : vector<1x3x8xf32> to vector<3x8xf32>
    %c0_301 = arith.constant 0 : index
    %c0_302 = arith.constant 0 : index
    %c0_303 = arith.constant 0 : index
    %576 = vector.load %arg17[%c0_301, %c0_302, %c0_303] : memref<12x32x8xf32, #tpu.memory_space<vmem>>, vector<1x32x8xf32>
    %577 = vector.shape_cast %576 : vector<1x32x8xf32> to vector<32x8xf32>
    %cst_304 = arith.constant dense<0.000000e+00> : vector<16x8xf32>
    %578 = tpu.matmul %572, %577, %cst_304 {dimension_numbers = #tpu.dot_dimension_numbers<[1], [0], [0], [1], [0, 0, 1, 1], [], []>} : vector<16x32xf32>, vector<32x8xf32>, vector<16x8xf32> -> vector<16x8xf32>
    %579 = vector.extract_strided_slice %575 {offsets = [0, 0], sizes = [1, 8], strides = [1, 1]} : vector<3x8xf32> to vector<1x8xf32>
    %580 = vector.broadcast %579 : vector<1x8xf32> to vector<16x8xf32>
    %581 = arith.addf %578, %580 : vector<16x8xf32>
    %c1_305 = arith.constant 1 : index
    %c0_306 = arith.constant 0 : index
    %c0_307 = arith.constant 0 : index
    %582 = vector.load %arg17[%c1_305, %c0_306, %c0_307] : memref<12x32x8xf32, #tpu.memory_space<vmem>>, vector<1x32x8xf32>
    %583 = vector.shape_cast %582 : vector<1x32x8xf32> to vector<32x8xf32>
    %cst_308 = arith.constant dense<0.000000e+00> : vector<16x8xf32>
    %584 = tpu.matmul %572, %583, %cst_308 {dimension_numbers = #tpu.dot_dimension_numbers<[1], [0], [0], [1], [0, 0, 1, 1], [], []>} : vector<16x32xf32>, vector<32x8xf32>, vector<16x8xf32> -> vector<16x8xf32>
    %585 = vector.extract_strided_slice %575 {offsets = [1, 0], sizes = [1, 8], strides = [1, 1]} : vector<3x8xf32> to vector<1x8xf32>
    %586 = vector.broadcast %585 : vector<1x8xf32> to vector<16x8xf32>
    %587 = arith.addf %584, %586 : vector<16x8xf32>
    %c2_309 = arith.constant 2 : index
    %c0_310 = arith.constant 0 : index
    %c0_311 = arith.constant 0 : index
    %588 = vector.load %arg17[%c2_309, %c0_310, %c0_311] : memref<12x32x8xf32, #tpu.memory_space<vmem>>, vector<1x32x8xf32>
    %589 = vector.shape_cast %588 : vector<1x32x8xf32> to vector<32x8xf32>
    %cst_312 = arith.constant dense<0.000000e+00> : vector<16x8xf32>
    %590 = tpu.matmul %572, %589, %cst_312 {dimension_numbers = #tpu.dot_dimension_numbers<[1], [0], [0], [1], [0, 0, 1, 1], [], []>} : vector<16x32xf32>, vector<32x8xf32>, vector<16x8xf32> -> vector<16x8xf32>
    %591 = vector.extract_strided_slice %575 {offsets = [2, 0], sizes = [1, 8], strides = [1, 1]} : vector<3x8xf32> to vector<1x8xf32>
    %592 = vector.broadcast %591 : vector<1x8xf32> to vector<16x8xf32>
    %593 = arith.addf %590, %592 : vector<16x8xf32>
    %cst_313 = arith.constant dense<0.000000e+00> : vector<16x16xf32>
    %594 = tpu.matmul %581, %587, %cst_313 {dimension_numbers = #tpu.dot_dimension_numbers<[1], [1], [0], [0], [0, 0, 1, 0], [], []>} : vector<16x8xf32>, vector<16x8xf32>, vector<16x16xf32> -> vector<16x16xf32>
    %cst_314 = arith.constant 0.353553385 : f32
    %595 = vector.broadcast %cst_314 : f32 to vector<16x16xf32>
    %596 = arith.mulf %594, %595 : vector<16x16xf32>
    %cst_315 = arith.constant dense<0xFF800000> : vector<16xf32>
    %597 = vector.multi_reduction <maximumf>, %596, %cst_315 [1] : vector<16x16xf32> to vector<16xf32>
    %598 = vector.shape_cast %597 : vector<16xf32> to vector<16x1xf32>
    %599 = vector.broadcast %598 : vector<16x1xf32> to vector<16x16xf32>
    %600 = arith.subf %596, %599 : vector<16x16xf32>
    %601 = math.exp %600 : vector<16x16xf32>
    %cst_316 = arith.constant dense<0.000000e+00> : vector<16xf32>
    %602 = vector.multi_reduction <add>, %601, %cst_316 [1] : vector<16x16xf32> to vector<16xf32>
    %603 = vector.shape_cast %602 : vector<16xf32> to vector<16x1xf32>
    %604 = vector.broadcast %603 : vector<16x1xf32> to vector<16x16xf32>
    %605 = arith.divf %601, %604 : vector<16x16xf32>
    %cst_317 = arith.constant dense<0.000000e+00> : vector<16x8xf32>
    %606 = tpu.matmul %605, %593, %cst_317 {dimension_numbers = #tpu.dot_dimension_numbers<[1], [0], [0], [1], [0, 0, 1, 1], [], []>} : vector<16x16xf32>, vector<16x8xf32>, vector<16x8xf32> -> vector<16x8xf32>
    %c0_318 = arith.constant 0 : index
    %c0_319 = arith.constant 0 : index
    %c0_320 = arith.constant 0 : index
    %607 = vector.load %arg19[%c0_318, %c0_319, %c0_320] : memref<4x8x32xf32, #tpu.memory_space<vmem>>, vector<1x8x32xf32>
    %608 = vector.shape_cast %607 : vector<1x8x32xf32> to vector<8x32xf32>
    %cst_321 = arith.constant dense<0.000000e+00> : vector<16x32xf32>
    %609 = tpu.matmul %606, %608, %cst_321 {dimension_numbers = #tpu.dot_dimension_numbers<[1], [0], [0], [1], [0, 0, 1, 1], [], []>} : vector<16x8xf32>, vector<8x32xf32>, vector<16x32xf32> -> vector<16x32xf32>
    %610 = arith.addf %573, %609 : vector<16x32xf32>
    %c1_322 = arith.constant 1 : index
    %c0_323 = arith.constant 0 : index
    %c0_324 = arith.constant 0 : index
    %611 = vector.load %arg18[%c1_322, %c0_323, %c0_324] : memref<4x3x8xf32, #tpu.memory_space<vmem>>, vector<1x3x8xf32>
    %612 = vector.shape_cast %611 : vector<1x3x8xf32> to vector<3x8xf32>
    %c3_325 = arith.constant 3 : index
    %c0_326 = arith.constant 0 : index
    %c0_327 = arith.constant 0 : index
    %613 = vector.load %arg17[%c3_325, %c0_326, %c0_327] : memref<12x32x8xf32, #tpu.memory_space<vmem>>, vector<1x32x8xf32>
    %614 = vector.shape_cast %613 : vector<1x32x8xf32> to vector<32x8xf32>
    %cst_328 = arith.constant dense<0.000000e+00> : vector<16x8xf32>
    %615 = tpu.matmul %572, %614, %cst_328 {dimension_numbers = #tpu.dot_dimension_numbers<[1], [0], [0], [1], [0, 0, 1, 1], [], []>} : vector<16x32xf32>, vector<32x8xf32>, vector<16x8xf32> -> vector<16x8xf32>
    %616 = vector.extract_strided_slice %612 {offsets = [0, 0], sizes = [1, 8], strides = [1, 1]} : vector<3x8xf32> to vector<1x8xf32>
    %617 = vector.broadcast %616 : vector<1x8xf32> to vector<16x8xf32>
    %618 = arith.addf %615, %617 : vector<16x8xf32>
    %c4_329 = arith.constant 4 : index
    %c0_330 = arith.constant 0 : index
    %c0_331 = arith.constant 0 : index
    %619 = vector.load %arg17[%c4_329, %c0_330, %c0_331] : memref<12x32x8xf32, #tpu.memory_space<vmem>>, vector<1x32x8xf32>
    %620 = vector.shape_cast %619 : vector<1x32x8xf32> to vector<32x8xf32>
    %cst_332 = arith.constant dense<0.000000e+00> : vector<16x8xf32>
    %621 = tpu.matmul %572, %620, %cst_332 {dimension_numbers = #tpu.dot_dimension_numbers<[1], [0], [0], [1], [0, 0, 1, 1], [], []>} : vector<16x32xf32>, vector<32x8xf32>, vector<16x8xf32> -> vector<16x8xf32>
    %622 = vector.extract_strided_slice %612 {offsets = [1, 0], sizes = [1, 8], strides = [1, 1]} : vector<3x8xf32> to vector<1x8xf32>
    %623 = vector.broadcast %622 : vector<1x8xf32> to vector<16x8xf32>
    %624 = arith.addf %621, %623 : vector<16x8xf32>
    %c5_333 = arith.constant 5 : index
    %c0_334 = arith.constant 0 : index
    %c0_335 = arith.constant 0 : index
    %625 = vector.load %arg17[%c5_333, %c0_334, %c0_335] : memref<12x32x8xf32, #tpu.memory_space<vmem>>, vector<1x32x8xf32>
    %626 = vector.shape_cast %625 : vector<1x32x8xf32> to vector<32x8xf32>
    %cst_336 = arith.constant dense<0.000000e+00> : vector<16x8xf32>
    %627 = tpu.matmul %572, %626, %cst_336 {dimension_numbers = #tpu.dot_dimension_numbers<[1], [0], [0], [1], [0, 0, 1, 1], [], []>} : vector<16x32xf32>, vector<32x8xf32>, vector<16x8xf32> -> vector<16x8xf32>
    %628 = vector.extract_strided_slice %612 {offsets = [2, 0], sizes = [1, 8], strides = [1, 1]} : vector<3x8xf32> to vector<1x8xf32>
    %629 = vector.broadcast %628 : vector<1x8xf32> to vector<16x8xf32>
    %630 = arith.addf %627, %629 : vector<16x8xf32>
    %cst_337 = arith.constant dense<0.000000e+00> : vector<16x16xf32>
    %631 = tpu.matmul %618, %624, %cst_337 {dimension_numbers = #tpu.dot_dimension_numbers<[1], [1], [0], [0], [0, 0, 1, 0], [], []>} : vector<16x8xf32>, vector<16x8xf32>, vector<16x16xf32> -> vector<16x16xf32>
    %cst_338 = arith.constant 0.353553385 : f32
    %632 = vector.broadcast %cst_338 : f32 to vector<16x16xf32>
    %633 = arith.mulf %631, %632 : vector<16x16xf32>
    %cst_339 = arith.constant dense<0xFF800000> : vector<16xf32>
    %634 = vector.multi_reduction <maximumf>, %633, %cst_339 [1] : vector<16x16xf32> to vector<16xf32>
    %635 = vector.shape_cast %634 : vector<16xf32> to vector<16x1xf32>
    %636 = vector.broadcast %635 : vector<16x1xf32> to vector<16x16xf32>
    %637 = arith.subf %633, %636 : vector<16x16xf32>
    %638 = math.exp %637 : vector<16x16xf32>
    %cst_340 = arith.constant dense<0.000000e+00> : vector<16xf32>
    %639 = vector.multi_reduction <add>, %638, %cst_340 [1] : vector<16x16xf32> to vector<16xf32>
    %640 = vector.shape_cast %639 : vector<16xf32> to vector<16x1xf32>
    %641 = vector.broadcast %640 : vector<16x1xf32> to vector<16x16xf32>
    %642 = arith.divf %638, %641 : vector<16x16xf32>
    %cst_341 = arith.constant dense<0.000000e+00> : vector<16x8xf32>
    %643 = tpu.matmul %642, %630, %cst_341 {dimension_numbers = #tpu.dot_dimension_numbers<[1], [0], [0], [1], [0, 0, 1, 1], [], []>} : vector<16x16xf32>, vector<16x8xf32>, vector<16x8xf32> -> vector<16x8xf32>
    %c1_342 = arith.constant 1 : index
    %c0_343 = arith.constant 0 : index
    %c0_344 = arith.constant 0 : index
    %644 = vector.load %arg19[%c1_342, %c0_343, %c0_344] : memref<4x8x32xf32, #tpu.memory_space<vmem>>, vector<1x8x32xf32>
    %645 = vector.shape_cast %644 : vector<1x8x32xf32> to vector<8x32xf32>
    %cst_345 = arith.constant dense<0.000000e+00> : vector<16x32xf32>
    %646 = tpu.matmul %643, %645, %cst_345 {dimension_numbers = #tpu.dot_dimension_numbers<[1], [0], [0], [1], [0, 0, 1, 1], [], []>} : vector<16x8xf32>, vector<8x32xf32>, vector<16x32xf32> -> vector<16x32xf32>
    %647 = arith.addf %610, %646 : vector<16x32xf32>
    %c2_346 = arith.constant 2 : index
    %c0_347 = arith.constant 0 : index
    %c0_348 = arith.constant 0 : index
    %648 = vector.load %arg18[%c2_346, %c0_347, %c0_348] : memref<4x3x8xf32, #tpu.memory_space<vmem>>, vector<1x3x8xf32>
    %649 = vector.shape_cast %648 : vector<1x3x8xf32> to vector<3x8xf32>
    %c6_349 = arith.constant 6 : index
    %c0_350 = arith.constant 0 : index
    %c0_351 = arith.constant 0 : index
    %650 = vector.load %arg17[%c6_349, %c0_350, %c0_351] : memref<12x32x8xf32, #tpu.memory_space<vmem>>, vector<1x32x8xf32>
    %651 = vector.shape_cast %650 : vector<1x32x8xf32> to vector<32x8xf32>
    %cst_352 = arith.constant dense<0.000000e+00> : vector<16x8xf32>
    %652 = tpu.matmul %572, %651, %cst_352 {dimension_numbers = #tpu.dot_dimension_numbers<[1], [0], [0], [1], [0, 0, 1, 1], [], []>} : vector<16x32xf32>, vector<32x8xf32>, vector<16x8xf32> -> vector<16x8xf32>
    %653 = vector.extract_strided_slice %649 {offsets = [0, 0], sizes = [1, 8], strides = [1, 1]} : vector<3x8xf32> to vector<1x8xf32>
    %654 = vector.broadcast %653 : vector<1x8xf32> to vector<16x8xf32>
    %655 = arith.addf %652, %654 : vector<16x8xf32>
    %c7_353 = arith.constant 7 : index
    %c0_354 = arith.constant 0 : index
    %c0_355 = arith.constant 0 : index
    %656 = vector.load %arg17[%c7_353, %c0_354, %c0_355] : memref<12x32x8xf32, #tpu.memory_space<vmem>>, vector<1x32x8xf32>
    %657 = vector.shape_cast %656 : vector<1x32x8xf32> to vector<32x8xf32>
    %cst_356 = arith.constant dense<0.000000e+00> : vector<16x8xf32>
    %658 = tpu.matmul %572, %657, %cst_356 {dimension_numbers = #tpu.dot_dimension_numbers<[1], [0], [0], [1], [0, 0, 1, 1], [], []>} : vector<16x32xf32>, vector<32x8xf32>, vector<16x8xf32> -> vector<16x8xf32>
    %659 = vector.extract_strided_slice %649 {offsets = [1, 0], sizes = [1, 8], strides = [1, 1]} : vector<3x8xf32> to vector<1x8xf32>
    %660 = vector.broadcast %659 : vector<1x8xf32> to vector<16x8xf32>
    %661 = arith.addf %658, %660 : vector<16x8xf32>
    %c8_357 = arith.constant 8 : index
    %c0_358 = arith.constant 0 : index
    %c0_359 = arith.constant 0 : index
    %662 = vector.load %arg17[%c8_357, %c0_358, %c0_359] : memref<12x32x8xf32, #tpu.memory_space<vmem>>, vector<1x32x8xf32>
    %663 = vector.shape_cast %662 : vector<1x32x8xf32> to vector<32x8xf32>
    %cst_360 = arith.constant dense<0.000000e+00> : vector<16x8xf32>
    %664 = tpu.matmul %572, %663, %cst_360 {dimension_numbers = #tpu.dot_dimension_numbers<[1], [0], [0], [1], [0, 0, 1, 1], [], []>} : vector<16x32xf32>, vector<32x8xf32>, vector<16x8xf32> -> vector<16x8xf32>
    %665 = vector.extract_strided_slice %649 {offsets = [2, 0], sizes = [1, 8], strides = [1, 1]} : vector<3x8xf32> to vector<1x8xf32>
    %666 = vector.broadcast %665 : vector<1x8xf32> to vector<16x8xf32>
    %667 = arith.addf %664, %666 : vector<16x8xf32>
    %cst_361 = arith.constant dense<0.000000e+00> : vector<16x16xf32>
    %668 = tpu.matmul %655, %661, %cst_361 {dimension_numbers = #tpu.dot_dimension_numbers<[1], [1], [0], [0], [0, 0, 1, 0], [], []>} : vector<16x8xf32>, vector<16x8xf32>, vector<16x16xf32> -> vector<16x16xf32>
    %cst_362 = arith.constant 0.353553385 : f32
    %669 = vector.broadcast %cst_362 : f32 to vector<16x16xf32>
    %670 = arith.mulf %668, %669 : vector<16x16xf32>
    %cst_363 = arith.constant dense<0xFF800000> : vector<16xf32>
    %671 = vector.multi_reduction <maximumf>, %670, %cst_363 [1] : vector<16x16xf32> to vector<16xf32>
    %672 = vector.shape_cast %671 : vector<16xf32> to vector<16x1xf32>
    %673 = vector.broadcast %672 : vector<16x1xf32> to vector<16x16xf32>
    %674 = arith.subf %670, %673 : vector<16x16xf32>
    %675 = math.exp %674 : vector<16x16xf32>
    %cst_364 = arith.constant dense<0.000000e+00> : vector<16xf32>
    %676 = vector.multi_reduction <add>, %675, %cst_364 [1] : vector<16x16xf32> to vector<16xf32>
    %677 = vector.shape_cast %676 : vector<16xf32> to vector<16x1xf32>
    %678 = vector.broadcast %677 : vector<16x1xf32> to vector<16x16xf32>
    %679 = arith.divf %675, %678 : vector<16x16xf32>
    %cst_365 = arith.constant dense<0.000000e+00> : vector<16x8xf32>
    %680 = tpu.matmul %679, %667, %cst_365 {dimension_numbers = #tpu.dot_dimension_numbers<[1], [0], [0], [1], [0, 0, 1, 1], [], []>} : vector<16x16xf32>, vector<16x8xf32>, vector<16x8xf32> -> vector<16x8xf32>
    %c2_366 = arith.constant 2 : index
    %c0_367 = arith.constant 0 : index
    %c0_368 = arith.constant 0 : index
    %681 = vector.load %arg19[%c2_366, %c0_367, %c0_368] : memref<4x8x32xf32, #tpu.memory_space<vmem>>, vector<1x8x32xf32>
    %682 = vector.shape_cast %681 : vector<1x8x32xf32> to vector<8x32xf32>
    %cst_369 = arith.constant dense<0.000000e+00> : vector<16x32xf32>
    %683 = tpu.matmul %680, %682, %cst_369 {dimension_numbers = #tpu.dot_dimension_numbers<[1], [0], [0], [1], [0, 0, 1, 1], [], []>} : vector<16x8xf32>, vector<8x32xf32>, vector<16x32xf32> -> vector<16x32xf32>
    %684 = arith.addf %647, %683 : vector<16x32xf32>
    %c3_370 = arith.constant 3 : index
    %c0_371 = arith.constant 0 : index
    %c0_372 = arith.constant 0 : index
    %685 = vector.load %arg18[%c3_370, %c0_371, %c0_372] : memref<4x3x8xf32, #tpu.memory_space<vmem>>, vector<1x3x8xf32>
    %686 = vector.shape_cast %685 : vector<1x3x8xf32> to vector<3x8xf32>
    %c9_373 = arith.constant 9 : index
    %c0_374 = arith.constant 0 : index
    %c0_375 = arith.constant 0 : index
    %687 = vector.load %arg17[%c9_373, %c0_374, %c0_375] : memref<12x32x8xf32, #tpu.memory_space<vmem>>, vector<1x32x8xf32>
    %688 = vector.shape_cast %687 : vector<1x32x8xf32> to vector<32x8xf32>
    %cst_376 = arith.constant dense<0.000000e+00> : vector<16x8xf32>
    %689 = tpu.matmul %572, %688, %cst_376 {dimension_numbers = #tpu.dot_dimension_numbers<[1], [0], [0], [1], [0, 0, 1, 1], [], []>} : vector<16x32xf32>, vector<32x8xf32>, vector<16x8xf32> -> vector<16x8xf32>
    %690 = vector.extract_strided_slice %686 {offsets = [0, 0], sizes = [1, 8], strides = [1, 1]} : vector<3x8xf32> to vector<1x8xf32>
    %691 = vector.broadcast %690 : vector<1x8xf32> to vector<16x8xf32>
    %692 = arith.addf %689, %691 : vector<16x8xf32>
    %c10_377 = arith.constant 10 : index
    %c0_378 = arith.constant 0 : index
    %c0_379 = arith.constant 0 : index
    %693 = vector.load %arg17[%c10_377, %c0_378, %c0_379] : memref<12x32x8xf32, #tpu.memory_space<vmem>>, vector<1x32x8xf32>
    %694 = vector.shape_cast %693 : vector<1x32x8xf32> to vector<32x8xf32>
    %cst_380 = arith.constant dense<0.000000e+00> : vector<16x8xf32>
    %695 = tpu.matmul %572, %694, %cst_380 {dimension_numbers = #tpu.dot_dimension_numbers<[1], [0], [0], [1], [0, 0, 1, 1], [], []>} : vector<16x32xf32>, vector<32x8xf32>, vector<16x8xf32> -> vector<16x8xf32>
    %696 = vector.extract_strided_slice %686 {offsets = [1, 0], sizes = [1, 8], strides = [1, 1]} : vector<3x8xf32> to vector<1x8xf32>
    %697 = vector.broadcast %696 : vector<1x8xf32> to vector<16x8xf32>
    %698 = arith.addf %695, %697 : vector<16x8xf32>
    %c11_381 = arith.constant 11 : index
    %c0_382 = arith.constant 0 : index
    %c0_383 = arith.constant 0 : index
    %699 = vector.load %arg17[%c11_381, %c0_382, %c0_383] : memref<12x32x8xf32, #tpu.memory_space<vmem>>, vector<1x32x8xf32>
    %700 = vector.shape_cast %699 : vector<1x32x8xf32> to vector<32x8xf32>
    %cst_384 = arith.constant dense<0.000000e+00> : vector<16x8xf32>
    %701 = tpu.matmul %572, %700, %cst_384 {dimension_numbers = #tpu.dot_dimension_numbers<[1], [0], [0], [1], [0, 0, 1, 1], [], []>} : vector<16x32xf32>, vector<32x8xf32>, vector<16x8xf32> -> vector<16x8xf32>
    %702 = vector.extract_strided_slice %686 {offsets = [2, 0], sizes = [1, 8], strides = [1, 1]} : vector<3x8xf32> to vector<1x8xf32>
    %703 = vector.broadcast %702 : vector<1x8xf32> to vector<16x8xf32>
    %704 = arith.addf %701, %703 : vector<16x8xf32>
    %cst_385 = arith.constant dense<0.000000e+00> : vector<16x16xf32>
    %705 = tpu.matmul %692, %698, %cst_385 {dimension_numbers = #tpu.dot_dimension_numbers<[1], [1], [0], [0], [0, 0, 1, 0], [], []>} : vector<16x8xf32>, vector<16x8xf32>, vector<16x16xf32> -> vector<16x16xf32>
    %cst_386 = arith.constant 0.353553385 : f32
    %706 = vector.broadcast %cst_386 : f32 to vector<16x16xf32>
    %707 = arith.mulf %705, %706 : vector<16x16xf32>
    %cst_387 = arith.constant dense<0xFF800000> : vector<16xf32>
    %708 = vector.multi_reduction <maximumf>, %707, %cst_387 [1] : vector<16x16xf32> to vector<16xf32>
    %709 = vector.shape_cast %708 : vector<16xf32> to vector<16x1xf32>
    %710 = vector.broadcast %709 : vector<16x1xf32> to vector<16x16xf32>
    %711 = arith.subf %707, %710 : vector<16x16xf32>
    %712 = math.exp %711 : vector<16x16xf32>
    %cst_388 = arith.constant dense<0.000000e+00> : vector<16xf32>
    %713 = vector.multi_reduction <add>, %712, %cst_388 [1] : vector<16x16xf32> to vector<16xf32>
    %714 = vector.shape_cast %713 : vector<16xf32> to vector<16x1xf32>
    %715 = vector.broadcast %714 : vector<16x1xf32> to vector<16x16xf32>
    %716 = arith.divf %712, %715 : vector<16x16xf32>
    %cst_389 = arith.constant dense<0.000000e+00> : vector<16x8xf32>
    %717 = tpu.matmul %716, %704, %cst_389 {dimension_numbers = #tpu.dot_dimension_numbers<[1], [0], [0], [1], [0, 0, 1, 1], [], []>} : vector<16x16xf32>, vector<16x8xf32>, vector<16x8xf32> -> vector<16x8xf32>
    %c3_390 = arith.constant 3 : index
    %c0_391 = arith.constant 0 : index
    %c0_392 = arith.constant 0 : index
    %718 = vector.load %arg19[%c3_390, %c0_391, %c0_392] : memref<4x8x32xf32, #tpu.memory_space<vmem>>, vector<1x8x32xf32>
    %719 = vector.shape_cast %718 : vector<1x8x32xf32> to vector<8x32xf32>
    %cst_393 = arith.constant dense<0.000000e+00> : vector<16x32xf32>
    %720 = tpu.matmul %717, %719, %cst_393 {dimension_numbers = #tpu.dot_dimension_numbers<[1], [0], [0], [1], [0, 0, 1, 1], [], []>} : vector<16x8xf32>, vector<8x32xf32>, vector<16x32xf32> -> vector<16x32xf32>
    %721 = arith.addf %684, %720 : vector<16x32xf32>
    %722 = arith.addf %548, %721 : vector<16x32xf32>
    %723 = vector.extract_strided_slice %550 {offsets = [2, 0], sizes = [1, 32], strides = [1, 1]} : vector<6x32xf32> to vector<1x32xf32>
    %724 = vector.broadcast %723 : vector<1x32xf32> to vector<16x32xf32>
    %725 = arith.addf %722, %724 : vector<16x32xf32>
    %726 = vector.extract_strided_slice %550 {offsets = [3, 0], sizes = [1, 32], strides = [1, 1]} : vector<6x32xf32> to vector<1x32xf32>
    %727 = vector.extract_strided_slice %550 {offsets = [4, 0], sizes = [1, 32], strides = [1, 1]} : vector<6x32xf32> to vector<1x32xf32>
    %cst_394 = arith.constant dense<0.000000e+00> : vector<16xf32>
    %728 = vector.multi_reduction <add>, %725, %cst_394 [1] : vector<16x32xf32> to vector<16xf32>
    %729 = vector.shape_cast %728 : vector<16xf32> to vector<16x1xf32>
    %cst_395 = arith.constant 3.200000e+01 : f32
    %730 = vector.broadcast %cst_395 : f32 to vector<16x1xf32>
    %731 = arith.divf %729, %730 : vector<16x1xf32>
    %732 = vector.broadcast %731 : vector<16x1xf32> to vector<16x32xf32>
    %733 = arith.subf %725, %732 : vector<16x32xf32>
    %734 = arith.mulf %733, %733 : vector<16x32xf32>
    %cst_396 = arith.constant dense<0.000000e+00> : vector<16xf32>
    %735 = vector.multi_reduction <add>, %734, %cst_396 [1] : vector<16x32xf32> to vector<16xf32>
    %736 = vector.shape_cast %735 : vector<16xf32> to vector<16x1xf32>
    %cst_397 = arith.constant 3.200000e+01 : f32
    %737 = vector.broadcast %cst_397 : f32 to vector<16x1xf32>
    %738 = arith.divf %736, %737 : vector<16x1xf32>
    %cst_398 = arith.constant 9.99999974E-6 : f32
    %739 = vector.broadcast %cst_398 : f32 to vector<16x1xf32>
    %740 = arith.addf %738, %739 : vector<16x1xf32>
    %741 = math.rsqrt %740 : vector<16x1xf32>
    %742 = vector.broadcast %741 : vector<16x1xf32> to vector<16x32xf32>
    %743 = arith.mulf %733, %742 : vector<16x32xf32>
    %744 = vector.broadcast %726 : vector<1x32xf32> to vector<16x32xf32>
    %745 = arith.mulf %743, %744 : vector<16x32xf32>
    %746 = vector.broadcast %727 : vector<1x32xf32> to vector<16x32xf32>
    %747 = arith.addf %745, %746 : vector<16x32xf32>
    %c0_399 = arith.constant 0 : index
    %c0_400 = arith.constant 0 : index
    %c0_401 = arith.constant 0 : index
    %748 = vector.load %arg20[%c0_399, %c0_400, %c0_401] : memref<1x32x128xf32, #tpu.memory_space<vmem>>, vector<1x32x128xf32>
    %749 = vector.shape_cast %748 : vector<1x32x128xf32> to vector<32x128xf32>
    %cst_402 = arith.constant dense<0.000000e+00> : vector<16x128xf32>
    %750 = tpu.matmul %747, %749, %cst_402 {dimension_numbers = #tpu.dot_dimension_numbers<[1], [0], [0], [1], [0, 0, 1, 1], [], []>} : vector<16x32xf32>, vector<32x128xf32>, vector<16x128xf32> -> vector<16x128xf32>
    %c0_403 = arith.constant 0 : index
    %c0_404 = arith.constant 0 : index
    %c0_405 = arith.constant 0 : index
    %751 = vector.load %arg21[%c0_403, %c0_404, %c0_405] : memref<1x1x128xf32, #tpu.memory_space<vmem>>, vector<1x1x128xf32>
    %752 = vector.shape_cast %751 : vector<1x1x128xf32> to vector<1x128xf32>
    %753 = vector.broadcast %752 : vector<1x128xf32> to vector<16x128xf32>
    %754 = arith.addf %750, %753 : vector<16x128xf32>
    %755 = arith.mulf %754, %754 : vector<16x128xf32>
    %756 = arith.mulf %754, %755 : vector<16x128xf32>
    %cst_406 = arith.constant 4.471500e-02 : f32
    %757 = vector.broadcast %cst_406 : f32 to vector<16x128xf32>
    %758 = arith.mulf %757, %756 : vector<16x128xf32>
    %759 = arith.addf %754, %758 : vector<16x128xf32>
    %cst_407 = arith.constant 0.797884583 : f32
    %760 = vector.broadcast %cst_407 : f32 to vector<16x128xf32>
    %761 = arith.mulf %760, %759 : vector<16x128xf32>
    %762 = math.tanh %761 : vector<16x128xf32>
    %cst_408 = arith.constant 1.000000e+00 : f32
    %763 = vector.broadcast %cst_408 : f32 to vector<16x128xf32>
    %764 = arith.addf %763, %762 : vector<16x128xf32>
    %cst_409 = arith.constant 5.000000e-01 : f32
    %765 = vector.broadcast %cst_409 : f32 to vector<16x128xf32>
    %766 = arith.mulf %765, %764 : vector<16x128xf32>
    %767 = arith.mulf %754, %766 : vector<16x128xf32>
    %c0_410 = arith.constant 0 : index
    %c0_411 = arith.constant 0 : index
    %c0_412 = arith.constant 0 : index
    %768 = vector.load %arg22[%c0_410, %c0_411, %c0_412] : memref<1x128x32xf32, #tpu.memory_space<vmem>>, vector<1x128x32xf32>
    %769 = vector.shape_cast %768 : vector<1x128x32xf32> to vector<128x32xf32>
    %cst_413 = arith.constant dense<0.000000e+00> : vector<16x32xf32>
    %770 = tpu.matmul %767, %769, %cst_413 {dimension_numbers = #tpu.dot_dimension_numbers<[1], [0], [0], [1], [0, 0, 1, 1], [], []>} : vector<16x128xf32>, vector<128x32xf32>, vector<16x32xf32> -> vector<16x32xf32>
    %771 = arith.addf %725, %770 : vector<16x32xf32>
    %772 = vector.extract_strided_slice %550 {offsets = [5, 0], sizes = [1, 32], strides = [1, 1]} : vector<6x32xf32> to vector<1x32xf32>
    %773 = vector.broadcast %772 : vector<1x32xf32> to vector<16x32xf32>
    %774 = arith.addf %771, %773 : vector<16x32xf32>
    %c0_414 = arith.constant 0 : index
    %c0_415 = arith.constant 0 : index
    %c0_416 = arith.constant 0 : index
    %775 = vector.load %arg24[%c0_414, %c0_415, %c0_416] : memref<1x16x32xf32, #tpu.memory_space<vmem>>, vector<1x16x32xf32>
    %776 = vector.shape_cast %775 : vector<1x16x32xf32> to vector<16x32xf32>
    %777 = vector.shape_cast %774 : vector<16x32xf32> to vector<1x16x32xf32>
    tpu.vector_store %arg24[%c0_414, %c0_415, %c0_416], %777 {strides = array<i32>} : memref<1x16x32xf32, #tpu.memory_space<vmem>>, vector<1x16x32xf32>,
    return
  }
  func.func @transform_0(%arg0: i32) -> (i32, i32, i32) {
    %c0_i32 = arith.constant 0 : i32
    %c0_i32_0 = arith.constant 0 : i32
    %c0_i32_1 = arith.constant 0 : i32
    return %arg0, %c0_i32, %c0_i32_0 : i32, i32, i32
  }
  func.func @transform_1(%arg0: i32) -> (i32, i32, i32) {
    %c0_i32 = arith.constant 0 : i32
    %c0_i32_0 = arith.constant 0 : i32
    %c0_i32_1 = arith.constant 0 : i32
    %c0_i32_2 = arith.constant 0 : i32
    return %c0_i32, %c0_i32_0, %c0_i32_1 : i32, i32, i32
  }
  func.func @transform_2(%arg0: i32) -> (i32, i32, i32) {
    %c0_i32 = arith.constant 0 : i32
    %c0_i32_0 = arith.constant 0 : i32
    %c0_i32_1 = arith.constant 0 : i32
    %c0_i32_2 = arith.constant 0 : i32
    return %c0_i32, %c0_i32_0, %c0_i32_1 : i32, i32, i32
  }
  func.func @transform_3(%arg0: i32) -> (i32, i32, i32) {
    %c0_i32 = arith.constant 0 : i32
    %c0_i32_0 = arith.constant 0 : i32
    %c0_i32_1 = arith.constant 0 : i32
    %c0_i32_2 = arith.constant 0 : i32
    return %c0_i32, %c0_i32_0, %c0_i32_1 : i32, i32, i32
  }
  func.func @transform_4(%arg0: i32) -> (i32, i32, i32) {
    %c0_i32 = arith.constant 0 : i32
    %c0_i32_0 = arith.constant 0 : i32
    %c0_i32_1 = arith.constant 0 : i32
    %c0_i32_2 = arith.constant 0 : i32
    return %c0_i32, %c0_i32_0, %c0_i32_1 : i32, i32, i32
  }
  func.func @transform_5(%arg0: i32) -> (i32, i32, i32) {
    %c0_i32 = arith.constant 0 : i32
    %c0_i32_0 = arith.constant 0 : i32
    %c0_i32_1 = arith.constant 0 : i32
    %c0_i32_2 = arith.constant 0 : i32
    return %c0_i32, %c0_i32_0, %c0_i32_1 : i32, i32, i32
  }
  func.func @transform_6(%arg0: i32) -> (i32, i32, i32) {
    %c0_i32 = arith.constant 0 : i32
    %c0_i32_0 = arith.constant 0 : i32
    %c0_i32_1 = arith.constant 0 : i32
    %c0_i32_2 = arith.constant 0 : i32
    return %c0_i32, %c0_i32_0, %c0_i32_1 : i32, i32, i32
  }
  func.func @transform_7(%arg0: i32) -> (i32, i32, i32) {
    %c0_i32 = arith.constant 0 : i32
    %c0_i32_0 = arith.constant 0 : i32
    %c0_i32_1 = arith.constant 0 : i32
    %c0_i32_2 = arith.constant 0 : i32
    return %c0_i32, %c0_i32_0, %c0_i32_1 : i32, i32, i32
  }
  func.func @transform_8(%arg0: i32) -> (i32, i32, i32) {
    %c0_i32 = arith.constant 0 : i32
    %c0_i32_0 = arith.constant 0 : i32
    %c0_i32_1 = arith.constant 0 : i32
    %c0_i32_2 = arith.constant 0 : i32
    return %c0_i32, %c0_i32_0, %c0_i32_1 : i32, i32, i32
  }
  func.func @transform_9(%arg0: i32) -> (i32, i32, i32) {
    %c0_i32 = arith.constant 0 : i32
    %c0_i32_0 = arith.constant 0 : i32
    %c0_i32_1 = arith.constant 0 : i32
    %c0_i32_2 = arith.constant 0 : i32
    return %c0_i32, %c0_i32_0, %c0_i32_1 : i32, i32, i32
  }
  func.func @transform_10(%arg0: i32) -> (i32, i32, i32) {
    %c0_i32 = arith.constant 0 : i32
    %c0_i32_0 = arith.constant 0 : i32
    %c0_i32_1 = arith.constant 0 : i32
    %c0_i32_2 = arith.constant 0 : i32
    return %c0_i32, %c0_i32_0, %c0_i32_1 : i32, i32, i32
  }
  func.func @transform_11(%arg0: i32) -> (i32, i32, i32) {
    %c0_i32 = arith.constant 0 : i32
    %c0_i32_0 = arith.constant 0 : i32
    %c0_i32_1 = arith.constant 0 : i32
    %c0_i32_2 = arith.constant 0 : i32
    return %c0_i32, %c0_i32_0, %c0_i32_1 : i32, i32, i32
  }
  func.func @transform_12(%arg0: i32) -> (i32, i32) {
    %c0_i32 = arith.constant 0 : i32
    %c0_i32_0 = arith.constant 0 : i32
    %c0_i32_1 = arith.constant 0 : i32
    return %c0_i32, %c0_i32_0 : i32, i32
  }
  func.func @transform_13(%arg0: i32) -> (i32, i32) {
    %c0_i32 = arith.constant 0 : i32
    %c0_i32_0 = arith.constant 0 : i32
    %c0_i32_1 = arith.constant 0 : i32
    return %c0_i32, %c0_i32_0 : i32, i32
  }
  func.func @transform_14(%arg0: i32) -> (i32, i32) {
    %c0_i32 = arith.constant 0 : i32
    %c0_i32_0 = arith.constant 0 : i32
    %c0_i32_1 = arith.constant 0 : i32
    return %c0_i32, %c0_i32_0 : i32, i32
  }
  func.func @transform_15(%arg0: i32) -> (i32, i32) {
    %c0_i32 = arith.constant 0 : i32
    %c0_i32_0 = arith.constant 0 : i32
    %c0_i32_1 = arith.constant 0 : i32
    return %c0_i32, %c0_i32_0 : i32, i32
  }
  func.func @transform_16(%arg0: i32) -> (i32, i32, i32) {
    %c0_i32 = arith.constant 0 : i32
    %c0_i32_0 = arith.constant 0 : i32
    %c0_i32_1 = arith.constant 0 : i32
    %c0_i32_2 = arith.constant 0 : i32
    return %c0_i32, %c0_i32_0, %c0_i32_1 : i32, i32, i32
  }
  func.func @transform_17(%arg0: i32) -> (i32, i32, i32) {
    %c0_i32 = arith.constant 0 : i32
    %c0_i32_0 = arith.constant 0 : i32
    %c0_i32_1 = arith.constant 0 : i32
    %c0_i32_2 = arith.constant 0 : i32
    return %c0_i32, %c0_i32_0, %c0_i32_1 : i32, i32, i32
  }
  func.func @transform_18(%arg0: i32) -> (i32, i32, i32) {
    %c0_i32 = arith.constant 0 : i32
    %c0_i32_0 = arith.constant 0 : i32
    %c0_i32_1 = arith.constant 0 : i32
    %c0_i32_2 = arith.constant 0 : i32
    return %c0_i32, %c0_i32_0, %c0_i32_1 : i32, i32, i32
  }
  func.func @transform_19(%arg0: i32) -> (i32, i32, i32) {
    %c0_i32 = arith.constant 0 : i32
    %c0_i32_0 = arith.constant 0 : i32
    %c0_i32_1 = arith.constant 0 : i32
    %c0_i32_2 = arith.constant 0 : i32
    return %c0_i32, %c0_i32_0, %c0_i32_1 : i32, i32, i32
  }
  func.func @transform_20(%arg0: i32) -> (i32, i32, i32) {
    %c0_i32 = arith.constant 0 : i32
    %c0_i32_0 = arith.constant 0 : i32
    %c0_i32_1 = arith.constant 0 : i32
    %c0_i32_2 = arith.constant 0 : i32
    return %c0_i32, %c0_i32_0, %c0_i32_1 : i32, i32, i32
  }
  func.func @transform_21(%arg0: i32) -> (i32, i32, i32) {
    %c0_i32 = arith.constant 0 : i32
    %c0_i32_0 = arith.constant 0 : i32
    %c0_i32_1 = arith.constant 0 : i32
    %c0_i32_2 = arith.constant 0 : i32
    return %c0_i32, %c0_i32_0, %c0_i32_1 : i32, i32, i32
  }
  func.func @transform_22(%arg0: i32) -> (i32, i32, i32) {
    %c0_i32 = arith.constant 0 : i32
    %c0_i32_0 = arith.constant 0 : i32
    %c0_i32_1 = arith.constant 0 : i32
    %c0_i32_2 = arith.constant 0 : i32
    return %c0_i32, %c0_i32_0, %c0_i32_1 : i32, i32, i32
  }
  func.func @transform_23(%arg0: i32) -> (i32, i32, i32) {
    %c0_i32 = arith.constant 0 : i32
    %c0_i32_0 = arith.constant 0 : i32
    %c0_i32_1 = arith.constant 0 : i32
    return %arg0, %c0_i32, %c0_i32_0 : i32, i32, i32
  }
}

</mosaic_0001>

<llo_original>
// kernel: permutation_encoder_forward.1
$region0: #{permutation_encoder_forward.1}
  #allocation0 [shape = 'u32[]', space=smem, size = 0x4, offset = 0x4, fixed_abs, tag = 'smem constant byte address 0x4 - core index']
  #allocation1 [shape = 'u32[144,128]{1,0:T(1,128)}', space=vmem, size = 0x12000, scoped, tag = 'internal scratch']
  %s0 = inlined_call_operand.vmem [shape: f32[2,8,32], index: 0, kind: input, shape index: {}]
  %s1 = inlined_call_operand.vmem [shape: f32[24,32,8], index: 1, kind: input, shape index: {}]
  %s2 = inlined_call_operand.vmem [shape: f32[8,3,8], index: 2, kind: input, shape index: {}]
  %s3 = inlined_call_operand.vmem [shape: f32[8,8,32], index: 3, kind: input, shape index: {}]
  %s4 = inlined_call_operand.vmem [shape: f32[2,32,128], index: 4, kind: input, shape index: {}]
  %s5 = inlined_call_operand.vmem [shape: f32[2,1,128], index: 5, kind: input, shape index: {}]
  %s6 = inlined_call_operand.vmem [shape: f32[2,128,32], index: 6, kind: input, shape index: {}]
  %s7 = inlined_call_operand.vmem [shape: f32[2,6,32], index: 7, kind: input, shape index: {}]
  %s8 = inlined_call_operand.vmem [shape: f32[2,16,16], index: 8, kind: input, shape index: {}]
  %s9 = inlined_call_operand.vmem [shape: f32[4,32,16], index: 9, kind: input, shape index: {}]
  %s10 = inlined_call_operand.vmem [shape: f32[2,2,16], index: 10, kind: input, shape index: {}]
  %s11 = inlined_call_operand.vmem [shape: f32[2,16,32], index: 11, kind: input, shape index: {}]
  %s12 = inlined_call_operand.vmem [shape: f32[32,128], index: 12, kind: input, shape index: {}]
  %s13 = inlined_call_operand.vmem [shape: f32[1,128], index: 13, kind: input, shape index: {}]
  %s14 = inlined_call_operand.vmem [shape: f32[128,32], index: 14, kind: input, shape index: {}]
  %s15 = inlined_call_operand.vmem [shape: f32[2,32], index: 15, kind: input, shape index: {}]
  %s16 = inlined_call_operand.vmem [shape: f32[12,32,8], index: 16, kind: input, shape index: {}]
  %s17 = inlined_call_operand.vmem [shape: f32[4,3,8], index: 17, kind: input, shape index: {}]
  %s18 = inlined_call_operand.vmem [shape: f32[4,8,32], index: 18, kind: input, shape index: {}]
  %s19 = inlined_call_operand.vmem [shape: f32[1,32,128], index: 19, kind: input, shape index: {}]
  %s20 = inlined_call_operand.vmem [shape: f32[1,1,128], index: 20, kind: input, shape index: {}]
  %s21 = inlined_call_operand.vmem [shape: f32[1,128,32], index: 21, kind: input, shape index: {}]
  %s22 = inlined_call_operand.vmem [shape: f32[1,6,32], index: 22, kind: input, shape index: {}]
  %s23 = inlined_call_operand.vmem [shape: f32[2,16,32], index: 23, kind: output, shape index: {}]
  %s24 = sld [smem:[#allocation0]]
  $region125: #{permutation_encoder_forward.1} parent=0
    _
  %s26 = ssub.s32 1, %s24
  %s27 = scalar_select 0, %s26, %s24
  loop: start=0, step=1, limit=4
  $region2: #{permutation_encoder_forward.1} parent=0 // loop_pre_header
    _
  $region3: #{permutation_encoder_forward.1} parent=0 // loop_header
    %s29 = sphi 0, %s33
    %p30 = scmp.ge.s32.totalorder %s29, 4
    %s39 = sphi 0, %s41
    %s42 = sphi 0, %s39
    %s43 = sphi 0, %s42
    %s59 = sphi 0, %s43
    %s63 = sphi 0, %s63
    %s65 = sphi 0, %s63
    %s66 = sphi 0, %s65
    %s80 = sphi 0, %s66
    %s84 = sphi 0, %s84
    %s86 = sphi 0, %s84
    %s87 = sphi 0, %s86
    %s101 = sphi 0, %s87
    %s105 = sphi 0, %s105
    %s107 = sphi 0, %s105
    %s108 = sphi 0, %s107
    %s122 = sphi 0, %s108
    %s126 = sphi 0, %s126
    %s128 = sphi 0, %s126
    %s129 = sphi 0, %s128
    %s143 = sphi 0, %s129
    %s147 = sphi 0, %s147
    %s149 = sphi 0, %s147
    %s150 = sphi 0, %s149
    %s164 = sphi 0, %s150
    %s168 = sphi 0, %s168
    %s170 = sphi 0, %s168
    %s171 = sphi 0, %s170
    %s185 = sphi 0, %s171
    %s189 = sphi 0, %s189
    %s191 = sphi 0, %s189
    %s192 = sphi 0, %s191
    %s206 = sphi 0, %s192
    %s210 = sphi 0, %s210
    %s212 = sphi 0, %s210
    %s213 = sphi 0, %s212
    %s227 = sphi 0, %s213
    %s231 = sphi 0, %s231
    %s233 = sphi 0, %s231
    %s234 = sphi 0, %s233
    %s248 = sphi 0, %s234
    %s252 = sphi 0, %s252
    %s254 = sphi 0, %s252
    %s255 = sphi 0, %s254
    %s269 = sphi 0, %s255
    %s273 = sphi 0, %s273
    %s275 = sphi 0, %s273
    %s276 = sphi 0, %s275
    %s290 = sphi 0, %s276
    %s294 = sphi 0, %s294
    %s296 = sphi 0, %s294
    %s297 = sphi 0, %s296
    %s311 = sphi 0, %s297
    %s315 = sphi 0, %s315
    %s317 = sphi 0, %s315
    %s318 = sphi 0, %s317
    %s332 = sphi 0, %s318
    %s336 = sphi 0, %s336
    %s338 = sphi 0, %s336
    %s339 = sphi 0, %s338
    %s353 = sphi 0, %s339
    %s357 = sphi 0, %s357
    %s359 = sphi 0, %s357
    %s360 = sphi 0, %s359
    %s374 = sphi 0, %s360
    %s378 = sphi 0, %s378
    %s380 = sphi 0, %s378
    %s381 = sphi 0, %s380
    %s395 = sphi 0, %s381
    %s399 = sphi 0, %s399
    %s401 = sphi 0, %s399
    %s402 = sphi 0, %s401
    %s416 = sphi 0, %s402
    %s420 = sphi 0, %s420
    %s422 = sphi 0, %s420
    %s423 = sphi 0, %s422
    %s437 = sphi 0, %s423
    %s441 = sphi 0, %s441
    %s443 = sphi 0, %s441
    %s444 = sphi 0, %s443
    %s458 = sphi 0, %s444
    %s462 = sphi 0, %s462
    %s464 = sphi 0, %s462
    %s465 = sphi 0, %s464
    %s479 = sphi 0, %s465
    %s483 = sphi 0, %s483
    %s485 = sphi 0, %s483
    %s486 = sphi 0, %s485
    %s500 = sphi 0, %s486
    %s504 = sphi 0, %s504
    %s506 = sphi 0, %s504
    %s507 = sphi 0, %s506
    %s521 = sphi 0, %s507
    %s527 = sphi 0, %s529
    %s530 = sphi 0, %s527
    %s531 = sphi 0, %s530
    %s547 = sphi 0, %s531
  $region4: #{permutation_encoder_forward.1} parent=0 // loop_header_branch
    %32 = sbr.rel (%p30) target = $region8
  $region5: #{permutation_encoder_forward.1} parent=0 // loop_body
    %s34 = ssub.s32 %s29, 1
    %s35 = ssub.s32 %s29, 2
    %s36 = sadd.s32 %s29, 1
    %s37 = ssub.s32 %s29, %s36
    %p38 = scmp.eq.s32.totalorder %s37, 0
    %s40 = sadd.s32 %s39, 1
    %s41 = scalar_select %p38, %s39, %s40
    %p44 = pneg %p38
    %p45 = scmp.eq.s32.totalorder %s29, 1
    %p46 = por %p44, %p45
    %p47 = scmp.ne.s32.totalorder %s39, %s42
    %p48 = scmp.eq.s32.totalorder %s29, 0
    %p49 = por %p47, %p48
    %p50 = scmp.ne.s32.totalorder %s39, %s42
    %p51 = scmp.eq.s32.totalorder %s34, 1
    %p52 = por %p50, %p51
    %p53 = scmp.ne.s32.totalorder %s42, %s43
    %p54 = scmp.eq.s32.totalorder %s34, 0
    %p55 = por %p53, %p54
    %p56 = scmp.ne.s32.totalorder %s42, %s43
    %p57 = scmp.eq.s32.totalorder %s35, 1
    %p58 = por %p56, %p57
    %p60 = scmp.ne.s32.totalorder %s43, %s59
    %p61 = scmp.eq.s32.totalorder %s35, 0
    %p62 = por %p60, %p61
    %s64 = sadd.s32 %s63, 1
    %p67 = scmp.eq.s32.totalorder %s29, 1
    %p68 = scmp.ne.s32.totalorder %s63, %s65
    %p69 = scmp.eq.s32.totalorder %s29, 0
    %p70 = por %p68, %p69
    %p71 = scmp.ne.s32.totalorder %s63, %s65
    %p72 = scmp.eq.s32.totalorder %s34, 1
    %p73 = por %p71, %p72
    %p74 = scmp.ne.s32.totalorder %s65, %s66
    %p75 = scmp.eq.s32.totalorder %s34, 0
    %p76 = por %p74, %p75
    %p77 = scmp.ne.s32.totalorder %s65, %s66
    %p78 = scmp.eq.s32.totalorder %s35, 1
    %p79 = por %p77, %p78
    %p81 = scmp.ne.s32.totalorder %s66, %s80
    %p82 = scmp.eq.s32.totalorder %s35, 0
    %p83 = por %p81, %p82
    %s85 = sadd.s32 %s84, 1
    %p88 = scmp.eq.s32.totalorder %s29, 1
    %p89 = scmp.ne.s32.totalorder %s84, %s86
    %p90 = scmp.eq.s32.totalorder %s29, 0
    %p91 = por %p89, %p90
    %p92 = scmp.ne.s32.totalorder %s84, %s86
    %p93 = scmp.eq.s32.totalorder %s34, 1
    %p94 = por %p92, %p93
    %p95 = scmp.ne.s32.totalorder %s86, %s87
    %p96 = scmp.eq.s32.totalorder %s34, 0
    %p97 = por %p95, %p96
    %p98 = scmp.ne.s32.totalorder %s86, %s87
    %p99 = scmp.eq.s32.totalorder %s35, 1
    %p100 = por %p98, %p99
    %p102 = scmp.ne.s32.totalorder %s87, %s101
    %p103 = scmp.eq.s32.totalorder %s35, 0
    %p104 = por %p102, %p103
    %s106 = sadd.s32 %s105, 1
    %p109 = scmp.eq.s32.totalorder %s29, 1
    %p110 = scmp.ne.s32.totalorder %s105, %s107
    %p111 = scmp.eq.s32.totalorder %s29, 0
    %p112 = por %p110, %p111
    %p113 = scmp.ne.s32.totalorder %s105, %s107
    %p114 = scmp.eq.s32.totalorder %s34, 1
    %p115 = por %p113, %p114
    %p116 = scmp.ne.s32.totalorder %s107, %s108
    %p117 = scmp.eq.s32.totalorder %s34, 0
    %p118 = por %p116, %p117
    %p119 = scmp.ne.s32.totalorder %s107, %s108
    %p120 = scmp.eq.s32.totalorder %s35, 1
    %p121 = por %p119, %p120
    %p123 = scmp.ne.s32.totalorder %s108, %s122
    %p124 = scmp.eq.s32.totalorder %s35, 0
    %p125 = por %p123, %p124
    %s127 = sadd.s32 %s126, 1
    %p130 = scmp.eq.s32.totalorder %s29, 1
    %p131 = scmp.ne.s32.totalorder %s126, %s128
    %p132 = scmp.eq.s32.totalorder %s29, 0
    %p133 = por %p131, %p132
    %p134 = scmp.ne.s32.totalorder %s126, %s128
    %p135 = scmp.eq.s32.totalorder %s34, 1
    %p136 = por %p134, %p135
    %p137 = scmp.ne.s32.totalorder %s128, %s129
    %p138 = scmp.eq.s32.totalorder %s34, 0
    %p139 = por %p137, %p138
    %p140 = scmp.ne.s32.totalorder %s128, %s129
    %p141 = scmp.eq.s32.totalorder %s35, 1
    %p142 = por %p140, %p141
    %p144 = scmp.ne.s32.totalorder %s129, %s143
    %p145 = scmp.eq.s32.totalorder %s35, 0
    %p146 = por %p144, %p145
    %s148 = sadd.s32 %s147, 1
    %p151 = scmp.eq.s32.totalorder %s29, 1
    %p152 = scmp.ne.s32.totalorder %s147, %s149
    %p153 = scmp.eq.s32.totalorder %s29, 0
    %p154 = por %p152, %p153
    %p155 = scmp.ne.s32.totalorder %s147, %s149
    %p156 = scmp.eq.s32.totalorder %s34, 1
    %p157 = por %p155, %p156
    %p158 = scmp.ne.s32.totalorder %s149, %s150
    %p159 = scmp.eq.s32.totalorder %s34, 0
    %p160 = por %p158, %p159
    %p161 = scmp.ne.s32.totalorder %s149, %s150
    %p162 = scmp.eq.s32.totalorder %s35, 1
    %p163 = por %p161, %p162
    %p165 = scmp.ne.s32.totalorder %s150, %s164
    %p166 = scmp.eq.s32.totalorder %s35, 0
    %p167 = por %p165, %p166
    %s169 = sadd.s32 %s168, 1
    %p172 = scmp.eq.s32.totalorder %s29, 1
    %p173 = scmp.ne.s32.totalorder %s168, %s170
    %p174 = scmp.eq.s32.totalorder %s29, 0
    %p175 = por %p173, %p174
    %p176 = scmp.ne.s32.totalorder %s168, %s170
    %p177 = scmp.eq.s32.totalorder %s34, 1
    %p178 = por %p176, %p177
    %p179 = scmp.ne.s32.totalorder %s170, %s171
    %p180 = scmp.eq.s32.totalorder %s34, 0
    %p181 = por %p179, %p180
    %p182 = scmp.ne.s32.totalorder %s170, %s171
    %p183 = scmp.eq.s32.totalorder %s35, 1
    %p184 = por %p182, %p183
    %p186 = scmp.ne.s32.totalorder %s171, %s185
    %p187 = scmp.eq.s32.totalorder %s35, 0
    %p188 = por %p186, %p187
    %s190 = sadd.s32 %s189, 1
    %p193 = scmp.eq.s32.totalorder %s29, 1
    %p194 = scmp.ne.s32.totalorder %s189, %s191
    %p195 = scmp.eq.s32.totalorder %s29, 0
    %p196 = por %p194, %p195
    %p197 = scmp.ne.s32.totalorder %s189, %s191
    %p198 = scmp.eq.s32.totalorder %s34, 1
    %p199 = por %p197, %p198
    %p200 = scmp.ne.s32.totalorder %s191, %s192
    %p201 = scmp.eq.s32.totalorder %s34, 0
    %p202 = por %p200, %p201
    %p203 = scmp.ne.s32.totalorder %s191, %s192
    %p204 = scmp.eq.s32.totalorder %s35, 1
    %p205 = por %p203, %p204
    %p207 = scmp.ne.s32.totalorder %s192, %s206
    %p208 = scmp.eq.s32.totalorder %s35, 0
    %p209 = por %p207, %p208
    %s211 = sadd.s32 %s210, 1
    %p214 = scmp.eq.s32.totalorder %s29, 1
    %p215 = scmp.ne.s32.totalorder %s210, %s212
    %p216 = scmp.eq.s32.totalorder %s29, 0
    %p217 = por %p215, %p216
    %p218 = scmp.ne.s32.totalorder %s210, %s212
    %p219 = scmp.eq.s32.totalorder %s34, 1
    %p220 = por %p218, %p219
    %p221 = scmp.ne.s32.totalorder %s212, %s213
    %p222 = scmp.eq.s32.totalorder %s34, 0
    %p223 = por %p221, %p222
    %p224 = scmp.ne.s32.totalorder %s212, %s213
    %p225 = scmp.eq.s32.totalorder %s35, 1
    %p226 = por %p224, %p225
    %p228 = scmp.ne.s32.totalorder %s213, %s227
    %p229 = scmp.eq.s32.totalorder %s35, 0
    %p230 = por %p228, %p229
    %s232 = sadd.s32 %s231, 1
    %p235 = scmp.eq.s32.totalorder %s29, 1
    %p236 = scmp.ne.s32.totalorder %s231, %s233
    %p237 = scmp.eq.s32.totalorder %s29, 0
    %p238 = por %p236, %p237
    %p239 = scmp.ne.s32.totalorder %s231, %s233
    %p240 = scmp.eq.s32.totalorder %s34, 1
    %p241 = por %p239, %p240
    %p242 = scmp.ne.s32.totalorder %s233, %s234
    %p243 = scmp.eq.s32.totalorder %s34, 0
    %p244 = por %p242, %p243
    %p245 = scmp.ne.s32.totalorder %s233, %s234
    %p246 = scmp.eq.s32.totalorder %s35, 1
    %p247 = por %p245, %p246
    %p249 = scmp.ne.s32.totalorder %s234, %s248
    %p250 = scmp.eq.s32.totalorder %s35, 0
    %p251 = por %p249, %p250
    %s253 = sadd.s32 %s252, 1
    %p256 = scmp.eq.s32.totalorder %s29, 1
    %p257 = scmp.ne.s32.totalorder %s252, %s254
    %p258 = scmp.eq.s32.totalorder %s29, 0
    %p259 = por %p257, %p258
    %p260 = scmp.ne.s32.totalorder %s252, %s254
    %p261 = scmp.eq.s32.totalorder %s34, 1
    %p262 = por %p260, %p261
    %p263 = scmp.ne.s32.totalorder %s254, %s255
    %p264 = scmp.eq.s32.totalorder %s34, 0
    %p265 = por %p263, %p264
    %p266 = scmp.ne.s32.totalorder %s254, %s255
    %p267 = scmp.eq.s32.totalorder %s35, 1
    %p268 = por %p266, %p267
    %p270 = scmp.ne.s32.totalorder %s255, %s269
    %p271 = scmp.eq.s32.totalorder %s35, 0
    %p272 = por %p270, %p271
    %s274 = sadd.s32 %s273, 1
    %p277 = scmp.eq.s32.totalorder %s29, 1
    %p278 = scmp.ne.s32.totalorder %s273, %s275
    %p279 = scmp.eq.s32.totalorder %s29, 0
    %p280 = por %p278, %p279
    %p281 = scmp.ne.s32.totalorder %s273, %s275
    %p282 = scmp.eq.s32.totalorder %s34, 1
    %p283 = por %p281, %p282
    %p284 = scmp.ne.s32.totalorder %s275, %s276
    %p285 = scmp.eq.s32.totalorder %s34, 0
    %p286 = por %p284, %p285
    %p287 = scmp.ne.s32.totalorder %s275, %s276
    %p288 = scmp.eq.s32.totalorder %s35, 1
    %p289 = por %p287, %p288
    %p291 = scmp.ne.s32.totalorder %s276, %s290
    %p292 = scmp.eq.s32.totalorder %s35, 0
    %p293 = por %p291, %p292
    %s295 = sadd.s32 %s294, 1
    %p298 = scmp.eq.s32.totalorder %s29, 1
    %p299 = scmp.ne.s32.totalorder %s294, %s296
    %p300 = scmp.eq.s32.totalorder %s29, 0
    %p301 = por %p299, %p300
    %p302 = scmp.ne.s32.totalorder %s294, %s296
    %p303 = scmp.eq.s32.totalorder %s34, 1
    %p304 = por %p302, %p303
    %p305 = scmp.ne.s32.totalorder %s296, %s297
    %p306 = scmp.eq.s32.totalorder %s34, 0
    %p307 = por %p305, %p306
    %p308 = scmp.ne.s32.totalorder %s296, %s297
    %p309 = scmp.eq.s32.totalorder %s35, 1
    %p310 = por %p308, %p309
    %p312 = scmp.ne.s32.totalorder %s297, %s311
    %p313 = scmp.eq.s32.totalorder %s35, 0
    %p314 = por %p312, %p313
    %s316 = sadd.s32 %s315, 1
    %p319 = scmp.eq.s32.totalorder %s29, 1
    %p320 = scmp.ne.s32.totalorder %s315, %s317
    %p321 = scmp.eq.s32.totalorder %s29, 0
    %p322 = por %p320, %p321
    %p323 = scmp.ne.s32.totalorder %s315, %s317
    %p324 = scmp.eq.s32.totalorder %s34, 1
    %p325 = por %p323, %p324
    %p326 = scmp.ne.s32.totalorder %s317, %s318
    %p327 = scmp.eq.s32.totalorder %s34, 0
    %p328 = por %p326, %p327
    %p329 = scmp.ne.s32.totalorder %s317, %s318
    %p330 = scmp.eq.s32.totalorder %s35, 1
    %p331 = por %p329, %p330
    %p333 = scmp.ne.s32.totalorder %s318, %s332
    %p334 = scmp.eq.s32.totalorder %s35, 0
    %p335 = por %p333, %p334
    %s337 = sadd.s32 %s336, 1
    %p340 = scmp.eq.s32.totalorder %s29, 1
    %p341 = scmp.ne.s32.totalorder %s336, %s338
    %p342 = scmp.eq.s32.totalorder %s29, 0
    %p343 = por %p341, %p342
    %p344 = scmp.ne.s32.totalorder %s336, %s338
    %p345 = scmp.eq.s32.totalorder %s34, 1
    %p346 = por %p344, %p345
    %p347 = scmp.ne.s32.totalorder %s338, %s339
    %p348 = scmp.eq.s32.totalorder %s34, 0
    %p349 = por %p347, %p348
    %p350 = scmp.ne.s32.totalorder %s338, %s339
    %p351 = scmp.eq.s32.totalorder %s35, 1
    %p352 = por %p350, %p351
    %p354 = scmp.ne.s32.totalorder %s339, %s353
    %p355 = scmp.eq.s32.totalorder %s35, 0
    %p356 = por %p354, %p355
    %s358 = sadd.s32 %s357, 1
    %p361 = scmp.eq.s32.totalorder %s29, 1
    %p362 = scmp.ne.s32.totalorder %s357, %s359
    %p363 = scmp.eq.s32.totalorder %s29, 0
    %p364 = por %p362, %p363
    %p365 = scmp.ne.s32.totalorder %s357, %s359
    %p366 = scmp.eq.s32.totalorder %s34, 1
    %p367 = por %p365, %p366
    %p368 = scmp.ne.s32.totalorder %s359, %s360
    %p369 = scmp.eq.s32.totalorder %s34, 0
    %p370 = por %p368, %p369
    %p371 = scmp.ne.s32.totalorder %s359, %s360
    %p372 = scmp.eq.s32.totalorder %s35, 1
    %p373 = por %p371, %p372
    %p375 = scmp.ne.s32.totalorder %s360, %s374
    %p376 = scmp.eq.s32.totalorder %s35, 0
    %p377 = por %p375, %p376
    %s379 = sadd.s32 %s378, 1
    %p382 = scmp.eq.s32.totalorder %s29, 1
    %p383 = scmp.ne.s32.totalorder %s378, %s380
    %p384 = scmp.eq.s32.totalorder %s29, 0
    %p385 = por %p383, %p384
    %p386 = scmp.ne.s32.totalorder %s378, %s380
    %p387 = scmp.eq.s32.totalorder %s34, 1
    %p388 = por %p386, %p387
    %p389 = scmp.ne.s32.totalorder %s380, %s381
    %p390 = scmp.eq.s32.totalorder %s34, 0
    %p391 = por %p389, %p390
    %p392 = scmp.ne.s32.totalorder %s380, %s381
    %p393 = scmp.eq.s32.totalorder %s35, 1
    %p394 = por %p392, %p393
    %p396 = scmp.ne.s32.totalorder %s381, %s395
    %p397 = scmp.eq.s32.totalorder %s35, 0
    %p398 = por %p396, %p397
    %s400 = sadd.s32 %s399, 1
    %p403 = scmp.eq.s32.totalorder %s29, 1
    %p404 = scmp.ne.s32.totalorder %s399, %s401
    %p405 = scmp.eq.s32.totalorder %s29, 0
    %p406 = por %p404, %p405
    %p407 = scmp.ne.s32.totalorder %s399, %s401
    %p408 = scmp.eq.s32.totalorder %s34, 1
    %p409 = por %p407, %p408
    %p410 = scmp.ne.s32.totalorder %s401, %s402
    %p411 = scmp.eq.s32.totalorder %s34, 0
    %p412 = por %p410, %p411
    %p413 = scmp.ne.s32.totalorder %s401, %s402
    %p414 = scmp.eq.s32.totalorder %s35, 1
    %p415 = por %p413, %p414
    %p417 = scmp.ne.s32.totalorder %s402, %s416
    %p418 = scmp.eq.s32.totalorder %s35, 0
    %p419 = por %p417, %p418
    %s421 = sadd.s32 %s420, 1
    %p424 = scmp.eq.s32.totalorder %s29, 1
    %p425 = scmp.ne.s32.totalorder %s420, %s422
    %p426 = scmp.eq.s32.totalorder %s29, 0
    %p427 = por %p425, %p426
    %p428 = scmp.ne.s32.totalorder %s420, %s422
    %p429 = scmp.eq.s32.totalorder %s34, 1
    %p430 = por %p428, %p429
    %p431 = scmp.ne.s32.totalorder %s422, %s423
    %p432 = scmp.eq.s32.totalorder %s34, 0
    %p433 = por %p431, %p432
    %p434 = scmp.ne.s32.totalorder %s422, %s423
    %p435 = scmp.eq.s32.totalorder %s35, 1
    %p436 = por %p434, %p435
    %p438 = scmp.ne.s32.totalorder %s423, %s437
    %p439 = scmp.eq.s32.totalorder %s35, 0
    %p440 = por %p438, %p439
    %s442 = sadd.s32 %s441, 1
    %p445 = scmp.eq.s32.totalorder %s29, 1
    %p446 = scmp.ne.s32.totalorder %s441, %s443
    %p447 = scmp.eq.s32.totalorder %s29, 0
    %p448 = por %p446, %p447
    %p449 = scmp.ne.s32.totalorder %s441, %s443
    %p450 = scmp.eq.s32.totalorder %s34, 1
    %p451 = por %p449, %p450
    %p452 = scmp.ne.s32.totalorder %s443, %s444
    %p453 = scmp.eq.s32.totalorder %s34, 0
    %p454 = por %p452, %p453
    %p455 = scmp.ne.s32.totalorder %s443, %s444
    %p456 = scmp.eq.s32.totalorder %s35, 1
    %p457 = por %p455, %p456
    %p459 = scmp.ne.s32.totalorder %s444, %s458
    %p460 = scmp.eq.s32.totalorder %s35, 0
    %p461 = por %p459, %p460
    %s463 = sadd.s32 %s462, 1
    %p466 = scmp.eq.s32.totalorder %s29, 1
    %p467 = scmp.ne.s32.totalorder %s462, %s464
    %p468 = scmp.eq.s32.totalorder %s29, 0
    %p469 = por %p467, %p468
    %p470 = scmp.ne.s32.totalorder %s462, %s464
    %p471 = scmp.eq.s32.totalorder %s34, 1
    %p472 = por %p470, %p471
    %p473 = scmp.ne.s32.totalorder %s464, %s465
    %p474 = scmp.eq.s32.totalorder %s34, 0
    %p475 = por %p473, %p474
    %p476 = scmp.ne.s32.totalorder %s464, %s465
    %p477 = scmp.eq.s32.totalorder %s35, 1
    %p478 = por %p476, %p477
    %p480 = scmp.ne.s32.totalorder %s465, %s479
    %p481 = scmp.eq.s32.totalorder %s35, 0
    %p482 = por %p480, %p481
    %s484 = sadd.s32 %s483, 1
    %p487 = scmp.eq.s32.totalorder %s29, 1
    %p488 = scmp.ne.s32.totalorder %s483, %s485
    %p489 = scmp.eq.s32.totalorder %s29, 0
    %p490 = por %p488, %p489
    %p491 = scmp.ne.s32.totalorder %s483, %s485
    %p492 = scmp.eq.s32.totalorder %s34, 1
    %p493 = por %p491, %p492
    %p494 = scmp.ne.s32.totalorder %s485, %s486
    %p495 = scmp.eq.s32.totalorder %s34, 0
    %p496 = por %p494, %p495
    %p497 = scmp.ne.s32.totalorder %s485, %s486
    %p498 = scmp.eq.s32.totalorder %s35, 1
    %p499 = por %p497, %p498
    %p501 = scmp.ne.s32.totalorder %s486, %s500
    %p502 = scmp.eq.s32.totalorder %s35, 0
    %p503 = por %p501, %p502
    %s505 = sadd.s32 %s504, 1
    %p508 = scmp.eq.s32.totalorder %s29, 1
    %p509 = scmp.ne.s32.totalorder %s504, %s506
    %p510 = scmp.eq.s32.totalorder %s29, 0
    %p511 = por %p509, %p510
    %p512 = scmp.ne.s32.totalorder %s504, %s506
    %p513 = scmp.eq.s32.totalorder %s34, 1
    %p514 = por %p512, %p513
    %p515 = scmp.ne.s32.totalorder %s506, %s507
    %p516 = scmp.eq.s32.totalorder %s34, 0
    %p517 = por %p515, %p516
    %p518 = scmp.ne.s32.totalorder %s506, %s507
    %p519 = scmp.eq.s32.totalorder %s35, 1
    %p520 = por %p518, %p519
    %p522 = scmp.ne.s32.totalorder %s507, %s521
    %p523 = scmp.eq.s32.totalorder %s35, 0
    %p524 = por %p522, %p523
    %s525 = ssub.s32 %s29, %s36
    %p526 = scmp.eq.s32.totalorder %s525, 0
    %s528 = sadd.s32 %s527, 1
    %s529 = scalar_select %p526, %s527, %s528
    %p532 = pneg %p526
    %p533 = scmp.eq.s32.totalorder %s29, 1
    %p534 = por %p532, %p533
    %p535 = scmp.ne.s32.totalorder %s527, %s530
    %p536 = scmp.eq.s32.totalorder %s29, 0
    %p537 = por %p535, %p536
    %p538 = scmp.ne.s32.totalorder %s527, %s530
    %p539 = scmp.eq.s32.totalorder %s34, 1
    %p540 = por %p538, %p539
    %p541 = scmp.ne.s32.totalorder %s530, %s531
    %p542 = scmp.eq.s32.totalorder %s34, 0
    %p543 = por %p541, %p542
    %p544 = scmp.ne.s32.totalorder %s530, %s531
    %p545 = scmp.eq.s32.totalorder %s35, 1
    %p546 = por %p544, %p545
    %p548 = scmp.ne.s32.totalorder %s531, %s547
    %p549 = scmp.eq.s32.totalorder %s35, 0
    %p550 = por %p548, %p549
    %p551 = scmp.le.s32.totalorder 1, %s29
    %p552 = scmp.lt.s32.totalorder %s29, 3
    %p553 = pnand %p551, %p552
    %p554 = pneg %p553
    // Predicated region
    $region9: #{permutation_encoder_forward.1} parent=5 // pred_check
      _
    $region10: #{permutation_encoder_forward.1} parent=5 // pred_check_branch
      %556 = sbr.rel (%p553) target = $region12
    $region11: #{permutation_encoder_forward.1} parent=5 // pred_region
      %s557 = ssub.s32 %s29, 1
      // Predicated region
      $region13: #{permutation_encoder_forward.1} parent=11 // pred_check
        %p558 = pneg %p76
      $region14: #{permutation_encoder_forward.1} parent=11 // pred_check_branch
        %560 = sbr.rel (%p558) target = $region16
      $region15: #{permutation_encoder_forward.1} parent=11 // pred_region
        _
      $region16: #{permutation_encoder_forward.1} parent=11 // pred_fallthru
        _
      // Predicated region
      $region17: #{permutation_encoder_forward.1} parent=11 // pred_check
        %p561 = pneg %p97
      $region18: #{permutation_encoder_forward.1} parent=11 // pred_check_branch
        %563 = sbr.rel (%p561) target = $region20
      $region19: #{permutation_encoder_forward.1} parent=11 // pred_region
        _
      $region20: #{permutation_encoder_forward.1} parent=11 // pred_fallthru
        _
      // Predicated region
      $region21: #{permutation_encoder_forward.1} parent=11 // pred_check
        %p564 = pneg %p118
      $region22: #{permutation_encoder_forward.1} parent=11 // pred_check_branch
        %566 = sbr.rel (%p564) target = $region24
      $region23: #{permutation_encoder_forward.1} parent=11 // pred_region
        _
      $region24: #{permutation_encoder_forward.1} parent=11 // pred_fallthru
        _
      // Predicated region
      $region25: #{permutation_encoder_forward.1} parent=11 // pred_check
        %p567 = pneg %p139
      $region26: #{permutation_encoder_forward.1} parent=11 // pred_check_branch
        %569 = sbr.rel (%p567) target = $region28
      $region27: #{permutation_encoder_forward.1} parent=11 // pred_region
        _
      $region28: #{permutation_encoder_forward.1} parent=11 // pred_fallthru
        _
      // Predicated region
      $region29: #{permutation_encoder_forward.1} parent=11 // pred_check
        %p570 = pneg %p160
      $region30: #{permutation_encoder_forward.1} parent=11 // pred_check_branch
        %572 = sbr.rel (%p570) target = $region32
      $region31: #{permutation_encoder_forward.1} parent=11 // pred_region
        _
      $region32: #{permutation_encoder_forward.1} parent=11 // pred_fallthru
        _
      // Predicated region
      $region33: #{permutation_encoder_forward.1} parent=11 // pred_check
        %p573 = pneg %p181
      $region34: #{permutation_encoder_forward.1} parent=11 // pred_check_branch
        %575 = sbr.rel (%p573) target = $region36
      $region35: #{permutation_encoder_forward.1} parent=11 // pred_region
        _
      $region36: #{permutation_encoder_forward.1} parent=11 // pred_fallthru
        _
      // Predicated region
      $region37: #{permutation_encoder_forward.1} parent=11 // pred_check
        %p576 = pneg %p202
      $region38: #{permutation_encoder_forward.1} parent=11 // pred_check_branch
        %578 = sbr.rel (%p576) target = $region40
      $region39: #{permutation_encoder_forward.1} parent=11 // pred_region
        _
      $region40: #{permutation_encoder_forward.1} parent=11 // pred_fallthru
        _
      // Predicated region
      $region41: #{permutation_encoder_forward.1} parent=11 // pred_check
        %p579 = pneg %p223
      $region42: #{permutation_encoder_forward.1} parent=11 // pred_check_branch
        %581 = sbr.rel (%p579) target = $region44
      $region43: #{permutation_encoder_forward.1} parent=11 // pred_region
        _
      $region44: #{permutation_encoder_forward.1} parent=11 // pred_fallthru
        _
      // Predicated region
      $region45: #{permutation_encoder_forward.1} parent=11 // pred_check
        %p582 = pneg %p244
      $region46: #{permutation_encoder_forward.1} parent=11 // pred_check_branch
        %584 = sbr.rel (%p582) target = $region48
      $region47: #{permutation_encoder_forward.1} parent=11 // pred_region
        _
      $region48: #{permutation_encoder_forward.1} parent=11 // pred_fallthru
        _
      // Predicated region
      $region49: #{permutation_encoder_forward.1} parent=11 // pred_check
        %p585 = pneg %p265
      $region50: #{permutation_encoder_forward.1} parent=11 // pred_check_branch
        %587 = sbr.rel (%p585) target = $region52
      $region51: #{permutation_encoder_forward.1} parent=11 // pred_region
        _
      $region52: #{permutation_encoder_forward.1} parent=11 // pred_fallthru
        _
      // Predicated region
      $region53: #{permutation_encoder_forward.1} parent=11 // pred_check
        %p588 = pneg %p286
      $region54: #{permutation_encoder_forward.1} parent=11 // pred_check_branch
        %590 = sbr.rel (%p588) target = $region56
      $region55: #{permutation_encoder_forward.1} parent=11 // pred_region
        _
      $region56: #{permutation_encoder_forward.1} parent=11 // pred_fallthru
        _
      // Predicated region
      $region57: #{permutation_encoder_forward.1} parent=11 // pred_check
        %p591 = pneg %p307
      $region58: #{permutation_encoder_forward.1} parent=11 // pred_check_branch
        %593 = sbr.rel (%p591) target = $region60
      $region59: #{permutation_encoder_forward.1} parent=11 // pred_region
        _
      $region60: #{permutation_encoder_forward.1} parent=11 // pred_fallthru
        _
      // Predicated region
      $region61: #{permutation_encoder_forward.1} parent=11 // pred_check
        %p594 = pneg %p328
      $region62: #{permutation_encoder_forward.1} parent=11 // pred_check_branch
        %596 = sbr.rel (%p594) target = $region64
      $region63: #{permutation_encoder_forward.1} parent=11 // pred_region
        _
      $region64: #{permutation_encoder_forward.1} parent=11 // pred_fallthru
        _
      // Predicated region
      $region65: #{permutation_encoder_forward.1} parent=11 // pred_check
        %p597 = pneg %p349
      $region66: #{permutation_encoder_forward.1} parent=11 // pred_check_branch
        %599 = sbr.rel (%p597) target = $region68
      $region67: #{permutation_encoder_forward.1} parent=11 // pred_region
        _
      $region68: #{permutation_encoder_forward.1} parent=11 // pred_fallthru
        _
      // Predicated region
      $region69: #{permutation_encoder_forward.1} parent=11 // pred_check
        %p600 = pneg %p370
      $region70: #{permutation_encoder_forward.1} parent=11 // pred_check_branch
        %602 = sbr.rel (%p600) target = $region72
      $region71: #{permutation_encoder_forward.1} parent=11 // pred_region
        _
      $region72: #{permutation_encoder_forward.1} parent=11 // pred_fallthru
        _
      // Predicated region
      $region73: #{permutation_encoder_forward.1} parent=11 // pred_check
        %p603 = pneg %p391
      $region74: #{permutation_encoder_forward.1} parent=11 // pred_check_branch
        %605 = sbr.rel (%p603) target = $region76
      $region75: #{permutation_encoder_forward.1} parent=11 // pred_region
        _
      $region76: #{permutation_encoder_forward.1} parent=11 // pred_fallthru
        _
      // Predicated region
      $region77: #{permutation_encoder_forward.1} parent=11 // pred_check
        %p606 = pneg %p412
      $region78: #{permutation_encoder_forward.1} parent=11 // pred_check_branch
        %608 = sbr.rel (%p606) target = $region80
      $region79: #{permutation_encoder_forward.1} parent=11 // pred_region
        _
      $region80: #{permutation_encoder_forward.1} parent=11 // pred_fallthru
        _
      // Predicated region
      $region81: #{permutation_encoder_forward.1} parent=11 // pred_check
        %p609 = pneg %p433
      $region82: #{permutation_encoder_forward.1} parent=11 // pred_check_branch
        %611 = sbr.rel (%p609) target = $region84
      $region83: #{permutation_encoder_forward.1} parent=11 // pred_region
        _
      $region84: #{permutation_encoder_forward.1} parent=11 // pred_fallthru
        _
      // Predicated region
      $region85: #{permutation_encoder_forward.1} parent=11 // pred_check
        %p612 = pneg %p454
      $region86: #{permutation_encoder_forward.1} parent=11 // pred_check_branch
        %614 = sbr.rel (%p612) target = $region88
      $region87: #{permutation_encoder_forward.1} parent=11 // pred_region
        _
      $region88: #{permutation_encoder_forward.1} parent=11 // pred_fallthru
        _
      // Predicated region
      $region89: #{permutation_encoder_forward.1} parent=11 // pred_check
        %p615 = pneg %p475
      $region90: #{permutation_encoder_forward.1} parent=11 // pred_check_branch
        %617 = sbr.rel (%p615) target = $region92
      $region91: #{permutation_encoder_forward.1} parent=11 // pred_region
        _
      $region92: #{permutation_encoder_forward.1} parent=11 // pred_fallthru
        _
      // Predicated region
      $region93: #{permutation_encoder_forward.1} parent=11 // pred_check
        %p618 = pneg %p496
      $region94: #{permutation_encoder_forward.1} parent=11 // pred_check_branch
        %620 = sbr.rel (%p618) target = $region96
      $region95: #{permutation_encoder_forward.1} parent=11 // pred_region
        _
      $region96: #{permutation_encoder_forward.1} parent=11 // pred_fallthru
        _
      // Predicated region
      $region97: #{permutation_encoder_forward.1} parent=11 // pred_check
        %p621 = pneg %p517
      $region98: #{permutation_encoder_forward.1} parent=11 // pred_check_branch
        %623 = sbr.rel (%p621) target = $region100
      $region99: #{permutation_encoder_forward.1} parent=11 // pred_region
        _
      $region100: #{permutation_encoder_forward.1} parent=11 // pred_fallthru
        _
    $region12: #{permutation_encoder_forward.1} parent=5 // pred_fallthru
      _
    %p624 = scmp.lt.s32.totalorder %s29, 2
    // Predicated region
    $region101: #{permutation_encoder_forward.1} parent=5 // pred_check
      %p625 = pneg %p624
    $region102: #{permutation_encoder_forward.1} parent=5 // pred_check_branch
      %627 = sbr.rel (%p625) target = $region104
    $region103: #{permutation_encoder_forward.1} parent=5 // pred_region
      // Predicated region
      $region105: #{permutation_encoder_forward.1} parent=103 // pred_check
        %p628 = pneg %p49
      $region106: #{permutation_encoder_forward.1} parent=103 // pred_check_branch
        %630 = sbr.rel (%p628) target = $region108
      $region107: #{permutation_encoder_forward.1} parent=103 // pred_region
        %p631 = scmp.lt.s32.totalorder %s29, 1
        %s632 = scalar_select %p631, %s29, 1
        %s633 = smul.addr %s632, 8
        %s634 = scalar_lea.vmem %s0, %s633
      $region108: #{permutation_encoder_forward.1} parent=103 // pred_fallthru
        _
    $region104: #{permutation_encoder_forward.1} parent=5 // pred_fallthru
      _
    %p635 = scmp.le.s32.totalorder 1, %s29
    %p636 = scmp.lt.s32.totalorder %s29, 3
    %p637 = pnand %p635, %p636
    %p638 = pneg %p637
    // Predicated region
    $region109: #{permutation_encoder_forward.1} parent=5 // pred_check
      _
    $region110: #{permutation_encoder_forward.1} parent=5 // pred_check_branch
      %640 = sbr.rel (%p637) target = $region112
    $region111: #{permutation_encoder_forward.1} parent=5 // pred_region
      %s641 = ssub.s32 %s29, 1
      %p642 = scmp.lt.s32.totalorder %s34, 1
      %s643 = scalar_select %p642, %s34, 1
      %s644 = smul.addr %s643, 8
      %s645 = scalar_lea.vmem %s0, %s644
      %p646 = pneg %p55
      %p647 = pneg %p52
      %p648 = pneg %p76
      %p649 = pneg %p73
      %p650 = pneg %p97
      %p651 = pneg %p94
      %p652 = pneg %p118
      %p653 = pneg %p115
      %p654 = pneg %p139
      %p655 = pneg %p136
      %p656 = pneg %p160
      %p657 = pneg %p157
      %p658 = pneg %p181
      %p659 = pneg %p178
      %p660 = pneg %p202
      %p661 = pneg %p199
      %p662 = pneg %p223
      %p663 = pneg %p220
      %p664 = pneg %p244
      %p665 = pneg %p241
      %p666 = pneg %p265
      %p667 = pneg %p262
      %p668 = pneg %p286
      %p669 = pneg %p283
      %p670 = pneg %p307
      %p671 = pneg %p304
      %p672 = pneg %p328
      %p673 = pneg %p325
      %p674 = pneg %p349
      %p675 = pneg %p346
      %p676 = pneg %p370
      %p677 = pneg %p367
      %p678 = pneg %p391
      %p679 = pneg %p388
      %p680 = pneg %p412
      %p681 = pneg %p409
      %p682 = pneg %p433
      %p683 = pneg %p430
      %p684 = pneg %p454
      %p685 = pneg %p451
      %p686 = pneg %p475
      %p687 = pneg %p472
      %p688 = pneg %p496
      %p689 = pneg %p493
      %p690 = pneg %p517
      %p691 = pneg %p514
      %p692 = pneg %p543
      %p693 = pneg %p540
      %p694 = scmp.lt.s32.totalorder %s34, 1
      %s695 = scalar_select %p694, %s34, 1
      %s696 = smul.addr %s695, 2
      %s697 = smul.addr %s696, 8
      %s698 = scalar_lea.vmem %s23, %s697
      %p699 = scmp.lt.s32.totalorder %s34, 1
      %s700 = scalar_select %p699, %s34, 1
      %s701 = smul.addr %s700, 8
      %s702 = scalar_lea.vmem %s0, %s701
      %p703 = scmp.lt.s32.totalorder %s34, 1
      %s704 = scalar_select %p703, %s34, 1
      %s705 = smul.addr %s704, 2
      %s706 = smul.addr %s705, 8
      %s707 = scalar_lea.vmem %s23, %s706
      %v708 = vld [vmem:[%s702] sm:$0xff]
      %v709 = vld [vmem:[%s7] sm:$0x3f]
      %vm710 = vcmask 261120
      %v711 = vsel %vm710, %v708, 0.0
      %712 = vadd.xlane.f32.xlu0 %v711
      %v713 = vpop.xlane.xlu0 %712
      %v714 = vrcp.pop 32.0
      %v715 = vmul.f32 %v713, %v714
      %v716 = vsub.f32 %v708, %v715
      %v717 = vmul.f32 %v716, %v716
      %v718 = vsel %vm710, %v717, 0.0
      %719 = vadd.xlane.f32.xlu0 %v718
      %v720 = vpop.xlane.xlu0 %719
      %v721 = vmul.f32 %v720, %v714
      %v722 = vadd.f32 %v721, 1e-05
      %v723 = vrsqrt.pop %v722
      %v724 = vmul.f32 %v716, %v723
      %v725 = vlaneseq
      %v726 = vshrl.u32 %v725, 7
      %v727 = vsub.s32 0, %v726
      %v728 = vrot.slane %v709, %v727
      %v729 = vmul.f32 %v724, %v728
      %v730 = vlaneseq
      %v731 = vshrl.u32 %v730, 7
      %v732 = vsub.s32 1, %v731
      %v733 = vrot.slane %v709, %v732
      %v734 = vadd.f32 %v729, %v733
      %v735 = vld [vmem:[%s2] sm:$0x7]
      %v736 = vld [vmem:[%s1] sm:$0xff]
      %v737 = vld [vmem:[%s1 + $0x8] sm:$0xff]
      %v738 = vld [vmem:[%s1 + $0x10] sm:$0xff]
      %v739 = vld [vmem:[%s1 + $0x18] sm:$0xff]
      %v740 = vlaneseq
      %v741 = vshrl.u32 %v740, 7
      %v742 = vsub.s32 0, %v741
      %v743 = vrot.slane %v735, %v742
      %v745 = vsel %vm710, %v734, 0
      %747 = vmatprep.subr.mxu0 0.0
      %748 = vmatpush1.msra.mxu0 0.0
      %749 = vmatprep.subr.mxu0 0.0
      %750 = vmatpush1.msra.mxu0 0.0
      %751 = vmatprep.subr.mxu0 0.0
      %752 = vmatpush1.msra.mxu0 0.0
      %753 = vmatprep.subr.mxu0 0.0
      %754 = vmatpush1.msra.mxu0 0.0
      %755 = vmatprep.subr.mxu0 0.0
      %756 = vmatpush1.msra.mxu0 0.0
      %757 = vmatprep.subr.mxu0 0.0
      %758 = vmatpush1.msra.mxu0 0.0
      %759 = vmatprep.subr.mxu0 0.0
      %760 = vmatpush1.msra.mxu0 0.0
      %761 = vmatprep.subr.mxu0 0.0
      %762 = vmatpush1.msra.mxu0 0.0
      %763 = vmatprep.subr.mxu0 0.0
      %764 = vmatpush1.msra.mxu0 0.0
      %765 = vmatprep.subr.mxu0 0.0
      %766 = vmatpush1.msra.mxu0 0.0
      %767 = vmatprep.subr.mxu0 0.0
      %768 = vmatpush1.msra.mxu0 0.0
      %769 = vmatprep.subr.mxu0 0.0
      %770 = vmatpush1.msra.mxu0 0.0
      %771 = vmatprep.subr.mxu0 0.0
      %772 = vmatpush1.msra.mxu0 %v739
      %773 = vmatprep.subr.mxu0 0.0
      %774 = vmatpush1.msra.mxu0 %v738
      %775 = vmatprep.subr.mxu0 0.0
      %776 = vmatpush1.msra.mxu0 %v737
      %777 = vmatprep.subr.mxu0 0.0
      %778 = vmatpush1.msra.mxu0 %v736
      %779 = vmatprep.subr.mxu0 0.0
      %780 = vmatpush2.msra.mxu0 0.0
      %781 = vmatprep.subr.mxu0 0.0
      %782 = vmatpush2.msra.mxu0 0.0
      %783 = vmatprep.subr.mxu0 0.0
      %784 = vmatpush2.msra.mxu0 0.0
      %785 = vmatprep.subr.mxu0 0.0
      %786 = vmatpush2.msra.mxu0 0.0
      %787 = vmatprep.subr.mxu0 0.0
      %788 = vmatpush2.msra.mxu0 0.0
      %789 = vmatprep.subr.mxu0 0.0
      %790 = vmatpush2.msra.mxu0 0.0
      %791 = vmatprep.subr.mxu0 0.0
      %792 = vmatpush2.msra.mxu0 0.0
      %793 = vmatprep.subr.mxu0 0.0
      %794 = vmatpush2.msra.mxu0 0.0
      %795 = vmatprep.subr.mxu0 0.0
      %796 = vmatpush2.msra.mxu0 0.0
      %797 = vmatprep.subr.mxu0 0.0
      %798 = vmatpush2.msra.mxu0 0.0
      %799 = vmatprep.subr.mxu0 0.0
      %800 = vmatpush2.msra.mxu0 0.0
      %801 = vmatprep.subr.mxu0 0.0
      %802 = vmatpush2.msra.mxu0 0.0
      %803 = vmatprep.subr.mxu0 0.0
      %804 = vmatpush2.msra.mxu0 0.0
      %805 = vmatprep.subr.mxu0 0.0
      %806 = vmatpush2.msra.mxu0 0.0
      %807 = vmatprep.subr.mxu0 0.0
      %808 = vmatpush2.msra.mxu0 0.0
      %809 = vmatprep.subr.mxu0 0.0
      %810 = vmatpush2.msra.mxu0 0.0
      %811 = vmatprep.mubr.f32.mxu0 0.0
      %812 = vmatmul.mubr.f32.gmra.mxu0 %v745
      %v813 = vpop.f32.mrf.mxu0
      %v814 = vadd.f32 %v743, %v813
      %v815 = vpop.f32.mrf.mxu0
      %816 = vdwg.mxu0
      %s817 = scalar_lea.vmem %s1, 32
      %v818 = vld [vmem:[%s817] sm:$0xff]
      %v819 = vld [vmem:[%s817 + $0x8] sm:$0xff]
      %v820 = vld [vmem:[%s817 + $0x10] sm:$0xff]
      %v821 = vld [vmem:[%s817 + $0x18] sm:$0xff]
      %v822 = vlaneseq
      %v823 = vshrl.u32 %v822, 7
      %v824 = vsub.s32 1, %v823
      %v825 = vrot.slane %v735, %v824
      %826 = vmatprep.subr.mxu0 0.0
      %827 = vmatpush1.msra.mxu0 0.0
      %828 = vmatprep.subr.mxu0 0.0
      %829 = vmatpush1.msra.mxu0 0.0
      %830 = vmatprep.subr.mxu0 0.0
      %831 = vmatpush1.msra.mxu0 0.0
      %832 = vmatprep.subr.mxu0 0.0
      %833 = vmatpush1.msra.mxu0 0.0
      %834 = vmatprep.subr.mxu0 0.0
      %835 = vmatpush1.msra.mxu0 0.0
      %836 = vmatprep.subr.mxu0 0.0
      %837 = vmatpush1.msra.mxu0 0.0
      %838 = vmatprep.subr.mxu0 0.0
      %839 = vmatpush1.msra.mxu0 0.0
      %840 = vmatprep.subr.mxu0 0.0
      %841 = vmatpush1.msra.mxu0 0.0
      %842 = vmatprep.subr.mxu0 0.0
      %843 = vmatpush1.msra.mxu0 0.0
      %844 = vmatprep.subr.mxu0 0.0
      %845 = vmatpush1.msra.mxu0 0.0
      %846 = vmatprep.subr.mxu0 0.0
      %847 = vmatpush1.msra.mxu0 0.0
      %848 = vmatprep.subr.mxu0 0.0
      %849 = vmatpush1.msra.mxu0 0.0
      %850 = vmatprep.subr.mxu0 0.0
      %851 = vmatpush1.msra.mxu0 %v821
      %852 = vmatprep.subr.mxu0 0.0
      %853 = vmatpush1.msra.mxu0 %v820
      %854 = vmatprep.subr.mxu0 0.0
      %855 = vmatpush1.msra.mxu0 %v819
      %856 = vmatprep.subr.mxu0 0.0
      %857 = vmatpush1.msra.mxu0 %v818
      %858 = vmatprep.subr.mxu0 0.0
      %859 = vmatpush2.msra.mxu0 0.0
      %860 = vmatprep.subr.mxu0 0.0
      %861 = vmatpush2.msra.mxu0 0.0
      %862 = vmatprep.subr.mxu0 0.0
      %863 = vmatpush2.msra.mxu0 0.0
      %864 = vmatprep.subr.mxu0 0.0
      %865 = vmatpush2.msra.mxu0 0.0
      %866 = vmatprep.subr.mxu0 0.0
      %867 = vmatpush2.msra.mxu0 0.0
      %868 = vmatprep.subr.mxu0 0.0
      %869 = vmatpush2.msra.mxu0 0.0
      %870 = vmatprep.subr.mxu0 0.0
      %871 = vmatpush2.msra.mxu0 0.0
      %872 = vmatprep.subr.mxu0 0.0
      %873 = vmatpush2.msra.mxu0 0.0
      %874 = vmatprep.subr.mxu0 0.0
      %875 = vmatpush2.msra.mxu0 0.0
      %876 = vmatprep.subr.mxu0 0.0
      %877 = vmatpush2.msra.mxu0 0.0
      %878 = vmatprep.subr.mxu0 0.0
      %879 = vmatpush2.msra.mxu0 0.0
      %880 = vmatprep.subr.mxu0 0.0
      %881 = vmatpush2.msra.mxu0 0.0
      %882 = vmatprep.subr.mxu0 0.0
      %883 = vmatpush2.msra.mxu0 0.0
      %884 = vmatprep.subr.mxu0 0.0
      %885 = vmatpush2.msra.mxu0 0.0
      %886 = vmatprep.subr.mxu0 0.0
      %887 = vmatpush2.msra.mxu0 0.0
      %888 = vmatprep.subr.mxu0 0.0
      %889 = vmatpush2.msra.mxu0 0.0
      %890 = vmatprep.mubr.f32.mxu0 0.0
      %891 = vmatmul.mubr.f32.gmra.mxu0 %v745
      %v892 = vpop.f32.mrf.mxu0
      %v893 = vadd.f32 %v825, %v892
      %v894 = vpop.f32.mrf.mxu0
      %895 = vdwg.mxu0
      %s896 = scalar_lea.vmem %s1, 64
      %v897 = vld [vmem:[%s896] sm:$0xff]
      %v898 = vld [vmem:[%s896 + $0x8] sm:$0xff]
      %v899 = vld [vmem:[%s896 + $0x10] sm:$0xff]
      %v900 = vld [vmem:[%s896 + $0x18] sm:$0xff]
      %v901 = vlaneseq
      %v902 = vshrl.u32 %v901, 7
      %v903 = vsub.s32 2, %v902
      %v904 = vrot.slane %v735, %v903
      %905 = vmatprep.subr.mxu0 0.0
      %906 = vmatpush1.msra.mxu0 0.0
      %907 = vmatprep.subr.mxu0 0.0
      %908 = vmatpush1.msra.mxu0 0.0
      %909 = vmatprep.subr.mxu0 0.0
      %910 = vmatpush1.msra.mxu0 0.0
      %911 = vmatprep.subr.mxu0 0.0
      %912 = vmatpush1.msra.mxu0 0.0
      %913 = vmatprep.subr.mxu0 0.0
      %914 = vmatpush1.msra.mxu0 0.0
      %915 = vmatprep.subr.mxu0 0.0
      %916 = vmatpush1.msra.mxu0 0.0
      %917 = vmatprep.subr.mxu0 0.0
      %918 = vmatpush1.msra.mxu0 0.0
      %919 = vmatprep.subr.mxu0 0.0
      %920 = vmatpush1.msra.mxu0 0.0
      %921 = vmatprep.subr.mxu0 0.0
      %922 = vmatpush1.msra.mxu0 0.0
      %923 = vmatprep.subr.mxu0 0.0
      %924 = vmatpush1.msra.mxu0 0.0
      %925 = vmatprep.subr.mxu0 0.0
      %926 = vmatpush1.msra.mxu0 0.0
      %927 = vmatprep.subr.mxu0 0.0
      %928 = vmatpush1.msra.mxu0 0.0
      %929 = vmatprep.subr.mxu0 0.0
      %930 = vmatpush1.msra.mxu0 %v900
      %931 = vmatprep.subr.mxu0 0.0
      %932 = vmatpush1.msra.mxu0 %v899
      %933 = vmatprep.subr.mxu0 0.0
      %934 = vmatpush1.msra.mxu0 %v898
      %935 = vmatprep.subr.mxu0 0.0
      %936 = vmatpush1.msra.mxu0 %v897
      %937 = vmatprep.subr.mxu0 0.0
      %938 = vmatpush2.msra.mxu0 0.0
      %939 = vmatprep.subr.mxu0 0.0
      %940 = vmatpush2.msra.mxu0 0.0
      %941 = vmatprep.subr.mxu0 0.0
      %942 = vmatpush2.msra.mxu0 0.0
      %943 = vmatprep.subr.mxu0 0.0
      %944 = vmatpush2.msra.mxu0 0.0
      %945 = vmatprep.subr.mxu0 0.0
      %946 = vmatpush2.msra.mxu0 0.0
      %947 = vmatprep.subr.mxu0 0.0
      %948 = vmatpush2.msra.mxu0 0.0
      %949 = vmatprep.subr.mxu0 0.0
      %950 = vmatpush2.msra.mxu0 0.0
      %951 = vmatprep.subr.mxu0 0.0
      %952 = vmatpush2.msra.mxu0 0.0
      %953 = vmatprep.subr.mxu0 0.0
      %954 = vmatpush2.msra.mxu0 0.0
      %955 = vmatprep.subr.mxu0 0.0
      %956 = vmatpush2.msra.mxu0 0.0
      %957 = vmatprep.subr.mxu0 0.0
      %958 = vmatpush2.msra.mxu0 0.0
      %959 = vmatprep.subr.mxu0 0.0
      %960 = vmatpush2.msra.mxu0 0.0
      %961 = vmatprep.subr.mxu0 0.0
      %962 = vmatpush2.msra.mxu0 0.0
      %963 = vmatprep.subr.mxu0 0.0
      %964 = vmatpush2.msra.mxu0 0.0
      %965 = vmatprep.subr.mxu0 0.0
      %966 = vmatpush2.msra.mxu0 0.0
      %967 = vmatprep.subr.mxu0 0.0
      %968 = vmatpush2.msra.mxu0 0.0
      %969 = vmatprep.mubr.f32.mxu0 0.0
      %970 = vmatmul.mubr.f32.gmra.mxu0 %v745
      %v971 = vpop.f32.mrf.mxu0
      %v972 = vadd.f32 %v904, %v971
      %v973 = vpop.f32.mrf.mxu0
      %974 = vdwg.mxu0
      %vm975 = vcmask 64512
      %v977 = vsel %vm975, %v814, 0
      %v980 = vsel %vm975, %v893, 0
      %982 = vmatprep.subr.mxu0 0.0
      %983 = vmatpush1.xpose.msra.mxu0 0.0
      %984 = vmatprep.subr.mxu0 0.0
      %985 = vmatpush1.xpose.msra.mxu0 0.0
      %986 = vmatprep.subr.mxu0 0.0
      %987 = vmatpush1.xpose.msra.mxu0 0.0
      %988 = vmatprep.subr.mxu0 0.0
      %989 = vmatpush1.xpose.msra.mxu0 0.0
      %990 = vmatprep.subr.mxu0 0.0
      %991 = vmatpush1.xpose.msra.mxu0 0.0
      %992 = vmatprep.subr.mxu0 0.0
      %993 = vmatpush1.xpose.msra.mxu0 0.0
      %994 = vmatprep.subr.mxu0 0.0
      %995 = vmatpush1.xpose.msra.mxu0 0.0
      %996 = vmatprep.subr.mxu0 0.0
      %997 = vmatpush1.xpose.msra.mxu0 0.0
      %998 = vmatprep.subr.mxu0 0.0
      %999 = vmatpush1.xpose.msra.mxu0 0.0
      %1000 = vmatprep.subr.mxu0 0.0
      %1001 = vmatpush1.xpose.msra.mxu0 0.0
      %1002 = vmatprep.subr.mxu0 0.0
      %1003 = vmatpush1.xpose.msra.mxu0 0.0
      %1004 = vmatprep.subr.mxu0 0.0
      %1005 = vmatpush1.xpose.msra.mxu0 0.0
      %1006 = vmatprep.subr.mxu0 0.0
      %1007 = vmatpush1.xpose.msra.mxu0 0.0
      %1008 = vmatprep.subr.mxu0 0.0
      %1009 = vmatpush1.xpose.msra.mxu0 0.0
      %1010 = vmatprep.subr.mxu0 0.0
      %1011 = vmatpush1.xpose.msra.mxu0 0.0
      %1012 = vmatprep.subr.mxu0 0.0
      %1013 = vmatpush1.xpose.msra.mxu0 %v980
      %1014 = vmatprep.subr.mxu0 0.0
      %1015 = vmatpush2.xpose.msra.mxu0 0.0
      %1016 = vmatprep.subr.mxu0 0.0
      %1017 = vmatpush2.xpose.msra.mxu0 0.0
      %1018 = vmatprep.subr.mxu0 0.0
      %1019 = vmatpush2.xpose.msra.mxu0 0.0
      %1020 = vmatprep.subr.mxu0 0.0
      %1021 = vmatpush2.xpose.msra.mxu0 0.0
      %1022 = vmatprep.subr.mxu0 0.0
      %1023 = vmatpush2.xpose.msra.mxu0 0.0
      %1024 = vmatprep.subr.mxu0 0.0
      %1025 = vmatpush2.xpose.msra.mxu0 0.0
      %1026 = vmatprep.subr.mxu0 0.0
      %1027 = vmatpush2.xpose.msra.mxu0 0.0
      %1028 = vmatprep.subr.mxu0 0.0
      %1029 = vmatpush2.xpose.msra.mxu0 0.0
      %1030 = vmatprep.subr.mxu0 0.0
      %1031 = vmatpush2.xpose.msra.mxu0 0.0
      %1032 = vmatprep.subr.mxu0 0.0
      %1033 = vmatpush2.xpose.msra.mxu0 0.0
      %1034 = vmatprep.subr.mxu0 0.0
      %1035 = vmatpush2.xpose.msra.mxu0 0.0
      %1036 = vmatprep.subr.mxu0 0.0
      %1037 = vmatpush2.xpose.msra.mxu0 0.0
      %1038 = vmatprep.subr.mxu0 0.0
      %1039 = vmatpush2.xpose.msra.mxu0 0.0
      %1040 = vmatprep.subr.mxu0 0.0
      %1041 = vmatpush2.xpose.msra.mxu0 0.0
      %1042 = vmatprep.subr.mxu0 0.0
      %1043 = vmatpush2.xpose.msra.mxu0 0.0
      %1044 = vmatprep.subr.mxu0 0.0
      %1045 = vmatpush2.xpose.msra.mxu0 0.0
      %1046 = vmatprep.mubr.f32.mxu0 0.0
      %1047 = vmatmul.mubr.f32.gmra.mxu0 %v977
      %v1048 = vpop.f32.mrf.mxu0
      %v1049 = vadd.f32 0.0, %v1048
      %v1050 = vpop.f32.mrf.mxu0
      %1051 = vdwg.mxu0
      %v1052 = vmul.f32 %v1049, 0.35355338
      %v1053 = vsel %vm975, %v1052, -inf
      %1054 = vmax.xlane.f32.xlu0 %v1053
      %v1055 = vpop.xlane.xlu0 %1054
      %v1056 = vsub.f32 %v1052, %v1055
      %v1057 = vmul.f32 %v1056, 1.442695
      %v1058 = vpow.pop %v1057
      %v1059 = vsel %vm975, %v1058, 0.0
      %1060 = vadd.xlane.f32.xlu0 %v1059
      %v1061 = vpop.xlane.xlu0 %1060
      %v1062 = vrcp.pop %v1061
      %v1063 = vmul.f32 %v1058, %v1062
      %v1065 = vsel %vm975, %v1063, 0
      %1067 = vmatprep.subr.mxu0 0.0
      %1068 = vmatpush1.msra.mxu0 0.0
      %1069 = vmatprep.subr.mxu0 0.0
      %1070 = vmatpush1.msra.mxu0 0.0
      %1071 = vmatprep.subr.mxu0 0.0
      %1072 = vmatpush1.msra.mxu0 0.0
      %1073 = vmatprep.subr.mxu0 0.0
      %1074 = vmatpush1.msra.mxu0 0.0
      %1075 = vmatprep.subr.mxu0 0.0
      %1076 = vmatpush1.msra.mxu0 0.0
      %1077 = vmatprep.subr.mxu0 0.0
      %1078 = vmatpush1.msra.mxu0 0.0
      %1079 = vmatprep.subr.mxu0 0.0
      %1080 = vmatpush1.msra.mxu0 0.0
      %1081 = vmatprep.subr.mxu0 0.0
      %1082 = vmatpush1.msra.mxu0 0.0
      %1083 = vmatprep.subr.mxu0 0.0
      %1084 = vmatpush1.msra.mxu0 0.0
      %1085 = vmatprep.subr.mxu0 0.0
      %1086 = vmatpush1.msra.mxu0 0.0
      %1087 = vmatprep.subr.mxu0 0.0
      %1088 = vmatpush1.msra.mxu0 0.0
      %1089 = vmatprep.subr.mxu0 0.0
      %1090 = vmatpush1.msra.mxu0 0.0
      %1091 = vmatprep.subr.mxu0 0.0
      %1092 = vmatpush1.msra.mxu0 0.0
      %1093 = vmatprep.subr.mxu0 0.0
      %1094 = vmatpush1.msra.mxu0 0.0
      %1095 = vmatprep.subr.mxu0 0.0
      %1096 = vmatpush1.msra.mxu0 0.0
      %1097 = vmatprep.subr.mxu0 0.0
      %1098 = vmatpush1.msra.mxu0 %v972
      %1099 = vmatprep.subr.mxu0 0.0
      %1100 = vmatpush2.msra.mxu0 0.0
      %1101 = vmatprep.subr.mxu0 0.0
      %1102 = vmatpush2.msra.mxu0 0.0
      %1103 = vmatprep.subr.mxu0 0.0
      %1104 = vmatpush2.msra.mxu0 0.0
      %1105 = vmatprep.subr.mxu0 0.0
      %1106 = vmatpush2.msra.mxu0 0.0
      %1107 = vmatprep.subr.mxu0 0.0
      %1108 = vmatpush2.msra.mxu0 0.0
      %1109 = vmatprep.subr.mxu0 0.0
      %1110 = vmatpush2.msra.mxu0 0.0
      %1111 = vmatprep.subr.mxu0 0.0
      %1112 = vmatpush2.msra.mxu0 0.0
      %1113 = vmatprep.subr.mxu0 0.0
      %1114 = vmatpush2.msra.mxu0 0.0
      %1115 = vmatprep.subr.mxu0 0.0
      %1116 = vmatpush2.msra.mxu0 0.0
      %1117 = vmatprep.subr.mxu0 0.0
      %1118 = vmatpush2.msra.mxu0 0.0
      %1119 = vmatprep.subr.mxu0 0.0
      %1120 = vmatpush2.msra.mxu0 0.0
      %1121 = vmatprep.subr.mxu0 0.0
      %1122 = vmatpush2.msra.mxu0 0.0
      %1123 = vmatprep.subr.mxu0 0.0
      %1124 = vmatpush2.msra.mxu0 0.0
      %1125 = vmatprep.subr.mxu0 0.0
      %1126 = vmatpush2.msra.mxu0 0.0
      %1127 = vmatprep.subr.mxu0 0.0
      %1128 = vmatpush2.msra.mxu0 0.0
      %1129 = vmatprep.subr.mxu0 0.0
      %1130 = vmatpush2.msra.mxu0 0.0
      %1131 = vmatprep.mubr.f32.mxu0 0.0
      %1132 = vmatmul.mubr.f32.gmra.mxu0 %v1065
      %v1133 = vpop.f32.mrf.mxu0
      %v1134 = vadd.f32 0.0, %v1133
      %v1135 = vpop.f32.mrf.mxu0
      %1136 = vdwg.mxu0
      %v1137 = vld [vmem:[%s3] sm:$0xff]
      %s1138 = scalar_lea.vmem %s2, 4
      %v1139 = vld [vmem:[%s1138] sm:$0x7]
      %s1140 = scalar_lea.vmem %s1, 96
      %v1141 = vld [vmem:[%s1140] sm:$0xff]
      %v1142 = vld [vmem:[%s1140 + $0x8] sm:$0xff]
      %v1143 = vld [vmem:[%s1140 + $0x10] sm:$0xff]
      %v1144 = vld [vmem:[%s1140 + $0x18] sm:$0xff]
      %v1145 = vlaneseq
      %v1146 = vshrl.u32 %v1145, 7
      %v1147 = vsub.s32 0, %v1146
      %v1148 = vrot.slane %v1139, %v1147
      %1149 = vmatprep.subr.mxu0 0.0
      %1150 = vmatpush1.msra.mxu0 0.0
      %1151 = vmatprep.subr.mxu0 0.0
      %1152 = vmatpush1.msra.mxu0 0.0
      %1153 = vmatprep.subr.mxu0 0.0
      %1154 = vmatpush1.msra.mxu0 0.0
      %1155 = vmatprep.subr.mxu0 0.0
      %1156 = vmatpush1.msra.mxu0 0.0
      %1157 = vmatprep.subr.mxu0 0.0
      %1158 = vmatpush1.msra.mxu0 0.0
      %1159 = vmatprep.subr.mxu0 0.0
      %1160 = vmatpush1.msra.mxu0 0.0
      %1161 = vmatprep.subr.mxu0 0.0
      %1162 = vmatpush1.msra.mxu0 0.0
      %1163 = vmatprep.subr.mxu0 0.0
      %1164 = vmatpush1.msra.mxu0 0.0
      %1165 = vmatprep.subr.mxu0 0.0
      %1166 = vmatpush1.msra.mxu0 0.0
      %1167 = vmatprep.subr.mxu0 0.0
      %1168 = vmatpush1.msra.mxu0 0.0
      %1169 = vmatprep.subr.mxu0 0.0
      %1170 = vmatpush1.msra.mxu0 0.0
      %1171 = vmatprep.subr.mxu0 0.0
      %1172 = vmatpush1.msra.mxu0 0.0
      %1173 = vmatprep.subr.mxu0 0.0
      %1174 = vmatpush1.msra.mxu0 %v1144
      %1175 = vmatprep.subr.mxu0 0.0
      %1176 = vmatpush1.msra.mxu0 %v1143
      %1177 = vmatprep.subr.mxu0 0.0
      %1178 = vmatpush1.msra.mxu0 %v1142
      %1179 = vmatprep.subr.mxu0 0.0
      %1180 = vmatpush1.msra.mxu0 %v1141
      %1181 = vmatprep.subr.mxu0 0.0
      %1182 = vmatpush2.msra.mxu0 0.0
      %1183 = vmatprep.subr.mxu0 0.0
      %1184 = vmatpush2.msra.mxu0 0.0
      %1185 = vmatprep.subr.mxu0 0.0
      %1186 = vmatpush2.msra.mxu0 0.0
      %1187 = vmatprep.subr.mxu0 0.0
      %1188 = vmatpush2.msra.mxu0 0.0
      %1189 = vmatprep.subr.mxu0 0.0
      %1190 = vmatpush2.msra.mxu0 0.0
      %1191 = vmatprep.subr.mxu0 0.0
      %1192 = vmatpush2.msra.mxu0 0.0
      %1193 = vmatprep.subr.mxu0 0.0
      %1194 = vmatpush2.msra.mxu0 0.0
      %1195 = vmatprep.subr.mxu0 0.0
      %1196 = vmatpush2.msra.mxu0 0.0
      %1197 = vmatprep.subr.mxu0 0.0
      %1198 = vmatpush2.msra.mxu0 0.0
      %1199 = vmatprep.subr.mxu0 0.0
      %1200 = vmatpush2.msra.mxu0 0.0
      %1201 = vmatprep.subr.mxu0 0.0
      %1202 = vmatpush2.msra.mxu0 0.0
      %1203 = vmatprep.subr.mxu0 0.0
      %1204 = vmatpush2.msra.mxu0 0.0
      %1205 = vmatprep.subr.mxu0 0.0
      %1206 = vmatpush2.msra.mxu0 0.0
      %1207 = vmatprep.subr.mxu0 0.0
      %1208 = vmatpush2.msra.mxu0 0.0
      %1209 = vmatprep.subr.mxu0 0.0
      %1210 = vmatpush2.msra.mxu0 0.0
      %1211 = vmatprep.subr.mxu0 0.0
      %1212 = vmatpush2.msra.mxu0 0.0
      %1213 = vmatprep.mubr.f32.mxu0 0.0
      %1214 = vmatmul.mubr.f32.gmra.mxu0 %v745
      %v1215 = vpop.f32.mrf.mxu0
      %v1216 = vadd.f32 %v1148, %v1215
      %v1217 = vpop.f32.mrf.mxu0
      %1218 = vdwg.mxu0
      %s1219 = scalar_lea.vmem %s1, 128
      %v1220 = vld [vmem:[%s1219] sm:$0xff]
      %v1221 = vld [vmem:[%s1219 + $0x8] sm:$0xff]
      %v1222 = vld [vmem:[%s1219 + $0x10] sm:$0xff]
      %v1223 = vld [vmem:[%s1219 + $0x18] sm:$0xff]
      %v1224 = vlaneseq
      %v1225 = vshrl.u32 %v1224, 7
      %v1226 = vsub.s32 1, %v1225
      %v1227 = vrot.slane %v1139, %v1226
      %1228 = vmatprep.subr.mxu0 0.0
      %1229 = vmatpush1.msra.mxu0 0.0
      %1230 = vmatprep.subr.mxu0 0.0
      %1231 = vmatpush1.msra.mxu0 0.0
      %1232 = vmatprep.subr.mxu0 0.0
      %1233 = vmatpush1.msra.mxu0 0.0
      %1234 = vmatprep.subr.mxu0 0.0
      %1235 = vmatpush1.msra.mxu0 0.0
      %1236 = vmatprep.subr.mxu0 0.0
      %1237 = vmatpush1.msra.mxu0 0.0
      %1238 = vmatprep.subr.mxu0 0.0
      %1239 = vmatpush1.msra.mxu0 0.0
      %1240 = vmatprep.subr.mxu0 0.0
      %1241 = vmatpush1.msra.mxu0 0.0
      %1242 = vmatprep.subr.mxu0 0.0
      %1243 = vmatpush1.msra.mxu0 0.0
      %1244 = vmatprep.subr.mxu0 0.0
      %1245 = vmatpush1.msra.mxu0 0.0
      %1246 = vmatprep.subr.mxu0 0.0
      %1247 = vmatpush1.msra.mxu0 0.0
      %1248 = vmatprep.subr.mxu0 0.0
      %1249 = vmatpush1.msra.mxu0 0.0
      %1250 = vmatprep.subr.mxu0 0.0
      %1251 = vmatpush1.msra.mxu0 0.0
      %1252 = vmatprep.subr.mxu0 0.0
      %1253 = vmatpush1.msra.mxu0 %v1223
      %1254 = vmatprep.subr.mxu0 0.0
      %1255 = vmatpush1.msra.mxu0 %v1222
      %1256 = vmatprep.subr.mxu0 0.0
      %1257 = vmatpush1.msra.mxu0 %v1221
      %1258 = vmatprep.subr.mxu0 0.0
      %1259 = vmatpush1.msra.mxu0 %v1220
      %1260 = vmatprep.subr.mxu0 0.0
      %1261 = vmatpush2.msra.mxu0 0.0
      %1262 = vmatprep.subr.mxu0 0.0
      %1263 = vmatpush2.msra.mxu0 0.0
      %1264 = vmatprep.subr.mxu0 0.0
      %1265 = vmatpush2.msra.mxu0 0.0
      %1266 = vmatprep.subr.mxu0 0.0
      %1267 = vmatpush2.msra.mxu0 0.0
      %1268 = vmatprep.subr.mxu0 0.0
      %1269 = vmatpush2.msra.mxu0 0.0
      %1270 = vmatprep.subr.mxu0 0.0
      %1271 = vmatpush2.msra.mxu0 0.0
      %1272 = vmatprep.subr.mxu0 0.0
      %1273 = vmatpush2.msra.mxu0 0.0
      %1274 = vmatprep.subr.mxu0 0.0
      %1275 = vmatpush2.msra.mxu0 0.0
      %1276 = vmatprep.subr.mxu0 0.0
      %1277 = vmatpush2.msra.mxu0 0.0
      %1278 = vmatprep.subr.mxu0 0.0
      %1279 = vmatpush2.msra.mxu0 0.0
      %1280 = vmatprep.subr.mxu0 0.0
      %1281 = vmatpush2.msra.mxu0 0.0
      %1282 = vmatprep.subr.mxu0 0.0
      %1283 = vmatpush2.msra.mxu0 0.0
      %1284 = vmatprep.subr.mxu0 0.0
      %1285 = vmatpush2.msra.mxu0 0.0
      %1286 = vmatprep.subr.mxu0 0.0
      %1287 = vmatpush2.msra.mxu0 0.0
      %1288 = vmatprep.subr.mxu0 0.0
      %1289 = vmatpush2.msra.mxu0 0.0
      %1290 = vmatprep.subr.mxu0 0.0
      %1291 = vmatpush2.msra.mxu0 0.0
      %1292 = vmatprep.mubr.f32.mxu0 0.0
      %1293 = vmatmul.mubr.f32.gmra.mxu0 %v745
      %v1294 = vpop.f32.mrf.mxu0
      %v1295 = vadd.f32 %v1227, %v1294
      %v1296 = vpop.f32.mrf.mxu0
      %1297 = vdwg.mxu0
      %s1298 = scalar_lea.vmem %s1, 160
      %v1299 = vld [vmem:[%s1298] sm:$0xff]
      %v1300 = vld [vmem:[%s1298 + $0x8] sm:$0xff]
      %v1301 = vld [vmem:[%s1298 + $0x10] sm:$0xff]
      %v1302 = vld [vmem:[%s1298 + $0x18] sm:$0xff]
      %v1303 = vlaneseq
      %v1304 = vshrl.u32 %v1303, 7
      %v1305 = vsub.s32 2, %v1304
      %v1306 = vrot.slane %v1139, %v1305
      %1307 = vmatprep.subr.mxu0 0.0
      %1308 = vmatpush1.msra.mxu0 0.0
      %1309 = vmatprep.subr.mxu0 0.0
      %1310 = vmatpush1.msra.mxu0 0.0
      %1311 = vmatprep.subr.mxu0 0.0
      %1312 = vmatpush1.msra.mxu0 0.0
      %1313 = vmatprep.subr.mxu0 0.0
      %1314 = vmatpush1.msra.mxu0 0.0
      %1315 = vmatprep.subr.mxu0 0.0
      %1316 = vmatpush1.msra.mxu0 0.0
      %1317 = vmatprep.subr.mxu0 0.0
      %1318 = vmatpush1.msra.mxu0 0.0
      %1319 = vmatprep.subr.mxu0 0.0
      %1320 = vmatpush1.msra.mxu0 0.0
      %1321 = vmatprep.subr.mxu0 0.0
      %1322 = vmatpush1.msra.mxu0 0.0
      %1323 = vmatprep.subr.mxu0 0.0
      %1324 = vmatpush1.msra.mxu0 0.0
      %1325 = vmatprep.subr.mxu0 0.0
      %1326 = vmatpush1.msra.mxu0 0.0
      %1327 = vmatprep.subr.mxu0 0.0
      %1328 = vmatpush1.msra.mxu0 0.0
      %1329 = vmatprep.subr.mxu0 0.0
      %1330 = vmatpush1.msra.mxu0 0.0
      %1331 = vmatprep.subr.mxu0 0.0
      %1332 = vmatpush1.msra.mxu0 %v1302
      %1333 = vmatprep.subr.mxu0 0.0
      %1334 = vmatpush1.msra.mxu0 %v1301
      %1335 = vmatprep.subr.mxu0 0.0
      %1336 = vmatpush1.msra.mxu0 %v1300
      %1337 = vmatprep.subr.mxu0 0.0
      %1338 = vmatpush1.msra.mxu0 %v1299
      %1339 = vmatprep.subr.mxu0 0.0
      %1340 = vmatpush2.msra.mxu0 0.0
      %1341 = vmatprep.subr.mxu0 0.0
      %1342 = vmatpush2.msra.mxu0 0.0
      %1343 = vmatprep.subr.mxu0 0.0
      %1344 = vmatpush2.msra.mxu0 0.0
      %1345 = vmatprep.subr.mxu0 0.0
      %1346 = vmatpush2.msra.mxu0 0.0
      %1347 = vmatprep.subr.mxu0 0.0
      %1348 = vmatpush2.msra.mxu0 0.0
      %1349 = vmatprep.subr.mxu0 0.0
      %1350 = vmatpush2.msra.mxu0 0.0
      %1351 = vmatprep.subr.mxu0 0.0
      %1352 = vmatpush2.msra.mxu0 0.0
      %1353 = vmatprep.subr.mxu0 0.0
      %1354 = vmatpush2.msra.mxu0 0.0
      %1355 = vmatprep.subr.mxu0 0.0
      %1356 = vmatpush2.msra.mxu0 0.0
      %1357 = vmatprep.subr.mxu0 0.0
      %1358 = vmatpush2.msra.mxu0 0.0
      %1359 = vmatprep.subr.mxu0 0.0
      %1360 = vmatpush2.msra.mxu0 0.0
      %1361 = vmatprep.subr.mxu0 0.0
      %1362 = vmatpush2.msra.mxu0 0.0
      %1363 = vmatprep.subr.mxu0 0.0
      %1364 = vmatpush2.msra.mxu0 0.0
      %1365 = vmatprep.subr.mxu0 0.0
      %1366 = vmatpush2.msra.mxu0 0.0
      %1367 = vmatprep.subr.mxu0 0.0
      %1368 = vmatpush2.msra.mxu0 0.0
      %1369 = vmatprep.subr.mxu0 0.0
      %1370 = vmatpush2.msra.mxu0 0.0
      %1371 = vmatprep.mubr.f32.mxu0 0.0
      %1372 = vmatmul.mubr.f32.gmra.mxu0 %v745
      %v1373 = vpop.f32.mrf.mxu0
      %v1374 = vadd.f32 %v1306, %v1373
      %v1375 = vpop.f32.mrf.mxu0
      %1376 = vdwg.mxu0
      %v1378 = vsel %vm975, %v1216, 0
      %v1381 = vsel %vm975, %v1295, 0
      %1383 = vmatprep.subr.mxu0 0.0
      %1384 = vmatpush1.xpose.msra.mxu0 0.0
      %1385 = vmatprep.subr.mxu0 0.0
      %1386 = vmatpush1.xpose.msra.mxu0 0.0
      %1387 = vmatprep.subr.mxu0 0.0
      %1388 = vmatpush1.xpose.msra.mxu0 0.0
      %1389 = vmatprep.subr.mxu0 0.0
      %1390 = vmatpush1.xpose.msra.mxu0 0.0
      %1391 = vmatprep.subr.mxu0 0.0
      %1392 = vmatpush1.xpose.msra.mxu0 0.0
      %1393 = vmatprep.subr.mxu0 0.0
      %1394 = vmatpush1.xpose.msra.mxu0 0.0
      %1395 = vmatprep.subr.mxu0 0.0
      %1396 = vmatpush1.xpose.msra.mxu0 0.0
      %1397 = vmatprep.subr.mxu0 0.0
      %1398 = vmatpush1.xpose.msra.mxu0 0.0
      %1399 = vmatprep.subr.mxu0 0.0
      %1400 = vmatpush1.xpose.msra.mxu0 0.0
      %1401 = vmatprep.subr.mxu0 0.0
      %1402 = vmatpush1.xpose.msra.mxu0 0.0
      %1403 = vmatprep.subr.mxu0 0.0
      %1404 = vmatpush1.xpose.msra.mxu0 0.0
      %1405 = vmatprep.subr.mxu0 0.0
      %1406 = vmatpush1.xpose.msra.mxu0 0.0
      %1407 = vmatprep.subr.mxu0 0.0
      %1408 = vmatpush1.xpose.msra.mxu0 0.0
      %1409 = vmatprep.subr.mxu0 0.0
      %1410 = vmatpush1.xpose.msra.mxu0 0.0
      %1411 = vmatprep.subr.mxu0 0.0
      %1412 = vmatpush1.xpose.msra.mxu0 0.0
      %1413 = vmatprep.subr.mxu0 0.0
      %1414 = vmatpush1.xpose.msra.mxu0 %v1381
      %1415 = vmatprep.subr.mxu0 0.0
      %1416 = vmatpush2.xpose.msra.mxu0 0.0
      %1417 = vmatprep.subr.mxu0 0.0
      %1418 = vmatpush2.xpose.msra.mxu0 0.0
      %1419 = vmatprep.subr.mxu0 0.0
      %1420 = vmatpush2.xpose.msra.mxu0 0.0
      %1421 = vmatprep.subr.mxu0 0.0
      %1422 = vmatpush2.xpose.msra.mxu0 0.0
      %1423 = vmatprep.subr.mxu0 0.0
      %1424 = vmatpush2.xpose.msra.mxu0 0.0
      %1425 = vmatprep.subr.mxu0 0.0
      %1426 = vmatpush2.xpose.msra.mxu0 0.0
      %1427 = vmatprep.subr.mxu0 0.0
      %1428 = vmatpush2.xpose.msra.mxu0 0.0
      %1429 = vmatprep.subr.mxu0 0.0
      %1430 = vmatpush2.xpose.msra.mxu0 0.0
      %1431 = vmatprep.subr.mxu0 0.0
      %1432 = vmatpush2.xpose.msra.mxu0 0.0
      %1433 = vmatprep.subr.mxu0 0.0
      %1434 = vmatpush2.xpose.msra.mxu0 0.0
      %1435 = vmatprep.subr.mxu0 0.0
      %1436 = vmatpush2.xpose.msra.mxu0 0.0
      %1437 = vmatprep.subr.mxu0 0.0
      %1438 = vmatpush2.xpose.msra.mxu0 0.0
      %1439 = vmatprep.subr.mxu0 0.0
      %1440 = vmatpush2.xpose.msra.mxu0 0.0
      %1441 = vmatprep.subr.mxu0 0.0
      %1442 = vmatpush2.xpose.msra.mxu0 0.0
      %1443 = vmatprep.subr.mxu0 0.0
      %1444 = vmatpush2.xpose.msra.mxu0 0.0
      %1445 = vmatprep.subr.mxu0 0.0
      %1446 = vmatpush2.xpose.msra.mxu0 0.0
      %1447 = vmatprep.mubr.f32.mxu0 0.0
      %1448 = vmatmul.mubr.f32.gmra.mxu0 %v1378
      %v1449 = vpop.f32.mrf.mxu0
      %v1450 = vadd.f32 0.0, %v1449
      %v1451 = vpop.f32.mrf.mxu0
      %1452 = vdwg.mxu0
      %v1453 = vmul.f32 %v1450, 0.35355338
      %v1454 = vsel %vm975, %v1453, -inf
      %1455 = vmax.xlane.f32.xlu0 %v1454
      %v1456 = vpop.xlane.xlu0 %1455
      %v1457 = vsub.f32 %v1453, %v1456
      %v1458 = vmul.f32 %v1457, 1.442695
      %v1459 = vpow.pop %v1458
      %v1460 = vsel %vm975, %v1459, 0.0
      %1461 = vadd.xlane.f32.xlu0 %v1460
      %v1462 = vpop.xlane.xlu0 %1461
      %v1463 = vrcp.pop %v1462
      %v1464 = vmul.f32 %v1459, %v1463
      %v1466 = vsel %vm975, %v1464, 0
      %1468 = vmatprep.subr.mxu0 0.0
      %1469 = vmatpush1.msra.mxu0 0.0
      %1470 = vmatprep.subr.mxu0 0.0
      %1471 = vmatpush1.msra.mxu0 0.0
      %1472 = vmatprep.subr.mxu0 0.0
      %1473 = vmatpush1.msra.mxu0 0.0
      %1474 = vmatprep.subr.mxu0 0.0
      %1475 = vmatpush1.msra.mxu0 0.0
      %1476 = vmatprep.subr.mxu0 0.0
      %1477 = vmatpush1.msra.mxu0 0.0
      %1478 = vmatprep.subr.mxu0 0.0
      %1479 = vmatpush1.msra.mxu0 0.0
      %1480 = vmatprep.subr.mxu0 0.0
      %1481 = vmatpush1.msra.mxu0 0.0
      %1482 = vmatprep.subr.mxu0 0.0
      %1483 = vmatpush1.msra.mxu0 0.0
      %1484 = vmatprep.subr.mxu0 0.0
      %1485 = vmatpush1.msra.mxu0 0.0
      %1486 = vmatprep.subr.mxu0 0.0
      %1487 = vmatpush1.msra.mxu0 0.0
      %1488 = vmatprep.subr.mxu0 0.0
      %1489 = vmatpush1.msra.mxu0 0.0
      %1490 = vmatprep.subr.mxu0 0.0
      %1491 = vmatpush1.msra.mxu0 0.0
      %1492 = vmatprep.subr.mxu0 0.0
      %1493 = vmatpush1.msra.mxu0 0.0
      %1494 = vmatprep.subr.mxu0 0.0
      %1495 = vmatpush1.msra.mxu0 0.0
      %1496 = vmatprep.subr.mxu0 0.0
      %1497 = vmatpush1.msra.mxu0 0.0
      %1498 = vmatprep.subr.mxu0 0.0
      %1499 = vmatpush1.msra.mxu0 %v1374
      %1500 = vmatprep.subr.mxu0 0.0
      %1501 = vmatpush2.msra.mxu0 0.0
      %1502 = vmatprep.subr.mxu0 0.0
      %1503 = vmatpush2.msra.mxu0 0.0
      %1504 = vmatprep.subr.mxu0 0.0
      %1505 = vmatpush2.msra.mxu0 0.0
      %1506 = vmatprep.subr.mxu0 0.0
      %1507 = vmatpush2.msra.mxu0 0.0
      %1508 = vmatprep.subr.mxu0 0.0
      %1509 = vmatpush2.msra.mxu0 0.0
      %1510 = vmatprep.subr.mxu0 0.0
      %1511 = vmatpush2.msra.mxu0 0.0
      %1512 = vmatprep.subr.mxu0 0.0
      %1513 = vmatpush2.msra.mxu0 0.0
      %1514 = vmatprep.subr.mxu0 0.0
      %1515 = vmatpush2.msra.mxu0 0.0
      %1516 = vmatprep.subr.mxu0 0.0
      %1517 = vmatpush2.msra.mxu0 0.0
      %1518 = vmatprep.subr.mxu0 0.0
      %1519 = vmatpush2.msra.mxu0 0.0
      %1520 = vmatprep.subr.mxu0 0.0
      %1521 = vmatpush2.msra.mxu0 0.0
      %1522 = vmatprep.subr.mxu0 0.0
      %1523 = vmatpush2.msra.mxu0 0.0
      %1524 = vmatprep.subr.mxu0 0.0
      %1525 = vmatpush2.msra.mxu0 0.0
      %1526 = vmatprep.subr.mxu0 0.0
      %1527 = vmatpush2.msra.mxu0 0.0
      %1528 = vmatprep.subr.mxu0 0.0
      %1529 = vmatpush2.msra.mxu0 0.0
      %1530 = vmatprep.subr.mxu0 0.0
      %1531 = vmatpush2.msra.mxu0 0.0
      %1532 = vmatprep.mubr.f32.mxu0 0.0
      %1533 = vmatmul.mubr.f32.gmra.mxu0 %v1466
      %v1534 = vpop.f32.mrf.mxu0
      %v1535 = vadd.f32 0.0, %v1534
      %v1536 = vpop.f32.mrf.mxu0
      %1537 = vdwg.mxu0
      %s1538 = scalar_lea.vmem %s3, 8
      %v1539 = vld [vmem:[%s1538] sm:$0xff]
      %v1541 = vsel %vm975, %v1535, 0
      %1543 = vmatprep.subr.mxu0 0.0
      %1544 = vmatpush1.msra.mxu0 0.0
      %1545 = vmatprep.subr.mxu0 0.0
      %1546 = vmatpush1.msra.mxu0 0.0
      %1547 = vmatprep.subr.mxu0 0.0
      %1548 = vmatpush1.msra.mxu0 0.0
      %1549 = vmatprep.subr.mxu0 0.0
      %1550 = vmatpush1.msra.mxu0 0.0
      %1551 = vmatprep.subr.mxu0 0.0
      %1552 = vmatpush1.msra.mxu0 0.0
      %1553 = vmatprep.subr.mxu0 0.0
      %1554 = vmatpush1.msra.mxu0 0.0
      %1555 = vmatprep.subr.mxu0 0.0
      %1556 = vmatpush1.msra.mxu0 0.0
      %1557 = vmatprep.subr.mxu0 0.0
      %1558 = vmatpush1.msra.mxu0 0.0
      %1559 = vmatprep.subr.mxu0 0.0
      %1560 = vmatpush1.msra.mxu0 0.0
      %1561 = vmatprep.subr.mxu0 0.0
      %1562 = vmatpush1.msra.mxu0 0.0
      %1563 = vmatprep.subr.mxu0 0.0
      %1564 = vmatpush1.msra.mxu0 0.0
      %1565 = vmatprep.subr.mxu0 0.0
      %1566 = vmatpush1.msra.mxu0 0.0
      %1567 = vmatprep.subr.mxu0 0.0
      %1568 = vmatpush1.msra.mxu0 0.0
      %1569 = vmatprep.subr.mxu0 0.0
      %1570 = vmatpush1.msra.mxu0 0.0
      %1571 = vmatprep.subr.mxu0 0.0
      %1572 = vmatpush1.msra.mxu0 0.0
      %1573 = vmatprep.subr.mxu0 0.0
      %1574 = vmatpush1.msra.mxu0 %v1539
      %1575 = vmatprep.subr.mxu0 0.0
      %1576 = vmatpush2.msra.mxu0 0.0
      %1577 = vmatprep.subr.mxu0 0.0
      %1578 = vmatpush2.msra.mxu0 0.0
      %1579 = vmatprep.subr.mxu0 0.0
      %1580 = vmatpush2.msra.mxu0 0.0
      %1581 = vmatprep.subr.mxu0 0.0
      %1582 = vmatpush2.msra.mxu0 0.0
      %1583 = vmatprep.subr.mxu0 0.0
      %1584 = vmatpush2.msra.mxu0 0.0
      %1585 = vmatprep.subr.mxu0 0.0
      %1586 = vmatpush2.msra.mxu0 0.0
      %1587 = vmatprep.subr.mxu0 0.0
      %1588 = vmatpush2.msra.mxu0 0.0
      %1589 = vmatprep.subr.mxu0 0.0
      %1590 = vmatpush2.msra.mxu0 0.0
      %1591 = vmatprep.subr.mxu0 0.0
      %1592 = vmatpush2.msra.mxu0 0.0
      %1593 = vmatprep.subr.mxu0 0.0
      %1594 = vmatpush2.msra.mxu0 0.0
      %1595 = vmatprep.subr.mxu0 0.0
      %1596 = vmatpush2.msra.mxu0 0.0
      %1597 = vmatprep.subr.mxu0 0.0
      %1598 = vmatpush2.msra.mxu0 0.0
      %1599 = vmatprep.subr.mxu0 0.0
      %1600 = vmatpush2.msra.mxu0 0.0
      %1601 = vmatprep.subr.mxu0 0.0
      %1602 = vmatpush2.msra.mxu0 0.0
      %1603 = vmatprep.subr.mxu0 0.0
      %1604 = vmatpush2.msra.mxu0 0.0
      %1605 = vmatprep.subr.mxu0 0.0
      %1606 = vmatpush2.msra.mxu0 0.0
      %1607 = vmatprep.mubr.f32.mxu0 0.0
      %1608 = vmatmul.mubr.f32.gmra.mxu0 %v1541
      %v1609 = vpop.f32.mrf.mxu0
      %v1610 = vadd.f32 0.0, %v1609
      %v1611 = vpop.f32.mrf.mxu0
      %1612 = vdwg.mxu0
      %v1614 = vsel %vm975, %v1134, 0
      %1616 = vmatprep.subr.mxu0 0.0
      %1617 = vmatpush1.msra.mxu0 0.0
      %1618 = vmatprep.subr.mxu0 0.0
      %1619 = vmatpush1.msra.mxu0 0.0
      %1620 = vmatprep.subr.mxu0 0.0
      %1621 = vmatpush1.msra.mxu0 0.0
      %1622 = vmatprep.subr.mxu0 0.0
      %1623 = vmatpush1.msra.mxu0 0.0
      %1624 = vmatprep.subr.mxu0 0.0
      %1625 = vmatpush1.msra.mxu0 0.0
      %1626 = vmatprep.subr.mxu0 0.0
      %1627 = vmatpush1.msra.mxu0 0.0
      %1628 = vmatprep.subr.mxu0 0.0
      %1629 = vmatpush1.msra.mxu0 0.0
      %1630 = vmatprep.subr.mxu0 0.0
      %1631 = vmatpush1.msra.mxu0 0.0
      %1632 = vmatprep.subr.mxu0 0.0
      %1633 = vmatpush1.msra.mxu0 0.0
      %1634 = vmatprep.subr.mxu0 0.0
      %1635 = vmatpush1.msra.mxu0 0.0
      %1636 = vmatprep.subr.mxu0 0.0
      %1637 = vmatpush1.msra.mxu0 0.0
      %1638 = vmatprep.subr.mxu0 0.0
      %1639 = vmatpush1.msra.mxu0 0.0
      %1640 = vmatprep.subr.mxu0 0.0
      %1641 = vmatpush1.msra.mxu0 0.0
      %1642 = vmatprep.subr.mxu0 0.0
      %1643 = vmatpush1.msra.mxu0 0.0
      %1644 = vmatprep.subr.mxu0 0.0
      %1645 = vmatpush1.msra.mxu0 0.0
      %1646 = vmatprep.subr.mxu0 0.0
      %1647 = vmatpush1.msra.mxu0 %v1137
      %1648 = vmatprep.subr.mxu0 0.0
      %1649 = vmatpush2.msra.mxu0 0.0
      %1650 = vmatprep.subr.mxu0 0.0
      %1651 = vmatpush2.msra.mxu0 0.0
      %1652 = vmatprep.subr.mxu0 0.0
      %1653 = vmatpush2.msra.mxu0 0.0
      %1654 = vmatprep.subr.mxu0 0.0
      %1655 = vmatpush2.msra.mxu0 0.0
      %1656 = vmatprep.subr.mxu0 0.0
      %1657 = vmatpush2.msra.mxu0 0.0
      %1658 = vmatprep.subr.mxu0 0.0
      %1659 = vmatpush2.msra.mxu0 0.0
      %1660 = vmatprep.subr.mxu0 0.0
      %1661 = vmatpush2.msra.mxu0 0.0
      %1662 = vmatprep.subr.mxu0 0.0
      %1663 = vmatpush2.msra.mxu0 0.0
      %1664 = vmatprep.subr.mxu0 0.0
      %1665 = vmatpush2.msra.mxu0 0.0
      %1666 = vmatprep.subr.mxu0 0.0
      %1667 = vmatpush2.msra.mxu0 0.0
      %1668 = vmatprep.subr.mxu0 0.0
      %1669 = vmatpush2.msra.mxu0 0.0
      %1670 = vmatprep.subr.mxu0 0.0
      %1671 = vmatpush2.msra.mxu0 0.0
      %1672 = vmatprep.subr.mxu0 0.0
      %1673 = vmatpush2.msra.mxu0 0.0
      %1674 = vmatprep.subr.mxu0 0.0
      %1675 = vmatpush2.msra.mxu0 0.0
      %1676 = vmatprep.subr.mxu0 0.0
      %1677 = vmatpush2.msra.mxu0 0.0
      %1678 = vmatprep.subr.mxu0 0.0
      %1679 = vmatpush2.msra.mxu0 0.0
      %1680 = vmatprep.mubr.f32.mxu0 0.0
      %1681 = vmatmul.mubr.f32.gmra.mxu0 %v1614
      %v1682 = vpop.f32.mrf.mxu0
      %v1683 = vadd.f32 %v1610, %v1682
      %v1684 = vpop.f32.mrf.mxu0
      %1685 = vdwg.mxu0
      %s1686 = scalar_lea.vmem %s2, 8
      %v1687 = vld [vmem:[%s1686] sm:$0x7]
      %s1688 = scalar_lea.vmem %s1, 192
      %v1689 = vld [vmem:[%s1688] sm:$0xff]
      %v1690 = vld [vmem:[%s1688 + $0x8] sm:$0xff]
      %v1691 = vld [vmem:[%s1688 + $0x10] sm:$0xff]
      %v1692 = vld [vmem:[%s1688 + $0x18] sm:$0xff]
      %v1693 = vlaneseq
      %v1694 = vshrl.u32 %v1693, 7
      %v1695 = vsub.s32 0, %v1694
      %v1696 = vrot.slane %v1687, %v1695
      %1697 = vmatprep.subr.mxu0 0.0
      %1698 = vmatpush1.msra.mxu0 0.0
      %1699 = vmatprep.subr.mxu0 0.0
      %1700 = vmatpush1.msra.mxu0 0.0
      %1701 = vmatprep.subr.mxu0 0.0
      %1702 = vmatpush1.msra.mxu0 0.0
      %1703 = vmatprep.subr.mxu0 0.0
      %1704 = vmatpush1.msra.mxu0 0.0
      %1705 = vmatprep.subr.mxu0 0.0
      %1706 = vmatpush1.msra.mxu0 0.0
      %1707 = vmatprep.subr.mxu0 0.0
      %1708 = vmatpush1.msra.mxu0 0.0
      %1709 = vmatprep.subr.mxu0 0.0
      %1710 = vmatpush1.msra.mxu0 0.0
      %1711 = vmatprep.subr.mxu0 0.0
      %1712 = vmatpush1.msra.mxu0 0.0
      %1713 = vmatprep.subr.mxu0 0.0
      %1714 = vmatpush1.msra.mxu0 0.0
      %1715 = vmatprep.subr.mxu0 0.0
      %1716 = vmatpush1.msra.mxu0 0.0
      %1717 = vmatprep.subr.mxu0 0.0
      %1718 = vmatpush1.msra.mxu0 0.0
      %1719 = vmatprep.subr.mxu0 0.0
      %1720 = vmatpush1.msra.mxu0 0.0
      %1721 = vmatprep.subr.mxu0 0.0
      %1722 = vmatpush1.msra.mxu0 %v1692
      %1723 = vmatprep.subr.mxu0 0.0
      %1724 = vmatpush1.msra.mxu0 %v1691
      %1725 = vmatprep.subr.mxu0 0.0
      %1726 = vmatpush1.msra.mxu0 %v1690
      %1727 = vmatprep.subr.mxu0 0.0
      %1728 = vmatpush1.msra.mxu0 %v1689
      %1729 = vmatprep.subr.mxu0 0.0
      %1730 = vmatpush2.msra.mxu0 0.0
      %1731 = vmatprep.subr.mxu0 0.0
      %1732 = vmatpush2.msra.mxu0 0.0
      %1733 = vmatprep.subr.mxu0 0.0
      %1734 = vmatpush2.msra.mxu0 0.0
      %1735 = vmatprep.subr.mxu0 0.0
      %1736 = vmatpush2.msra.mxu0 0.0
      %1737 = vmatprep.subr.mxu0 0.0
      %1738 = vmatpush2.msra.mxu0 0.0
      %1739 = vmatprep.subr.mxu0 0.0
      %1740 = vmatpush2.msra.mxu0 0.0
      %1741 = vmatprep.subr.mxu0 0.0
      %1742 = vmatpush2.msra.mxu0 0.0
      %1743 = vmatprep.subr.mxu0 0.0
      %1744 = vmatpush2.msra.mxu0 0.0
      %1745 = vmatprep.subr.mxu0 0.0
      %1746 = vmatpush2.msra.mxu0 0.0
      %1747 = vmatprep.subr.mxu0 0.0
      %1748 = vmatpush2.msra.mxu0 0.0
      %1749 = vmatprep.subr.mxu0 0.0
      %1750 = vmatpush2.msra.mxu0 0.0
      %1751 = vmatprep.subr.mxu0 0.0
      %1752 = vmatpush2.msra.mxu0 0.0
      %1753 = vmatprep.subr.mxu0 0.0
      %1754 = vmatpush2.msra.mxu0 0.0
      %1755 = vmatprep.subr.mxu0 0.0
      %1756 = vmatpush2.msra.mxu0 0.0
      %1757 = vmatprep.subr.mxu0 0.0
      %1758 = vmatpush2.msra.mxu0 0.0
      %1759 = vmatprep.subr.mxu0 0.0
      %1760 = vmatpush2.msra.mxu0 0.0
      %1761 = vmatprep.mubr.f32.mxu0 0.0
      %1762 = vmatmul.mubr.f32.gmra.mxu0 %v745
      %v1763 = vpop.f32.mrf.mxu0
      %v1764 = vadd.f32 %v1696, %v1763
      %v1765 = vpop.f32.mrf.mxu0
      %1766 = vdwg.mxu0
      %s1767 = scalar_lea.vmem %s1, 224
      %v1768 = vld [vmem:[%s1767] sm:$0xff]
      %v1769 = vld [vmem:[%s1767 + $0x8] sm:$0xff]
      %v1770 = vld [vmem:[%s1767 + $0x10] sm:$0xff]
      %v1771 = vld [vmem:[%s1767 + $0x18] sm:$0xff]
      %v1772 = vlaneseq
      %v1773 = vshrl.u32 %v1772, 7
      %v1774 = vsub.s32 1, %v1773
      %v1775 = vrot.slane %v1687, %v1774
      %1776 = vmatprep.subr.mxu0 0.0
      %1777 = vmatpush1.msra.mxu0 0.0
      %1778 = vmatprep.subr.mxu0 0.0
      %1779 = vmatpush1.msra.mxu0 0.0
      %1780 = vmatprep.subr.mxu0 0.0
      %1781 = vmatpush1.msra.mxu0 0.0
      %1782 = vmatprep.subr.mxu0 0.0
      %1783 = vmatpush1.msra.mxu0 0.0
      %1784 = vmatprep.subr.mxu0 0.0
      %1785 = vmatpush1.msra.mxu0 0.0
      %1786 = vmatprep.subr.mxu0 0.0
      %1787 = vmatpush1.msra.mxu0 0.0
      %1788 = vmatprep.subr.mxu0 0.0
      %1789 = vmatpush1.msra.mxu0 0.0
      %1790 = vmatprep.subr.mxu0 0.0
      %1791 = vmatpush1.msra.mxu0 0.0
      %1792 = vmatprep.subr.mxu0 0.0
      %1793 = vmatpush1.msra.mxu0 0.0
      %1794 = vmatprep.subr.mxu0 0.0
      %1795 = vmatpush1.msra.mxu0 0.0
      %1796 = vmatprep.subr.mxu0 0.0
      %1797 = vmatpush1.msra.mxu0 0.0
      %1798 = vmatprep.subr.mxu0 0.0
      %1799 = vmatpush1.msra.mxu0 0.0
      %1800 = vmatprep.subr.mxu0 0.0
      %1801 = vmatpush1.msra.mxu0 %v1771
      %1802 = vmatprep.subr.mxu0 0.0
      %1803 = vmatpush1.msra.mxu0 %v1770
      %1804 = vmatprep.subr.mxu0 0.0
      %1805 = vmatpush1.msra.mxu0 %v1769
      %1806 = vmatprep.subr.mxu0 0.0
      %1807 = vmatpush1.msra.mxu0 %v1768
      %1808 = vmatprep.subr.mxu0 0.0
      %1809 = vmatpush2.msra.mxu0 0.0
      %1810 = vmatprep.subr.mxu0 0.0
      %1811 = vmatpush2.msra.mxu0 0.0
      %1812 = vmatprep.subr.mxu0 0.0
      %1813 = vmatpush2.msra.mxu0 0.0
      %1814 = vmatprep.subr.mxu0 0.0
      %1815 = vmatpush2.msra.mxu0 0.0
      %1816 = vmatprep.subr.mxu0 0.0
      %1817 = vmatpush2.msra.mxu0 0.0
      %1818 = vmatprep.subr.mxu0 0.0
      %1819 = vmatpush2.msra.mxu0 0.0
      %1820 = vmatprep.subr.mxu0 0.0
      %1821 = vmatpush2.msra.mxu0 0.0
      %1822 = vmatprep.subr.mxu0 0.0
      %1823 = vmatpush2.msra.mxu0 0.0
      %1824 = vmatprep.subr.mxu0 0.0
      %1825 = vmatpush2.msra.mxu0 0.0
      %1826 = vmatprep.subr.mxu0 0.0
      %1827 = vmatpush2.msra.mxu0 0.0
      %1828 = vmatprep.subr.mxu0 0.0
      %1829 = vmatpush2.msra.mxu0 0.0
      %1830 = vmatprep.subr.mxu0 0.0
      %1831 = vmatpush2.msra.mxu0 0.0
      %1832 = vmatprep.subr.mxu0 0.0
      %1833 = vmatpush2.msra.mxu0 0.0
      %1834 = vmatprep.subr.mxu0 0.0
      %1835 = vmatpush2.msra.mxu0 0.0
      %1836 = vmatprep.subr.mxu0 0.0
      %1837 = vmatpush2.msra.mxu0 0.0
      %1838 = vmatprep.subr.mxu0 0.0
      %1839 = vmatpush2.msra.mxu0 0.0
      %1840 = vmatprep.mubr.f32.mxu0 0.0
      %1841 = vmatmul.mubr.f32.gmra.mxu0 %v745
      %v1842 = vpop.f32.mrf.mxu0
      %v1843 = vadd.f32 %v1775, %v1842
      %v1844 = vpop.f32.mrf.mxu0
      %1845 = vdwg.mxu0
      %s1846 = scalar_lea.vmem %s1, 256
      %v1847 = vld [vmem:[%s1846] sm:$0xff]
      %v1848 = vld [vmem:[%s1846 + $0x8] sm:$0xff]
      %v1849 = vld [vmem:[%s1846 + $0x10] sm:$0xff]
      %v1850 = vld [vmem:[%s1846 + $0x18] sm:$0xff]
      %v1851 = vlaneseq
      %v1852 = vshrl.u32 %v1851, 7
      %v1853 = vsub.s32 2, %v1852
      %v1854 = vrot.slane %v1687, %v1853
      %1855 = vmatprep.subr.mxu0 0.0
      %1856 = vmatpush1.msra.mxu0 0.0
      %1857 = vmatprep.subr.mxu0 0.0
      %1858 = vmatpush1.msra.mxu0 0.0
      %1859 = vmatprep.subr.mxu0 0.0
      %1860 = vmatpush1.msra.mxu0 0.0
      %1861 = vmatprep.subr.mxu0 0.0
      %1862 = vmatpush1.msra.mxu0 0.0
      %1863 = vmatprep.subr.mxu0 0.0
      %1864 = vmatpush1.msra.mxu0 0.0
      %1865 = vmatprep.subr.mxu0 0.0
      %1866 = vmatpush1.msra.mxu0 0.0
      %1867 = vmatprep.subr.mxu0 0.0
      %1868 = vmatpush1.msra.mxu0 0.0
      %1869 = vmatprep.subr.mxu0 0.0
      %1870 = vmatpush1.msra.mxu0 0.0
      %1871 = vmatprep.subr.mxu0 0.0
      %1872 = vmatpush1.msra.mxu0 0.0
      %1873 = vmatprep.subr.mxu0 0.0
      %1874 = vmatpush1.msra.mxu0 0.0
      %1875 = vmatprep.subr.mxu0 0.0
      %1876 = vmatpush1.msra.mxu0 0.0
      %1877 = vmatprep.subr.mxu0 0.0
      %1878 = vmatpush1.msra.mxu0 0.0
      %1879 = vmatprep.subr.mxu0 0.0
      %1880 = vmatpush1.msra.mxu0 %v1850
      %1881 = vmatprep.subr.mxu0 0.0
      %1882 = vmatpush1.msra.mxu0 %v1849
      %1883 = vmatprep.subr.mxu0 0.0
      %1884 = vmatpush1.msra.mxu0 %v1848
      %1885 = vmatprep.subr.mxu0 0.0
      %1886 = vmatpush1.msra.mxu0 %v1847
      %1887 = vmatprep.subr.mxu0 0.0
      %1888 = vmatpush2.msra.mxu0 0.0
      %1889 = vmatprep.subr.mxu0 0.0
      %1890 = vmatpush2.msra.mxu0 0.0
      %1891 = vmatprep.subr.mxu0 0.0
      %1892 = vmatpush2.msra.mxu0 0.0
      %1893 = vmatprep.subr.mxu0 0.0
      %1894 = vmatpush2.msra.mxu0 0.0
      %1895 = vmatprep.subr.mxu0 0.0
      %1896 = vmatpush2.msra.mxu0 0.0
      %1897 = vmatprep.subr.mxu0 0.0
      %1898 = vmatpush2.msra.mxu0 0.0
      %1899 = vmatprep.subr.mxu0 0.0
      %1900 = vmatpush2.msra.mxu0 0.0
      %1901 = vmatprep.subr.mxu0 0.0
      %1902 = vmatpush2.msra.mxu0 0.0
      %1903 = vmatprep.subr.mxu0 0.0
      %1904 = vmatpush2.msra.mxu0 0.0
      %1905 = vmatprep.subr.mxu0 0.0
      %1906 = vmatpush2.msra.mxu0 0.0
      %1907 = vmatprep.subr.mxu0 0.0
      %1908 = vmatpush2.msra.mxu0 0.0
      %1909 = vmatprep.subr.mxu0 0.0
      %1910 = vmatpush2.msra.mxu0 0.0
      %1911 = vmatprep.subr.mxu0 0.0
      %1912 = vmatpush2.msra.mxu0 0.0
      %1913 = vmatprep.subr.mxu0 0.0
      %1914 = vmatpush2.msra.mxu0 0.0
      %1915 = vmatprep.subr.mxu0 0.0
      %1916 = vmatpush2.msra.mxu0 0.0
      %1917 = vmatprep.subr.mxu0 0.0
      %1918 = vmatpush2.msra.mxu0 0.0
      %1919 = vmatprep.mubr.f32.mxu0 0.0
      %1920 = vmatmul.mubr.f32.gmra.mxu0 %v745
      %v1921 = vpop.f32.mrf.mxu0
      %v1922 = vadd.f32 %v1854, %v1921
      %v1923 = vpop.f32.mrf.mxu0
      %1924 = vdwg.mxu0
      %v1926 = vsel %vm975, %v1764, 0
      %v1929 = vsel %vm975, %v1843, 0
      %1931 = vmatprep.subr.mxu0 0.0
      %1932 = vmatpush1.xpose.msra.mxu0 0.0
      %1933 = vmatprep.subr.mxu0 0.0
      %1934 = vmatpush1.xpose.msra.mxu0 0.0
      %1935 = vmatprep.subr.mxu0 0.0
      %1936 = vmatpush1.xpose.msra.mxu0 0.0
      %1937 = vmatprep.subr.mxu0 0.0
      %1938 = vmatpush1.xpose.msra.mxu0 0.0
      %1939 = vmatprep.subr.mxu0 0.0
      %1940 = vmatpush1.xpose.msra.mxu0 0.0
      %1941 = vmatprep.subr.mxu0 0.0
      %1942 = vmatpush1.xpose.msra.mxu0 0.0
      %1943 = vmatprep.subr.mxu0 0.0
      %1944 = vmatpush1.xpose.msra.mxu0 0.0
      %1945 = vmatprep.subr.mxu0 0.0
      %1946 = vmatpush1.xpose.msra.mxu0 0.0
      %1947 = vmatprep.subr.mxu0 0.0
      %1948 = vmatpush1.xpose.msra.mxu0 0.0
      %1949 = vmatprep.subr.mxu0 0.0
      %1950 = vmatpush1.xpose.msra.mxu0 0.0
      %1951 = vmatprep.subr.mxu0 0.0
      %1952 = vmatpush1.xpose.msra.mxu0 0.0
      %1953 = vmatprep.subr.mxu0 0.0
      %1954 = vmatpush1.xpose.msra.mxu0 0.0
      %1955 = vmatprep.subr.mxu0 0.0
      %1956 = vmatpush1.xpose.msra.mxu0 0.0
      %1957 = vmatprep.subr.mxu0 0.0
      %1958 = vmatpush1.xpose.msra.mxu0 0.0
      %1959 = vmatprep.subr.mxu0 0.0
      %1960 = vmatpush1.xpose.msra.mxu0 0.0
      %1961 = vmatprep.subr.mxu0 0.0
      %1962 = vmatpush1.xpose.msra.mxu0 %v1929
      %1963 = vmatprep.subr.mxu0 0.0
      %1964 = vmatpush2.xpose.msra.mxu0 0.0
      %1965 = vmatprep.subr.mxu0 0.0
      %1966 = vmatpush2.xpose.msra.mxu0 0.0
      %1967 = vmatprep.subr.mxu0 0.0
      %1968 = vmatpush2.xpose.msra.mxu0 0.0
      %1969 = vmatprep.subr.mxu0 0.0
      %1970 = vmatpush2.xpose.msra.mxu0 0.0
      %1971 = vmatprep.subr.mxu0 0.0
      %1972 = vmatpush2.xpose.msra.mxu0 0.0
      %1973 = vmatprep.subr.mxu0 0.0
      %1974 = vmatpush2.xpose.msra.mxu0 0.0
      %1975 = vmatprep.subr.mxu0 0.0
      %1976 = vmatpush2.xpose.msra.mxu0 0.0
      %1977 = vmatprep.subr.mxu0 0.0
      %1978 = vmatpush2.xpose.msra.mxu0 0.0
      %1979 = vmatprep.subr.mxu0 0.0
      %1980 = vmatpush2.xpose.msra.mxu0 0.0
      %1981 = vmatprep.subr.mxu0 0.0
      %1982 = vmatpush2.xpose.msra.mxu0 0.0
      %1983 = vmatprep.subr.mxu0 0.0
      %1984 = vmatpush2.xpose.msra.mxu0 0.0
      %1985 = vmatprep.subr.mxu0 0.0
      %1986 = vmatpush2.xpose.msra.mxu0 0.0
      %1987 = vmatprep.subr.mxu0 0.0
      %1988 = vmatpush2.xpose.msra.mxu0 0.0
      %1989 = vmatprep.subr.mxu0 0.0
      %1990 = vmatpush2.xpose.msra.mxu0 0.0
      %1991 = vmatprep.subr.mxu0 0.0
      %1992 = vmatpush2.xpose.msra.mxu0 0.0
      %1993 = vmatprep.subr.mxu0 0.0
      %1994 = vmatpush2.xpose.msra.mxu0 0.0
      %1995 = vmatprep.mubr.f32.mxu0 0.0
      %1996 = vmatmul.mubr.f32.gmra.mxu0 %v1926
      %v1997 = vpop.f32.mrf.mxu0
      %v1998 = vadd.f32 0.0, %v1997
      %v1999 = vpop.f32.mrf.mxu0
      %2000 = vdwg.mxu0
      %v2001 = vmul.f32 %v1998, 0.35355338
      %v2002 = vsel %vm975, %v2001, -inf
      %2003 = vmax.xlane.f32.xlu0 %v2002
      %v2004 = vpop.xlane.xlu0 %2003
      %v2005 = vsub.f32 %v2001, %v2004
      %v2006 = vmul.f32 %v2005, 1.442695
      %v2007 = vpow.pop %v2006
      %v2008 = vsel %vm975, %v2007, 0.0
      %2009 = vadd.xlane.f32.xlu0 %v2008
      %v2010 = vpop.xlane.xlu0 %2009
      %v2011 = vrcp.pop %v2010
      %v2012 = vmul.f32 %v2007, %v2011
      %v2014 = vsel %vm975, %v2012, 0
      %2016 = vmatprep.subr.mxu0 0.0
      %2017 = vmatpush1.msra.mxu0 0.0
      %2018 = vmatprep.subr.mxu0 0.0
      %2019 = vmatpush1.msra.mxu0 0.0
      %2020 = vmatprep.subr.mxu0 0.0
      %2021 = vmatpush1.msra.mxu0 0.0
      %2022 = vmatprep.subr.mxu0 0.0
      %2023 = vmatpush1.msra.mxu0 0.0
      %2024 = vmatprep.subr.mxu0 0.0
      %2025 = vmatpush1.msra.mxu0 0.0
      %2026 = vmatprep.subr.mxu0 0.0
      %2027 = vmatpush1.msra.mxu0 0.0
      %2028 = vmatprep.subr.mxu0 0.0
      %2029 = vmatpush1.msra.mxu0 0.0
      %2030 = vmatprep.subr.mxu0 0.0
      %2031 = vmatpush1.msra.mxu0 0.0
      %2032 = vmatprep.subr.mxu0 0.0
      %2033 = vmatpush1.msra.mxu0 0.0
      %2034 = vmatprep.subr.mxu0 0.0
      %2035 = vmatpush1.msra.mxu0 0.0
      %2036 = vmatprep.subr.mxu0 0.0
      %2037 = vmatpush1.msra.mxu0 0.0
      %2038 = vmatprep.subr.mxu0 0.0
      %2039 = vmatpush1.msra.mxu0 0.0
      %2040 = vmatprep.subr.mxu0 0.0
      %2041 = vmatpush1.msra.mxu0 0.0
      %2042 = vmatprep.subr.mxu0 0.0
      %2043 = vmatpush1.msra.mxu0 0.0
      %2044 = vmatprep.subr.mxu0 0.0
      %2045 = vmatpush1.msra.mxu0 0.0
      %2046 = vmatprep.subr.mxu0 0.0
      %2047 = vmatpush1.msra.mxu0 %v1922
      %2048 = vmatprep.subr.mxu0 0.0
      %2049 = vmatpush2.msra.mxu0 0.0
      %2050 = vmatprep.subr.mxu0 0.0
      %2051 = vmatpush2.msra.mxu0 0.0
      %2052 = vmatprep.subr.mxu0 0.0
      %2053 = vmatpush2.msra.mxu0 0.0
      %2054 = vmatprep.subr.mxu0 0.0
      %2055 = vmatpush2.msra.mxu0 0.0
      %2056 = vmatprep.subr.mxu0 0.0
      %2057 = vmatpush2.msra.mxu0 0.0
      %2058 = vmatprep.subr.mxu0 0.0
      %2059 = vmatpush2.msra.mxu0 0.0
      %2060 = vmatprep.subr.mxu0 0.0
      %2061 = vmatpush2.msra.mxu0 0.0
      %2062 = vmatprep.subr.mxu0 0.0
      %2063 = vmatpush2.msra.mxu0 0.0
      %2064 = vmatprep.subr.mxu0 0.0
      %2065 = vmatpush2.msra.mxu0 0.0
      %2066 = vmatprep.subr.mxu0 0.0
      %2067 = vmatpush2.msra.mxu0 0.0
      %2068 = vmatprep.subr.mxu0 0.0
      %2069 = vmatpush2.msra.mxu0 0.0
      %2070 = vmatprep.subr.mxu0 0.0
      %2071 = vmatpush2.msra.mxu0 0.0
      %2072 = vmatprep.subr.mxu0 0.0
      %2073 = vmatpush2.msra.mxu0 0.0
      %2074 = vmatprep.subr.mxu0 0.0
      %2075 = vmatpush2.msra.mxu0 0.0
      %2076 = vmatprep.subr.mxu0 0.0
      %2077 = vmatpush2.msra.mxu0 0.0
      %2078 = vmatprep.subr.mxu0 0.0
      %2079 = vmatpush2.msra.mxu0 0.0
      %2080 = vmatprep.mubr.f32.mxu0 0.0
      %2081 = vmatmul.mubr.f32.gmra.mxu0 %v2014
      %v2082 = vpop.f32.mrf.mxu0
      %v2083 = vadd.f32 0.0, %v2082
      %v2084 = vpop.f32.mrf.mxu0
      %2085 = vdwg.mxu0
      %s2086 = scalar_lea.vmem %s3, 16
      %v2087 = vld [vmem:[%s2086] sm:$0xff]
      %v2089 = vsel %vm975, %v2083, 0
      %2091 = vmatprep.subr.mxu0 0.0
      %2092 = vmatpush1.msra.mxu0 0.0
      %2093 = vmatprep.subr.mxu0 0.0
      %2094 = vmatpush1.msra.mxu0 0.0
      %2095 = vmatprep.subr.mxu0 0.0
      %2096 = vmatpush1.msra.mxu0 0.0
      %2097 = vmatprep.subr.mxu0 0.0
      %2098 = vmatpush1.msra.mxu0 0.0
      %2099 = vmatprep.subr.mxu0 0.0
      %2100 = vmatpush1.msra.mxu0 0.0
      %2101 = vmatprep.subr.mxu0 0.0
      %2102 = vmatpush1.msra.mxu0 0.0
      %2103 = vmatprep.subr.mxu0 0.0
      %2104 = vmatpush1.msra.mxu0 0.0
      %2105 = vmatprep.subr.mxu0 0.0
      %2106 = vmatpush1.msra.mxu0 0.0
      %2107 = vmatprep.subr.mxu0 0.0
      %2108 = vmatpush1.msra.mxu0 0.0
      %2109 = vmatprep.subr.mxu0 0.0
      %2110 = vmatpush1.msra.mxu0 0.0
      %2111 = vmatprep.subr.mxu0 0.0
      %2112 = vmatpush1.msra.mxu0 0.0
      %2113 = vmatprep.subr.mxu0 0.0
      %2114 = vmatpush1.msra.mxu0 0.0
      %2115 = vmatprep.subr.mxu0 0.0
      %2116 = vmatpush1.msra.mxu0 0.0
      %2117 = vmatprep.subr.mxu0 0.0
      %2118 = vmatpush1.msra.mxu0 0.0
      %2119 = vmatprep.subr.mxu0 0.0
      %2120 = vmatpush1.msra.mxu0 0.0
      %2121 = vmatprep.subr.mxu0 0.0
      %2122 = vmatpush1.msra.mxu0 %v2087
      %2123 = vmatprep.subr.mxu0 0.0
      %2124 = vmatpush2.msra.mxu0 0.0
      %2125 = vmatprep.subr.mxu0 0.0
      %2126 = vmatpush2.msra.mxu0 0.0
      %2127 = vmatprep.subr.mxu0 0.0
      %2128 = vmatpush2.msra.mxu0 0.0
      %2129 = vmatprep.subr.mxu0 0.0
      %2130 = vmatpush2.msra.mxu0 0.0
      %2131 = vmatprep.subr.mxu0 0.0
      %2132 = vmatpush2.msra.mxu0 0.0
      %2133 = vmatprep.subr.mxu0 0.0
      %2134 = vmatpush2.msra.mxu0 0.0
      %2135 = vmatprep.subr.mxu0 0.0
      %2136 = vmatpush2.msra.mxu0 0.0
      %2137 = vmatprep.subr.mxu0 0.0
      %2138 = vmatpush2.msra.mxu0 0.0
      %2139 = vmatprep.subr.mxu0 0.0
      %2140 = vmatpush2.msra.mxu0 0.0
      %2141 = vmatprep.subr.mxu0 0.0
      %2142 = vmatpush2.msra.mxu0 0.0
      %2143 = vmatprep.subr.mxu0 0.0
      %2144 = vmatpush2.msra.mxu0 0.0
      %2145 = vmatprep.subr.mxu0 0.0
      %2146 = vmatpush2.msra.mxu0 0.0
      %2147 = vmatprep.subr.mxu0 0.0
      %2148 = vmatpush2.msra.mxu0 0.0
      %2149 = vmatprep.subr.mxu0 0.0
      %2150 = vmatpush2.msra.mxu0 0.0
      %2151 = vmatprep.subr.mxu0 0.0
      %2152 = vmatpush2.msra.mxu0 0.0
      %2153 = vmatprep.subr.mxu0 0.0
      %2154 = vmatpush2.msra.mxu0 0.0
      %2155 = vmatprep.mubr.f32.mxu0 0.0
      %2156 = vmatmul.mubr.f32.gmra.mxu0 %v2089
      %v2157 = vpop.f32.mrf.mxu0
      %v2158 = vadd.f32 0.0, %v2157
      %v2159 = vpop.f32.mrf.mxu0
      %2160 = vdwg.mxu0
      %v2161 = vadd.f32 %v1683, %v2158
      %s2162 = scalar_lea.vmem %s2, 12
      %v2163 = vld [vmem:[%s2162] sm:$0x7]
      %s2164 = scalar_lea.vmem %s1, 288
      %v2165 = vld [vmem:[%s2164] sm:$0xff]
      %v2166 = vld [vmem:[%s2164 + $0x8] sm:$0xff]
      %v2167 = vld [vmem:[%s2164 + $0x10] sm:$0xff]
      %v2168 = vld [vmem:[%s2164 + $0x18] sm:$0xff]
      %v2169 = vlaneseq
      %v2170 = vshrl.u32 %v2169, 7
      %v2171 = vsub.s32 0, %v2170
      %v2172 = vrot.slane %v2163, %v2171
      %2173 = vmatprep.subr.mxu0 0.0
      %2174 = vmatpush1.msra.mxu0 0.0
      %2175 = vmatprep.subr.mxu0 0.0
      %2176 = vmatpush1.msra.mxu0 0.0
      %2177 = vmatprep.subr.mxu0 0.0
      %2178 = vmatpush1.msra.mxu0 0.0
      %2179 = vmatprep.subr.mxu0 0.0
      %2180 = vmatpush1.msra.mxu0 0.0
      %2181 = vmatprep.subr.mxu0 0.0
      %2182 = vmatpush1.msra.mxu0 0.0
      %2183 = vmatprep.subr.mxu0 0.0
      %2184 = vmatpush1.msra.mxu0 0.0
      %2185 = vmatprep.subr.mxu0 0.0
      %2186 = vmatpush1.msra.mxu0 0.0
      %2187 = vmatprep.subr.mxu0 0.0
      %2188 = vmatpush1.msra.mxu0 0.0
      %2189 = vmatprep.subr.mxu0 0.0
      %2190 = vmatpush1.msra.mxu0 0.0
      %2191 = vmatprep.subr.mxu0 0.0
      %2192 = vmatpush1.msra.mxu0 0.0
      %2193 = vmatprep.subr.mxu0 0.0
      %2194 = vmatpush1.msra.mxu0 0.0
      %2195 = vmatprep.subr.mxu0 0.0
      %2196 = vmatpush1.msra.mxu0 0.0
      %2197 = vmatprep.subr.mxu0 0.0
      %2198 = vmatpush1.msra.mxu0 %v2168
      %2199 = vmatprep.subr.mxu0 0.0
      %2200 = vmatpush1.msra.mxu0 %v2167
      %2201 = vmatprep.subr.mxu0 0.0
      %2202 = vmatpush1.msra.mxu0 %v2166
      %2203 = vmatprep.subr.mxu0 0.0
      %2204 = vmatpush1.msra.mxu0 %v2165
      %2205 = vmatprep.subr.mxu0 0.0
      %2206 = vmatpush2.msra.mxu0 0.0
      %2207 = vmatprep.subr.mxu0 0.0
      %2208 = vmatpush2.msra.mxu0 0.0
      %2209 = vmatprep.subr.mxu0 0.0
      %2210 = vmatpush2.msra.mxu0 0.0
      %2211 = vmatprep.subr.mxu0 0.0
      %2212 = vmatpush2.msra.mxu0 0.0
      %2213 = vmatprep.subr.mxu0 0.0
      %2214 = vmatpush2.msra.mxu0 0.0
      %2215 = vmatprep.subr.mxu0 0.0
      %2216 = vmatpush2.msra.mxu0 0.0
      %2217 = vmatprep.subr.mxu0 0.0
      %2218 = vmatpush2.msra.mxu0 0.0
      %2219 = vmatprep.subr.mxu0 0.0
      %2220 = vmatpush2.msra.mxu0 0.0
      %2221 = vmatprep.subr.mxu0 0.0
      %2222 = vmatpush2.msra.mxu0 0.0
      %2223 = vmatprep.subr.mxu0 0.0
      %2224 = vmatpush2.msra.mxu0 0.0
      %2225 = vmatprep.subr.mxu0 0.0
      %2226 = vmatpush2.msra.mxu0 0.0
      %2227 = vmatprep.subr.mxu0 0.0
      %2228 = vmatpush2.msra.mxu0 0.0
      %2229 = vmatprep.subr.mxu0 0.0
      %2230 = vmatpush2.msra.mxu0 0.0
      %2231 = vmatprep.subr.mxu0 0.0
      %2232 = vmatpush2.msra.mxu0 0.0
      %2233 = vmatprep.subr.mxu0 0.0
      %2234 = vmatpush2.msra.mxu0 0.0
      %2235 = vmatprep.subr.mxu0 0.0
      %2236 = vmatpush2.msra.mxu0 0.0
      %2237 = vmatprep.mubr.f32.mxu0 0.0
      %2238 = vmatmul.mubr.f32.gmra.mxu0 %v745
      %v2239 = vpop.f32.mrf.mxu0
      %v2240 = vadd.f32 %v2172, %v2239
      %v2241 = vpop.f32.mrf.mxu0
      %2242 = vdwg.mxu0
      %s2243 = scalar_lea.vmem %s1, 320
      %v2244 = vld [vmem:[%s2243] sm:$0xff]
      %v2245 = vld [vmem:[%s2243 + $0x8] sm:$0xff]
      %v2246 = vld [vmem:[%s2243 + $0x10] sm:$0xff]
      %v2247 = vld [vmem:[%s2243 + $0x18] sm:$0xff]
      %v2248 = vlaneseq
      %v2249 = vshrl.u32 %v2248, 7
      %v2250 = vsub.s32 1, %v2249
      %v2251 = vrot.slane %v2163, %v2250
      %2252 = vmatprep.subr.mxu0 0.0
      %2253 = vmatpush1.msra.mxu0 0.0
      %2254 = vmatprep.subr.mxu0 0.0
      %2255 = vmatpush1.msra.mxu0 0.0
      %2256 = vmatprep.subr.mxu0 0.0
      %2257 = vmatpush1.msra.mxu0 0.0
      %2258 = vmatprep.subr.mxu0 0.0
      %2259 = vmatpush1.msra.mxu0 0.0
      %2260 = vmatprep.subr.mxu0 0.0
      %2261 = vmatpush1.msra.mxu0 0.0
      %2262 = vmatprep.subr.mxu0 0.0
      %2263 = vmatpush1.msra.mxu0 0.0
      %2264 = vmatprep.subr.mxu0 0.0
      %2265 = vmatpush1.msra.mxu0 0.0
      %2266 = vmatprep.subr.mxu0 0.0
      %2267 = vmatpush1.msra.mxu0 0.0
      %2268 = vmatprep.subr.mxu0 0.0
      %2269 = vmatpush1.msra.mxu0 0.0
      %2270 = vmatprep.subr.mxu0 0.0
      %2271 = vmatpush1.msra.mxu0 0.0
      %2272 = vmatprep.subr.mxu0 0.0
      %2273 = vmatpush1.msra.mxu0 0.0
      %2274 = vmatprep.subr.mxu0 0.0
      %2275 = vmatpush1.msra.mxu0 0.0
      %2276 = vmatprep.subr.mxu0 0.0
      %2277 = vmatpush1.msra.mxu0 %v2247
      %2278 = vmatprep.subr.mxu0 0.0
      %2279 = vmatpush1.msra.mxu0 %v2246
      %2280 = vmatprep.subr.mxu0 0.0
      %2281 = vmatpush1.msra.mxu0 %v2245
      %2282 = vmatprep.subr.mxu0 0.0
      %2283 = vmatpush1.msra.mxu0 %v2244
      %2284 = vmatprep.subr.mxu0 0.0
      %2285 = vmatpush2.msra.mxu0 0.0
      %2286 = vmatprep.subr.mxu0 0.0
      %2287 = vmatpush2.msra.mxu0 0.0
      %2288 = vmatprep.subr.mxu0 0.0
      %2289 = vmatpush2.msra.mxu0 0.0
      %2290 = vmatprep.subr.mxu0 0.0
      %2291 = vmatpush2.msra.mxu0 0.0
      %2292 = vmatprep.subr.mxu0 0.0
      %2293 = vmatpush2.msra.mxu0 0.0
      %2294 = vmatprep.subr.mxu0 0.0
      %2295 = vmatpush2.msra.mxu0 0.0
      %2296 = vmatprep.subr.mxu0 0.0
      %2297 = vmatpush2.msra.mxu0 0.0
      %2298 = vmatprep.subr.mxu0 0.0
      %2299 = vmatpush2.msra.mxu0 0.0
      %2300 = vmatprep.subr.mxu0 0.0
      %2301 = vmatpush2.msra.mxu0 0.0
      %2302 = vmatprep.subr.mxu0 0.0
      %2303 = vmatpush2.msra.mxu0 0.0
      %2304 = vmatprep.subr.mxu0 0.0
      %2305 = vmatpush2.msra.mxu0 0.0
      %2306 = vmatprep.subr.mxu0 0.0
      %2307 = vmatpush2.msra.mxu0 0.0
      %2308 = vmatprep.subr.mxu0 0.0
      %2309 = vmatpush2.msra.mxu0 0.0
      %2310 = vmatprep.subr.mxu0 0.0
      %2311 = vmatpush2.msra.mxu0 0.0
      %2312 = vmatprep.subr.mxu0 0.0
      %2313 = vmatpush2.msra.mxu0 0.0
      %2314 = vmatprep.subr.mxu0 0.0
      %2315 = vmatpush2.msra.mxu0 0.0
      %2316 = vmatprep.mubr.f32.mxu0 0.0
      %2317 = vmatmul.mubr.f32.gmra.mxu0 %v745
      %v2318 = vpop.f32.mrf.mxu0
      %v2319 = vadd.f32 %v2251, %v2318
      %v2320 = vpop.f32.mrf.mxu0
      %2321 = vdwg.mxu0
      %s2322 = scalar_lea.vmem %s1, 352
      %v2323 = vld [vmem:[%s2322] sm:$0xff]
      %v2324 = vld [vmem:[%s2322 + $0x8] sm:$0xff]
      %v2325 = vld [vmem:[%s2322 + $0x10] sm:$0xff]
      %v2326 = vld [vmem:[%s2322 + $0x18] sm:$0xff]
      %v2327 = vlaneseq
      %v2328 = vshrl.u32 %v2327, 7
      %v2329 = vsub.s32 2, %v2328
      %v2330 = vrot.slane %v2163, %v2329
      %2331 = vmatprep.subr.mxu0 0.0
      %2332 = vmatpush1.msra.mxu0 0.0
      %2333 = vmatprep.subr.mxu0 0.0
      %2334 = vmatpush1.msra.mxu0 0.0
      %2335 = vmatprep.subr.mxu0 0.0
      %2336 = vmatpush1.msra.mxu0 0.0
      %2337 = vmatprep.subr.mxu0 0.0
      %2338 = vmatpush1.msra.mxu0 0.0
      %2339 = vmatprep.subr.mxu0 0.0
      %2340 = vmatpush1.msra.mxu0 0.0
      %2341 = vmatprep.subr.mxu0 0.0
      %2342 = vmatpush1.msra.mxu0 0.0
      %2343 = vmatprep.subr.mxu0 0.0
      %2344 = vmatpush1.msra.mxu0 0.0
      %2345 = vmatprep.subr.mxu0 0.0
      %2346 = vmatpush1.msra.mxu0 0.0
      %2347 = vmatprep.subr.mxu0 0.0
      %2348 = vmatpush1.msra.mxu0 0.0
      %2349 = vmatprep.subr.mxu0 0.0
      %2350 = vmatpush1.msra.mxu0 0.0
      %2351 = vmatprep.subr.mxu0 0.0
      %2352 = vmatpush1.msra.mxu0 0.0
      %2353 = vmatprep.subr.mxu0 0.0
      %2354 = vmatpush1.msra.mxu0 0.0
      %2355 = vmatprep.subr.mxu0 0.0
      %2356 = vmatpush1.msra.mxu0 %v2326
      %2357 = vmatprep.subr.mxu0 0.0
      %2358 = vmatpush1.msra.mxu0 %v2325
      %2359 = vmatprep.subr.mxu0 0.0
      %2360 = vmatpush1.msra.mxu0 %v2324
      %2361 = vmatprep.subr.mxu0 0.0
      %2362 = vmatpush1.msra.mxu0 %v2323
      %2363 = vmatprep.subr.mxu0 0.0
      %2364 = vmatpush2.msra.mxu0 0.0
      %2365 = vmatprep.subr.mxu0 0.0
      %2366 = vmatpush2.msra.mxu0 0.0
      %2367 = vmatprep.subr.mxu0 0.0
      %2368 = vmatpush2.msra.mxu0 0.0
      %2369 = vmatprep.subr.mxu0 0.0
      %2370 = vmatpush2.msra.mxu0 0.0
      %2371 = vmatprep.subr.mxu0 0.0
      %2372 = vmatpush2.msra.mxu0 0.0
      %2373 = vmatprep.subr.mxu0 0.0
      %2374 = vmatpush2.msra.mxu0 0.0
      %2375 = vmatprep.subr.mxu0 0.0
      %2376 = vmatpush2.msra.mxu0 0.0
      %2377 = vmatprep.subr.mxu0 0.0
      %2378 = vmatpush2.msra.mxu0 0.0
      %2379 = vmatprep.subr.mxu0 0.0
      %2380 = vmatpush2.msra.mxu0 0.0
      %2381 = vmatprep.subr.mxu0 0.0
      %2382 = vmatpush2.msra.mxu0 0.0
      %2383 = vmatprep.subr.mxu0 0.0
      %2384 = vmatpush2.msra.mxu0 0.0
      %2385 = vmatprep.subr.mxu0 0.0
      %2386 = vmatpush2.msra.mxu0 0.0
      %2387 = vmatprep.subr.mxu0 0.0
      %2388 = vmatpush2.msra.mxu0 0.0
      %2389 = vmatprep.subr.mxu0 0.0
      %2390 = vmatpush2.msra.mxu0 0.0
      %2391 = vmatprep.subr.mxu0 0.0
      %2392 = vmatpush2.msra.mxu0 0.0
      %2393 = vmatprep.subr.mxu0 0.0
      %2394 = vmatpush2.msra.mxu0 0.0
      %2395 = vmatprep.mubr.f32.mxu0 0.0
      %2396 = vmatmul.mubr.f32.gmra.mxu0 %v745
      %v2397 = vpop.f32.mrf.mxu0
      %v2398 = vadd.f32 %v2330, %v2397
      %v2399 = vpop.f32.mrf.mxu0
      %2400 = vdwg.mxu0
      %v2402 = vsel %vm975, %v2240, 0
      %v2405 = vsel %vm975, %v2319, 0
      %2407 = vmatprep.subr.mxu0 0.0
      %2408 = vmatpush1.xpose.msra.mxu0 0.0
      %2409 = vmatprep.subr.mxu0 0.0
      %2410 = vmatpush1.xpose.msra.mxu0 0.0
      %2411 = vmatprep.subr.mxu0 0.0
      %2412 = vmatpush1.xpose.msra.mxu0 0.0
      %2413 = vmatprep.subr.mxu0 0.0
      %2414 = vmatpush1.xpose.msra.mxu0 0.0
      %2415 = vmatprep.subr.mxu0 0.0
      %2416 = vmatpush1.xpose.msra.mxu0 0.0
      %2417 = vmatprep.subr.mxu0 0.0
      %2418 = vmatpush1.xpose.msra.mxu0 0.0
      %2419 = vmatprep.subr.mxu0 0.0
      %2420 = vmatpush1.xpose.msra.mxu0 0.0
      %2421 = vmatprep.subr.mxu0 0.0
      %2422 = vmatpush1.xpose.msra.mxu0 0.0
      %2423 = vmatprep.subr.mxu0 0.0
      %2424 = vmatpush1.xpose.msra.mxu0 0.0
      %2425 = vmatprep.subr.mxu0 0.0
      %2426 = vmatpush1.xpose.msra.mxu0 0.0
      %2427 = vmatprep.subr.mxu0 0.0
      %2428 = vmatpush1.xpose.msra.mxu0 0.0
      %2429 = vmatprep.subr.mxu0 0.0
      %2430 = vmatpush1.xpose.msra.mxu0 0.0
      %2431 = vmatprep.subr.mxu0 0.0
      %2432 = vmatpush1.xpose.msra.mxu0 0.0
      %2433 = vmatprep.subr.mxu0 0.0
      %2434 = vmatpush1.xpose.msra.mxu0 0.0
      %2435 = vmatprep.subr.mxu0 0.0
      %2436 = vmatpush1.xpose.msra.mxu0 0.0
      %2437 = vmatprep.subr.mxu0 0.0
      %2438 = vmatpush1.xpose.msra.mxu0 %v2405
      %2439 = vmatprep.subr.mxu0 0.0
      %2440 = vmatpush2.xpose.msra.mxu0 0.0
      %2441 = vmatprep.subr.mxu0 0.0
      %2442 = vmatpush2.xpose.msra.mxu0 0.0
      %2443 = vmatprep.subr.mxu0 0.0
      %2444 = vmatpush2.xpose.msra.mxu0 0.0
      %2445 = vmatprep.subr.mxu0 0.0
      %2446 = vmatpush2.xpose.msra.mxu0 0.0
      %2447 = vmatprep.subr.mxu0 0.0
      %2448 = vmatpush2.xpose.msra.mxu0 0.0
      %2449 = vmatprep.subr.mxu0 0.0
      %2450 = vmatpush2.xpose.msra.mxu0 0.0
      %2451 = vmatprep.subr.mxu0 0.0
      %2452 = vmatpush2.xpose.msra.mxu0 0.0
      %2453 = vmatprep.subr.mxu0 0.0
      %2454 = vmatpush2.xpose.msra.mxu0 0.0
      %2455 = vmatprep.subr.mxu0 0.0
      %2456 = vmatpush2.xpose.msra.mxu0 0.0
      %2457 = vmatprep.subr.mxu0 0.0
      %2458 = vmatpush2.xpose.msra.mxu0 0.0
      %2459 = vmatprep.subr.mxu0 0.0
      %2460 = vmatpush2.xpose.msra.mxu0 0.0
      %2461 = vmatprep.subr.mxu0 0.0
      %2462 = vmatpush2.xpose.msra.mxu0 0.0
      %2463 = vmatprep.subr.mxu0 0.0
      %2464 = vmatpush2.xpose.msra.mxu0 0.0
      %2465 = vmatprep.subr.mxu0 0.0
      %2466 = vmatpush2.xpose.msra.mxu0 0.0
      %2467 = vmatprep.subr.mxu0 0.0
      %2468 = vmatpush2.xpose.msra.mxu0 0.0
      %2469 = vmatprep.subr.mxu0 0.0
      %2470 = vmatpush2.xpose.msra.mxu0 0.0
      %2471 = vmatprep.mubr.f32.mxu0 0.0
      %2472 = vmatmul.mubr.f32.gmra.mxu0 %v2402
      %v2473 = vpop.f32.mrf.mxu0
      %v2474 = vadd.f32 0.0, %v2473
      %v2475 = vpop.f32.mrf.mxu0
      %2476 = vdwg.mxu0
      %v2477 = vmul.f32 %v2474, 0.35355338
      %v2478 = vsel %vm975, %v2477, -inf
      %2479 = vmax.xlane.f32.xlu0 %v2478
      %v2480 = vpop.xlane.xlu0 %2479
      %v2481 = vsub.f32 %v2477, %v2480
      %v2482 = vmul.f32 %v2481, 1.442695
      %v2483 = vpow.pop %v2482
      %v2484 = vsel %vm975, %v2483, 0.0
      %2485 = vadd.xlane.f32.xlu0 %v2484
      %v2486 = vpop.xlane.xlu0 %2485
      %v2487 = vrcp.pop %v2486
      %v2488 = vmul.f32 %v2483, %v2487
      %v2490 = vsel %vm975, %v2488, 0
      %2492 = vmatprep.subr.mxu0 0.0
      %2493 = vmatpush1.msra.mxu0 0.0
      %2494 = vmatprep.subr.mxu0 0.0
      %2495 = vmatpush1.msra.mxu0 0.0
      %2496 = vmatprep.subr.mxu0 0.0
      %2497 = vmatpush1.msra.mxu0 0.0
      %2498 = vmatprep.subr.mxu0 0.0
      %2499 = vmatpush1.msra.mxu0 0.0
      %2500 = vmatprep.subr.mxu0 0.0
      %2501 = vmatpush1.msra.mxu0 0.0
      %2502 = vmatprep.subr.mxu0 0.0
      %2503 = vmatpush1.msra.mxu0 0.0
      %2504 = vmatprep.subr.mxu0 0.0
      %2505 = vmatpush1.msra.mxu0 0.0
      %2506 = vmatprep.subr.mxu0 0.0
      %2507 = vmatpush1.msra.mxu0 0.0
      %2508 = vmatprep.subr.mxu0 0.0
      %2509 = vmatpush1.msra.mxu0 0.0
      %2510 = vmatprep.subr.mxu0 0.0
      %2511 = vmatpush1.msra.mxu0 0.0
      %2512 = vmatprep.subr.mxu0 0.0
      %2513 = vmatpush1.msra.mxu0 0.0
      %2514 = vmatprep.subr.mxu0 0.0
      %2515 = vmatpush1.msra.mxu0 0.0
      %2516 = vmatprep.subr.mxu0 0.0
      %2517 = vmatpush1.msra.mxu0 0.0
      %2518 = vmatprep.subr.mxu0 0.0
      %2519 = vmatpush1.msra.mxu0 0.0
      %2520 = vmatprep.subr.mxu0 0.0
      %2521 = vmatpush1.msra.mxu0 0.0
      %2522 = vmatprep.subr.mxu0 0.0
      %2523 = vmatpush1.msra.mxu0 %v2398
      %2524 = vmatprep.subr.mxu0 0.0
      %2525 = vmatpush2.msra.mxu0 0.0
      %2526 = vmatprep.subr.mxu0 0.0
      %2527 = vmatpush2.msra.mxu0 0.0
      %2528 = vmatprep.subr.mxu0 0.0
      %2529 = vmatpush2.msra.mxu0 0.0
      %2530 = vmatprep.subr.mxu0 0.0
      %2531 = vmatpush2.msra.mxu0 0.0
      %2532 = vmatprep.subr.mxu0 0.0
      %2533 = vmatpush2.msra.mxu0 0.0
      %2534 = vmatprep.subr.mxu0 0.0
      %2535 = vmatpush2.msra.mxu0 0.0
      %2536 = vmatprep.subr.mxu0 0.0
      %2537 = vmatpush2.msra.mxu0 0.0
      %2538 = vmatprep.subr.mxu0 0.0
      %2539 = vmatpush2.msra.mxu0 0.0
      %2540 = vmatprep.subr.mxu0 0.0
      %2541 = vmatpush2.msra.mxu0 0.0
      %2542 = vmatprep.subr.mxu0 0.0
      %2543 = vmatpush2.msra.mxu0 0.0
      %2544 = vmatprep.subr.mxu0 0.0
      %2545 = vmatpush2.msra.mxu0 0.0
      %2546 = vmatprep.subr.mxu0 0.0
      %2547 = vmatpush2.msra.mxu0 0.0
      %2548 = vmatprep.subr.mxu0 0.0
      %2549 = vmatpush2.msra.mxu0 0.0
      %2550 = vmatprep.subr.mxu0 0.0
      %2551 = vmatpush2.msra.mxu0 0.0
      %2552 = vmatprep.subr.mxu0 0.0
      %2553 = vmatpush2.msra.mxu0 0.0
      %2554 = vmatprep.subr.mxu0 0.0
      %2555 = vmatpush2.msra.mxu0 0.0
      %2556 = vmatprep.mubr.f32.mxu0 0.0
      %2557 = vmatmul.mubr.f32.gmra.mxu0 %v2490
      %v2558 = vpop.f32.mrf.mxu0
      %v2559 = vadd.f32 0.0, %v2558
      %v2560 = vpop.f32.mrf.mxu0
      %2561 = vdwg.mxu0
      %s2562 = scalar_lea.vmem %s3, 24
      %v2563 = vld [vmem:[%s2562] sm:$0xff]
      %v2565 = vsel %vm975, %v2559, 0
      %2567 = vmatprep.subr.mxu0 0.0
      %2568 = vmatpush1.msra.mxu0 0.0
      %2569 = vmatprep.subr.mxu0 0.0
      %2570 = vmatpush1.msra.mxu0 0.0
      %2571 = vmatprep.subr.mxu0 0.0
      %2572 = vmatpush1.msra.mxu0 0.0
      %2573 = vmatprep.subr.mxu0 0.0
      %2574 = vmatpush1.msra.mxu0 0.0
      %2575 = vmatprep.subr.mxu0 0.0
      %2576 = vmatpush1.msra.mxu0 0.0
      %2577 = vmatprep.subr.mxu0 0.0
      %2578 = vmatpush1.msra.mxu0 0.0
      %2579 = vmatprep.subr.mxu0 0.0
      %2580 = vmatpush1.msra.mxu0 0.0
      %2581 = vmatprep.subr.mxu0 0.0
      %2582 = vmatpush1.msra.mxu0 0.0
      %2583 = vmatprep.subr.mxu0 0.0
      %2584 = vmatpush1.msra.mxu0 0.0
      %2585 = vmatprep.subr.mxu0 0.0
      %2586 = vmatpush1.msra.mxu0 0.0
      %2587 = vmatprep.subr.mxu0 0.0
      %2588 = vmatpush1.msra.mxu0 0.0
      %2589 = vmatprep.subr.mxu0 0.0
      %2590 = vmatpush1.msra.mxu0 0.0
      %2591 = vmatprep.subr.mxu0 0.0
      %2592 = vmatpush1.msra.mxu0 0.0
      %2593 = vmatprep.subr.mxu0 0.0
      %2594 = vmatpush1.msra.mxu0 0.0
      %2595 = vmatprep.subr.mxu0 0.0
      %2596 = vmatpush1.msra.mxu0 0.0
      %2597 = vmatprep.subr.mxu0 0.0
      %2598 = vmatpush1.msra.mxu0 %v2563
      %2599 = vmatprep.subr.mxu0 0.0
      %2600 = vmatpush2.msra.mxu0 0.0
      %2601 = vmatprep.subr.mxu0 0.0
      %2602 = vmatpush2.msra.mxu0 0.0
      %2603 = vmatprep.subr.mxu0 0.0
      %2604 = vmatpush2.msra.mxu0 0.0
      %2605 = vmatprep.subr.mxu0 0.0
      %2606 = vmatpush2.msra.mxu0 0.0
      %2607 = vmatprep.subr.mxu0 0.0
      %2608 = vmatpush2.msra.mxu0 0.0
      %2609 = vmatprep.subr.mxu0 0.0
      %2610 = vmatpush2.msra.mxu0 0.0
      %2611 = vmatprep.subr.mxu0 0.0
      %2612 = vmatpush2.msra.mxu0 0.0
      %2613 = vmatprep.subr.mxu0 0.0
      %2614 = vmatpush2.msra.mxu0 0.0
      %2615 = vmatprep.subr.mxu0 0.0
      %2616 = vmatpush2.msra.mxu0 0.0
      %2617 = vmatprep.subr.mxu0 0.0
      %2618 = vmatpush2.msra.mxu0 0.0
      %2619 = vmatprep.subr.mxu0 0.0
      %2620 = vmatpush2.msra.mxu0 0.0
      %2621 = vmatprep.subr.mxu0 0.0
      %2622 = vmatpush2.msra.mxu0 0.0
      %2623 = vmatprep.subr.mxu0 0.0
      %2624 = vmatpush2.msra.mxu0 0.0
      %2625 = vmatprep.subr.mxu0 0.0
      %2626 = vmatpush2.msra.mxu0 0.0
      %2627 = vmatprep.subr.mxu0 0.0
      %2628 = vmatpush2.msra.mxu0 0.0
      %2629 = vmatprep.subr.mxu0 0.0
      %2630 = vmatpush2.msra.mxu0 0.0
      %2631 = vmatprep.mubr.f32.mxu0 0.0
      %2632 = vmatmul.mubr.f32.gmra.mxu0 %v2565
      %v2633 = vpop.f32.mrf.mxu0
      %v2634 = vadd.f32 0.0, %v2633
      %v2635 = vpop.f32.mrf.mxu0
      %2636 = vdwg.mxu0
      %v2637 = vadd.f32 %v2161, %v2634
      %v2638 = vadd.f32 %v708, %v2637
      %v2639 = vlaneseq
      %v2640 = vshrl.u32 %v2639, 7
      %v2641 = vsub.s32 2, %v2640
      %v2642 = vrot.slane %v709, %v2641
      %v2643 = vadd.f32 %v2638, %v2642
      %v2644 = vsel %vm710, %v2643, 0.0
      %2645 = vadd.xlane.f32.xlu0 %v2644
      %v2646 = vpop.xlane.xlu0 %2645
      %v2647 = vmul.f32 %v2646, %v714
      %v2648 = vsub.f32 %v2643, %v2647
      %v2649 = vmul.f32 %v2648, %v2648
      %v2650 = vsel %vm710, %v2649, 0.0
      %2651 = vadd.xlane.f32.xlu0 %v2650
      %v2652 = vpop.xlane.xlu0 %2651
      %v2653 = vmul.f32 %v2652, %v714
      %v2654 = vadd.f32 %v2653, 1e-05
      %v2655 = vrsqrt.pop %v2654
      %v2656 = vmul.f32 %v2648, %v2655
      %v2657 = vlaneseq
      %v2658 = vshrl.u32 %v2657, 7
      %v2659 = vsub.s32 3, %v2658
      %v2660 = vrot.slane %v709, %v2659
      %v2661 = vmul.f32 %v2656, %v2660
      %v2662 = vlaneseq
      %v2663 = vshrl.u32 %v2662, 7
      %v2664 = vsub.s32 4, %v2663
      %v2665 = vrot.slane %v709, %v2664
      %v2666 = vadd.f32 %v2661, %v2665
      %v2667 = vld [vmem:[%s4] sm:$0xff]
      %v2668 = vld [vmem:[%s4 + $0x8] sm:$0xff]
      %v2669 = vld [vmem:[%s4 + $0x10] sm:$0xff]
      %v2670 = vld [vmem:[%s4 + $0x18] sm:$0xff]
      %v2671 = vld [vmem:[%s5] sm:$0x1]
      %v2673 = vlaneseq
      %v2674 = vshrl.u32 %v2673, 7
      %v2675 = vsub.s32 0, %v2674
      %v2676 = vrot.slane %v2671, %v2675
      %v2679 = vsel %vm710, %v2666, 0
      %2681 = vmatprep.subr.mxu0 0.0
      %2682 = vmatpush1.msra.mxu0 0.0
      %2683 = vmatprep.subr.mxu0 0.0
      %2684 = vmatpush1.msra.mxu0 0.0
      %2685 = vmatprep.subr.mxu0 0.0
      %2686 = vmatpush1.msra.mxu0 0.0
      %2687 = vmatprep.subr.mxu0 0.0
      %2688 = vmatpush1.msra.mxu0 0.0
      %2689 = vmatprep.subr.mxu0 0.0
      %2690 = vmatpush1.msra.mxu0 0.0
      %2691 = vmatprep.subr.mxu0 0.0
      %2692 = vmatpush1.msra.mxu0 0.0
      %2693 = vmatprep.subr.mxu0 0.0
      %2694 = vmatpush1.msra.mxu0 0.0
      %2695 = vmatprep.subr.mxu0 0.0
      %2696 = vmatpush1.msra.mxu0 0.0
      %2697 = vmatprep.subr.mxu0 0.0
      %2698 = vmatpush1.msra.mxu0 0.0
      %2699 = vmatprep.subr.mxu0 0.0
      %2700 = vmatpush1.msra.mxu0 0.0
      %2701 = vmatprep.subr.mxu0 0.0
      %2702 = vmatpush1.msra.mxu0 0.0
      %2703 = vmatprep.subr.mxu0 0.0
      %2704 = vmatpush1.msra.mxu0 0.0
      %2705 = vmatprep.subr.mxu0 0.0
      %2706 = vmatpush1.msra.mxu0 %v2670
      %2707 = vmatprep.subr.mxu0 0.0
      %2708 = vmatpush1.msra.mxu0 %v2669
      %2709 = vmatprep.subr.mxu0 0.0
      %2710 = vmatpush1.msra.mxu0 %v2668
      %2711 = vmatprep.subr.mxu0 0.0
      %2712 = vmatpush1.msra.mxu0 %v2667
      %2713 = vmatprep.subr.mxu0 0.0
      %2714 = vmatpush2.msra.mxu0 0.0
      %2715 = vmatprep.subr.mxu0 0.0
      %2716 = vmatpush2.msra.mxu0 0.0
      %2717 = vmatprep.subr.mxu0 0.0
      %2718 = vmatpush2.msra.mxu0 0.0
      %2719 = vmatprep.subr.mxu0 0.0
      %2720 = vmatpush2.msra.mxu0 0.0
      %2721 = vmatprep.subr.mxu0 0.0
      %2722 = vmatpush2.msra.mxu0 0.0
      %2723 = vmatprep.subr.mxu0 0.0
      %2724 = vmatpush2.msra.mxu0 0.0
      %2725 = vmatprep.subr.mxu0 0.0
      %2726 = vmatpush2.msra.mxu0 0.0
      %2727 = vmatprep.subr.mxu0 0.0
      %2728 = vmatpush2.msra.mxu0 0.0
      %2729 = vmatprep.subr.mxu0 0.0
      %2730 = vmatpush2.msra.mxu0 0.0
      %2731 = vmatprep.subr.mxu0 0.0
      %2732 = vmatpush2.msra.mxu0 0.0
      %2733 = vmatprep.subr.mxu0 0.0
      %2734 = vmatpush2.msra.mxu0 0.0
      %2735 = vmatprep.subr.mxu0 0.0
      %2736 = vmatpush2.msra.mxu0 0.0
      %2737 = vmatprep.subr.mxu0 0.0
      %2738 = vmatpush2.msra.mxu0 0.0
      %2739 = vmatprep.subr.mxu0 0.0
      %2740 = vmatpush2.msra.mxu0 0.0
      %2741 = vmatprep.subr.mxu0 0.0
      %2742 = vmatpush2.msra.mxu0 0.0
      %2743 = vmatprep.subr.mxu0 0.0
      %2744 = vmatpush2.msra.mxu0 0.0
      %2745 = vmatprep.mubr.f32.mxu0 0.0
      %2746 = vmatmul.mubr.f32.gmra.mxu0 %v2679
      %v2747 = vpop.f32.mrf.mxu0
      %v2748 = vadd.f32 %v2676, %v2747
      %v2749 = vpop.f32.mrf.mxu0
      %2750 = vdwg.mxu0
      %v2751 = vmul.f32 %v2748, %v2748
      %v2752 = vmul.f32 %v2748, %v2751
      %v2753 = vmul.f32 %v2752, 0.044715
      %v2754 = vadd.f32 %v2748, %v2753
      %v2755 = vmul.f32 %v2754, 0.7978846
      %v2756 = vtanh.pop %v2755
      %v2757 = vadd.f32 %v2756, 1.0
      %v2758 = vmul.f32 %v2757, 0.5
      %v2759 = vmul.f32 %v2748, %v2758
      %v2760 = vld [vmem:[%s6] sm:$0xff]
      %v2761 = vld [vmem:[%s6 + $0x8] sm:$0xff]
      %v2762 = vld [vmem:[%s6 + $0x10] sm:$0xff]
      %v2763 = vld [vmem:[%s6 + $0x18] sm:$0xff]
      %v2764 = vld [vmem:[%s6 + $0x20] sm:$0xff]
      %v2765 = vld [vmem:[%s6 + $0x28] sm:$0xff]
      %v2766 = vld [vmem:[%s6 + $0x30] sm:$0xff]
      %v2767 = vld [vmem:[%s6 + $0x38] sm:$0xff]
      %v2768 = vld [vmem:[%s6 + $0x40] sm:$0xff]
      %v2769 = vld [vmem:[%s6 + $0x48] sm:$0xff]
      %v2770 = vld [vmem:[%s6 + $0x50] sm:$0xff]
      %v2771 = vld [vmem:[%s6 + $0x58] sm:$0xff]
      %v2772 = vld [vmem:[%s6 + $0x60] sm:$0xff]
      %v2773 = vld [vmem:[%s6 + $0x68] sm:$0xff]
      %v2774 = vld [vmem:[%s6 + $0x70] sm:$0xff]
      %v2775 = vld [vmem:[%s6 + $0x78] sm:$0xff]
      %2776 = vmatprep.subr.mxu0 0.0
      %2777 = vmatpush1.msra.mxu0 %v2775
      %2778 = vmatprep.subr.mxu0 0.0
      %2779 = vmatpush1.msra.mxu0 %v2774
      %2780 = vmatprep.subr.mxu0 0.0
      %2781 = vmatpush1.msra.mxu0 %v2773
      %2782 = vmatprep.subr.mxu0 0.0
      %2783 = vmatpush1.msra.mxu0 %v2772
      %2784 = vmatprep.subr.mxu0 0.0
      %2785 = vmatpush1.msra.mxu0 %v2771
      %2786 = vmatprep.subr.mxu0 0.0
      %2787 = vmatpush1.msra.mxu0 %v2770
      %2788 = vmatprep.subr.mxu0 0.0
      %2789 = vmatpush1.msra.mxu0 %v2769
      %2790 = vmatprep.subr.mxu0 0.0
      %2791 = vmatpush1.msra.mxu0 %v2768
      %2792 = vmatprep.subr.mxu0 0.0
      %2793 = vmatpush1.msra.mxu0 %v2767
      %2794 = vmatprep.subr.mxu0 0.0
      %2795 = vmatpush1.msra.mxu0 %v2766
      %2796 = vmatprep.subr.mxu0 0.0
      %2797 = vmatpush1.msra.mxu0 %v2765
      %2798 = vmatprep.subr.mxu0 0.0
      %2799 = vmatpush1.msra.mxu0 %v2764
      %2800 = vmatprep.subr.mxu0 0.0
      %2801 = vmatpush1.msra.mxu0 %v2763
      %2802 = vmatprep.subr.mxu0 0.0
      %2803 = vmatpush1.msra.mxu0 %v2762
      %2804 = vmatprep.subr.mxu0 0.0
      %2805 = vmatpush1.msra.mxu0 %v2761
      %2806 = vmatprep.subr.mxu0 0.0
      %2807 = vmatpush1.msra.mxu0 %v2760
      %2808 = vmatprep.subr.mxu0 0.0
      %2809 = vmatpush2.msra.mxu0 0.0
      %2810 = vmatprep.subr.mxu0 0.0
      %2811 = vmatpush2.msra.mxu0 0.0
      %2812 = vmatprep.subr.mxu0 0.0
      %2813 = vmatpush2.msra.mxu0 0.0
      %2814 = vmatprep.subr.mxu0 0.0
      %2815 = vmatpush2.msra.mxu0 0.0
      %2816 = vmatprep.subr.mxu0 0.0
      %2817 = vmatpush2.msra.mxu0 0.0
      %2818 = vmatprep.subr.mxu0 0.0
      %2819 = vmatpush2.msra.mxu0 0.0
      %2820 = vmatprep.subr.mxu0 0.0
      %2821 = vmatpush2.msra.mxu0 0.0
      %2822 = vmatprep.subr.mxu0 0.0
      %2823 = vmatpush2.msra.mxu0 0.0
      %2824 = vmatprep.subr.mxu0 0.0
      %2825 = vmatpush2.msra.mxu0 0.0
      %2826 = vmatprep.subr.mxu0 0.0
      %2827 = vmatpush2.msra.mxu0 0.0
      %2828 = vmatprep.subr.mxu0 0.0
      %2829 = vmatpush2.msra.mxu0 0.0
      %2830 = vmatprep.subr.mxu0 0.0
      %2831 = vmatpush2.msra.mxu0 0.0
      %2832 = vmatprep.subr.mxu0 0.0
      %2833 = vmatpush2.msra.mxu0 0.0
      %2834 = vmatprep.subr.mxu0 0.0
      %2835 = vmatpush2.msra.mxu0 0.0
      %2836 = vmatprep.subr.mxu0 0.0
      %2837 = vmatpush2.msra.mxu0 0.0
      %2838 = vmatprep.subr.mxu0 0.0
      %2839 = vmatpush2.msra.mxu0 0.0
      %2840 = vmatprep.mubr.f32.mxu0 0.0
      %2841 = vmatmul.mubr.f32.gmra.mxu0 %v2759
      %v2842 = vpop.f32.mrf.mxu0
      %v2843 = vadd.f32 0.0, %v2842
      %v2844 = vpop.f32.mrf.mxu0
      %2845 = vdwg.mxu0
      %v2846 = vadd.f32 %v2643, %v2843
      %v2847 = vlaneseq
      %v2848 = vshrl.u32 %v2847, 7
      %v2849 = vsub.s32 5, %v2848
      %v2850 = vrot.slane %v709, %v2849
      %v2851 = vadd.f32 %v2846, %v2850
      %s2852 = scalar_lea.vmem %s7, 8
      %v2853 = vld [vmem:[%s2852] sm:$0x3f]
      %v2854 = vsel %vm710, %v2851, 0.0
      %2855 = vadd.xlane.f32.xlu0 %v2854
      %v2856 = vpop.xlane.xlu0 %2855
      %v2857 = vmul.f32 %v2856, %v714
      %v2858 = vsub.f32 %v2851, %v2857
      %v2859 = vmul.f32 %v2858, %v2858
      %v2860 = vsel %vm710, %v2859, 0.0
      %2861 = vadd.xlane.f32.xlu0 %v2860
      %v2862 = vpop.xlane.xlu0 %2861
      %v2863 = vmul.f32 %v2862, %v714
      %v2864 = vadd.f32 %v2863, 1e-05
      %v2865 = vrsqrt.pop %v2864
      %v2866 = vmul.f32 %v2858, %v2865
      %v2867 = vlaneseq
      %v2868 = vshrl.u32 %v2867, 7
      %v2869 = vsub.s32 0, %v2868
      %v2870 = vrot.slane %v2853, %v2869
      %v2871 = vmul.f32 %v2866, %v2870
      %v2872 = vlaneseq
      %v2873 = vshrl.u32 %v2872, 7
      %v2874 = vsub.s32 1, %v2873
      %v2875 = vrot.slane %v2853, %v2874
      %v2876 = vadd.f32 %v2871, %v2875
      %s2877 = scalar_lea.vmem %s2, 16
      %v2878 = vld [vmem:[%s2877] sm:$0x7]
      %s2879 = scalar_lea.vmem %s1, 384
      %v2880 = vld [vmem:[%s2879] sm:$0xff]
      %v2881 = vld [vmem:[%s2879 + $0x8] sm:$0xff]
      %v2882 = vld [vmem:[%s2879 + $0x10] sm:$0xff]
      %v2883 = vld [vmem:[%s2879 + $0x18] sm:$0xff]
      %v2884 = vlaneseq
      %v2885 = vshrl.u32 %v2884, 7
      %v2886 = vsub.s32 0, %v2885
      %v2887 = vrot.slane %v2878, %v2886
      %v2889 = vsel %vm710, %v2876, 0
      %2891 = vmatprep.subr.mxu0 0.0
      %2892 = vmatpush1.msra.mxu0 0.0
      %2893 = vmatprep.subr.mxu0 0.0
      %2894 = vmatpush1.msra.mxu0 0.0
      %2895 = vmatprep.subr.mxu0 0.0
      %2896 = vmatpush1.msra.mxu0 0.0
      %2897 = vmatprep.subr.mxu0 0.0
      %2898 = vmatpush1.msra.mxu0 0.0
      %2899 = vmatprep.subr.mxu0 0.0
      %2900 = vmatpush1.msra.mxu0 0.0
      %2901 = vmatprep.subr.mxu0 0.0
      %2902 = vmatpush1.msra.mxu0 0.0
      %2903 = vmatprep.subr.mxu0 0.0
      %2904 = vmatpush1.msra.mxu0 0.0
      %2905 = vmatprep.subr.mxu0 0.0
      %2906 = vmatpush1.msra.mxu0 0.0
      %2907 = vmatprep.subr.mxu0 0.0
      %2908 = vmatpush1.msra.mxu0 0.0
      %2909 = vmatprep.subr.mxu0 0.0
      %2910 = vmatpush1.msra.mxu0 0.0
      %2911 = vmatprep.subr.mxu0 0.0
      %2912 = vmatpush1.msra.mxu0 0.0
      %2913 = vmatprep.subr.mxu0 0.0
      %2914 = vmatpush1.msra.mxu0 0.0
      %2915 = vmatprep.subr.mxu0 0.0
      %2916 = vmatpush1.msra.mxu0 %v2883
      %2917 = vmatprep.subr.mxu0 0.0
      %2918 = vmatpush1.msra.mxu0 %v2882
      %2919 = vmatprep.subr.mxu0 0.0
      %2920 = vmatpush1.msra.mxu0 %v2881
      %2921 = vmatprep.subr.mxu0 0.0
      %2922 = vmatpush1.msra.mxu0 %v2880
      %2923 = vmatprep.subr.mxu0 0.0
      %2924 = vmatpush2.msra.mxu0 0.0
      %2925 = vmatprep.subr.mxu0 0.0
      %2926 = vmatpush2.msra.mxu0 0.0
      %2927 = vmatprep.subr.mxu0 0.0
      %2928 = vmatpush2.msra.mxu0 0.0
      %2929 = vmatprep.subr.mxu0 0.0
      %2930 = vmatpush2.msra.mxu0 0.0
      %2931 = vmatprep.subr.mxu0 0.0
      %2932 = vmatpush2.msra.mxu0 0.0
      %2933 = vmatprep.subr.mxu0 0.0
      %2934 = vmatpush2.msra.mxu0 0.0
      %2935 = vmatprep.subr.mxu0 0.0
      %2936 = vmatpush2.msra.mxu0 0.0
      %2937 = vmatprep.subr.mxu0 0.0
      %2938 = vmatpush2.msra.mxu0 0.0
      %2939 = vmatprep.subr.mxu0 0.0
      %2940 = vmatpush2.msra.mxu0 0.0
      %2941 = vmatprep.subr.mxu0 0.0
      %2942 = vmatpush2.msra.mxu0 0.0
      %2943 = vmatprep.subr.mxu0 0.0
      %2944 = vmatpush2.msra.mxu0 0.0
      %2945 = vmatprep.subr.mxu0 0.0
      %2946 = vmatpush2.msra.mxu0 0.0
      %2947 = vmatprep.subr.mxu0 0.0
      %2948 = vmatpush2.msra.mxu0 0.0
      %2949 = vmatprep.subr.mxu0 0.0
      %2950 = vmatpush2.msra.mxu0 0.0
      %2951 = vmatprep.subr.mxu0 0.0
      %2952 = vmatpush2.msra.mxu0 0.0
      %2953 = vmatprep.subr.mxu0 0.0
      %2954 = vmatpush2.msra.mxu0 0.0
      %2955 = vmatprep.mubr.f32.mxu0 0.0
      %2956 = vmatmul.mubr.f32.gmra.mxu0 %v2889
      %v2957 = vpop.f32.mrf.mxu0
      %v2958 = vadd.f32 %v2887, %v2957
      %v2959 = vpop.f32.mrf.mxu0
      %2960 = vdwg.mxu0
      %s2961 = scalar_lea.vmem %s1, 416
      %v2962 = vld [vmem:[%s2961] sm:$0xff]
      %v2963 = vld [vmem:[%s2961 + $0x8] sm:$0xff]
      %v2964 = vld [vmem:[%s2961 + $0x10] sm:$0xff]
      %v2965 = vld [vmem:[%s2961 + $0x18] sm:$0xff]
      %v2966 = vlaneseq
      %v2967 = vshrl.u32 %v2966, 7
      %v2968 = vsub.s32 1, %v2967
      %v2969 = vrot.slane %v2878, %v2968
      %2970 = vmatprep.subr.mxu0 0.0
      %2971 = vmatpush1.msra.mxu0 0.0
      %2972 = vmatprep.subr.mxu0 0.0
      %2973 = vmatpush1.msra.mxu0 0.0
      %2974 = vmatprep.subr.mxu0 0.0
      %2975 = vmatpush1.msra.mxu0 0.0
      %2976 = vmatprep.subr.mxu0 0.0
      %2977 = vmatpush1.msra.mxu0 0.0
      %2978 = vmatprep.subr.mxu0 0.0
      %2979 = vmatpush1.msra.mxu0 0.0
      %2980 = vmatprep.subr.mxu0 0.0
      %2981 = vmatpush1.msra.mxu0 0.0
      %2982 = vmatprep.subr.mxu0 0.0
      %2983 = vmatpush1.msra.mxu0 0.0
      %2984 = vmatprep.subr.mxu0 0.0
      %2985 = vmatpush1.msra.mxu0 0.0
      %2986 = vmatprep.subr.mxu0 0.0
      %2987 = vmatpush1.msra.mxu0 0.0
      %2988 = vmatprep.subr.mxu0 0.0
      %2989 = vmatpush1.msra.mxu0 0.0
      %2990 = vmatprep.subr.mxu0 0.0
      %2991 = vmatpush1.msra.mxu0 0.0
      %2992 = vmatprep.subr.mxu0 0.0
      %2993 = vmatpush1.msra.mxu0 0.0
      %2994 = vmatprep.subr.mxu0 0.0
      %2995 = vmatpush1.msra.mxu0 %v2965
      %2996 = vmatprep.subr.mxu0 0.0
      %2997 = vmatpush1.msra.mxu0 %v2964
      %2998 = vmatprep.subr.mxu0 0.0
      %2999 = vmatpush1.msra.mxu0 %v2963
      %3000 = vmatprep.subr.mxu0 0.0
      %3001 = vmatpush1.msra.mxu0 %v2962
      %3002 = vmatprep.subr.mxu0 0.0
      %3003 = vmatpush2.msra.mxu0 0.0
      %3004 = vmatprep.subr.mxu0 0.0
      %3005 = vmatpush2.msra.mxu0 0.0
      %3006 = vmatprep.subr.mxu0 0.0
      %3007 = vmatpush2.msra.mxu0 0.0
      %3008 = vmatprep.subr.mxu0 0.0
      %3009 = vmatpush2.msra.mxu0 0.0
      %3010 = vmatprep.subr.mxu0 0.0
      %3011 = vmatpush2.msra.mxu0 0.0
      %3012 = vmatprep.subr.mxu0 0.0
      %3013 = vmatpush2.msra.mxu0 0.0
      %3014 = vmatprep.subr.mxu0 0.0
      %3015 = vmatpush2.msra.mxu0 0.0
      %3016 = vmatprep.subr.mxu0 0.0
      %3017 = vmatpush2.msra.mxu0 0.0
      %3018 = vmatprep.subr.mxu0 0.0
      %3019 = vmatpush2.msra.mxu0 0.0
      %3020 = vmatprep.subr.mxu0 0.0
      %3021 = vmatpush2.msra.mxu0 0.0
      %3022 = vmatprep.subr.mxu0 0.0
      %3023 = vmatpush2.msra.mxu0 0.0
      %3024 = vmatprep.subr.mxu0 0.0
      %3025 = vmatpush2.msra.mxu0 0.0
      %3026 = vmatprep.subr.mxu0 0.0
      %3027 = vmatpush2.msra.mxu0 0.0
      %3028 = vmatprep.subr.mxu0 0.0
      %3029 = vmatpush2.msra.mxu0 0.0
      %3030 = vmatprep.subr.mxu0 0.0
      %3031 = vmatpush2.msra.mxu0 0.0
      %3032 = vmatprep.subr.mxu0 0.0
      %3033 = vmatpush2.msra.mxu0 0.0
      %3034 = vmatprep.mubr.f32.mxu0 0.0
      %3035 = vmatmul.mubr.f32.gmra.mxu0 %v2889
      %v3036 = vpop.f32.mrf.mxu0
      %v3037 = vadd.f32 %v2969, %v3036
      %v3038 = vpop.f32.mrf.mxu0
      %3039 = vdwg.mxu0
      %s3040 = scalar_lea.vmem %s1, 448
      %v3041 = vld [vmem:[%s3040] sm:$0xff]
      %v3042 = vld [vmem:[%s3040 + $0x8] sm:$0xff]
      %v3043 = vld [vmem:[%s3040 + $0x10] sm:$0xff]
      %v3044 = vld [vmem:[%s3040 + $0x18] sm:$0xff]
      %v3045 = vlaneseq
      %v3046 = vshrl.u32 %v3045, 7
      %v3047 = vsub.s32 2, %v3046
      %v3048 = vrot.slane %v2878, %v3047
      %3049 = vmatprep.subr.mxu0 0.0
      %3050 = vmatpush1.msra.mxu0 0.0
      %3051 = vmatprep.subr.mxu0 0.0
      %3052 = vmatpush1.msra.mxu0 0.0
      %3053 = vmatprep.subr.mxu0 0.0
      %3054 = vmatpush1.msra.mxu0 0.0
      %3055 = vmatprep.subr.mxu0 0.0
      %3056 = vmatpush1.msra.mxu0 0.0
      %3057 = vmatprep.subr.mxu0 0.0
      %3058 = vmatpush1.msra.mxu0 0.0
      %3059 = vmatprep.subr.mxu0 0.0
      %3060 = vmatpush1.msra.mxu0 0.0
      %3061 = vmatprep.subr.mxu0 0.0
      %3062 = vmatpush1.msra.mxu0 0.0
      %3063 = vmatprep.subr.mxu0 0.0
      %3064 = vmatpush1.msra.mxu0 0.0
      %3065 = vmatprep.subr.mxu0 0.0
      %3066 = vmatpush1.msra.mxu0 0.0
      %3067 = vmatprep.subr.mxu0 0.0
      %3068 = vmatpush1.msra.mxu0 0.0
      %3069 = vmatprep.subr.mxu0 0.0
      %3070 = vmatpush1.msra.mxu0 0.0
      %3071 = vmatprep.subr.mxu0 0.0
      %3072 = vmatpush1.msra.mxu0 0.0
      %3073 = vmatprep.subr.mxu0 0.0
      %3074 = vmatpush1.msra.mxu0 %v3044
      %3075 = vmatprep.subr.mxu0 0.0
      %3076 = vmatpush1.msra.mxu0 %v3043
      %3077 = vmatprep.subr.mxu0 0.0
      %3078 = vmatpush1.msra.mxu0 %v3042
      %3079 = vmatprep.subr.mxu0 0.0
      %3080 = vmatpush1.msra.mxu0 %v3041
      %3081 = vmatprep.subr.mxu0 0.0
      %3082 = vmatpush2.msra.mxu0 0.0
      %3083 = vmatprep.subr.mxu0 0.0
      %3084 = vmatpush2.msra.mxu0 0.0
      %3085 = vmatprep.subr.mxu0 0.0
      %3086 = vmatpush2.msra.mxu0 0.0
      %3087 = vmatprep.subr.mxu0 0.0
      %3088 = vmatpush2.msra.mxu0 0.0
      %3089 = vmatprep.subr.mxu0 0.0
      %3090 = vmatpush2.msra.mxu0 0.0
      %3091 = vmatprep.subr.mxu0 0.0
      %3092 = vmatpush2.msra.mxu0 0.0
      %3093 = vmatprep.subr.mxu0 0.0
      %3094 = vmatpush2.msra.mxu0 0.0
      %3095 = vmatprep.subr.mxu0 0.0
      %3096 = vmatpush2.msra.mxu0 0.0
      %3097 = vmatprep.subr.mxu0 0.0
      %3098 = vmatpush2.msra.mxu0 0.0
      %3099 = vmatprep.subr.mxu0 0.0
      %3100 = vmatpush2.msra.mxu0 0.0
      %3101 = vmatprep.subr.mxu0 0.0
      %3102 = vmatpush2.msra.mxu0 0.0
      %3103 = vmatprep.subr.mxu0 0.0
      %3104 = vmatpush2.msra.mxu0 0.0
      %3105 = vmatprep.subr.mxu0 0.0
      %3106 = vmatpush2.msra.mxu0 0.0
      %3107 = vmatprep.subr.mxu0 0.0
      %3108 = vmatpush2.msra.mxu0 0.0
      %3109 = vmatprep.subr.mxu0 0.0
      %3110 = vmatpush2.msra.mxu0 0.0
      %3111 = vmatprep.subr.mxu0 0.0
      %3112 = vmatpush2.msra.mxu0 0.0
      %3113 = vmatprep.mubr.f32.mxu0 0.0
      %3114 = vmatmul.mubr.f32.gmra.mxu0 %v2889
      %v3115 = vpop.f32.mrf.mxu0
      %v3116 = vadd.f32 %v3048, %v3115
      %v3117 = vpop.f32.mrf.mxu0
      %3118 = vdwg.mxu0
      %v3120 = vsel %vm975, %v2958, 0
      %v3123 = vsel %vm975, %v3037, 0
      %3125 = vmatprep.subr.mxu0 0.0
      %3126 = vmatpush1.xpose.msra.mxu0 0.0
      %3127 = vmatprep.subr.mxu0 0.0
      %3128 = vmatpush1.xpose.msra.mxu0 0.0
      %3129 = vmatprep.subr.mxu0 0.0
      %3130 = vmatpush1.xpose.msra.mxu0 0.0
      %3131 = vmatprep.subr.mxu0 0.0
      %3132 = vmatpush1.xpose.msra.mxu0 0.0
      %3133 = vmatprep.subr.mxu0 0.0
      %3134 = vmatpush1.xpose.msra.mxu0 0.0
      %3135 = vmatprep.subr.mxu0 0.0
      %3136 = vmatpush1.xpose.msra.mxu0 0.0
      %3137 = vmatprep.subr.mxu0 0.0
      %3138 = vmatpush1.xpose.msra.mxu0 0.0
      %3139 = vmatprep.subr.mxu0 0.0
      %3140 = vmatpush1.xpose.msra.mxu0 0.0
      %3141 = vmatprep.subr.mxu0 0.0
      %3142 = vmatpush1.xpose.msra.mxu0 0.0
      %3143 = vmatprep.subr.mxu0 0.0
      %3144 = vmatpush1.xpose.msra.mxu0 0.0
      %3145 = vmatprep.subr.mxu0 0.0
      %3146 = vmatpush1.xpose.msra.mxu0 0.0
      %3147 = vmatprep.subr.mxu0 0.0
      %3148 = vmatpush1.xpose.msra.mxu0 0.0
      %3149 = vmatprep.subr.mxu0 0.0
      %3150 = vmatpush1.xpose.msra.mxu0 0.0
      %3151 = vmatprep.subr.mxu0 0.0
      %3152 = vmatpush1.xpose.msra.mxu0 0.0
      %3153 = vmatprep.subr.mxu0 0.0
      %3154 = vmatpush1.xpose.msra.mxu0 0.0
      %3155 = vmatprep.subr.mxu0 0.0
      %3156 = vmatpush1.xpose.msra.mxu0 %v3123
      %3157 = vmatprep.subr.mxu0 0.0
      %3158 = vmatpush2.xpose.msra.mxu0 0.0
      %3159 = vmatprep.subr.mxu0 0.0
      %3160 = vmatpush2.xpose.msra.mxu0 0.0
      %3161 = vmatprep.subr.mxu0 0.0
      %3162 = vmatpush2.xpose.msra.mxu0 0.0
      %3163 = vmatprep.subr.mxu0 0.0
      %3164 = vmatpush2.xpose.msra.mxu0 0.0
      %3165 = vmatprep.subr.mxu0 0.0
      %3166 = vmatpush2.xpose.msra.mxu0 0.0
      %3167 = vmatprep.subr.mxu0 0.0
      %3168 = vmatpush2.xpose.msra.mxu0 0.0
      %3169 = vmatprep.subr.mxu0 0.0
      %3170 = vmatpush2.xpose.msra.mxu0 0.0
      %3171 = vmatprep.subr.mxu0 0.0
      %3172 = vmatpush2.xpose.msra.mxu0 0.0
      %3173 = vmatprep.subr.mxu0 0.0
      %3174 = vmatpush2.xpose.msra.mxu0 0.0
      %3175 = vmatprep.subr.mxu0 0.0
      %3176 = vmatpush2.xpose.msra.mxu0 0.0
      %3177 = vmatprep.subr.mxu0 0.0
      %3178 = vmatpush2.xpose.msra.mxu0 0.0
      %3179 = vmatprep.subr.mxu0 0.0
      %3180 = vmatpush2.xpose.msra.mxu0 0.0
      %3181 = vmatprep.subr.mxu0 0.0
      %3182 = vmatpush2.xpose.msra.mxu0 0.0
      %3183 = vmatprep.subr.mxu0 0.0
      %3184 = vmatpush2.xpose.msra.mxu0 0.0
      %3185 = vmatprep.subr.mxu0 0.0
      %3186 = vmatpush2.xpose.msra.mxu0 0.0
      %3187 = vmatprep.subr.mxu0 0.0
      %3188 = vmatpush2.xpose.msra.mxu0 0.0
      %3189 = vmatprep.mubr.f32.mxu0 0.0
      %3190 = vmatmul.mubr.f32.gmra.mxu0 %v3120
      %v3191 = vpop.f32.mrf.mxu0
      %v3192 = vadd.f32 0.0, %v3191
      %v3193 = vpop.f32.mrf.mxu0
      %3194 = vdwg.mxu0
      %v3195 = vmul.f32 %v3192, 0.35355338
      %v3196 = vsel %vm975, %v3195, -inf
      %3197 = vmax.xlane.f32.xlu0 %v3196
      %v3198 = vpop.xlane.xlu0 %3197
      %v3199 = vsub.f32 %v3195, %v3198
      %v3200 = vmul.f32 %v3199, 1.442695
      %v3201 = vpow.pop %v3200
      %v3202 = vsel %vm975, %v3201, 0.0
      %3203 = vadd.xlane.f32.xlu0 %v3202
      %v3204 = vpop.xlane.xlu0 %3203
      %v3205 = vrcp.pop %v3204
      %v3206 = vmul.f32 %v3201, %v3205
      %v3208 = vsel %vm975, %v3206, 0
      %3210 = vmatprep.subr.mxu0 0.0
      %3211 = vmatpush1.msra.mxu0 0.0
      %3212 = vmatprep.subr.mxu0 0.0
      %3213 = vmatpush1.msra.mxu0 0.0
      %3214 = vmatprep.subr.mxu0 0.0
      %3215 = vmatpush1.msra.mxu0 0.0
      %3216 = vmatprep.subr.mxu0 0.0
      %3217 = vmatpush1.msra.mxu0 0.0
      %3218 = vmatprep.subr.mxu0 0.0
      %3219 = vmatpush1.msra.mxu0 0.0
      %3220 = vmatprep.subr.mxu0 0.0
      %3221 = vmatpush1.msra.mxu0 0.0
      %3222 = vmatprep.subr.mxu0 0.0
      %3223 = vmatpush1.msra.mxu0 0.0
      %3224 = vmatprep.subr.mxu0 0.0
      %3225 = vmatpush1.msra.mxu0 0.0
      %3226 = vmatprep.subr.mxu0 0.0
      %3227 = vmatpush1.msra.mxu0 0.0
      %3228 = vmatprep.subr.mxu0 0.0
      %3229 = vmatpush1.msra.mxu0 0.0
      %3230 = vmatprep.subr.mxu0 0.0
      %3231 = vmatpush1.msra.mxu0 0.0
      %3232 = vmatprep.subr.mxu0 0.0
      %3233 = vmatpush1.msra.mxu0 0.0
      %3234 = vmatprep.subr.mxu0 0.0
      %3235 = vmatpush1.msra.mxu0 0.0
      %3236 = vmatprep.subr.mxu0 0.0
      %3237 = vmatpush1.msra.mxu0 0.0
      %3238 = vmatprep.subr.mxu0 0.0
      %3239 = vmatpush1.msra.mxu0 0.0
      %3240 = vmatprep.subr.mxu0 0.0
      %3241 = vmatpush1.msra.mxu0 %v3116
      %3242 = vmatprep.subr.mxu0 0.0
      %3243 = vmatpush2.msra.mxu0 0.0
      %3244 = vmatprep.subr.mxu0 0.0
      %3245 = vmatpush2.msra.mxu0 0.0
      %3246 = vmatprep.subr.mxu0 0.0
      %3247 = vmatpush2.msra.mxu0 0.0
      %3248 = vmatprep.subr.mxu0 0.0
      %3249 = vmatpush2.msra.mxu0 0.0
      %3250 = vmatprep.subr.mxu0 0.0
      %3251 = vmatpush2.msra.mxu0 0.0
      %3252 = vmatprep.subr.mxu0 0.0
      %3253 = vmatpush2.msra.mxu0 0.0
      %3254 = vmatprep.subr.mxu0 0.0
      %3255 = vmatpush2.msra.mxu0 0.0
      %3256 = vmatprep.subr.mxu0 0.0
      %3257 = vmatpush2.msra.mxu0 0.0
      %3258 = vmatprep.subr.mxu0 0.0
      %3259 = vmatpush2.msra.mxu0 0.0
      %3260 = vmatprep.subr.mxu0 0.0
      %3261 = vmatpush2.msra.mxu0 0.0
      %3262 = vmatprep.subr.mxu0 0.0
      %3263 = vmatpush2.msra.mxu0 0.0
      %3264 = vmatprep.subr.mxu0 0.0
      %3265 = vmatpush2.msra.mxu0 0.0
      %3266 = vmatprep.subr.mxu0 0.0
      %3267 = vmatpush2.msra.mxu0 0.0
      %3268 = vmatprep.subr.mxu0 0.0
      %3269 = vmatpush2.msra.mxu0 0.0
      %3270 = vmatprep.subr.mxu0 0.0
      %3271 = vmatpush2.msra.mxu0 0.0
      %3272 = vmatprep.subr.mxu0 0.0
      %3273 = vmatpush2.msra.mxu0 0.0
      %3274 = vmatprep.mubr.f32.mxu0 0.0
      %3275 = vmatmul.mubr.f32.gmra.mxu0 %v3208
      %v3276 = vpop.f32.mrf.mxu0
      %v3277 = vadd.f32 0.0, %v3276
      %v3278 = vpop.f32.mrf.mxu0
      %3279 = vdwg.mxu0
      %s3280 = scalar_lea.vmem %s3, 32
      %v3281 = vld [vmem:[%s3280] sm:$0xff]
      %s3282 = scalar_lea.vmem %s2, 20
      %v3283 = vld [vmem:[%s3282] sm:$0x7]
      %s3284 = scalar_lea.vmem %s1, 480
      %v3285 = vld [vmem:[%s3284] sm:$0xff]
      %v3286 = vld [vmem:[%s3284 + $0x8] sm:$0xff]
      %v3287 = vld [vmem:[%s3284 + $0x10] sm:$0xff]
      %v3288 = vld [vmem:[%s3284 + $0x18] sm:$0xff]
      %v3289 = vlaneseq
      %v3290 = vshrl.u32 %v3289, 7
      %v3291 = vsub.s32 0, %v3290
      %v3292 = vrot.slane %v3283, %v3291
      %3293 = vmatprep.subr.mxu0 0.0
      %3294 = vmatpush1.msra.mxu0 0.0
      %3295 = vmatprep.subr.mxu0 0.0
      %3296 = vmatpush1.msra.mxu0 0.0
      %3297 = vmatprep.subr.mxu0 0.0
      %3298 = vmatpush1.msra.mxu0 0.0
      %3299 = vmatprep.subr.mxu0 0.0
      %3300 = vmatpush1.msra.mxu0 0.0
      %3301 = vmatprep.subr.mxu0 0.0
      %3302 = vmatpush1.msra.mxu0 0.0
      %3303 = vmatprep.subr.mxu0 0.0
      %3304 = vmatpush1.msra.mxu0 0.0
      %3305 = vmatprep.subr.mxu0 0.0
      %3306 = vmatpush1.msra.mxu0 0.0
      %3307 = vmatprep.subr.mxu0 0.0
      %3308 = vmatpush1.msra.mxu0 0.0
      %3309 = vmatprep.subr.mxu0 0.0
      %3310 = vmatpush1.msra.mxu0 0.0
      %3311 = vmatprep.subr.mxu0 0.0
      %3312 = vmatpush1.msra.mxu0 0.0
      %3313 = vmatprep.subr.mxu0 0.0
      %3314 = vmatpush1.msra.mxu0 0.0
      %3315 = vmatprep.subr.mxu0 0.0
      %3316 = vmatpush1.msra.mxu0 0.0
      %3317 = vmatprep.subr.mxu0 0.0
      %3318 = vmatpush1.msra.mxu0 %v3288
      %3319 = vmatprep.subr.mxu0 0.0
      %3320 = vmatpush1.msra.mxu0 %v3287
      %3321 = vmatprep.subr.mxu0 0.0
      %3322 = vmatpush1.msra.mxu0 %v3286
      %3323 = vmatprep.subr.mxu0 0.0
      %3324 = vmatpush1.msra.mxu0 %v3285
      %3325 = vmatprep.subr.mxu0 0.0
      %3326 = vmatpush2.msra.mxu0 0.0
      %3327 = vmatprep.subr.mxu0 0.0
      %3328 = vmatpush2.msra.mxu0 0.0
      %3329 = vmatprep.subr.mxu0 0.0
      %3330 = vmatpush2.msra.mxu0 0.0
      %3331 = vmatprep.subr.mxu0 0.0
      %3332 = vmatpush2.msra.mxu0 0.0
      %3333 = vmatprep.subr.mxu0 0.0
      %3334 = vmatpush2.msra.mxu0 0.0
      %3335 = vmatprep.subr.mxu0 0.0
      %3336 = vmatpush2.msra.mxu0 0.0
      %3337 = vmatprep.subr.mxu0 0.0
      %3338 = vmatpush2.msra.mxu0 0.0
      %3339 = vmatprep.subr.mxu0 0.0
      %3340 = vmatpush2.msra.mxu0 0.0
      %3341 = vmatprep.subr.mxu0 0.0
      %3342 = vmatpush2.msra.mxu0 0.0
      %3343 = vmatprep.subr.mxu0 0.0
      %3344 = vmatpush2.msra.mxu0 0.0
      %3345 = vmatprep.subr.mxu0 0.0
      %3346 = vmatpush2.msra.mxu0 0.0
      %3347 = vmatprep.subr.mxu0 0.0
      %3348 = vmatpush2.msra.mxu0 0.0
      %3349 = vmatprep.subr.mxu0 0.0
      %3350 = vmatpush2.msra.mxu0 0.0
      %3351 = vmatprep.subr.mxu0 0.0
      %3352 = vmatpush2.msra.mxu0 0.0
      %3353 = vmatprep.subr.mxu0 0.0
      %3354 = vmatpush2.msra.mxu0 0.0
      %3355 = vmatprep.subr.mxu0 0.0
      %3356 = vmatpush2.msra.mxu0 0.0
      %3357 = vmatprep.mubr.f32.mxu0 0.0
      %3358 = vmatmul.mubr.f32.gmra.mxu0 %v2889
      %v3359 = vpop.f32.mrf.mxu0
      %v3360 = vadd.f32 %v3292, %v3359
      %v3361 = vpop.f32.mrf.mxu0
      %3362 = vdwg.mxu0
      %s3363 = scalar_lea.vmem %s1, 512
      %v3364 = vld [vmem:[%s3363] sm:$0xff]
      %v3365 = vld [vmem:[%s3363 + $0x8] sm:$0xff]
      %v3366 = vld [vmem:[%s3363 + $0x10] sm:$0xff]
      %v3367 = vld [vmem:[%s3363 + $0x18] sm:$0xff]
      %v3368 = vlaneseq
      %v3369 = vshrl.u32 %v3368, 7
      %v3370 = vsub.s32 1, %v3369
      %v3371 = vrot.slane %v3283, %v3370
      %3372 = vmatprep.subr.mxu0 0.0
      %3373 = vmatpush1.msra.mxu0 0.0
      %3374 = vmatprep.subr.mxu0 0.0
      %3375 = vmatpush1.msra.mxu0 0.0
      %3376 = vmatprep.subr.mxu0 0.0
      %3377 = vmatpush1.msra.mxu0 0.0
      %3378 = vmatprep.subr.mxu0 0.0
      %3379 = vmatpush1.msra.mxu0 0.0
      %3380 = vmatprep.subr.mxu0 0.0
      %3381 = vmatpush1.msra.mxu0 0.0
      %3382 = vmatprep.subr.mxu0 0.0
      %3383 = vmatpush1.msra.mxu0 0.0
      %3384 = vmatprep.subr.mxu0 0.0
      %3385 = vmatpush1.msra.mxu0 0.0
      %3386 = vmatprep.subr.mxu0 0.0
      %3387 = vmatpush1.msra.mxu0 0.0
      %3388 = vmatprep.subr.mxu0 0.0
      %3389 = vmatpush1.msra.mxu0 0.0
      %3390 = vmatprep.subr.mxu0 0.0
      %3391 = vmatpush1.msra.mxu0 0.0
      %3392 = vmatprep.subr.mxu0 0.0
      %3393 = vmatpush1.msra.mxu0 0.0
      %3394 = vmatprep.subr.mxu0 0.0
      %3395 = vmatpush1.msra.mxu0 0.0
      %3396 = vmatprep.subr.mxu0 0.0
      %3397 = vmatpush1.msra.mxu0 %v3367
      %3398 = vmatprep.subr.mxu0 0.0
      %3399 = vmatpush1.msra.mxu0 %v3366
      %3400 = vmatprep.subr.mxu0 0.0
      %3401 = vmatpush1.msra.mxu0 %v3365
      %3402 = vmatprep.subr.mxu0 0.0
      %3403 = vmatpush1.msra.mxu0 %v3364
      %3404 = vmatprep.subr.mxu0 0.0
      %3405 = vmatpush2.msra.mxu0 0.0
      %3406 = vmatprep.subr.mxu0 0.0
      %3407 = vmatpush2.msra.mxu0 0.0
      %3408 = vmatprep.subr.mxu0 0.0
      %3409 = vmatpush2.msra.mxu0 0.0
      %3410 = vmatprep.subr.mxu0 0.0
      %3411 = vmatpush2.msra.mxu0 0.0
      %3412 = vmatprep.subr.mxu0 0.0
      %3413 = vmatpush2.msra.mxu0 0.0
      %3414 = vmatprep.subr.mxu0 0.0
      %3415 = vmatpush2.msra.mxu0 0.0
      %3416 = vmatprep.subr.mxu0 0.0
      %3417 = vmatpush2.msra.mxu0 0.0
      %3418 = vmatprep.subr.mxu0 0.0
      %3419 = vmatpush2.msra.mxu0 0.0
      %3420 = vmatprep.subr.mxu0 0.0
      %3421 = vmatpush2.msra.mxu0 0.0
      %3422 = vmatprep.subr.mxu0 0.0
      %3423 = vmatpush2.msra.mxu0 0.0
      %3424 = vmatprep.subr.mxu0 0.0
      %3425 = vmatpush2.msra.mxu0 0.0
      %3426 = vmatprep.subr.mxu0 0.0
      %3427 = vmatpush2.msra.mxu0 0.0
      %3428 = vmatprep.subr.mxu0 0.0
      %3429 = vmatpush2.msra.mxu0 0.0
      %3430 = vmatprep.subr.mxu0 0.0
      %3431 = vmatpush2.msra.mxu0 0.0
      %3432 = vmatprep.subr.mxu0 0.0
      %3433 = vmatpush2.msra.mxu0 0.0
      %3434 = vmatprep.subr.mxu0 0.0
      %3435 = vmatpush2.msra.mxu0 0.0
      %3436 = vmatprep.mubr.f32.mxu0 0.0
      %3437 = vmatmul.mubr.f32.gmra.mxu0 %v2889
      %v3438 = vpop.f32.mrf.mxu0
      %v3439 = vadd.f32 %v3371, %v3438
      %v3440 = vpop.f32.mrf.mxu0
      %3441 = vdwg.mxu0
      %s3442 = scalar_lea.vmem %s1, 544
      %v3443 = vld [vmem:[%s3442] sm:$0xff]
      %v3444 = vld [vmem:[%s3442 + $0x8] sm:$0xff]
      %v3445 = vld [vmem:[%s3442 + $0x10] sm:$0xff]
      %v3446 = vld [vmem:[%s3442 + $0x18] sm:$0xff]
      %v3447 = vlaneseq
      %v3448 = vshrl.u32 %v3447, 7
      %v3449 = vsub.s32 2, %v3448
      %v3450 = vrot.slane %v3283, %v3449
      %3451 = vmatprep.subr.mxu0 0.0
      %3452 = vmatpush1.msra.mxu0 0.0
      %3453 = vmatprep.subr.mxu0 0.0
      %3454 = vmatpush1.msra.mxu0 0.0
      %3455 = vmatprep.subr.mxu0 0.0
      %3456 = vmatpush1.msra.mxu0 0.0
      %3457 = vmatprep.subr.mxu0 0.0
      %3458 = vmatpush1.msra.mxu0 0.0
      %3459 = vmatprep.subr.mxu0 0.0
      %3460 = vmatpush1.msra.mxu0 0.0
      %3461 = vmatprep.subr.mxu0 0.0
      %3462 = vmatpush1.msra.mxu0 0.0
      %3463 = vmatprep.subr.mxu0 0.0
      %3464 = vmatpush1.msra.mxu0 0.0
      %3465 = vmatprep.subr.mxu0 0.0
      %3466 = vmatpush1.msra.mxu0 0.0
      %3467 = vmatprep.subr.mxu0 0.0
      %3468 = vmatpush1.msra.mxu0 0.0
      %3469 = vmatprep.subr.mxu0 0.0
      %3470 = vmatpush1.msra.mxu0 0.0
      %3471 = vmatprep.subr.mxu0 0.0
      %3472 = vmatpush1.msra.mxu0 0.0
      %3473 = vmatprep.subr.mxu0 0.0
      %3474 = vmatpush1.msra.mxu0 0.0
      %3475 = vmatprep.subr.mxu0 0.0
      %3476 = vmatpush1.msra.mxu0 %v3446
      %3477 = vmatprep.subr.mxu0 0.0
      %3478 = vmatpush1.msra.mxu0 %v3445
      %3479 = vmatprep.subr.mxu0 0.0
      %3480 = vmatpush1.msra.mxu0 %v3444
      %3481 = vmatprep.subr.mxu0 0.0
      %3482 = vmatpush1.msra.mxu0 %v3443
      %3483 = vmatprep.subr.mxu0 0.0
      %3484 = vmatpush2.msra.mxu0 0.0
      %3485 = vmatprep.subr.mxu0 0.0
      %3486 = vmatpush2.msra.mxu0 0.0
      %3487 = vmatprep.subr.mxu0 0.0
      %3488 = vmatpush2.msra.mxu0 0.0
      %3489 = vmatprep.subr.mxu0 0.0
      %3490 = vmatpush2.msra.mxu0 0.0
      %3491 = vmatprep.subr.mxu0 0.0
      %3492 = vmatpush2.msra.mxu0 0.0
      %3493 = vmatprep.subr.mxu0 0.0
      %3494 = vmatpush2.msra.mxu0 0.0
      %3495 = vmatprep.subr.mxu0 0.0
      %3496 = vmatpush2.msra.mxu0 0.0
      %3497 = vmatprep.subr.mxu0 0.0
      %3498 = vmatpush2.msra.mxu0 0.0
      %3499 = vmatprep.subr.mxu0 0.0
      %3500 = vmatpush2.msra.mxu0 0.0
      %3501 = vmatprep.subr.mxu0 0.0
      %3502 = vmatpush2.msra.mxu0 0.0
      %3503 = vmatprep.subr.mxu0 0.0
      %3504 = vmatpush2.msra.mxu0 0.0
      %3505 = vmatprep.subr.mxu0 0.0
      %3506 = vmatpush2.msra.mxu0 0.0
      %3507 = vmatprep.subr.mxu0 0.0
      %3508 = vmatpush2.msra.mxu0 0.0
      %3509 = vmatprep.subr.mxu0 0.0
      %3510 = vmatpush2.msra.mxu0 0.0
      %3511 = vmatprep.subr.mxu0 0.0
      %3512 = vmatpush2.msra.mxu0 0.0
      %3513 = vmatprep.subr.mxu0 0.0
      %3514 = vmatpush2.msra.mxu0 0.0
      %3515 = vmatprep.mubr.f32.mxu0 0.0
      %3516 = vmatmul.mubr.f32.gmra.mxu0 %v2889
      %v3517 = vpop.f32.mrf.mxu0
      %v3518 = vadd.f32 %v3450, %v3517
      %v3519 = vpop.f32.mrf.mxu0
      %3520 = vdwg.mxu0
      %v3522 = vsel %vm975, %v3360, 0
      %v3525 = vsel %vm975, %v3439, 0
      %3527 = vmatprep.subr.mxu0 0.0
      %3528 = vmatpush1.xpose.msra.mxu0 0.0
      %3529 = vmatprep.subr.mxu0 0.0
      %3530 = vmatpush1.xpose.msra.mxu0 0.0
      %3531 = vmatprep.subr.mxu0 0.0
      %3532 = vmatpush1.xpose.msra.mxu0 0.0
      %3533 = vmatprep.subr.mxu0 0.0
      %3534 = vmatpush1.xpose.msra.mxu0 0.0
      %3535 = vmatprep.subr.mxu0 0.0
      %3536 = vmatpush1.xpose.msra.mxu0 0.0
      %3537 = vmatprep.subr.mxu0 0.0
      %3538 = vmatpush1.xpose.msra.mxu0 0.0
      %3539 = vmatprep.subr.mxu0 0.0
      %3540 = vmatpush1.xpose.msra.mxu0 0.0
      %3541 = vmatprep.subr.mxu0 0.0
      %3542 = vmatpush1.xpose.msra.mxu0 0.0
      %3543 = vmatprep.subr.mxu0 0.0
      %3544 = vmatpush1.xpose.msra.mxu0 0.0
      %3545 = vmatprep.subr.mxu0 0.0
      %3546 = vmatpush1.xpose.msra.mxu0 0.0
      %3547 = vmatprep.subr.mxu0 0.0
      %3548 = vmatpush1.xpose.msra.mxu0 0.0
      %3549 = vmatprep.subr.mxu0 0.0
      %3550 = vmatpush1.xpose.msra.mxu0 0.0
      %3551 = vmatprep.subr.mxu0 0.0
      %3552 = vmatpush1.xpose.msra.mxu0 0.0
      %3553 = vmatprep.subr.mxu0 0.0
      %3554 = vmatpush1.xpose.msra.mxu0 0.0
      %3555 = vmatprep.subr.mxu0 0.0
      %3556 = vmatpush1.xpose.msra.mxu0 0.0
      %3557 = vmatprep.subr.mxu0 0.0
      %3558 = vmatpush1.xpose.msra.mxu0 %v3525
      %3559 = vmatprep.subr.mxu0 0.0
      %3560 = vmatpush2.xpose.msra.mxu0 0.0
      %3561 = vmatprep.subr.mxu0 0.0
      %3562 = vmatpush2.xpose.msra.mxu0 0.0
      %3563 = vmatprep.subr.mxu0 0.0
      %3564 = vmatpush2.xpose.msra.mxu0 0.0
      %3565 = vmatprep.subr.mxu0 0.0
      %3566 = vmatpush2.xpose.msra.mxu0 0.0
      %3567 = vmatprep.subr.mxu0 0.0
      %3568 = vmatpush2.xpose.msra.mxu0 0.0
      %3569 = vmatprep.subr.mxu0 0.0
      %3570 = vmatpush2.xpose.msra.mxu0 0.0
      %3571 = vmatprep.subr.mxu0 0.0
      %3572 = vmatpush2.xpose.msra.mxu0 0.0
      %3573 = vmatprep.subr.mxu0 0.0
      %3574 = vmatpush2.xpose.msra.mxu0 0.0
      %3575 = vmatprep.subr.mxu0 0.0
      %3576 = vmatpush2.xpose.msra.mxu0 0.0
      %3577 = vmatprep.subr.mxu0 0.0
      %3578 = vmatpush2.xpose.msra.mxu0 0.0
      %3579 = vmatprep.subr.mxu0 0.0
      %3580 = vmatpush2.xpose.msra.mxu0 0.0
      %3581 = vmatprep.subr.mxu0 0.0
      %3582 = vmatpush2.xpose.msra.mxu0 0.0
      %3583 = vmatprep.subr.mxu0 0.0
      %3584 = vmatpush2.xpose.msra.mxu0 0.0
      %3585 = vmatprep.subr.mxu0 0.0
      %3586 = vmatpush2.xpose.msra.mxu0 0.0
      %3587 = vmatprep.subr.mxu0 0.0
      %3588 = vmatpush2.xpose.msra.mxu0 0.0
      %3589 = vmatprep.subr.mxu0 0.0
      %3590 = vmatpush2.xpose.msra.mxu0 0.0
      %3591 = vmatprep.mubr.f32.mxu0 0.0
      %3592 = vmatmul.mubr.f32.gmra.mxu0 %v3522
      %v3593 = vpop.f32.mrf.mxu0
      %v3594 = vadd.f32 0.0, %v3593
      %v3595 = vpop.f32.mrf.mxu0
      %3596 = vdwg.mxu0
      %v3597 = vmul.f32 %v3594, 0.35355338
      %v3598 = vsel %vm975, %v3597, -inf
      %3599 = vmax.xlane.f32.xlu0 %v3598
      %v3600 = vpop.xlane.xlu0 %3599
      %v3601 = vsub.f32 %v3597, %v3600
      %v3602 = vmul.f32 %v3601, 1.442695
      %v3603 = vpow.pop %v3602
      %v3604 = vsel %vm975, %v3603, 0.0
      %3605 = vadd.xlane.f32.xlu0 %v3604
      %v3606 = vpop.xlane.xlu0 %3605
      %v3607 = vrcp.pop %v3606
      %v3608 = vmul.f32 %v3603, %v3607
      %v3610 = vsel %vm975, %v3608, 0
      %3612 = vmatprep.subr.mxu0 0.0
      %3613 = vmatpush1.msra.mxu0 0.0
      %3614 = vmatprep.subr.mxu0 0.0
      %3615 = vmatpush1.msra.mxu0 0.0
      %3616 = vmatprep.subr.mxu0 0.0
      %3617 = vmatpush1.msra.mxu0 0.0
      %3618 = vmatprep.subr.mxu0 0.0
      %3619 = vmatpush1.msra.mxu0 0.0
      %3620 = vmatprep.subr.mxu0 0.0
      %3621 = vmatpush1.msra.mxu0 0.0
      %3622 = vmatprep.subr.mxu0 0.0
      %3623 = vmatpush1.msra.mxu0 0.0
      %3624 = vmatprep.subr.mxu0 0.0
      %3625 = vmatpush1.msra.mxu0 0.0
      %3626 = vmatprep.subr.mxu0 0.0
      %3627 = vmatpush1.msra.mxu0 0.0
      %3628 = vmatprep.subr.mxu0 0.0
      %3629 = vmatpush1.msra.mxu0 0.0
      %3630 = vmatprep.subr.mxu0 0.0
      %3631 = vmatpush1.msra.mxu0 0.0
      %3632 = vmatprep.subr.mxu0 0.0
      %3633 = vmatpush1.msra.mxu0 0.0
      %3634 = vmatprep.subr.mxu0 0.0
      %3635 = vmatpush1.msra.mxu0 0.0
      %3636 = vmatprep.subr.mxu0 0.0
      %3637 = vmatpush1.msra.mxu0 0.0
      %3638 = vmatprep.subr.mxu0 0.0
      %3639 = vmatpush1.msra.mxu0 0.0
      %3640 = vmatprep.subr.mxu0 0.0
      %3641 = vmatpush1.msra.mxu0 0.0
      %3642 = vmatprep.subr.mxu0 0.0
      %3643 = vmatpush1.msra.mxu0 %v3518
      %3644 = vmatprep.subr.mxu0 0.0
      %3645 = vmatpush2.msra.mxu0 0.0
      %3646 = vmatprep.subr.mxu0 0.0
      %3647 = vmatpush2.msra.mxu0 0.0
      %3648 = vmatprep.subr.mxu0 0.0
      %3649 = vmatpush2.msra.mxu0 0.0
      %3650 = vmatprep.subr.mxu0 0.0
      %3651 = vmatpush2.msra.mxu0 0.0
      %3652 = vmatprep.subr.mxu0 0.0
      %3653 = vmatpush2.msra.mxu0 0.0
      %3654 = vmatprep.subr.mxu0 0.0
      %3655 = vmatpush2.msra.mxu0 0.0
      %3656 = vmatprep.subr.mxu0 0.0
      %3657 = vmatpush2.msra.mxu0 0.0
      %3658 = vmatprep.subr.mxu0 0.0
      %3659 = vmatpush2.msra.mxu0 0.0
      %3660 = vmatprep.subr.mxu0 0.0
      %3661 = vmatpush2.msra.mxu0 0.0
      %3662 = vmatprep.subr.mxu0 0.0
      %3663 = vmatpush2.msra.mxu0 0.0
      %3664 = vmatprep.subr.mxu0 0.0
      %3665 = vmatpush2.msra.mxu0 0.0
      %3666 = vmatprep.subr.mxu0 0.0
      %3667 = vmatpush2.msra.mxu0 0.0
      %3668 = vmatprep.subr.mxu0 0.0
      %3669 = vmatpush2.msra.mxu0 0.0
      %3670 = vmatprep.subr.mxu0 0.0
      %3671 = vmatpush2.msra.mxu0 0.0
      %3672 = vmatprep.subr.mxu0 0.0
      %3673 = vmatpush2.msra.mxu0 0.0
      %3674 = vmatprep.subr.mxu0 0.0
      %3675 = vmatpush2.msra.mxu0 0.0
      %3676 = vmatprep.mubr.f32.mxu0 0.0
      %3677 = vmatmul.mubr.f32.gmra.mxu0 %v3610
      %v3678 = vpop.f32.mrf.mxu0
      %v3679 = vadd.f32 0.0, %v3678
      %v3680 = vpop.f32.mrf.mxu0
      %3681 = vdwg.mxu0
      %s3682 = scalar_lea.vmem %s3, 40
      %v3683 = vld [vmem:[%s3682] sm:$0xff]
      %v3685 = vsel %vm975, %v3679, 0
      %3687 = vmatprep.subr.mxu0 0.0
      %3688 = vmatpush1.msra.mxu0 0.0
      %3689 = vmatprep.subr.mxu0 0.0
      %3690 = vmatpush1.msra.mxu0 0.0
      %3691 = vmatprep.subr.mxu0 0.0
      %3692 = vmatpush1.msra.mxu0 0.0
      %3693 = vmatprep.subr.mxu0 0.0
      %3694 = vmatpush1.msra.mxu0 0.0
      %3695 = vmatprep.subr.mxu0 0.0
      %3696 = vmatpush1.msra.mxu0 0.0
      %3697 = vmatprep.subr.mxu0 0.0
      %3698 = vmatpush1.msra.mxu0 0.0
      %3699 = vmatprep.subr.mxu0 0.0
      %3700 = vmatpush1.msra.mxu0 0.0
      %3701 = vmatprep.subr.mxu0 0.0
      %3702 = vmatpush1.msra.mxu0 0.0
      %3703 = vmatprep.subr.mxu0 0.0
      %3704 = vmatpush1.msra.mxu0 0.0
      %3705 = vmatprep.subr.mxu0 0.0
      %3706 = vmatpush1.msra.mxu0 0.0
      %3707 = vmatprep.subr.mxu0 0.0
      %3708 = vmatpush1.msra.mxu0 0.0
      %3709 = vmatprep.subr.mxu0 0.0
      %3710 = vmatpush1.msra.mxu0 0.0
      %3711 = vmatprep.subr.mxu0 0.0
      %3712 = vmatpush1.msra.mxu0 0.0
      %3713 = vmatprep.subr.mxu0 0.0
      %3714 = vmatpush1.msra.mxu0 0.0
      %3715 = vmatprep.subr.mxu0 0.0
      %3716 = vmatpush1.msra.mxu0 0.0
      %3717 = vmatprep.subr.mxu0 0.0
      %3718 = vmatpush1.msra.mxu0 %v3683
      %3719 = vmatprep.subr.mxu0 0.0
      %3720 = vmatpush2.msra.mxu0 0.0
      %3721 = vmatprep.subr.mxu0 0.0
      %3722 = vmatpush2.msra.mxu0 0.0
      %3723 = vmatprep.subr.mxu0 0.0
      %3724 = vmatpush2.msra.mxu0 0.0
      %3725 = vmatprep.subr.mxu0 0.0
      %3726 = vmatpush2.msra.mxu0 0.0
      %3727 = vmatprep.subr.mxu0 0.0
      %3728 = vmatpush2.msra.mxu0 0.0
      %3729 = vmatprep.subr.mxu0 0.0
      %3730 = vmatpush2.msra.mxu0 0.0
      %3731 = vmatprep.subr.mxu0 0.0
      %3732 = vmatpush2.msra.mxu0 0.0
      %3733 = vmatprep.subr.mxu0 0.0
      %3734 = vmatpush2.msra.mxu0 0.0
      %3735 = vmatprep.subr.mxu0 0.0
      %3736 = vmatpush2.msra.mxu0 0.0
      %3737 = vmatprep.subr.mxu0 0.0
      %3738 = vmatpush2.msra.mxu0 0.0
      %3739 = vmatprep.subr.mxu0 0.0
      %3740 = vmatpush2.msra.mxu0 0.0
      %3741 = vmatprep.subr.mxu0 0.0
      %3742 = vmatpush2.msra.mxu0 0.0
      %3743 = vmatprep.subr.mxu0 0.0
      %3744 = vmatpush2.msra.mxu0 0.0
      %3745 = vmatprep.subr.mxu0 0.0
      %3746 = vmatpush2.msra.mxu0 0.0
      %3747 = vmatprep.subr.mxu0 0.0
      %3748 = vmatpush2.msra.mxu0 0.0
      %3749 = vmatprep.subr.mxu0 0.0
      %3750 = vmatpush2.msra.mxu0 0.0
      %3751 = vmatprep.mubr.f32.mxu0 0.0
      %3752 = vmatmul.mubr.f32.gmra.mxu0 %v3685
      %v3753 = vpop.f32.mrf.mxu0
      %v3754 = vadd.f32 0.0, %v3753
      %v3755 = vpop.f32.mrf.mxu0
      %3756 = vdwg.mxu0
      %v3758 = vsel %vm975, %v3277, 0
      %3760 = vmatprep.subr.mxu0 0.0
      %3761 = vmatpush1.msra.mxu0 0.0
      %3762 = vmatprep.subr.mxu0 0.0
      %3763 = vmatpush1.msra.mxu0 0.0
      %3764 = vmatprep.subr.mxu0 0.0
      %3765 = vmatpush1.msra.mxu0 0.0
      %3766 = vmatprep.subr.mxu0 0.0
      %3767 = vmatpush1.msra.mxu0 0.0
      %3768 = vmatprep.subr.mxu0 0.0
      %3769 = vmatpush1.msra.mxu0 0.0
      %3770 = vmatprep.subr.mxu0 0.0
      %3771 = vmatpush1.msra.mxu0 0.0
      %3772 = vmatprep.subr.mxu0 0.0
      %3773 = vmatpush1.msra.mxu0 0.0
      %3774 = vmatprep.subr.mxu0 0.0
      %3775 = vmatpush1.msra.mxu0 0.0
      %3776 = vmatprep.subr.mxu0 0.0
      %3777 = vmatpush1.msra.mxu0 0.0
      %3778 = vmatprep.subr.mxu0 0.0
      %3779 = vmatpush1.msra.mxu0 0.0
      %3780 = vmatprep.subr.mxu0 0.0
      %3781 = vmatpush1.msra.mxu0 0.0
      %3782 = vmatprep.subr.mxu0 0.0
      %3783 = vmatpush1.msra.mxu0 0.0
      %3784 = vmatprep.subr.mxu0 0.0
      %3785 = vmatpush1.msra.mxu0 0.0
      %3786 = vmatprep.subr.mxu0 0.0
      %3787 = vmatpush1.msra.mxu0 0.0
      %3788 = vmatprep.subr.mxu0 0.0
      %3789 = vmatpush1.msra.mxu0 0.0
      %3790 = vmatprep.subr.mxu0 0.0
      %3791 = vmatpush1.msra.mxu0 %v3281
      %3792 = vmatprep.subr.mxu0 0.0
      %3793 = vmatpush2.msra.mxu0 0.0
      %3794 = vmatprep.subr.mxu0 0.0
      %3795 = vmatpush2.msra.mxu0 0.0
      %3796 = vmatprep.subr.mxu0 0.0
      %3797 = vmatpush2.msra.mxu0 0.0
      %3798 = vmatprep.subr.mxu0 0.0
      %3799 = vmatpush2.msra.mxu0 0.0
      %3800 = vmatprep.subr.mxu0 0.0
      %3801 = vmatpush2.msra.mxu0 0.0
      %3802 = vmatprep.subr.mxu0 0.0
      %3803 = vmatpush2.msra.mxu0 0.0
      %3804 = vmatprep.subr.mxu0 0.0
      %3805 = vmatpush2.msra.mxu0 0.0
      %3806 = vmatprep.subr.mxu0 0.0
      %3807 = vmatpush2.msra.mxu0 0.0
      %3808 = vmatprep.subr.mxu0 0.0
      %3809 = vmatpush2.msra.mxu0 0.0
      %3810 = vmatprep.subr.mxu0 0.0
      %3811 = vmatpush2.msra.mxu0 0.0
      %3812 = vmatprep.subr.mxu0 0.0
      %3813 = vmatpush2.msra.mxu0 0.0
      %3814 = vmatprep.subr.mxu0 0.0
      %3815 = vmatpush2.msra.mxu0 0.0
      %3816 = vmatprep.subr.mxu0 0.0
      %3817 = vmatpush2.msra.mxu0 0.0
      %3818 = vmatprep.subr.mxu0 0.0
      %3819 = vmatpush2.msra.mxu0 0.0
      %3820 = vmatprep.subr.mxu0 0.0
      %3821 = vmatpush2.msra.mxu0 0.0
      %3822 = vmatprep.subr.mxu0 0.0
      %3823 = vmatpush2.msra.mxu0 0.0
      %3824 = vmatprep.mubr.f32.mxu0 0.0
      %3825 = vmatmul.mubr.f32.gmra.mxu0 %v3758
      %v3826 = vpop.f32.mrf.mxu0
      %v3827 = vadd.f32 %v3754, %v3826
      %v3828 = vpop.f32.mrf.mxu0
      %3829 = vdwg.mxu0
      %s3830 = scalar_lea.vmem %s2, 24
      %v3831 = vld [vmem:[%s3830] sm:$0x7]
      %s3832 = scalar_lea.vmem %s1, 576
      %v3833 = vld [vmem:[%s3832] sm:$0xff]
      %v3834 = vld [vmem:[%s3832 + $0x8] sm:$0xff]
      %v3835 = vld [vmem:[%s3832 + $0x10] sm:$0xff]
      %v3836 = vld [vmem:[%s3832 + $0x18] sm:$0xff]
      %v3837 = vlaneseq
      %v3838 = vshrl.u32 %v3837, 7
      %v3839 = vsub.s32 0, %v3838
      %v3840 = vrot.slane %v3831, %v3839
      %3841 = vmatprep.subr.mxu0 0.0
      %3842 = vmatpush1.msra.mxu0 0.0
      %3843 = vmatprep.subr.mxu0 0.0
      %3844 = vmatpush1.msra.mxu0 0.0
      %3845 = vmatprep.subr.mxu0 0.0
      %3846 = vmatpush1.msra.mxu0 0.0
      %3847 = vmatprep.subr.mxu0 0.0
      %3848 = vmatpush1.msra.mxu0 0.0
      %3849 = vmatprep.subr.mxu0 0.0
      %3850 = vmatpush1.msra.mxu0 0.0
      %3851 = vmatprep.subr.mxu0 0.0
      %3852 = vmatpush1.msra.mxu0 0.0
      %3853 = vmatprep.subr.mxu0 0.0
      %3854 = vmatpush1.msra.mxu0 0.0
      %3855 = vmatprep.subr.mxu0 0.0
      %3856 = vmatpush1.msra.mxu0 0.0
      %3857 = vmatprep.subr.mxu0 0.0
      %3858 = vmatpush1.msra.mxu0 0.0
      %3859 = vmatprep.subr.mxu0 0.0
      %3860 = vmatpush1.msra.mxu0 0.0
      %3861 = vmatprep.subr.mxu0 0.0
      %3862 = vmatpush1.msra.mxu0 0.0
      %3863 = vmatprep.subr.mxu0 0.0
      %3864 = vmatpush1.msra.mxu0 0.0
      %3865 = vmatprep.subr.mxu0 0.0
      %3866 = vmatpush1.msra.mxu0 %v3836
      %3867 = vmatprep.subr.mxu0 0.0
      %3868 = vmatpush1.msra.mxu0 %v3835
      %3869 = vmatprep.subr.mxu0 0.0
      %3870 = vmatpush1.msra.mxu0 %v3834
      %3871 = vmatprep.subr.mxu0 0.0
      %3872 = vmatpush1.msra.mxu0 %v3833
      %3873 = vmatprep.subr.mxu0 0.0
      %3874 = vmatpush2.msra.mxu0 0.0
      %3875 = vmatprep.subr.mxu0 0.0
      %3876 = vmatpush2.msra.mxu0 0.0
      %3877 = vmatprep.subr.mxu0 0.0
      %3878 = vmatpush2.msra.mxu0 0.0
      %3879 = vmatprep.subr.mxu0 0.0
      %3880 = vmatpush2.msra.mxu0 0.0
      %3881 = vmatprep.subr.mxu0 0.0
      %3882 = vmatpush2.msra.mxu0 0.0
      %3883 = vmatprep.subr.mxu0 0.0
      %3884 = vmatpush2.msra.mxu0 0.0
      %3885 = vmatprep.subr.mxu0 0.0
      %3886 = vmatpush2.msra.mxu0 0.0
      %3887 = vmatprep.subr.mxu0 0.0
      %3888 = vmatpush2.msra.mxu0 0.0
      %3889 = vmatprep.subr.mxu0 0.0
      %3890 = vmatpush2.msra.mxu0 0.0
      %3891 = vmatprep.subr.mxu0 0.0
      %3892 = vmatpush2.msra.mxu0 0.0
      %3893 = vmatprep.subr.mxu0 0.0
      %3894 = vmatpush2.msra.mxu0 0.0
      %3895 = vmatprep.subr.mxu0 0.0
      %3896 = vmatpush2.msra.mxu0 0.0
      %3897 = vmatprep.subr.mxu0 0.0
      %3898 = vmatpush2.msra.mxu0 0.0
      %3899 = vmatprep.subr.mxu0 0.0
      %3900 = vmatpush2.msra.mxu0 0.0
      %3901 = vmatprep.subr.mxu0 0.0
      %3902 = vmatpush2.msra.mxu0 0.0
      %3903 = vmatprep.subr.mxu0 0.0
      %3904 = vmatpush2.msra.mxu0 0.0
      %3905 = vmatprep.mubr.f32.mxu0 0.0
      %3906 = vmatmul.mubr.f32.gmra.mxu0 %v2889
      %v3907 = vpop.f32.mrf.mxu0
      %v3908 = vadd.f32 %v3840, %v3907
      %v3909 = vpop.f32.mrf.mxu0
      %3910 = vdwg.mxu0
      %s3911 = scalar_lea.vmem %s1, 608
      %v3912 = vld [vmem:[%s3911] sm:$0xff]
      %v3913 = vld [vmem:[%s3911 + $0x8] sm:$0xff]
      %v3914 = vld [vmem:[%s3911 + $0x10] sm:$0xff]
      %v3915 = vld [vmem:[%s3911 + $0x18] sm:$0xff]
      %v3916 = vlaneseq
      %v3917 = vshrl.u32 %v3916, 7
      %v3918 = vsub.s32 1, %v3917
      %v3919 = vrot.slane %v3831, %v3918
      %3920 = vmatprep.subr.mxu0 0.0
      %3921 = vmatpush1.msra.mxu0 0.0
      %3922 = vmatprep.subr.mxu0 0.0
      %3923 = vmatpush1.msra.mxu0 0.0
      %3924 = vmatprep.subr.mxu0 0.0
      %3925 = vmatpush1.msra.mxu0 0.0
      %3926 = vmatprep.subr.mxu0 0.0
      %3927 = vmatpush1.msra.mxu0 0.0
      %3928 = vmatprep.subr.mxu0 0.0
      %3929 = vmatpush1.msra.mxu0 0.0
      %3930 = vmatprep.subr.mxu0 0.0
      %3931 = vmatpush1.msra.mxu0 0.0
      %3932 = vmatprep.subr.mxu0 0.0
      %3933 = vmatpush1.msra.mxu0 0.0
      %3934 = vmatprep.subr.mxu0 0.0
      %3935 = vmatpush1.msra.mxu0 0.0
      %3936 = vmatprep.subr.mxu0 0.0
      %3937 = vmatpush1.msra.mxu0 0.0
      %3938 = vmatprep.subr.mxu0 0.0
      %3939 = vmatpush1.msra.mxu0 0.0
      %3940 = vmatprep.subr.mxu0 0.0
      %3941 = vmatpush1.msra.mxu0 0.0
      %3942 = vmatprep.subr.mxu0 0.0
      %3943 = vmatpush1.msra.mxu0 0.0
      %3944 = vmatprep.subr.mxu0 0.0
      %3945 = vmatpush1.msra.mxu0 %v3915
      %3946 = vmatprep.subr.mxu0 0.0
      %3947 = vmatpush1.msra.mxu0 %v3914
      %3948 = vmatprep.subr.mxu0 0.0
      %3949 = vmatpush1.msra.mxu0 %v3913
      %3950 = vmatprep.subr.mxu0 0.0
      %3951 = vmatpush1.msra.mxu0 %v3912
      %3952 = vmatprep.subr.mxu0 0.0
      %3953 = vmatpush2.msra.mxu0 0.0
      %3954 = vmatprep.subr.mxu0 0.0
      %3955 = vmatpush2.msra.mxu0 0.0
      %3956 = vmatprep.subr.mxu0 0.0
      %3957 = vmatpush2.msra.mxu0 0.0
      %3958 = vmatprep.subr.mxu0 0.0
      %3959 = vmatpush2.msra.mxu0 0.0
      %3960 = vmatprep.subr.mxu0 0.0
      %3961 = vmatpush2.msra.mxu0 0.0
      %3962 = vmatprep.subr.mxu0 0.0
      %3963 = vmatpush2.msra.mxu0 0.0
      %3964 = vmatprep.subr.mxu0 0.0
      %3965 = vmatpush2.msra.mxu0 0.0
      %3966 = vmatprep.subr.mxu0 0.0
      %3967 = vmatpush2.msra.mxu0 0.0
      %3968 = vmatprep.subr.mxu0 0.0
      %3969 = vmatpush2.msra.mxu0 0.0
      %3970 = vmatprep.subr.mxu0 0.0
      %3971 = vmatpush2.msra.mxu0 0.0
      %3972 = vmatprep.subr.mxu0 0.0
      %3973 = vmatpush2.msra.mxu0 0.0
      %3974 = vmatprep.subr.mxu0 0.0
      %3975 = vmatpush2.msra.mxu0 0.0
      %3976 = vmatprep.subr.mxu0 0.0
      %3977 = vmatpush2.msra.mxu0 0.0
      %3978 = vmatprep.subr.mxu0 0.0
      %3979 = vmatpush2.msra.mxu0 0.0
      %3980 = vmatprep.subr.mxu0 0.0
      %3981 = vmatpush2.msra.mxu0 0.0
      %3982 = vmatprep.subr.mxu0 0.0
      %3983 = vmatpush2.msra.mxu0 0.0
      %3984 = vmatprep.mubr.f32.mxu0 0.0
      %3985 = vmatmul.mubr.f32.gmra.mxu0 %v2889
      %v3986 = vpop.f32.mrf.mxu0
      %v3987 = vadd.f32 %v3919, %v3986
      %v3988 = vpop.f32.mrf.mxu0
      %3989 = vdwg.mxu0
      %s3990 = scalar_lea.vmem %s1, 640
      %v3991 = vld [vmem:[%s3990] sm:$0xff]
      %v3992 = vld [vmem:[%s3990 + $0x8] sm:$0xff]
      %v3993 = vld [vmem:[%s3990 + $0x10] sm:$0xff]
      %v3994 = vld [vmem:[%s3990 + $0x18] sm:$0xff]
      %v3995 = vlaneseq
      %v3996 = vshrl.u32 %v3995, 7
      %v3997 = vsub.s32 2, %v3996
      %v3998 = vrot.slane %v3831, %v3997
      %3999 = vmatprep.subr.mxu0 0.0
      %4000 = vmatpush1.msra.mxu0 0.0
      %4001 = vmatprep.subr.mxu0 0.0
      %4002 = vmatpush1.msra.mxu0 0.0
      %4003 = vmatprep.subr.mxu0 0.0
      %4004 = vmatpush1.msra.mxu0 0.0
      %4005 = vmatprep.subr.mxu0 0.0
      %4006 = vmatpush1.msra.mxu0 0.0
      %4007 = vmatprep.subr.mxu0 0.0
      %4008 = vmatpush1.msra.mxu0 0.0
      %4009 = vmatprep.subr.mxu0 0.0
      %4010 = vmatpush1.msra.mxu0 0.0
      %4011 = vmatprep.subr.mxu0 0.0
      %4012 = vmatpush1.msra.mxu0 0.0
      %4013 = vmatprep.subr.mxu0 0.0
      %4014 = vmatpush1.msra.mxu0 0.0
      %4015 = vmatprep.subr.mxu0 0.0
      %4016 = vmatpush1.msra.mxu0 0.0
      %4017 = vmatprep.subr.mxu0 0.0
      %4018 = vmatpush1.msra.mxu0 0.0
      %4019 = vmatprep.subr.mxu0 0.0
      %4020 = vmatpush1.msra.mxu0 0.0
      %4021 = vmatprep.subr.mxu0 0.0
      %4022 = vmatpush1.msra.mxu0 0.0
      %4023 = vmatprep.subr.mxu0 0.0
      %4024 = vmatpush1.msra.mxu0 %v3994
      %4025 = vmatprep.subr.mxu0 0.0
      %4026 = vmatpush1.msra.mxu0 %v3993
      %4027 = vmatprep.subr.mxu0 0.0
      %4028 = vmatpush1.msra.mxu0 %v3992
      %4029 = vmatprep.subr.mxu0 0.0
      %4030 = vmatpush1.msra.mxu0 %v3991
      %4031 = vmatprep.subr.mxu0 0.0
      %4032 = vmatpush2.msra.mxu0 0.0
      %4033 = vmatprep.subr.mxu0 0.0
      %4034 = vmatpush2.msra.mxu0 0.0
      %4035 = vmatprep.subr.mxu0 0.0
      %4036 = vmatpush2.msra.mxu0 0.0
      %4037 = vmatprep.subr.mxu0 0.0
      %4038 = vmatpush2.msra.mxu0 0.0
      %4039 = vmatprep.subr.mxu0 0.0
      %4040 = vmatpush2.msra.mxu0 0.0
      %4041 = vmatprep.subr.mxu0 0.0
      %4042 = vmatpush2.msra.mxu0 0.0
      %4043 = vmatprep.subr.mxu0 0.0
      %4044 = vmatpush2.msra.mxu0 0.0
      %4045 = vmatprep.subr.mxu0 0.0
      %4046 = vmatpush2.msra.mxu0 0.0
      %4047 = vmatprep.subr.mxu0 0.0
      %4048 = vmatpush2.msra.mxu0 0.0
      %4049 = vmatprep.subr.mxu0 0.0
      %4050 = vmatpush2.msra.mxu0 0.0
      %4051 = vmatprep.subr.mxu0 0.0
      %4052 = vmatpush2.msra.mxu0 0.0
      %4053 = vmatprep.subr.mxu0 0.0
      %4054 = vmatpush2.msra.mxu0 0.0
      %4055 = vmatprep.subr.mxu0 0.0
      %4056 = vmatpush2.msra.mxu0 0.0
      %4057 = vmatprep.subr.mxu0 0.0
      %4058 = vmatpush2.msra.mxu0 0.0
      %4059 = vmatprep.subr.mxu0 0.0
      %4060 = vmatpush2.msra.mxu0 0.0
      %4061 = vmatprep.subr.mxu0 0.0
      %4062 = vmatpush2.msra.mxu0 0.0
      %4063 = vmatprep.mubr.f32.mxu0 0.0
      %4064 = vmatmul.mubr.f32.gmra.mxu0 %v2889
      %v4065 = vpop.f32.mrf.mxu0
      %v4066 = vadd.f32 %v3998, %v4065
      %v4067 = vpop.f32.mrf.mxu0
      %4068 = vdwg.mxu0
      %v4070 = vsel %vm975, %v3908, 0
      %v4073 = vsel %vm975, %v3987, 0
      %4075 = vmatprep.subr.mxu0 0.0
      %4076 = vmatpush1.xpose.msra.mxu0 0.0
      %4077 = vmatprep.subr.mxu0 0.0
      %4078 = vmatpush1.xpose.msra.mxu0 0.0
      %4079 = vmatprep.subr.mxu0 0.0
      %4080 = vmatpush1.xpose.msra.mxu0 0.0
      %4081 = vmatprep.subr.mxu0 0.0
      %4082 = vmatpush1.xpose.msra.mxu0 0.0
      %4083 = vmatprep.subr.mxu0 0.0
      %4084 = vmatpush1.xpose.msra.mxu0 0.0
      %4085 = vmatprep.subr.mxu0 0.0
      %4086 = vmatpush1.xpose.msra.mxu0 0.0
      %4087 = vmatprep.subr.mxu0 0.0
      %4088 = vmatpush1.xpose.msra.mxu0 0.0
      %4089 = vmatprep.subr.mxu0 0.0
      %4090 = vmatpush1.xpose.msra.mxu0 0.0
      %4091 = vmatprep.subr.mxu0 0.0
      %4092 = vmatpush1.xpose.msra.mxu0 0.0
      %4093 = vmatprep.subr.mxu0 0.0
      %4094 = vmatpush1.xpose.msra.mxu0 0.0
      %4095 = vmatprep.subr.mxu0 0.0
      %4096 = vmatpush1.xpose.msra.mxu0 0.0
      %4097 = vmatprep.subr.mxu0 0.0
      %4098 = vmatpush1.xpose.msra.mxu0 0.0
      %4099 = vmatprep.subr.mxu0 0.0
      %4100 = vmatpush1.xpose.msra.mxu0 0.0
      %4101 = vmatprep.subr.mxu0 0.0
      %4102 = vmatpush1.xpose.msra.mxu0 0.0
      %4103 = vmatprep.subr.mxu0 0.0
      %4104 = vmatpush1.xpose.msra.mxu0 0.0
      %4105 = vmatprep.subr.mxu0 0.0
      %4106 = vmatpush1.xpose.msra.mxu0 %v4073
      %4107 = vmatprep.subr.mxu0 0.0
      %4108 = vmatpush2.xpose.msra.mxu0 0.0
      %4109 = vmatprep.subr.mxu0 0.0
      %4110 = vmatpush2.xpose.msra.mxu0 0.0
      %4111 = vmatprep.subr.mxu0 0.0
      %4112 = vmatpush2.xpose.msra.mxu0 0.0
      %4113 = vmatprep.subr.mxu0 0.0
      %4114 = vmatpush2.xpose.msra.mxu0 0.0
      %4115 = vmatprep.subr.mxu0 0.0
      %4116 = vmatpush2.xpose.msra.mxu0 0.0
      %4117 = vmatprep.subr.mxu0 0.0
      %4118 = vmatpush2.xpose.msra.mxu0 0.0
      %4119 = vmatprep.subr.mxu0 0.0
      %4120 = vmatpush2.xpose.msra.mxu0 0.0
      %4121 = vmatprep.subr.mxu0 0.0
      %4122 = vmatpush2.xpose.msra.mxu0 0.0
      %4123 = vmatprep.subr.mxu0 0.0
      %4124 = vmatpush2.xpose.msra.mxu0 0.0
      %4125 = vmatprep.subr.mxu0 0.0
      %4126 = vmatpush2.xpose.msra.mxu0 0.0
      %4127 = vmatprep.subr.mxu0 0.0
      %4128 = vmatpush2.xpose.msra.mxu0 0.0
      %4129 = vmatprep.subr.mxu0 0.0
      %4130 = vmatpush2.xpose.msra.mxu0 0.0
      %4131 = vmatprep.subr.mxu0 0.0
      %4132 = vmatpush2.xpose.msra.mxu0 0.0
      %4133 = vmatprep.subr.mxu0 0.0
      %4134 = vmatpush2.xpose.msra.mxu0 0.0
      %4135 = vmatprep.subr.mxu0 0.0
      %4136 = vmatpush2.xpose.msra.mxu0 0.0
      %4137 = vmatprep.subr.mxu0 0.0
      %4138 = vmatpush2.xpose.msra.mxu0 0.0
      %4139 = vmatprep.mubr.f32.mxu0 0.0
      %4140 = vmatmul.mubr.f32.gmra.mxu0 %v4070
      %v4141 = vpop.f32.mrf.mxu0
      %v4142 = vadd.f32 0.0, %v4141
      %v4143 = vpop.f32.mrf.mxu0
      %4144 = vdwg.mxu0
      %v4145 = vmul.f32 %v4142, 0.35355338
      %v4146 = vsel %vm975, %v4145, -inf
      %4147 = vmax.xlane.f32.xlu0 %v4146
      %v4148 = vpop.xlane.xlu0 %4147
      %v4149 = vsub.f32 %v4145, %v4148
      %v4150 = vmul.f32 %v4149, 1.442695
      %v4151 = vpow.pop %v4150
      %v4152 = vsel %vm975, %v4151, 0.0
      %4153 = vadd.xlane.f32.xlu0 %v4152
      %v4154 = vpop.xlane.xlu0 %4153
      %v4155 = vrcp.pop %v4154
      %v4156 = vmul.f32 %v4151, %v4155
      %v4158 = vsel %vm975, %v4156, 0
      %4160 = vmatprep.subr.mxu0 0.0
      %4161 = vmatpush1.msra.mxu0 0.0
      %4162 = vmatprep.subr.mxu0 0.0
      %4163 = vmatpush1.msra.mxu0 0.0
      %4164 = vmatprep.subr.mxu0 0.0
      %4165 = vmatpush1.msra.mxu0 0.0
      %4166 = vmatprep.subr.mxu0 0.0
      %4167 = vmatpush1.msra.mxu0 0.0
      %4168 = vmatprep.subr.mxu0 0.0
      %4169 = vmatpush1.msra.mxu0 0.0
      %4170 = vmatprep.subr.mxu0 0.0
      %4171 = vmatpush1.msra.mxu0 0.0
      %4172 = vmatprep.subr.mxu0 0.0
      %4173 = vmatpush1.msra.mxu0 0.0
      %4174 = vmatprep.subr.mxu0 0.0
      %4175 = vmatpush1.msra.mxu0 0.0
      %4176 = vmatprep.subr.mxu0 0.0
      %4177 = vmatpush1.msra.mxu0 0.0
      %4178 = vmatprep.subr.mxu0 0.0
      %4179 = vmatpush1.msra.mxu0 0.0
      %4180 = vmatprep.subr.mxu0 0.0
      %4181 = vmatpush1.msra.mxu0 0.0
      %4182 = vmatprep.subr.mxu0 0.0
      %4183 = vmatpush1.msra.mxu0 0.0
      %4184 = vmatprep.subr.mxu0 0.0
      %4185 = vmatpush1.msra.mxu0 0.0
      %4186 = vmatprep.subr.mxu0 0.0
      %4187 = vmatpush1.msra.mxu0 0.0
      %4188 = vmatprep.subr.mxu0 0.0
      %4189 = vmatpush1.msra.mxu0 0.0
      %4190 = vmatprep.subr.mxu0 0.0
      %4191 = vmatpush1.msra.mxu0 %v4066
      %4192 = vmatprep.subr.mxu0 0.0
      %4193 = vmatpush2.msra.mxu0 0.0
      %4194 = vmatprep.subr.mxu0 0.0
      %4195 = vmatpush2.msra.mxu0 0.0
      %4196 = vmatprep.subr.mxu0 0.0
      %4197 = vmatpush2.msra.mxu0 0.0
      %4198 = vmatprep.subr.mxu0 0.0
      %4199 = vmatpush2.msra.mxu0 0.0
      %4200 = vmatprep.subr.mxu0 0.0
      %4201 = vmatpush2.msra.mxu0 0.0
      %4202 = vmatprep.subr.mxu0 0.0
      %4203 = vmatpush2.msra.mxu0 0.0
      %4204 = vmatprep.subr.mxu0 0.0
      %4205 = vmatpush2.msra.mxu0 0.0
      %4206 = vmatprep.subr.mxu0 0.0
      %4207 = vmatpush2.msra.mxu0 0.0
      %4208 = vmatprep.subr.mxu0 0.0
      %4209 = vmatpush2.msra.mxu0 0.0
      %4210 = vmatprep.subr.mxu0 0.0
      %4211 = vmatpush2.msra.mxu0 0.0
      %4212 = vmatprep.subr.mxu0 0.0
      %4213 = vmatpush2.msra.mxu0 0.0
      %4214 = vmatprep.subr.mxu0 0.0
      %4215 = vmatpush2.msra.mxu0 0.0
      %4216 = vmatprep.subr.mxu0 0.0
      %4217 = vmatpush2.msra.mxu0 0.0
      %4218 = vmatprep.subr.mxu0 0.0
      %4219 = vmatpush2.msra.mxu0 0.0
      %4220 = vmatprep.subr.mxu0 0.0
      %4221 = vmatpush2.msra.mxu0 0.0
      %4222 = vmatprep.subr.mxu0 0.0
      %4223 = vmatpush2.msra.mxu0 0.0
      %4224 = vmatprep.mubr.f32.mxu0 0.0
      %4225 = vmatmul.mubr.f32.gmra.mxu0 %v4158
      %v4226 = vpop.f32.mrf.mxu0
      %v4227 = vadd.f32 0.0, %v4226
      %v4228 = vpop.f32.mrf.mxu0
      %4229 = vdwg.mxu0
      %s4230 = scalar_lea.vmem %s3, 48
      %v4231 = vld [vmem:[%s4230] sm:$0xff]
      %v4233 = vsel %vm975, %v4227, 0
      %4235 = vmatprep.subr.mxu0 0.0
      %4236 = vmatpush1.msra.mxu0 0.0
      %4237 = vmatprep.subr.mxu0 0.0
      %4238 = vmatpush1.msra.mxu0 0.0
      %4239 = vmatprep.subr.mxu0 0.0
      %4240 = vmatpush1.msra.mxu0 0.0
      %4241 = vmatprep.subr.mxu0 0.0
      %4242 = vmatpush1.msra.mxu0 0.0
      %4243 = vmatprep.subr.mxu0 0.0
      %4244 = vmatpush1.msra.mxu0 0.0
      %4245 = vmatprep.subr.mxu0 0.0
      %4246 = vmatpush1.msra.mxu0 0.0
      %4247 = vmatprep.subr.mxu0 0.0
      %4248 = vmatpush1.msra.mxu0 0.0
      %4249 = vmatprep.subr.mxu0 0.0
      %4250 = vmatpush1.msra.mxu0 0.0
      %4251 = vmatprep.subr.mxu0 0.0
      %4252 = vmatpush1.msra.mxu0 0.0
      %4253 = vmatprep.subr.mxu0 0.0
      %4254 = vmatpush1.msra.mxu0 0.0
      %4255 = vmatprep.subr.mxu0 0.0
      %4256 = vmatpush1.msra.mxu0 0.0
      %4257 = vmatprep.subr.mxu0 0.0
      %4258 = vmatpush1.msra.mxu0 0.0
      %4259 = vmatprep.subr.mxu0 0.0
      %4260 = vmatpush1.msra.mxu0 0.0
      %4261 = vmatprep.subr.mxu0 0.0
      %4262 = vmatpush1.msra.mxu0 0.0
      %4263 = vmatprep.subr.mxu0 0.0
      %4264 = vmatpush1.msra.mxu0 0.0
      %4265 = vmatprep.subr.mxu0 0.0
      %4266 = vmatpush1.msra.mxu0 %v4231
      %4267 = vmatprep.subr.mxu0 0.0
      %4268 = vmatpush2.msra.mxu0 0.0
      %4269 = vmatprep.subr.mxu0 0.0
      %4270 = vmatpush2.msra.mxu0 0.0
      %4271 = vmatprep.subr.mxu0 0.0
      %4272 = vmatpush2.msra.mxu0 0.0
      %4273 = vmatprep.subr.mxu0 0.0
      %4274 = vmatpush2.msra.mxu0 0.0
      %4275 = vmatprep.subr.mxu0 0.0
      %4276 = vmatpush2.msra.mxu0 0.0
      %4277 = vmatprep.subr.mxu0 0.0
      %4278 = vmatpush2.msra.mxu0 0.0
      %4279 = vmatprep.subr.mxu0 0.0
      %4280 = vmatpush2.msra.mxu0 0.0
      %4281 = vmatprep.subr.mxu0 0.0
      %4282 = vmatpush2.msra.mxu0 0.0
      %4283 = vmatprep.subr.mxu0 0.0
      %4284 = vmatpush2.msra.mxu0 0.0
      %4285 = vmatprep.subr.mxu0 0.0
      %4286 = vmatpush2.msra.mxu0 0.0
      %4287 = vmatprep.subr.mxu0 0.0
      %4288 = vmatpush2.msra.mxu0 0.0
      %4289 = vmatprep.subr.mxu0 0.0
      %4290 = vmatpush2.msra.mxu0 0.0
      %4291 = vmatprep.subr.mxu0 0.0
      %4292 = vmatpush2.msra.mxu0 0.0
      %4293 = vmatprep.subr.mxu0 0.0
      %4294 = vmatpush2.msra.mxu0 0.0
      %4295 = vmatprep.subr.mxu0 0.0
      %4296 = vmatpush2.msra.mxu0 0.0
      %4297 = vmatprep.subr.mxu0 0.0
      %4298 = vmatpush2.msra.mxu0 0.0
      %4299 = vmatprep.mubr.f32.mxu0 0.0
      %4300 = vmatmul.mubr.f32.gmra.mxu0 %v4233
      %v4301 = vpop.f32.mrf.mxu0
      %v4302 = vadd.f32 0.0, %v4301
      %v4303 = vpop.f32.mrf.mxu0
      %4304 = vdwg.mxu0
      %v4305 = vadd.f32 %v3827, %v4302
      %s4306 = scalar_lea.vmem %s2, 28
      %v4307 = vld [vmem:[%s4306] sm:$0x7]
      %s4308 = scalar_lea.vmem %s1, 672
      %v4309 = vld [vmem:[%s4308] sm:$0xff]
      %v4310 = vld [vmem:[%s4308 + $0x8] sm:$0xff]
      %v4311 = vld [vmem:[%s4308 + $0x10] sm:$0xff]
      %v4312 = vld [vmem:[%s4308 + $0x18] sm:$0xff]
      %v4313 = vlaneseq
      %v4314 = vshrl.u32 %v4313, 7
      %v4315 = vsub.s32 0, %v4314
      %v4316 = vrot.slane %v4307, %v4315
      %4317 = vmatprep.subr.mxu0 0.0
      %4318 = vmatpush1.msra.mxu0 0.0
      %4319 = vmatprep.subr.mxu0 0.0
      %4320 = vmatpush1.msra.mxu0 0.0
      %4321 = vmatprep.subr.mxu0 0.0
      %4322 = vmatpush1.msra.mxu0 0.0
      %4323 = vmatprep.subr.mxu0 0.0
      %4324 = vmatpush1.msra.mxu0 0.0
      %4325 = vmatprep.subr.mxu0 0.0
      %4326 = vmatpush1.msra.mxu0 0.0
      %4327 = vmatprep.subr.mxu0 0.0
      %4328 = vmatpush1.msra.mxu0 0.0
      %4329 = vmatprep.subr.mxu0 0.0
      %4330 = vmatpush1.msra.mxu0 0.0
      %4331 = vmatprep.subr.mxu0 0.0
      %4332 = vmatpush1.msra.mxu0 0.0
      %4333 = vmatprep.subr.mxu0 0.0
      %4334 = vmatpush1.msra.mxu0 0.0
      %4335 = vmatprep.subr.mxu0 0.0
      %4336 = vmatpush1.msra.mxu0 0.0
      %4337 = vmatprep.subr.mxu0 0.0
      %4338 = vmatpush1.msra.mxu0 0.0
      %4339 = vmatprep.subr.mxu0 0.0
      %4340 = vmatpush1.msra.mxu0 0.0
      %4341 = vmatprep.subr.mxu0 0.0
      %4342 = vmatpush1.msra.mxu0 %v4312
      %4343 = vmatprep.subr.mxu0 0.0
      %4344 = vmatpush1.msra.mxu0 %v4311
      %4345 = vmatprep.subr.mxu0 0.0
      %4346 = vmatpush1.msra.mxu0 %v4310
      %4347 = vmatprep.subr.mxu0 0.0
      %4348 = vmatpush1.msra.mxu0 %v4309
      %4349 = vmatprep.subr.mxu0 0.0
      %4350 = vmatpush2.msra.mxu0 0.0
      %4351 = vmatprep.subr.mxu0 0.0
      %4352 = vmatpush2.msra.mxu0 0.0
      %4353 = vmatprep.subr.mxu0 0.0
      %4354 = vmatpush2.msra.mxu0 0.0
      %4355 = vmatprep.subr.mxu0 0.0
      %4356 = vmatpush2.msra.mxu0 0.0
      %4357 = vmatprep.subr.mxu0 0.0
      %4358 = vmatpush2.msra.mxu0 0.0
      %4359 = vmatprep.subr.mxu0 0.0
      %4360 = vmatpush2.msra.mxu0 0.0
      %4361 = vmatprep.subr.mxu0 0.0
      %4362 = vmatpush2.msra.mxu0 0.0
      %4363 = vmatprep.subr.mxu0 0.0
      %4364 = vmatpush2.msra.mxu0 0.0
      %4365 = vmatprep.subr.mxu0 0.0
      %4366 = vmatpush2.msra.mxu0 0.0
      %4367 = vmatprep.subr.mxu0 0.0
      %4368 = vmatpush2.msra.mxu0 0.0
      %4369 = vmatprep.subr.mxu0 0.0
      %4370 = vmatpush2.msra.mxu0 0.0
      %4371 = vmatprep.subr.mxu0 0.0
      %4372 = vmatpush2.msra.mxu0 0.0
      %4373 = vmatprep.subr.mxu0 0.0
      %4374 = vmatpush2.msra.mxu0 0.0
      %4375 = vmatprep.subr.mxu0 0.0
      %4376 = vmatpush2.msra.mxu0 0.0
      %4377 = vmatprep.subr.mxu0 0.0
      %4378 = vmatpush2.msra.mxu0 0.0
      %4379 = vmatprep.subr.mxu0 0.0
      %4380 = vmatpush2.msra.mxu0 0.0
      %4381 = vmatprep.mubr.f32.mxu0 0.0
      %4382 = vmatmul.mubr.f32.gmra.mxu0 %v2889
      %v4383 = vpop.f32.mrf.mxu0
      %v4384 = vadd.f32 %v4316, %v4383
      %v4385 = vpop.f32.mrf.mxu0
      %4386 = vdwg.mxu0
      %s4387 = scalar_lea.vmem %s1, 704
      %v4388 = vld [vmem:[%s4387] sm:$0xff]
      %v4389 = vld [vmem:[%s4387 + $0x8] sm:$0xff]
      %v4390 = vld [vmem:[%s4387 + $0x10] sm:$0xff]
      %v4391 = vld [vmem:[%s4387 + $0x18] sm:$0xff]
      %v4392 = vlaneseq
      %v4393 = vshrl.u32 %v4392, 7
      %v4394 = vsub.s32 1, %v4393
      %v4395 = vrot.slane %v4307, %v4394
      %4396 = vmatprep.subr.mxu0 0.0
      %4397 = vmatpush1.msra.mxu0 0.0
      %4398 = vmatprep.subr.mxu0 0.0
      %4399 = vmatpush1.msra.mxu0 0.0
      %4400 = vmatprep.subr.mxu0 0.0
      %4401 = vmatpush1.msra.mxu0 0.0
      %4402 = vmatprep.subr.mxu0 0.0
      %4403 = vmatpush1.msra.mxu0 0.0
      %4404 = vmatprep.subr.mxu0 0.0
      %4405 = vmatpush1.msra.mxu0 0.0
      %4406 = vmatprep.subr.mxu0 0.0
      %4407 = vmatpush1.msra.mxu0 0.0
      %4408 = vmatprep.subr.mxu0 0.0
      %4409 = vmatpush1.msra.mxu0 0.0
      %4410 = vmatprep.subr.mxu0 0.0
      %4411 = vmatpush1.msra.mxu0 0.0
      %4412 = vmatprep.subr.mxu0 0.0
      %4413 = vmatpush1.msra.mxu0 0.0
      %4414 = vmatprep.subr.mxu0 0.0
      %4415 = vmatpush1.msra.mxu0 0.0
      %4416 = vmatprep.subr.mxu0 0.0
      %4417 = vmatpush1.msra.mxu0 0.0
      %4418 = vmatprep.subr.mxu0 0.0
      %4419 = vmatpush1.msra.mxu0 0.0
      %4420 = vmatprep.subr.mxu0 0.0
      %4421 = vmatpush1.msra.mxu0 %v4391
      %4422 = vmatprep.subr.mxu0 0.0
      %4423 = vmatpush1.msra.mxu0 %v4390
      %4424 = vmatprep.subr.mxu0 0.0
      %4425 = vmatpush1.msra.mxu0 %v4389
      %4426 = vmatprep.subr.mxu0 0.0
      %4427 = vmatpush1.msra.mxu0 %v4388
      %4428 = vmatprep.subr.mxu0 0.0
      %4429 = vmatpush2.msra.mxu0 0.0
      %4430 = vmatprep.subr.mxu0 0.0
      %4431 = vmatpush2.msra.mxu0 0.0
      %4432 = vmatprep.subr.mxu0 0.0
      %4433 = vmatpush2.msra.mxu0 0.0
      %4434 = vmatprep.subr.mxu0 0.0
      %4435 = vmatpush2.msra.mxu0 0.0
      %4436 = vmatprep.subr.mxu0 0.0
      %4437 = vmatpush2.msra.mxu0 0.0
      %4438 = vmatprep.subr.mxu0 0.0
      %4439 = vmatpush2.msra.mxu0 0.0
      %4440 = vmatprep.subr.mxu0 0.0
      %4441 = vmatpush2.msra.mxu0 0.0
      %4442 = vmatprep.subr.mxu0 0.0
      %4443 = vmatpush2.msra.mxu0 0.0
      %4444 = vmatprep.subr.mxu0 0.0
      %4445 = vmatpush2.msra.mxu0 0.0
      %4446 = vmatprep.subr.mxu0 0.0
      %4447 = vmatpush2.msra.mxu0 0.0
      %4448 = vmatprep.subr.mxu0 0.0
      %4449 = vmatpush2.msra.mxu0 0.0
      %4450 = vmatprep.subr.mxu0 0.0
      %4451 = vmatpush2.msra.mxu0 0.0
      %4452 = vmatprep.subr.mxu0 0.0
      %4453 = vmatpush2.msra.mxu0 0.0
      %4454 = vmatprep.subr.mxu0 0.0
      %4455 = vmatpush2.msra.mxu0 0.0
      %4456 = vmatprep.subr.mxu0 0.0
      %4457 = vmatpush2.msra.mxu0 0.0
      %4458 = vmatprep.subr.mxu0 0.0
      %4459 = vmatpush2.msra.mxu0 0.0
      %4460 = vmatprep.mubr.f32.mxu0 0.0
      %4461 = vmatmul.mubr.f32.gmra.mxu0 %v2889
      %v4462 = vpop.f32.mrf.mxu0
      %v4463 = vadd.f32 %v4395, %v4462
      %v4464 = vpop.f32.mrf.mxu0
      %4465 = vdwg.mxu0
      %s4466 = scalar_lea.vmem %s1, 736
      %v4467 = vld [vmem:[%s4466] sm:$0xff]
      %v4468 = vld [vmem:[%s4466 + $0x8] sm:$0xff]
      %v4469 = vld [vmem:[%s4466 + $0x10] sm:$0xff]
      %v4470 = vld [vmem:[%s4466 + $0x18] sm:$0xff]
      %v4471 = vlaneseq
      %v4472 = vshrl.u32 %v4471, 7
      %v4473 = vsub.s32 2, %v4472
      %v4474 = vrot.slane %v4307, %v4473
      %4475 = vmatprep.subr.mxu0 0.0
      %4476 = vmatpush1.msra.mxu0 0.0
      %4477 = vmatprep.subr.mxu0 0.0
      %4478 = vmatpush1.msra.mxu0 0.0
      %4479 = vmatprep.subr.mxu0 0.0
      %4480 = vmatpush1.msra.mxu0 0.0
      %4481 = vmatprep.subr.mxu0 0.0
      %4482 = vmatpush1.msra.mxu0 0.0
      %4483 = vmatprep.subr.mxu0 0.0
      %4484 = vmatpush1.msra.mxu0 0.0
      %4485 = vmatprep.subr.mxu0 0.0
      %4486 = vmatpush1.msra.mxu0 0.0
      %4487 = vmatprep.subr.mxu0 0.0
      %4488 = vmatpush1.msra.mxu0 0.0
      %4489 = vmatprep.subr.mxu0 0.0
      %4490 = vmatpush1.msra.mxu0 0.0
      %4491 = vmatprep.subr.mxu0 0.0
      %4492 = vmatpush1.msra.mxu0 0.0
      %4493 = vmatprep.subr.mxu0 0.0
      %4494 = vmatpush1.msra.mxu0 0.0
      %4495 = vmatprep.subr.mxu0 0.0
      %4496 = vmatpush1.msra.mxu0 0.0
      %4497 = vmatprep.subr.mxu0 0.0
      %4498 = vmatpush1.msra.mxu0 0.0
      %4499 = vmatprep.subr.mxu0 0.0
      %4500 = vmatpush1.msra.mxu0 %v4470
      %4501 = vmatprep.subr.mxu0 0.0
      %4502 = vmatpush1.msra.mxu0 %v4469
      %4503 = vmatprep.subr.mxu0 0.0
      %4504 = vmatpush1.msra.mxu0 %v4468
      %4505 = vmatprep.subr.mxu0 0.0
      %4506 = vmatpush1.msra.mxu0 %v4467
      %4507 = vmatprep.subr.mxu0 0.0
      %4508 = vmatpush2.msra.mxu0 0.0
      %4509 = vmatprep.subr.mxu0 0.0
      %4510 = vmatpush2.msra.mxu0 0.0
      %4511 = vmatprep.subr.mxu0 0.0
      %4512 = vmatpush2.msra.mxu0 0.0
      %4513 = vmatprep.subr.mxu0 0.0
      %4514 = vmatpush2.msra.mxu0 0.0
      %4515 = vmatprep.subr.mxu0 0.0
      %4516 = vmatpush2.msra.mxu0 0.0
      %4517 = vmatprep.subr.mxu0 0.0
      %4518 = vmatpush2.msra.mxu0 0.0
      %4519 = vmatprep.subr.mxu0 0.0
      %4520 = vmatpush2.msra.mxu0 0.0
      %4521 = vmatprep.subr.mxu0 0.0
      %4522 = vmatpush2.msra.mxu0 0.0
      %4523 = vmatprep.subr.mxu0 0.0
      %4524 = vmatpush2.msra.mxu0 0.0
      %4525 = vmatprep.subr.mxu0 0.0
      %4526 = vmatpush2.msra.mxu0 0.0
      %4527 = vmatprep.subr.mxu0 0.0
      %4528 = vmatpush2.msra.mxu0 0.0
      %4529 = vmatprep.subr.mxu0 0.0
      %4530 = vmatpush2.msra.mxu0 0.0
      %4531 = vmatprep.subr.mxu0 0.0
      %4532 = vmatpush2.msra.mxu0 0.0
      %4533 = vmatprep.subr.mxu0 0.0
      %4534 = vmatpush2.msra.mxu0 0.0
      %4535 = vmatprep.subr.mxu0 0.0
      %4536 = vmatpush2.msra.mxu0 0.0
      %4537 = vmatprep.subr.mxu0 0.0
      %4538 = vmatpush2.msra.mxu0 0.0
      %4539 = vmatprep.mubr.f32.mxu0 0.0
      %4540 = vmatmul.mubr.f32.gmra.mxu0 %v2889
      %v4541 = vpop.f32.mrf.mxu0
      %v4542 = vadd.f32 %v4474, %v4541
      %v4543 = vpop.f32.mrf.mxu0
      %4544 = vdwg.mxu0
      %v4546 = vsel %vm975, %v4384, 0
      %v4549 = vsel %vm975, %v4463, 0
      %4551 = vmatprep.subr.mxu0 0.0
      %4552 = vmatpush1.xpose.msra.mxu0 0.0
      %4553 = vmatprep.subr.mxu0 0.0
      %4554 = vmatpush1.xpose.msra.mxu0 0.0
      %4555 = vmatprep.subr.mxu0 0.0
      %4556 = vmatpush1.xpose.msra.mxu0 0.0
      %4557 = vmatprep.subr.mxu0 0.0
      %4558 = vmatpush1.xpose.msra.mxu0 0.0
      %4559 = vmatprep.subr.mxu0 0.0
      %4560 = vmatpush1.xpose.msra.mxu0 0.0
      %4561 = vmatprep.subr.mxu0 0.0
      %4562 = vmatpush1.xpose.msra.mxu0 0.0
      %4563 = vmatprep.subr.mxu0 0.0
      %4564 = vmatpush1.xpose.msra.mxu0 0.0
      %4565 = vmatprep.subr.mxu0 0.0
      %4566 = vmatpush1.xpose.msra.mxu0 0.0
      %4567 = vmatprep.subr.mxu0 0.0
      %4568 = vmatpush1.xpose.msra.mxu0 0.0
      %4569 = vmatprep.subr.mxu0 0.0
      %4570 = vmatpush1.xpose.msra.mxu0 0.0
      %4571 = vmatprep.subr.mxu0 0.0
      %4572 = vmatpush1.xpose.msra.mxu0 0.0
      %4573 = vmatprep.subr.mxu0 0.0
      %4574 = vmatpush1.xpose.msra.mxu0 0.0
      %4575 = vmatprep.subr.mxu0 0.0
      %4576 = vmatpush1.xpose.msra.mxu0 0.0
      %4577 = vmatprep.subr.mxu0 0.0
      %4578 = vmatpush1.xpose.msra.mxu0 0.0
      %4579 = vmatprep.subr.mxu0 0.0
      %4580 = vmatpush1.xpose.msra.mxu0 0.0
      %4581 = vmatprep.subr.mxu0 0.0
      %4582 = vmatpush1.xpose.msra.mxu0 %v4549
      %4583 = vmatprep.subr.mxu0 0.0
      %4584 = vmatpush2.xpose.msra.mxu0 0.0
      %4585 = vmatprep.subr.mxu0 0.0
      %4586 = vmatpush2.xpose.msra.mxu0 0.0
      %4587 = vmatprep.subr.mxu0 0.0
      %4588 = vmatpush2.xpose.msra.mxu0 0.0
      %4589 = vmatprep.subr.mxu0 0.0
      %4590 = vmatpush2.xpose.msra.mxu0 0.0
      %4591 = vmatprep.subr.mxu0 0.0
      %4592 = vmatpush2.xpose.msra.mxu0 0.0
      %4593 = vmatprep.subr.mxu0 0.0
      %4594 = vmatpush2.xpose.msra.mxu0 0.0
      %4595 = vmatprep.subr.mxu0 0.0
      %4596 = vmatpush2.xpose.msra.mxu0 0.0
      %4597 = vmatprep.subr.mxu0 0.0
      %4598 = vmatpush2.xpose.msra.mxu0 0.0
      %4599 = vmatprep.subr.mxu0 0.0
      %4600 = vmatpush2.xpose.msra.mxu0 0.0
      %4601 = vmatprep.subr.mxu0 0.0
      %4602 = vmatpush2.xpose.msra.mxu0 0.0
      %4603 = vmatprep.subr.mxu0 0.0
      %4604 = vmatpush2.xpose.msra.mxu0 0.0
      %4605 = vmatprep.subr.mxu0 0.0
      %4606 = vmatpush2.xpose.msra.mxu0 0.0
      %4607 = vmatprep.subr.mxu0 0.0
      %4608 = vmatpush2.xpose.msra.mxu0 0.0
      %4609 = vmatprep.subr.mxu0 0.0
      %4610 = vmatpush2.xpose.msra.mxu0 0.0
      %4611 = vmatprep.subr.mxu0 0.0
      %4612 = vmatpush2.xpose.msra.mxu0 0.0
      %4613 = vmatprep.subr.mxu0 0.0
      %4614 = vmatpush2.xpose.msra.mxu0 0.0
      %4615 = vmatprep.mubr.f32.mxu0 0.0
      %4616 = vmatmul.mubr.f32.gmra.mxu0 %v4546
      %v4617 = vpop.f32.mrf.mxu0
      %v4618 = vadd.f32 0.0, %v4617
      %v4619 = vpop.f32.mrf.mxu0
      %4620 = vdwg.mxu0
      %v4621 = vmul.f32 %v4618, 0.35355338
      %v4622 = vsel %vm975, %v4621, -inf
      %4623 = vmax.xlane.f32.xlu0 %v4622
      %v4624 = vpop.xlane.xlu0 %4623
      %v4625 = vsub.f32 %v4621, %v4624
      %v4626 = vmul.f32 %v4625, 1.442695
      %v4627 = vpow.pop %v4626
      %v4628 = vsel %vm975, %v4627, 0.0
      %4629 = vadd.xlane.f32.xlu0 %v4628
      %v4630 = vpop.xlane.xlu0 %4629
      %v4631 = vrcp.pop %v4630
      %v4632 = vmul.f32 %v4627, %v4631
      %v4634 = vsel %vm975, %v4632, 0
      %4636 = vmatprep.subr.mxu0 0.0
      %4637 = vmatpush1.msra.mxu0 0.0
      %4638 = vmatprep.subr.mxu0 0.0
      %4639 = vmatpush1.msra.mxu0 0.0
      %4640 = vmatprep.subr.mxu0 0.0
      %4641 = vmatpush1.msra.mxu0 0.0
      %4642 = vmatprep.subr.mxu0 0.0
      %4643 = vmatpush1.msra.mxu0 0.0
      %4644 = vmatprep.subr.mxu0 0.0
      %4645 = vmatpush1.msra.mxu0 0.0
      %4646 = vmatprep.subr.mxu0 0.0
      %4647 = vmatpush1.msra.mxu0 0.0
      %4648 = vmatprep.subr.mxu0 0.0
      %4649 = vmatpush1.msra.mxu0 0.0
      %4650 = vmatprep.subr.mxu0 0.0
      %4651 = vmatpush1.msra.mxu0 0.0
      %4652 = vmatprep.subr.mxu0 0.0
      %4653 = vmatpush1.msra.mxu0 0.0
      %4654 = vmatprep.subr.mxu0 0.0
      %4655 = vmatpush1.msra.mxu0 0.0
      %4656 = vmatprep.subr.mxu0 0.0
      %4657 = vmatpush1.msra.mxu0 0.0
      %4658 = vmatprep.subr.mxu0 0.0
      %4659 = vmatpush1.msra.mxu0 0.0
      %4660 = vmatprep.subr.mxu0 0.0
      %4661 = vmatpush1.msra.mxu0 0.0
      %4662 = vmatprep.subr.mxu0 0.0
      %4663 = vmatpush1.msra.mxu0 0.0
      %4664 = vmatprep.subr.mxu0 0.0
      %4665 = vmatpush1.msra.mxu0 0.0
      %4666 = vmatprep.subr.mxu0 0.0
      %4667 = vmatpush1.msra.mxu0 %v4542
      %4668 = vmatprep.subr.mxu0 0.0
      %4669 = vmatpush2.msra.mxu0 0.0
      %4670 = vmatprep.subr.mxu0 0.0
      %4671 = vmatpush2.msra.mxu0 0.0
      %4672 = vmatprep.subr.mxu0 0.0
      %4673 = vmatpush2.msra.mxu0 0.0
      %4674 = vmatprep.subr.mxu0 0.0
      %4675 = vmatpush2.msra.mxu0 0.0
      %4676 = vmatprep.subr.mxu0 0.0
      %4677 = vmatpush2.msra.mxu0 0.0
      %4678 = vmatprep.subr.mxu0 0.0
      %4679 = vmatpush2.msra.mxu0 0.0
      %4680 = vmatprep.subr.mxu0 0.0
      %4681 = vmatpush2.msra.mxu0 0.0
      %4682 = vmatprep.subr.mxu0 0.0
      %4683 = vmatpush2.msra.mxu0 0.0
      %4684 = vmatprep.subr.mxu0 0.0
      %4685 = vmatpush2.msra.mxu0 0.0
      %4686 = vmatprep.subr.mxu0 0.0
      %4687 = vmatpush2.msra.mxu0 0.0
      %4688 = vmatprep.subr.mxu0 0.0
      %4689 = vmatpush2.msra.mxu0 0.0
      %4690 = vmatprep.subr.mxu0 0.0
      %4691 = vmatpush2.msra.mxu0 0.0
      %4692 = vmatprep.subr.mxu0 0.0
      %4693 = vmatpush2.msra.mxu0 0.0
      %4694 = vmatprep.subr.mxu0 0.0
      %4695 = vmatpush2.msra.mxu0 0.0
      %4696 = vmatprep.subr.mxu0 0.0
      %4697 = vmatpush2.msra.mxu0 0.0
      %4698 = vmatprep.subr.mxu0 0.0
      %4699 = vmatpush2.msra.mxu0 0.0
      %4700 = vmatprep.mubr.f32.mxu0 0.0
      %4701 = vmatmul.mubr.f32.gmra.mxu0 %v4634
      %v4702 = vpop.f32.mrf.mxu0
      %v4703 = vadd.f32 0.0, %v4702
      %v4704 = vpop.f32.mrf.mxu0
      %4705 = vdwg.mxu0
      %s4706 = scalar_lea.vmem %s3, 56
      %v4707 = vld [vmem:[%s4706] sm:$0xff]
      %v4709 = vsel %vm975, %v4703, 0
      %4711 = vmatprep.subr.mxu0 0.0
      %4712 = vmatpush1.msra.mxu0 0.0
      %4713 = vmatprep.subr.mxu0 0.0
      %4714 = vmatpush1.msra.mxu0 0.0
      %4715 = vmatprep.subr.mxu0 0.0
      %4716 = vmatpush1.msra.mxu0 0.0
      %4717 = vmatprep.subr.mxu0 0.0
      %4718 = vmatpush1.msra.mxu0 0.0
      %4719 = vmatprep.subr.mxu0 0.0
      %4720 = vmatpush1.msra.mxu0 0.0
      %4721 = vmatprep.subr.mxu0 0.0
      %4722 = vmatpush1.msra.mxu0 0.0
      %4723 = vmatprep.subr.mxu0 0.0
      %4724 = vmatpush1.msra.mxu0 0.0
      %4725 = vmatprep.subr.mxu0 0.0
      %4726 = vmatpush1.msra.mxu0 0.0
      %4727 = vmatprep.subr.mxu0 0.0
      %4728 = vmatpush1.msra.mxu0 0.0
      %4729 = vmatprep.subr.mxu0 0.0
      %4730 = vmatpush1.msra.mxu0 0.0
      %4731 = vmatprep.subr.mxu0 0.0
      %4732 = vmatpush1.msra.mxu0 0.0
      %4733 = vmatprep.subr.mxu0 0.0
      %4734 = vmatpush1.msra.mxu0 0.0
      %4735 = vmatprep.subr.mxu0 0.0
      %4736 = vmatpush1.msra.mxu0 0.0
      %4737 = vmatprep.subr.mxu0 0.0
      %4738 = vmatpush1.msra.mxu0 0.0
      %4739 = vmatprep.subr.mxu0 0.0
      %4740 = vmatpush1.msra.mxu0 0.0
      %4741 = vmatprep.subr.mxu0 0.0
      %4742 = vmatpush1.msra.mxu0 %v4707
      %4743 = vmatprep.subr.mxu0 0.0
      %4744 = vmatpush2.msra.mxu0 0.0
      %4745 = vmatprep.subr.mxu0 0.0
      %4746 = vmatpush2.msra.mxu0 0.0
      %4747 = vmatprep.subr.mxu0 0.0
      %4748 = vmatpush2.msra.mxu0 0.0
      %4749 = vmatprep.subr.mxu0 0.0
      %4750 = vmatpush2.msra.mxu0 0.0
      %4751 = vmatprep.subr.mxu0 0.0
      %4752 = vmatpush2.msra.mxu0 0.0
      %4753 = vmatprep.subr.mxu0 0.0
      %4754 = vmatpush2.msra.mxu0 0.0
      %4755 = vmatprep.subr.mxu0 0.0
      %4756 = vmatpush2.msra.mxu0 0.0
      %4757 = vmatprep.subr.mxu0 0.0
      %4758 = vmatpush2.msra.mxu0 0.0
      %4759 = vmatprep.subr.mxu0 0.0
      %4760 = vmatpush2.msra.mxu0 0.0
      %4761 = vmatprep.subr.mxu0 0.0
      %4762 = vmatpush2.msra.mxu0 0.0
      %4763 = vmatprep.subr.mxu0 0.0
      %4764 = vmatpush2.msra.mxu0 0.0
      %4765 = vmatprep.subr.mxu0 0.0
      %4766 = vmatpush2.msra.mxu0 0.0
      %4767 = vmatprep.subr.mxu0 0.0
      %4768 = vmatpush2.msra.mxu0 0.0
      %4769 = vmatprep.subr.mxu0 0.0
      %4770 = vmatpush2.msra.mxu0 0.0
      %4771 = vmatprep.subr.mxu0 0.0
      %4772 = vmatpush2.msra.mxu0 0.0
      %4773 = vmatprep.subr.mxu0 0.0
      %4774 = vmatpush2.msra.mxu0 0.0
      %4775 = vmatprep.mubr.f32.mxu0 0.0
      %4776 = vmatmul.mubr.f32.gmra.mxu0 %v4709
      %v4777 = vpop.f32.mrf.mxu0
      %v4778 = vadd.f32 0.0, %v4777
      %v4779 = vpop.f32.mrf.mxu0
      %4780 = vdwg.mxu0
      %v4781 = vadd.f32 %v4305, %v4778
      %v4782 = vadd.f32 %v2851, %v4781
      %v4783 = vlaneseq
      %v4784 = vshrl.u32 %v4783, 7
      %v4785 = vsub.s32 2, %v4784
      %v4786 = vrot.slane %v2853, %v4785
      %v4787 = vadd.f32 %v4782, %v4786
      %v4788 = vsel %vm710, %v4787, 0.0
      %4789 = vadd.xlane.f32.xlu0 %v4788
      %v4790 = vpop.xlane.xlu0 %4789
      %v4791 = vmul.f32 %v4790, %v714
      %v4792 = vsub.f32 %v4787, %v4791
      %v4793 = vmul.f32 %v4792, %v4792
      %v4794 = vsel %vm710, %v4793, 0.0
      %4795 = vadd.xlane.f32.xlu0 %v4794
      %v4796 = vpop.xlane.xlu0 %4795
      %v4797 = vmul.f32 %v4796, %v714
      %v4798 = vadd.f32 %v4797, 1e-05
      %v4799 = vrsqrt.pop %v4798
      %v4800 = vmul.f32 %v4792, %v4799
      %v4801 = vlaneseq
      %v4802 = vshrl.u32 %v4801, 7
      %v4803 = vsub.s32 3, %v4802
      %v4804 = vrot.slane %v2853, %v4803
      %v4805 = vmul.f32 %v4800, %v4804
      %v4806 = vlaneseq
      %v4807 = vshrl.u32 %v4806, 7
      %v4808 = vsub.s32 4, %v4807
      %v4809 = vrot.slane %v2853, %v4808
      %v4810 = vadd.f32 %v4805, %v4809
      %s4811 = scalar_lea.vmem %s4, 32
      %v4812 = vld [vmem:[%s4811] sm:$0xff]
      %v4813 = vld [vmem:[%s4811 + $0x8] sm:$0xff]
      %v4814 = vld [vmem:[%s4811 + $0x10] sm:$0xff]
      %v4815 = vld [vmem:[%s4811 + $0x18] sm:$0xff]
      %s4816 = scalar_lea.vmem %s5, 1
      %v4817 = vld [vmem:[%s4816] sm:$0x1]
      %v4819 = vlaneseq
      %v4820 = vshrl.u32 %v4819, 7
      %v4821 = vsub.s32 0, %v4820
      %v4822 = vrot.slane %v4817, %v4821
      %v4825 = vsel %vm710, %v4810, 0
      %4827 = vmatprep.subr.mxu0 0.0
      %4828 = vmatpush1.msra.mxu0 0.0
      %4829 = vmatprep.subr.mxu0 0.0
      %4830 = vmatpush1.msra.mxu0 0.0
      %4831 = vmatprep.subr.mxu0 0.0
      %4832 = vmatpush1.msra.mxu0 0.0
      %4833 = vmatprep.subr.mxu0 0.0
      %4834 = vmatpush1.msra.mxu0 0.0
      %4835 = vmatprep.subr.mxu0 0.0
      %4836 = vmatpush1.msra.mxu0 0.0
      %4837 = vmatprep.subr.mxu0 0.0
      %4838 = vmatpush1.msra.mxu0 0.0
      %4839 = vmatprep.subr.mxu0 0.0
      %4840 = vmatpush1.msra.mxu0 0.0
      %4841 = vmatprep.subr.mxu0 0.0
      %4842 = vmatpush1.msra.mxu0 0.0
      %4843 = vmatprep.subr.mxu0 0.0
      %4844 = vmatpush1.msra.mxu0 0.0
      %4845 = vmatprep.subr.mxu0 0.0
      %4846 = vmatpush1.msra.mxu0 0.0
      %4847 = vmatprep.subr.mxu0 0.0
      %4848 = vmatpush1.msra.mxu0 0.0
      %4849 = vmatprep.subr.mxu0 0.0
      %4850 = vmatpush1.msra.mxu0 0.0
      %4851 = vmatprep.subr.mxu0 0.0
      %4852 = vmatpush1.msra.mxu0 %v4815
      %4853 = vmatprep.subr.mxu0 0.0
      %4854 = vmatpush1.msra.mxu0 %v4814
      %4855 = vmatprep.subr.mxu0 0.0
      %4856 = vmatpush1.msra.mxu0 %v4813
      %4857 = vmatprep.subr.mxu0 0.0
      %4858 = vmatpush1.msra.mxu0 %v4812
      %4859 = vmatprep.subr.mxu0 0.0
      %4860 = vmatpush2.msra.mxu0 0.0
      %4861 = vmatprep.subr.mxu0 0.0
      %4862 = vmatpush2.msra.mxu0 0.0
      %4863 = vmatprep.subr.mxu0 0.0
      %4864 = vmatpush2.msra.mxu0 0.0
      %4865 = vmatprep.subr.mxu0 0.0
      %4866 = vmatpush2.msra.mxu0 0.0
      %4867 = vmatprep.subr.mxu0 0.0
      %4868 = vmatpush2.msra.mxu0 0.0
      %4869 = vmatprep.subr.mxu0 0.0
      %4870 = vmatpush2.msra.mxu0 0.0
      %4871 = vmatprep.subr.mxu0 0.0
      %4872 = vmatpush2.msra.mxu0 0.0
      %4873 = vmatprep.subr.mxu0 0.0
      %4874 = vmatpush2.msra.mxu0 0.0
      %4875 = vmatprep.subr.mxu0 0.0
      %4876 = vmatpush2.msra.mxu0 0.0
      %4877 = vmatprep.subr.mxu0 0.0
      %4878 = vmatpush2.msra.mxu0 0.0
      %4879 = vmatprep.subr.mxu0 0.0
      %4880 = vmatpush2.msra.mxu0 0.0
      %4881 = vmatprep.subr.mxu0 0.0
      %4882 = vmatpush2.msra.mxu0 0.0
      %4883 = vmatprep.subr.mxu0 0.0
      %4884 = vmatpush2.msra.mxu0 0.0
      %4885 = vmatprep.subr.mxu0 0.0
      %4886 = vmatpush2.msra.mxu0 0.0
      %4887 = vmatprep.subr.mxu0 0.0
      %4888 = vmatpush2.msra.mxu0 0.0
      %4889 = vmatprep.subr.mxu0 0.0
      %4890 = vmatpush2.msra.mxu0 0.0
      %4891 = vmatprep.mubr.f32.mxu0 0.0
      %4892 = vmatmul.mubr.f32.gmra.mxu0 %v4825
      %v4893 = vpop.f32.mrf.mxu0
      %v4894 = vadd.f32 %v4822, %v4893
      %v4895 = vpop.f32.mrf.mxu0
      %4896 = vdwg.mxu0
      %v4897 = vmul.f32 %v4894, %v4894
      %v4898 = vmul.f32 %v4894, %v4897
      %v4899 = vmul.f32 %v4898, 0.044715
      %v4900 = vadd.f32 %v4894, %v4899
      %v4901 = vmul.f32 %v4900, 0.7978846
      %v4902 = vtanh.pop %v4901
      %v4903 = vadd.f32 %v4902, 1.0
      %v4904 = vmul.f32 %v4903, 0.5
      %v4905 = vmul.f32 %v4894, %v4904
      %s4906 = scalar_lea.vmem %s6, 128
      %v4907 = vld [vmem:[%s4906] sm:$0xff]
      %v4908 = vld [vmem:[%s4906 + $0x8] sm:$0xff]
      %v4909 = vld [vmem:[%s4906 + $0x10] sm:$0xff]
      %v4910 = vld [vmem:[%s4906 + $0x18] sm:$0xff]
      %v4911 = vld [vmem:[%s4906 + $0x20] sm:$0xff]
      %v4912 = vld [vmem:[%s4906 + $0x28] sm:$0xff]
      %v4913 = vld [vmem:[%s4906 + $0x30] sm:$0xff]
      %v4914 = vld [vmem:[%s4906 + $0x38] sm:$0xff]
      %v4915 = vld [vmem:[%s4906 + $0x40] sm:$0xff]
      %v4916 = vld [vmem:[%s4906 + $0x48] sm:$0xff]
      %v4917 = vld [vmem:[%s4906 + $0x50] sm:$0xff]
      %v4918 = vld [vmem:[%s4906 + $0x58] sm:$0xff]
      %v4919 = vld [vmem:[%s4906 + $0x60] sm:$0xff]
      %v4920 = vld [vmem:[%s4906 + $0x68] sm:$0xff]
      %v4921 = vld [vmem:[%s4906 + $0x70] sm:$0xff]
      %v4922 = vld [vmem:[%s4906 + $0x78] sm:$0xff]
      %4923 = vmatprep.subr.mxu0 0.0
      %4924 = vmatpush1.msra.mxu0 %v4922
      %4925 = vmatprep.subr.mxu0 0.0
      %4926 = vmatpush1.msra.mxu0 %v4921
      %4927 = vmatprep.subr.mxu0 0.0
      %4928 = vmatpush1.msra.mxu0 %v4920
      %4929 = vmatprep.subr.mxu0 0.0
      %4930 = vmatpush1.msra.mxu0 %v4919
      %4931 = vmatprep.subr.mxu0 0.0
      %4932 = vmatpush1.msra.mxu0 %v4918
      %4933 = vmatprep.subr.mxu0 0.0
      %4934 = vmatpush1.msra.mxu0 %v4917
      %4935 = vmatprep.subr.mxu0 0.0
      %4936 = vmatpush1.msra.mxu0 %v4916
      %4937 = vmatprep.subr.mxu0 0.0
      %4938 = vmatpush1.msra.mxu0 %v4915
      %4939 = vmatprep.subr.mxu0 0.0
      %4940 = vmatpush1.msra.mxu0 %v4914
      %4941 = vmatprep.subr.mxu0 0.0
      %4942 = vmatpush1.msra.mxu0 %v4913
      %4943 = vmatprep.subr.mxu0 0.0
      %4944 = vmatpush1.msra.mxu0 %v4912
      %4945 = vmatprep.subr.mxu0 0.0
      %4946 = vmatpush1.msra.mxu0 %v4911
      %4947 = vmatprep.subr.mxu0 0.0
      %4948 = vmatpush1.msra.mxu0 %v4910
      %4949 = vmatprep.subr.mxu0 0.0
      %4950 = vmatpush1.msra.mxu0 %v4909
      %4951 = vmatprep.subr.mxu0 0.0
      %4952 = vmatpush1.msra.mxu0 %v4908
      %4953 = vmatprep.subr.mxu0 0.0
      %4954 = vmatpush1.msra.mxu0 %v4907
      %4955 = vmatprep.subr.mxu0 0.0
      %4956 = vmatpush2.msra.mxu0 0.0
      %4957 = vmatprep.subr.mxu0 0.0
      %4958 = vmatpush2.msra.mxu0 0.0
      %4959 = vmatprep.subr.mxu0 0.0
      %4960 = vmatpush2.msra.mxu0 0.0
      %4961 = vmatprep.subr.mxu0 0.0
      %4962 = vmatpush2.msra.mxu0 0.0
      %4963 = vmatprep.subr.mxu0 0.0
      %4964 = vmatpush2.msra.mxu0 0.0
      %4965 = vmatprep.subr.mxu0 0.0
      %4966 = vmatpush2.msra.mxu0 0.0
      %4967 = vmatprep.subr.mxu0 0.0
      %4968 = vmatpush2.msra.mxu0 0.0
      %4969 = vmatprep.subr.mxu0 0.0
      %4970 = vmatpush2.msra.mxu0 0.0
      %4971 = vmatprep.subr.mxu0 0.0
      %4972 = vmatpush2.msra.mxu0 0.0
      %4973 = vmatprep.subr.mxu0 0.0
      %4974 = vmatpush2.msra.mxu0 0.0
      %4975 = vmatprep.subr.mxu0 0.0
      %4976 = vmatpush2.msra.mxu0 0.0
      %4977 = vmatprep.subr.mxu0 0.0
      %4978 = vmatpush2.msra.mxu0 0.0
      %4979 = vmatprep.subr.mxu0 0.0
      %4980 = vmatpush2.msra.mxu0 0.0
      %4981 = vmatprep.subr.mxu0 0.0
      %4982 = vmatpush2.msra.mxu0 0.0
      %4983 = vmatprep.subr.mxu0 0.0
      %4984 = vmatpush2.msra.mxu0 0.0
      %4985 = vmatprep.subr.mxu0 0.0
      %4986 = vmatpush2.msra.mxu0 0.0
      %4987 = vmatprep.mubr.f32.mxu0 0.0
      %4988 = vmatmul.mubr.f32.gmra.mxu0 %v4905
      %v4989 = vpop.f32.mrf.mxu0
      %v4990 = vadd.f32 0.0, %v4989
      %v4991 = vpop.f32.mrf.mxu0
      %4992 = vdwg.mxu0
      %v4993 = vadd.f32 %v4787, %v4990
      %v4994 = vlaneseq
      %v4995 = vshrl.u32 %v4994, 7
      %v4996 = vsub.s32 5, %v4995
      %v4997 = vrot.slane %v2853, %v4996
      %v4998 = vadd.f32 %v4993, %v4997
      %v4999 = vld [vmem:[%s10] sm:$0x3]
      %v5000 = vld [vmem:[%s9] sm:$0xff]
      %v5001 = vld [vmem:[%s9 + $0x8] sm:$0xff]
      %v5002 = vld [vmem:[%s9 + $0x10] sm:$0xff]
      %v5003 = vld [vmem:[%s9 + $0x18] sm:$0xff]
      %v5004 = vlaneseq
      %v5005 = vshrl.u32 %v5004, 7
      %v5006 = vsub.s32 0, %v5005
      %v5007 = vrot.slane %v4999, %v5006
      %v5009 = vsel %vm710, %v4998, 0
      %5011 = vmatprep.subr.mxu0 0.0
      %5012 = vmatpush1.msra.mxu0 0.0
      %5013 = vmatprep.subr.mxu0 0.0
      %5014 = vmatpush1.msra.mxu0 0.0
      %5015 = vmatprep.subr.mxu0 0.0
      %5016 = vmatpush1.msra.mxu0 0.0
      %5017 = vmatprep.subr.mxu0 0.0
      %5018 = vmatpush1.msra.mxu0 0.0
      %5019 = vmatprep.subr.mxu0 0.0
      %5020 = vmatpush1.msra.mxu0 0.0
      %5021 = vmatprep.subr.mxu0 0.0
      %5022 = vmatpush1.msra.mxu0 0.0
      %5023 = vmatprep.subr.mxu0 0.0
      %5024 = vmatpush1.msra.mxu0 0.0
      %5025 = vmatprep.subr.mxu0 0.0
      %5026 = vmatpush1.msra.mxu0 0.0
      %5027 = vmatprep.subr.mxu0 0.0
      %5028 = vmatpush1.msra.mxu0 0.0
      %5029 = vmatprep.subr.mxu0 0.0
      %5030 = vmatpush1.msra.mxu0 0.0
      %5031 = vmatprep.subr.mxu0 0.0
      %5032 = vmatpush1.msra.mxu0 0.0
      %5033 = vmatprep.subr.mxu0 0.0
      %5034 = vmatpush1.msra.mxu0 0.0
      %5035 = vmatprep.subr.mxu0 0.0
      %5036 = vmatpush1.msra.mxu0 %v5003
      %5037 = vmatprep.subr.mxu0 0.0
      %5038 = vmatpush1.msra.mxu0 %v5002
      %5039 = vmatprep.subr.mxu0 0.0
      %5040 = vmatpush1.msra.mxu0 %v5001
      %5041 = vmatprep.subr.mxu0 0.0
      %5042 = vmatpush1.msra.mxu0 %v5000
      %5043 = vmatprep.subr.mxu0 0.0
      %5044 = vmatpush2.msra.mxu0 0.0
      %5045 = vmatprep.subr.mxu0 0.0
      %5046 = vmatpush2.msra.mxu0 0.0
      %5047 = vmatprep.subr.mxu0 0.0
      %5048 = vmatpush2.msra.mxu0 0.0
      %5049 = vmatprep.subr.mxu0 0.0
      %5050 = vmatpush2.msra.mxu0 0.0
      %5051 = vmatprep.subr.mxu0 0.0
      %5052 = vmatpush2.msra.mxu0 0.0
      %5053 = vmatprep.subr.mxu0 0.0
      %5054 = vmatpush2.msra.mxu0 0.0
      %5055 = vmatprep.subr.mxu0 0.0
      %5056 = vmatpush2.msra.mxu0 0.0
      %5057 = vmatprep.subr.mxu0 0.0
      %5058 = vmatpush2.msra.mxu0 0.0
      %5059 = vmatprep.subr.mxu0 0.0
      %5060 = vmatpush2.msra.mxu0 0.0
      %5061 = vmatprep.subr.mxu0 0.0
      %5062 = vmatpush2.msra.mxu0 0.0
      %5063 = vmatprep.subr.mxu0 0.0
      %5064 = vmatpush2.msra.mxu0 0.0
      %5065 = vmatprep.subr.mxu0 0.0
      %5066 = vmatpush2.msra.mxu0 0.0
      %5067 = vmatprep.subr.mxu0 0.0
      %5068 = vmatpush2.msra.mxu0 0.0
      %5069 = vmatprep.subr.mxu0 0.0
      %5070 = vmatpush2.msra.mxu0 0.0
      %5071 = vmatprep.subr.mxu0 0.0
      %5072 = vmatpush2.msra.mxu0 0.0
      %5073 = vmatprep.subr.mxu0 0.0
      %5074 = vmatpush2.msra.mxu0 0.0
      %5075 = vmatprep.mubr.f32.mxu0 0.0
      %5076 = vmatmul.mubr.f32.gmra.mxu0 %v5009
      %v5077 = vpop.f32.mrf.mxu0
      %v5078 = vadd.f32 %v5007, %v5077
      %v5079 = vpop.f32.mrf.mxu0
      %5080 = vdwg.mxu0
      %s5081 = scalar_lea.vmem %s9, 32
      %v5082 = vld [vmem:[%s5081] sm:$0xff]
      %v5083 = vld [vmem:[%s5081 + $0x8] sm:$0xff]
      %v5084 = vld [vmem:[%s5081 + $0x10] sm:$0xff]
      %v5085 = vld [vmem:[%s5081 + $0x18] sm:$0xff]
      %v5086 = vlaneseq
      %v5087 = vshrl.u32 %v5086, 7
      %v5088 = vsub.s32 1, %v5087
      %v5089 = vrot.slane %v4999, %v5088
      %5090 = vmatprep.subr.mxu0 0.0
      %5091 = vmatpush1.msra.mxu0 0.0
      %5092 = vmatprep.subr.mxu0 0.0
      %5093 = vmatpush1.msra.mxu0 0.0
      %5094 = vmatprep.subr.mxu0 0.0
      %5095 = vmatpush1.msra.mxu0 0.0
      %5096 = vmatprep.subr.mxu0 0.0
      %5097 = vmatpush1.msra.mxu0 0.0
      %5098 = vmatprep.subr.mxu0 0.0
      %5099 = vmatpush1.msra.mxu0 0.0
      %5100 = vmatprep.subr.mxu0 0.0
      %5101 = vmatpush1.msra.mxu0 0.0
      %5102 = vmatprep.subr.mxu0 0.0
      %5103 = vmatpush1.msra.mxu0 0.0
      %5104 = vmatprep.subr.mxu0 0.0
      %5105 = vmatpush1.msra.mxu0 0.0
      %5106 = vmatprep.subr.mxu0 0.0
      %5107 = vmatpush1.msra.mxu0 0.0
      %5108 = vmatprep.subr.mxu0 0.0
      %5109 = vmatpush1.msra.mxu0 0.0
      %5110 = vmatprep.subr.mxu0 0.0
      %5111 = vmatpush1.msra.mxu0 0.0
      %5112 = vmatprep.subr.mxu0 0.0
      %5113 = vmatpush1.msra.mxu0 0.0
      %5114 = vmatprep.subr.mxu0 0.0
      %5115 = vmatpush1.msra.mxu0 %v5085
      %5116 = vmatprep.subr.mxu0 0.0
      %5117 = vmatpush1.msra.mxu0 %v5084
      %5118 = vmatprep.subr.mxu0 0.0
      %5119 = vmatpush1.msra.mxu0 %v5083
      %5120 = vmatprep.subr.mxu0 0.0
      %5121 = vmatpush1.msra.mxu0 %v5082
      %5122 = vmatprep.subr.mxu0 0.0
      %5123 = vmatpush2.msra.mxu0 0.0
      %5124 = vmatprep.subr.mxu0 0.0
      %5125 = vmatpush2.msra.mxu0 0.0
      %5126 = vmatprep.subr.mxu0 0.0
      %5127 = vmatpush2.msra.mxu0 0.0
      %5128 = vmatprep.subr.mxu0 0.0
      %5129 = vmatpush2.msra.mxu0 0.0
      %5130 = vmatprep.subr.mxu0 0.0
      %5131 = vmatpush2.msra.mxu0 0.0
      %5132 = vmatprep.subr.mxu0 0.0
      %5133 = vmatpush2.msra.mxu0 0.0
      %5134 = vmatprep.subr.mxu0 0.0
      %5135 = vmatpush2.msra.mxu0 0.0
      %5136 = vmatprep.subr.mxu0 0.0
      %5137 = vmatpush2.msra.mxu0 0.0
      %5138 = vmatprep.subr.mxu0 0.0
      %5139 = vmatpush2.msra.mxu0 0.0
      %5140 = vmatprep.subr.mxu0 0.0
      %5141 = vmatpush2.msra.mxu0 0.0
      %5142 = vmatprep.subr.mxu0 0.0
      %5143 = vmatpush2.msra.mxu0 0.0
      %5144 = vmatprep.subr.mxu0 0.0
      %5145 = vmatpush2.msra.mxu0 0.0
      %5146 = vmatprep.subr.mxu0 0.0
      %5147 = vmatpush2.msra.mxu0 0.0
      %5148 = vmatprep.subr.mxu0 0.0
      %5149 = vmatpush2.msra.mxu0 0.0
      %5150 = vmatprep.subr.mxu0 0.0
      %5151 = vmatpush2.msra.mxu0 0.0
      %5152 = vmatprep.subr.mxu0 0.0
      %5153 = vmatpush2.msra.mxu0 0.0
      %5154 = vmatprep.mubr.f32.mxu0 0.0
      %5155 = vmatmul.mubr.f32.gmra.mxu0 %v5009
      %v5156 = vpop.f32.mrf.mxu0
      %v5157 = vadd.f32 %v5089, %v5156
      %v5158 = vpop.f32.mrf.mxu0
      %5159 = vdwg.mxu0
      %v5160 = vld [vmem:[%s8] sm:$0xff]
      %v5161 = vld [vmem:[%s8 + $0x8] sm:$0xff]
      %vm5162 = vcmask 130048
      %v5164 = vsel %vm5162, %v5160, 0
      %v5167 = vsel %vm5162, %v5161, 0
      %v5170 = vsel %vm5162, %v5078, 0
      %5172 = vmatprep.subr.mxu0 0.0
      %5173 = vmatpush1.xpose.msra.mxu0 0.0
      %5174 = vmatprep.subr.mxu0 0.0
      %5175 = vmatpush1.xpose.msra.mxu0 0.0
      %5176 = vmatprep.subr.mxu0 0.0
      %5177 = vmatpush1.xpose.msra.mxu0 0.0
      %5178 = vmatprep.subr.mxu0 0.0
      %5179 = vmatpush1.xpose.msra.mxu0 0.0
      %5180 = vmatprep.subr.mxu0 0.0
      %5181 = vmatpush1.xpose.msra.mxu0 0.0
      %5182 = vmatprep.subr.mxu0 0.0
      %5183 = vmatpush1.xpose.msra.mxu0 0.0
      %5184 = vmatprep.subr.mxu0 0.0
      %5185 = vmatpush1.xpose.msra.mxu0 0.0
      %5186 = vmatprep.subr.mxu0 0.0
      %5187 = vmatpush1.xpose.msra.mxu0 0.0
      %5188 = vmatprep.subr.mxu0 0.0
      %5189 = vmatpush1.xpose.msra.mxu0 0.0
      %5190 = vmatprep.subr.mxu0 0.0
      %5191 = vmatpush1.xpose.msra.mxu0 0.0
      %5192 = vmatprep.subr.mxu0 0.0
      %5193 = vmatpush1.xpose.msra.mxu0 0.0
      %5194 = vmatprep.subr.mxu0 0.0
      %5195 = vmatpush1.xpose.msra.mxu0 0.0
      %5196 = vmatprep.subr.mxu0 0.0
      %5197 = vmatpush1.xpose.msra.mxu0 0.0
      %5198 = vmatprep.subr.mxu0 0.0
      %5199 = vmatpush1.xpose.msra.mxu0 0.0
      %5200 = vmatprep.subr.mxu0 0.0
      %5201 = vmatpush1.xpose.msra.mxu0 0.0
      %5202 = vmatprep.subr.mxu0 0.0
      %5203 = vmatpush1.xpose.msra.mxu0 %v5170
      %5204 = vmatprep.subr.mxu0 0.0
      %5205 = vmatpush2.xpose.msra.mxu0 0.0
      %5206 = vmatprep.subr.mxu0 0.0
      %5207 = vmatpush2.xpose.msra.mxu0 0.0
      %5208 = vmatprep.subr.mxu0 0.0
      %5209 = vmatpush2.xpose.msra.mxu0 0.0
      %5210 = vmatprep.subr.mxu0 0.0
      %5211 = vmatpush2.xpose.msra.mxu0 0.0
      %5212 = vmatprep.subr.mxu0 0.0
      %5213 = vmatpush2.xpose.msra.mxu0 0.0
      %5214 = vmatprep.subr.mxu0 0.0
      %5215 = vmatpush2.xpose.msra.mxu0 0.0
      %5216 = vmatprep.subr.mxu0 0.0
      %5217 = vmatpush2.xpose.msra.mxu0 0.0
      %5218 = vmatprep.subr.mxu0 0.0
      %5219 = vmatpush2.xpose.msra.mxu0 0.0
      %5220 = vmatprep.subr.mxu0 0.0
      %5221 = vmatpush2.xpose.msra.mxu0 0.0
      %5222 = vmatprep.subr.mxu0 0.0
      %5223 = vmatpush2.xpose.msra.mxu0 0.0
      %5224 = vmatprep.subr.mxu0 0.0
      %5225 = vmatpush2.xpose.msra.mxu0 0.0
      %5226 = vmatprep.subr.mxu0 0.0
      %5227 = vmatpush2.xpose.msra.mxu0 0.0
      %5228 = vmatprep.subr.mxu0 0.0
      %5229 = vmatpush2.xpose.msra.mxu0 0.0
      %5230 = vmatprep.subr.mxu0 0.0
      %5231 = vmatpush2.xpose.msra.mxu0 0.0
      %5232 = vmatprep.subr.mxu0 0.0
      %5233 = vmatpush2.xpose.msra.mxu0 0.0
      %5234 = vmatprep.subr.mxu0 0.0
      %5235 = vmatpush2.xpose.msra.mxu0 0.0
      %5236 = vmatprep.mubr.f32.mxu0 0.0
      %5237 = vmatmul.mubr.f32.gmra.mxu0 %v5164
      %v5238 = vpop.f32.mrf.mxu0
      %v5239 = vadd.f32 0.0, %v5238
      %v5240 = vpop.f32.mrf.mxu0
      %5241 = vmatprep.mubr.f32.mxu0 0.0
      %5242 = vmatmul.mubr.f32.gmra.mxu0 %v5167
      %v5243 = vpop.f32.mrf.mxu0
      %v5244 = vadd.f32 0.0, %v5243
      %v5245 = vpop.f32.mrf.mxu0
      %5246 = vdwg.mxu0
      %v5247 = vmul.f32 %v5239, 0.25
      %v5248 = vmul.f32 %v5244, 0.25
      %v5249 = vsel %vm975, %v5247, -inf
      %5250 = vmax.xlane.f32.xlu0 %v5249
      %v5251 = vpop.xlane.xlu0 %5250
      %v5252 = vsel %vm975, %v5248, -inf
      %5253 = vmax.xlane.f32.xlu0 %v5252
      %v5254 = vpop.xlane.xlu0 %5253
      %v5255 = vsub.f32 %v5247, %v5251
      %v5256 = vsub.f32 %v5248, %v5254
      %v5257 = vmul.f32 %v5255, 1.442695
      %v5258 = vpow.pop %v5257
      %v5259 = vmul.f32 %v5256, 1.442695
      %v5260 = vpow.pop %v5259
      %v5261 = vsel %vm975, %v5258, 0.0
      %5262 = vadd.xlane.f32.xlu0 %v5261
      %v5263 = vpop.xlane.xlu0 %5262
      %v5264 = vsel %vm975, %v5260, 0.0
      %5265 = vadd.xlane.f32.xlu0 %v5264
      %v5266 = vpop.xlane.xlu0 %5265
      %v5267 = vrcp.pop %v5263
      %v5268 = vmul.f32 %v5258, %v5267
      %v5269 = vrcp.pop %v5266
      %v5270 = vmul.f32 %v5260, %v5269
      %v5272 = vsel %vm975, %v5268, 0
      %v5275 = vsel %vm975, %v5270, 0
      %5277 = vmatprep.subr.mxu0 0.0
      %5278 = vmatpush1.msra.mxu0 0.0
      %5279 = vmatprep.subr.mxu0 0.0
      %5280 = vmatpush1.msra.mxu0 0.0
      %5281 = vmatprep.subr.mxu0 0.0
      %5282 = vmatpush1.msra.mxu0 0.0
      %5283 = vmatprep.subr.mxu0 0.0
      %5284 = vmatpush1.msra.mxu0 0.0
      %5285 = vmatprep.subr.mxu0 0.0
      %5286 = vmatpush1.msra.mxu0 0.0
      %5287 = vmatprep.subr.mxu0 0.0
      %5288 = vmatpush1.msra.mxu0 0.0
      %5289 = vmatprep.subr.mxu0 0.0
      %5290 = vmatpush1.msra.mxu0 0.0
      %5291 = vmatprep.subr.mxu0 0.0
      %5292 = vmatpush1.msra.mxu0 0.0
      %5293 = vmatprep.subr.mxu0 0.0
      %5294 = vmatpush1.msra.mxu0 0.0
      %5295 = vmatprep.subr.mxu0 0.0
      %5296 = vmatpush1.msra.mxu0 0.0
      %5297 = vmatprep.subr.mxu0 0.0
      %5298 = vmatpush1.msra.mxu0 0.0
      %5299 = vmatprep.subr.mxu0 0.0
      %5300 = vmatpush1.msra.mxu0 0.0
      %5301 = vmatprep.subr.mxu0 0.0
      %5302 = vmatpush1.msra.mxu0 0.0
      %5303 = vmatprep.subr.mxu0 0.0
      %5304 = vmatpush1.msra.mxu0 0.0
      %5305 = vmatprep.subr.mxu0 0.0
      %5306 = vmatpush1.msra.mxu0 0.0
      %5307 = vmatprep.subr.mxu0 0.0
      %5308 = vmatpush1.msra.mxu0 %v5157
      %5309 = vmatprep.subr.mxu0 0.0
      %5310 = vmatpush2.msra.mxu0 0.0
      %5311 = vmatprep.subr.mxu0 0.0
      %5312 = vmatpush2.msra.mxu0 0.0
      %5313 = vmatprep.subr.mxu0 0.0
      %5314 = vmatpush2.msra.mxu0 0.0
      %5315 = vmatprep.subr.mxu0 0.0
      %5316 = vmatpush2.msra.mxu0 0.0
      %5317 = vmatprep.subr.mxu0 0.0
      %5318 = vmatpush2.msra.mxu0 0.0
      %5319 = vmatprep.subr.mxu0 0.0
      %5320 = vmatpush2.msra.mxu0 0.0
      %5321 = vmatprep.subr.mxu0 0.0
      %5322 = vmatpush2.msra.mxu0 0.0
      %5323 = vmatprep.subr.mxu0 0.0
      %5324 = vmatpush2.msra.mxu0 0.0
      %5325 = vmatprep.subr.mxu0 0.0
      %5326 = vmatpush2.msra.mxu0 0.0
      %5327 = vmatprep.subr.mxu0 0.0
      %5328 = vmatpush2.msra.mxu0 0.0
      %5329 = vmatprep.subr.mxu0 0.0
      %5330 = vmatpush2.msra.mxu0 0.0
      %5331 = vmatprep.subr.mxu0 0.0
      %5332 = vmatpush2.msra.mxu0 0.0
      %5333 = vmatprep.subr.mxu0 0.0
      %5334 = vmatpush2.msra.mxu0 0.0
      %5335 = vmatprep.subr.mxu0 0.0
      %5336 = vmatpush2.msra.mxu0 0.0
      %5337 = vmatprep.subr.mxu0 0.0
      %5338 = vmatpush2.msra.mxu0 0.0
      %5339 = vmatprep.subr.mxu0 0.0
      %5340 = vmatpush2.msra.mxu0 0.0
      %5341 = vmatprep.mubr.f32.mxu0 0.0
      %5342 = vmatmul.mubr.f32.gmra.mxu0 %v5272
      %v5343 = vpop.f32.mrf.mxu0
      %v5344 = vadd.f32 0.0, %v5343
      %v5345 = vpop.f32.mrf.mxu0
      %5346 = vmatprep.mubr.f32.mxu0 0.0
      %5347 = vmatmul.mubr.f32.gmra.mxu0 %v5275
      %v5348 = vpop.f32.mrf.mxu0
      %v5349 = vadd.f32 0.0, %v5348
      %v5350 = vpop.f32.mrf.mxu0
      %5351 = vdwg.mxu0
      %v5352 = vld [vmem:[%s11] sm:$0xff]
      %v5353 = vld [vmem:[%s11 + $0x8] sm:$0xff]
      %s5354 = scalar_lea.vmem %s10, 2
      %v5355 = vld [vmem:[%s5354] sm:$0x3]
      %s5356 = scalar_lea.vmem %s9, 64
      %v5357 = vld [vmem:[%s5356] sm:$0xff]
      %v5358 = vld [vmem:[%s5356 + $0x8] sm:$0xff]
      %v5359 = vld [vmem:[%s5356 + $0x10] sm:$0xff]
      %v5360 = vld [vmem:[%s5356 + $0x18] sm:$0xff]
      %v5361 = vlaneseq
      %v5362 = vshrl.u32 %v5361, 7
      %v5363 = vsub.s32 0, %v5362
      %v5364 = vrot.slane %v5355, %v5363
      %5365 = vmatprep.subr.mxu0 0.0
      %5366 = vmatpush1.msra.mxu0 0.0
      %5367 = vmatprep.subr.mxu0 0.0
      %5368 = vmatpush1.msra.mxu0 0.0
      %5369 = vmatprep.subr.mxu0 0.0
      %5370 = vmatpush1.msra.mxu0 0.0
      %5371 = vmatprep.subr.mxu0 0.0
      %5372 = vmatpush1.msra.mxu0 0.0
      %5373 = vmatprep.subr.mxu0 0.0
      %5374 = vmatpush1.msra.mxu0 0.0
      %5375 = vmatprep.subr.mxu0 0.0
      %5376 = vmatpush1.msra.mxu0 0.0
      %5377 = vmatprep.subr.mxu0 0.0
      %5378 = vmatpush1.msra.mxu0 0.0
      %5379 = vmatprep.subr.mxu0 0.0
      %5380 = vmatpush1.msra.mxu0 0.0
      %5381 = vmatprep.subr.mxu0 0.0
      %5382 = vmatpush1.msra.mxu0 0.0
      %5383 = vmatprep.subr.mxu0 0.0
      %5384 = vmatpush1.msra.mxu0 0.0
      %5385 = vmatprep.subr.mxu0 0.0
      %5386 = vmatpush1.msra.mxu0 0.0
      %5387 = vmatprep.subr.mxu0 0.0
      %5388 = vmatpush1.msra.mxu0 0.0
      %5389 = vmatprep.subr.mxu0 0.0
      %5390 = vmatpush1.msra.mxu0 %v5360
      %5391 = vmatprep.subr.mxu0 0.0
      %5392 = vmatpush1.msra.mxu0 %v5359
      %5393 = vmatprep.subr.mxu0 0.0
      %5394 = vmatpush1.msra.mxu0 %v5358
      %5395 = vmatprep.subr.mxu0 0.0
      %5396 = vmatpush1.msra.mxu0 %v5357
      %5397 = vmatprep.subr.mxu0 0.0
      %5398 = vmatpush2.msra.mxu0 0.0
      %5399 = vmatprep.subr.mxu0 0.0
      %5400 = vmatpush2.msra.mxu0 0.0
      %5401 = vmatprep.subr.mxu0 0.0
      %5402 = vmatpush2.msra.mxu0 0.0
      %5403 = vmatprep.subr.mxu0 0.0
      %5404 = vmatpush2.msra.mxu0 0.0
      %5405 = vmatprep.subr.mxu0 0.0
      %5406 = vmatpush2.msra.mxu0 0.0
      %5407 = vmatprep.subr.mxu0 0.0
      %5408 = vmatpush2.msra.mxu0 0.0
      %5409 = vmatprep.subr.mxu0 0.0
      %5410 = vmatpush2.msra.mxu0 0.0
      %5411 = vmatprep.subr.mxu0 0.0
      %5412 = vmatpush2.msra.mxu0 0.0
      %5413 = vmatprep.subr.mxu0 0.0
      %5414 = vmatpush2.msra.mxu0 0.0
      %5415 = vmatprep.subr.mxu0 0.0
      %5416 = vmatpush2.msra.mxu0 0.0
      %5417 = vmatprep.subr.mxu0 0.0
      %5418 = vmatpush2.msra.mxu0 0.0
      %5419 = vmatprep.subr.mxu0 0.0
      %5420 = vmatpush2.msra.mxu0 0.0
      %5421 = vmatprep.subr.mxu0 0.0
      %5422 = vmatpush2.msra.mxu0 0.0
      %5423 = vmatprep.subr.mxu0 0.0
      %5424 = vmatpush2.msra.mxu0 0.0
      %5425 = vmatprep.subr.mxu0 0.0
      %5426 = vmatpush2.msra.mxu0 0.0
      %5427 = vmatprep.subr.mxu0 0.0
      %5428 = vmatpush2.msra.mxu0 0.0
      %5429 = vmatprep.mubr.f32.mxu0 0.0
      %5430 = vmatmul.mubr.f32.gmra.mxu0 %v5009
      %v5431 = vpop.f32.mrf.mxu0
      %v5432 = vadd.f32 %v5364, %v5431
      %v5433 = vpop.f32.mrf.mxu0
      %5434 = vdwg.mxu0
      %s5435 = scalar_lea.vmem %s9, 96
      %v5436 = vld [vmem:[%s5435] sm:$0xff]
      %v5437 = vld [vmem:[%s5435 + $0x8] sm:$0xff]
      %v5438 = vld [vmem:[%s5435 + $0x10] sm:$0xff]
      %v5439 = vld [vmem:[%s5435 + $0x18] sm:$0xff]
      %v5440 = vlaneseq
      %v5441 = vshrl.u32 %v5440, 7
      %v5442 = vsub.s32 1, %v5441
      %v5443 = vrot.slane %v5355, %v5442
      %5444 = vmatprep.subr.mxu0 0.0
      %5445 = vmatpush1.msra.mxu0 0.0
      %5446 = vmatprep.subr.mxu0 0.0
      %5447 = vmatpush1.msra.mxu0 0.0
      %5448 = vmatprep.subr.mxu0 0.0
      %5449 = vmatpush1.msra.mxu0 0.0
      %5450 = vmatprep.subr.mxu0 0.0
      %5451 = vmatpush1.msra.mxu0 0.0
      %5452 = vmatprep.subr.mxu0 0.0
      %5453 = vmatpush1.msra.mxu0 0.0
      %5454 = vmatprep.subr.mxu0 0.0
      %5455 = vmatpush1.msra.mxu0 0.0
      %5456 = vmatprep.subr.mxu0 0.0
      %5457 = vmatpush1.msra.mxu0 0.0
      %5458 = vmatprep.subr.mxu0 0.0
      %5459 = vmatpush1.msra.mxu0 0.0
      %5460 = vmatprep.subr.mxu0 0.0
      %5461 = vmatpush1.msra.mxu0 0.0
      %5462 = vmatprep.subr.mxu0 0.0
      %5463 = vmatpush1.msra.mxu0 0.0
      %5464 = vmatprep.subr.mxu0 0.0
      %5465 = vmatpush1.msra.mxu0 0.0
      %5466 = vmatprep.subr.mxu0 0.0
      %5467 = vmatpush1.msra.mxu0 0.0
      %5468 = vmatprep.subr.mxu0 0.0
      %5469 = vmatpush1.msra.mxu0 %v5439
      %5470 = vmatprep.subr.mxu0 0.0
      %5471 = vmatpush1.msra.mxu0 %v5438
      %5472 = vmatprep.subr.mxu0 0.0
      %5473 = vmatpush1.msra.mxu0 %v5437
      %5474 = vmatprep.subr.mxu0 0.0
      %5475 = vmatpush1.msra.mxu0 %v5436
      %5476 = vmatprep.subr.mxu0 0.0
      %5477 = vmatpush2.msra.mxu0 0.0
      %5478 = vmatprep.subr.mxu0 0.0
      %5479 = vmatpush2.msra.mxu0 0.0
      %5480 = vmatprep.subr.mxu0 0.0
      %5481 = vmatpush2.msra.mxu0 0.0
      %5482 = vmatprep.subr.mxu0 0.0
      %5483 = vmatpush2.msra.mxu0 0.0
      %5484 = vmatprep.subr.mxu0 0.0
      %5485 = vmatpush2.msra.mxu0 0.0
      %5486 = vmatprep.subr.mxu0 0.0
      %5487 = vmatpush2.msra.mxu0 0.0
      %5488 = vmatprep.subr.mxu0 0.0
      %5489 = vmatpush2.msra.mxu0 0.0
      %5490 = vmatprep.subr.mxu0 0.0
      %5491 = vmatpush2.msra.mxu0 0.0
      %5492 = vmatprep.subr.mxu0 0.0
      %5493 = vmatpush2.msra.mxu0 0.0
      %5494 = vmatprep.subr.mxu0 0.0
      %5495 = vmatpush2.msra.mxu0 0.0
      %5496 = vmatprep.subr.mxu0 0.0
      %5497 = vmatpush2.msra.mxu0 0.0
      %5498 = vmatprep.subr.mxu0 0.0
      %5499 = vmatpush2.msra.mxu0 0.0
      %5500 = vmatprep.subr.mxu0 0.0
      %5501 = vmatpush2.msra.mxu0 0.0
      %5502 = vmatprep.subr.mxu0 0.0
      %5503 = vmatpush2.msra.mxu0 0.0
      %5504 = vmatprep.subr.mxu0 0.0
      %5505 = vmatpush2.msra.mxu0 0.0
      %5506 = vmatprep.subr.mxu0 0.0
      %5507 = vmatpush2.msra.mxu0 0.0
      %5508 = vmatprep.mubr.f32.mxu0 0.0
      %5509 = vmatmul.mubr.f32.gmra.mxu0 %v5009
      %v5510 = vpop.f32.mrf.mxu0
      %v5511 = vadd.f32 %v5443, %v5510
      %v5512 = vpop.f32.mrf.mxu0
      %5513 = vdwg.mxu0
      %s5514 = scalar_lea.vmem %s8, 16
      %v5515 = vld [vmem:[%s5514] sm:$0xff]
      %v5516 = vld [vmem:[%s5514 + $0x8] sm:$0xff]
      %v5518 = vsel %vm5162, %v5515, 0
      %v5521 = vsel %vm5162, %v5516, 0
      %v5524 = vsel %vm5162, %v5432, 0
      %5526 = vmatprep.subr.mxu0 0.0
      %5527 = vmatpush1.xpose.msra.mxu0 0.0
      %5528 = vmatprep.subr.mxu0 0.0
      %5529 = vmatpush1.xpose.msra.mxu0 0.0
      %5530 = vmatprep.subr.mxu0 0.0
      %5531 = vmatpush1.xpose.msra.mxu0 0.0
      %5532 = vmatprep.subr.mxu0 0.0
      %5533 = vmatpush1.xpose.msra.mxu0 0.0
      %5534 = vmatprep.subr.mxu0 0.0
      %5535 = vmatpush1.xpose.msra.mxu0 0.0
      %5536 = vmatprep.subr.mxu0 0.0
      %5537 = vmatpush1.xpose.msra.mxu0 0.0
      %5538 = vmatprep.subr.mxu0 0.0
      %5539 = vmatpush1.xpose.msra.mxu0 0.0
      %5540 = vmatprep.subr.mxu0 0.0
      %5541 = vmatpush1.xpose.msra.mxu0 0.0
      %5542 = vmatprep.subr.mxu0 0.0
      %5543 = vmatpush1.xpose.msra.mxu0 0.0
      %5544 = vmatprep.subr.mxu0 0.0
      %5545 = vmatpush1.xpose.msra.mxu0 0.0
      %5546 = vmatprep.subr.mxu0 0.0
      %5547 = vmatpush1.xpose.msra.mxu0 0.0
      %5548 = vmatprep.subr.mxu0 0.0
      %5549 = vmatpush1.xpose.msra.mxu0 0.0
      %5550 = vmatprep.subr.mxu0 0.0
      %5551 = vmatpush1.xpose.msra.mxu0 0.0
      %5552 = vmatprep.subr.mxu0 0.0
      %5553 = vmatpush1.xpose.msra.mxu0 0.0
      %5554 = vmatprep.subr.mxu0 0.0
      %5555 = vmatpush1.xpose.msra.mxu0 0.0
      %5556 = vmatprep.subr.mxu0 0.0
      %5557 = vmatpush1.xpose.msra.mxu0 %v5524
      %5558 = vmatprep.subr.mxu0 0.0
      %5559 = vmatpush2.xpose.msra.mxu0 0.0
      %5560 = vmatprep.subr.mxu0 0.0
      %5561 = vmatpush2.xpose.msra.mxu0 0.0
      %5562 = vmatprep.subr.mxu0 0.0
      %5563 = vmatpush2.xpose.msra.mxu0 0.0
      %5564 = vmatprep.subr.mxu0 0.0
      %5565 = vmatpush2.xpose.msra.mxu0 0.0
      %5566 = vmatprep.subr.mxu0 0.0
      %5567 = vmatpush2.xpose.msra.mxu0 0.0
      %5568 = vmatprep.subr.mxu0 0.0
      %5569 = vmatpush2.xpose.msra.mxu0 0.0
      %5570 = vmatprep.subr.mxu0 0.0
      %5571 = vmatpush2.xpose.msra.mxu0 0.0
      %5572 = vmatprep.subr.mxu0 0.0
      %5573 = vmatpush2.xpose.msra.mxu0 0.0
      %5574 = vmatprep.subr.mxu0 0.0
      %5575 = vmatpush2.xpose.msra.mxu0 0.0
      %5576 = vmatprep.subr.mxu0 0.0
      %5577 = vmatpush2.xpose.msra.mxu0 0.0
      %5578 = vmatprep.subr.mxu0 0.0
      %5579 = vmatpush2.xpose.msra.mxu0 0.0
      %5580 = vmatprep.subr.mxu0 0.0
      %5581 = vmatpush2.xpose.msra.mxu0 0.0
      %5582 = vmatprep.subr.mxu0 0.0
      %5583 = vmatpush2.xpose.msra.mxu0 0.0
      %5584 = vmatprep.subr.mxu0 0.0
      %5585 = vmatpush2.xpose.msra.mxu0 0.0
      %5586 = vmatprep.subr.mxu0 0.0
      %5587 = vmatpush2.xpose.msra.mxu0 0.0
      %5588 = vmatprep.subr.mxu0 0.0
      %5589 = vmatpush2.xpose.msra.mxu0 0.0
      %5590 = vmatprep.mubr.f32.mxu0 0.0
      %5591 = vmatmul.mubr.f32.gmra.mxu0 %v5518
      %v5592 = vpop.f32.mrf.mxu0
      %v5593 = vadd.f32 0.0, %v5592
      %v5594 = vpop.f32.mrf.mxu0
      %5595 = vmatprep.mubr.f32.mxu0 0.0
      %5596 = vmatmul.mubr.f32.gmra.mxu0 %v5521
      %v5597 = vpop.f32.mrf.mxu0
      %v5598 = vadd.f32 0.0, %v5597
      %v5599 = vpop.f32.mrf.mxu0
      %5600 = vdwg.mxu0
      %v5601 = vmul.f32 %v5593, 0.25
      %v5602 = vmul.f32 %v5598, 0.25
      %v5603 = vsel %vm975, %v5601, -inf
      %5604 = vmax.xlane.f32.xlu0 %v5603
      %v5605 = vpop.xlane.xlu0 %5604
      %v5606 = vsel %vm975, %v5602, -inf
      %5607 = vmax.xlane.f32.xlu0 %v5606
      %v5608 = vpop.xlane.xlu0 %5607
      %v5609 = vsub.f32 %v5601, %v5605
      %v5610 = vsub.f32 %v5602, %v5608
      %v5611 = vmul.f32 %v5609, 1.442695
      %v5612 = vpow.pop %v5611
      %v5613 = vmul.f32 %v5610, 1.442695
      %v5614 = vpow.pop %v5613
      %v5615 = vsel %vm975, %v5612, 0.0
      %5616 = vadd.xlane.f32.xlu0 %v5615
      %v5617 = vpop.xlane.xlu0 %5616
      %v5618 = vsel %vm975, %v5614, 0.0
      %5619 = vadd.xlane.f32.xlu0 %v5618
      %v5620 = vpop.xlane.xlu0 %5619
      %v5621 = vrcp.pop %v5617
      %v5622 = vmul.f32 %v5612, %v5621
      %v5623 = vrcp.pop %v5620
      %v5624 = vmul.f32 %v5614, %v5623
      %v5626 = vsel %vm975, %v5622, 0
      %v5629 = vsel %vm975, %v5624, 0
      %5631 = vmatprep.subr.mxu0 0.0
      %5632 = vmatpush1.msra.mxu0 0.0
      %5633 = vmatprep.subr.mxu0 0.0
      %5634 = vmatpush1.msra.mxu0 0.0
      %5635 = vmatprep.subr.mxu0 0.0
      %5636 = vmatpush1.msra.mxu0 0.0
      %5637 = vmatprep.subr.mxu0 0.0
      %5638 = vmatpush1.msra.mxu0 0.0
      %5639 = vmatprep.subr.mxu0 0.0
      %5640 = vmatpush1.msra.mxu0 0.0
      %5641 = vmatprep.subr.mxu0 0.0
      %5642 = vmatpush1.msra.mxu0 0.0
      %5643 = vmatprep.subr.mxu0 0.0
      %5644 = vmatpush1.msra.mxu0 0.0
      %5645 = vmatprep.subr.mxu0 0.0
      %5646 = vmatpush1.msra.mxu0 0.0
      %5647 = vmatprep.subr.mxu0 0.0
      %5648 = vmatpush1.msra.mxu0 0.0
      %5649 = vmatprep.subr.mxu0 0.0
      %5650 = vmatpush1.msra.mxu0 0.0
      %5651 = vmatprep.subr.mxu0 0.0
      %5652 = vmatpush1.msra.mxu0 0.0
      %5653 = vmatprep.subr.mxu0 0.0
      %5654 = vmatpush1.msra.mxu0 0.0
      %5655 = vmatprep.subr.mxu0 0.0
      %5656 = vmatpush1.msra.mxu0 0.0
      %5657 = vmatprep.subr.mxu0 0.0
      %5658 = vmatpush1.msra.mxu0 0.0
      %5659 = vmatprep.subr.mxu0 0.0
      %5660 = vmatpush1.msra.mxu0 0.0
      %5661 = vmatprep.subr.mxu0 0.0
      %5662 = vmatpush1.msra.mxu0 %v5511
      %5663 = vmatprep.subr.mxu0 0.0
      %5664 = vmatpush2.msra.mxu0 0.0
      %5665 = vmatprep.subr.mxu0 0.0
      %5666 = vmatpush2.msra.mxu0 0.0
      %5667 = vmatprep.subr.mxu0 0.0
      %5668 = vmatpush2.msra.mxu0 0.0
      %5669 = vmatprep.subr.mxu0 0.0
      %5670 = vmatpush2.msra.mxu0 0.0
      %5671 = vmatprep.subr.mxu0 0.0
      %5672 = vmatpush2.msra.mxu0 0.0
      %5673 = vmatprep.subr.mxu0 0.0
      %5674 = vmatpush2.msra.mxu0 0.0
      %5675 = vmatprep.subr.mxu0 0.0
      %5676 = vmatpush2.msra.mxu0 0.0
      %5677 = vmatprep.subr.mxu0 0.0
      %5678 = vmatpush2.msra.mxu0 0.0
      %5679 = vmatprep.subr.mxu0 0.0
      %5680 = vmatpush2.msra.mxu0 0.0
      %5681 = vmatprep.subr.mxu0 0.0
      %5682 = vmatpush2.msra.mxu0 0.0
      %5683 = vmatprep.subr.mxu0 0.0
      %5684 = vmatpush2.msra.mxu0 0.0
      %5685 = vmatprep.subr.mxu0 0.0
      %5686 = vmatpush2.msra.mxu0 0.0
      %5687 = vmatprep.subr.mxu0 0.0
      %5688 = vmatpush2.msra.mxu0 0.0
      %5689 = vmatprep.subr.mxu0 0.0
      %5690 = vmatpush2.msra.mxu0 0.0
      %5691 = vmatprep.subr.mxu0 0.0
      %5692 = vmatpush2.msra.mxu0 0.0
      %5693 = vmatprep.subr.mxu0 0.0
      %5694 = vmatpush2.msra.mxu0 0.0
      %5695 = vmatprep.mubr.f32.mxu0 0.0
      %5696 = vmatmul.mubr.f32.gmra.mxu0 %v5626
      %v5697 = vpop.f32.mrf.mxu0
      %v5698 = vadd.f32 0.0, %v5697
      %v5699 = vpop.f32.mrf.mxu0
      %5700 = vmatprep.mubr.f32.mxu0 0.0
      %5701 = vmatmul.mubr.f32.gmra.mxu0 %v5629
      %v5702 = vpop.f32.mrf.mxu0
      %v5703 = vadd.f32 0.0, %v5702
      %v5704 = vpop.f32.mrf.mxu0
      %5705 = vdwg.mxu0
      %s5706 = scalar_lea.vmem %s11, 16
      %v5707 = vld [vmem:[%s5706] sm:$0xff]
      %v5708 = vld [vmem:[%s5706 + $0x8] sm:$0xff]
      %v5710 = vsel %vm5162, %v5698, 0
      %v5713 = vsel %vm5162, %v5703, 0
      %5715 = vmatprep.subr.mxu0 0.0
      %5716 = vmatpush1.msra.mxu0 0.0
      %5717 = vmatprep.subr.mxu0 0.0
      %5718 = vmatpush1.msra.mxu0 0.0
      %5719 = vmatprep.subr.mxu0 0.0
      %5720 = vmatpush1.msra.mxu0 0.0
      %5721 = vmatprep.subr.mxu0 0.0
      %5722 = vmatpush1.msra.mxu0 0.0
      %5723 = vmatprep.subr.mxu0 0.0
      %5724 = vmatpush1.msra.mxu0 0.0
      %5725 = vmatprep.subr.mxu0 0.0
      %5726 = vmatpush1.msra.mxu0 0.0
      %5727 = vmatprep.subr.mxu0 0.0
      %5728 = vmatpush1.msra.mxu0 0.0
      %5729 = vmatprep.subr.mxu0 0.0
      %5730 = vmatpush1.msra.mxu0 0.0
      %5731 = vmatprep.subr.mxu0 0.0
      %5732 = vmatpush1.msra.mxu0 0.0
      %5733 = vmatprep.subr.mxu0 0.0
      %5734 = vmatpush1.msra.mxu0 0.0
      %5735 = vmatprep.subr.mxu0 0.0
      %5736 = vmatpush1.msra.mxu0 0.0
      %5737 = vmatprep.subr.mxu0 0.0
      %5738 = vmatpush1.msra.mxu0 0.0
      %5739 = vmatprep.subr.mxu0 0.0
      %5740 = vmatpush1.msra.mxu0 0.0
      %5741 = vmatprep.subr.mxu0 0.0
      %5742 = vmatpush1.msra.mxu0 0.0
      %5743 = vmatprep.subr.mxu0 0.0
      %5744 = vmatpush1.msra.mxu0 %v5708
      %5745 = vmatprep.subr.mxu0 0.0
      %5746 = vmatpush1.msra.mxu0 %v5707
      %5747 = vmatprep.subr.mxu0 0.0
      %5748 = vmatpush2.msra.mxu0 0.0
      %5749 = vmatprep.subr.mxu0 0.0
      %5750 = vmatpush2.msra.mxu0 0.0
      %5751 = vmatprep.subr.mxu0 0.0
      %5752 = vmatpush2.msra.mxu0 0.0
      %5753 = vmatprep.subr.mxu0 0.0
      %5754 = vmatpush2.msra.mxu0 0.0
      %5755 = vmatprep.subr.mxu0 0.0
      %5756 = vmatpush2.msra.mxu0 0.0
      %5757 = vmatprep.subr.mxu0 0.0
      %5758 = vmatpush2.msra.mxu0 0.0
      %5759 = vmatprep.subr.mxu0 0.0
      %5760 = vmatpush2.msra.mxu0 0.0
      %5761 = vmatprep.subr.mxu0 0.0
      %5762 = vmatpush2.msra.mxu0 0.0
      %5763 = vmatprep.subr.mxu0 0.0
      %5764 = vmatpush2.msra.mxu0 0.0
      %5765 = vmatprep.subr.mxu0 0.0
      %5766 = vmatpush2.msra.mxu0 0.0
      %5767 = vmatprep.subr.mxu0 0.0
      %5768 = vmatpush2.msra.mxu0 0.0
      %5769 = vmatprep.subr.mxu0 0.0
      %5770 = vmatpush2.msra.mxu0 0.0
      %5771 = vmatprep.subr.mxu0 0.0
      %5772 = vmatpush2.msra.mxu0 0.0
      %5773 = vmatprep.subr.mxu0 0.0
      %5774 = vmatpush2.msra.mxu0 0.0
      %5775 = vmatprep.subr.mxu0 0.0
      %5776 = vmatpush2.msra.mxu0 0.0
      %5777 = vmatprep.subr.mxu0 0.0
      %5778 = vmatpush2.msra.mxu0 0.0
      %5779 = vmatprep.mubr.f32.mxu0 0.0
      %5780 = vmatmul.mubr.f32.gmra.mxu0 %v5710
      %v5781 = vpop.f32.mrf.mxu0
      %v5782 = vadd.f32 0.0, %v5781
      %v5783 = vpop.f32.mrf.mxu0
      %5784 = vmatprep.mubr.f32.mxu0 0.0
      %5785 = vmatmul.mubr.f32.gmra.mxu0 %v5713
      %v5786 = vpop.f32.mrf.mxu0
      %v5787 = vadd.f32 0.0, %v5786
      %v5788 = vpop.f32.mrf.mxu0
      %5789 = vdwg.mxu0
      %v5791 = vsel %vm5162, %v5344, 0
      %v5794 = vsel %vm5162, %v5349, 0
      %5796 = vmatprep.subr.mxu0 0.0
      %5797 = vmatpush1.msra.mxu0 0.0
      %5798 = vmatprep.subr.mxu0 0.0
      %5799 = vmatpush1.msra.mxu0 0.0
      %5800 = vmatprep.subr.mxu0 0.0
      %5801 = vmatpush1.msra.mxu0 0.0
      %5802 = vmatprep.subr.mxu0 0.0
      %5803 = vmatpush1.msra.mxu0 0.0
      %5804 = vmatprep.subr.mxu0 0.0
      %5805 = vmatpush1.msra.mxu0 0.0
      %5806 = vmatprep.subr.mxu0 0.0
      %5807 = vmatpush1.msra.mxu0 0.0
      %5808 = vmatprep.subr.mxu0 0.0
      %5809 = vmatpush1.msra.mxu0 0.0
      %5810 = vmatprep.subr.mxu0 0.0
      %5811 = vmatpush1.msra.mxu0 0.0
      %5812 = vmatprep.subr.mxu0 0.0
      %5813 = vmatpush1.msra.mxu0 0.0
      %5814 = vmatprep.subr.mxu0 0.0
      %5815 = vmatpush1.msra.mxu0 0.0
      %5816 = vmatprep.subr.mxu0 0.0
      %5817 = vmatpush1.msra.mxu0 0.0
      %5818 = vmatprep.subr.mxu0 0.0
      %5819 = vmatpush1.msra.mxu0 0.0
      %5820 = vmatprep.subr.mxu0 0.0
      %5821 = vmatpush1.msra.mxu0 0.0
      %5822 = vmatprep.subr.mxu0 0.0
      %5823 = vmatpush1.msra.mxu0 0.0
      %5824 = vmatprep.subr.mxu0 0.0
      %5825 = vmatpush1.msra.mxu0 %v5353
      %5826 = vmatprep.subr.mxu0 0.0
      %5827 = vmatpush1.msra.mxu0 %v5352
      %5828 = vmatprep.subr.mxu0 0.0
      %5829 = vmatpush2.msra.mxu0 0.0
      %5830 = vmatprep.subr.mxu0 0.0
      %5831 = vmatpush2.msra.mxu0 0.0
      %5832 = vmatprep.subr.mxu0 0.0
      %5833 = vmatpush2.msra.mxu0 0.0
      %5834 = vmatprep.subr.mxu0 0.0
      %5835 = vmatpush2.msra.mxu0 0.0
      %5836 = vmatprep.subr.mxu0 0.0
      %5837 = vmatpush2.msra.mxu0 0.0
      %5838 = vmatprep.subr.mxu0 0.0
      %5839 = vmatpush2.msra.mxu0 0.0
      %5840 = vmatprep.subr.mxu0 0.0
      %5841 = vmatpush2.msra.mxu0 0.0
      %5842 = vmatprep.subr.mxu0 0.0
      %5843 = vmatpush2.msra.mxu0 0.0
      %5844 = vmatprep.subr.mxu0 0.0
      %5845 = vmatpush2.msra.mxu0 0.0
      %5846 = vmatprep.subr.mxu0 0.0
      %5847 = vmatpush2.msra.mxu0 0.0
      %5848 = vmatprep.subr.mxu0 0.0
      %5849 = vmatpush2.msra.mxu0 0.0
      %5850 = vmatprep.subr.mxu0 0.0
      %5851 = vmatpush2.msra.mxu0 0.0
      %5852 = vmatprep.subr.mxu0 0.0
      %5853 = vmatpush2.msra.mxu0 0.0
      %5854 = vmatprep.subr.mxu0 0.0
      %5855 = vmatpush2.msra.mxu0 0.0
      %5856 = vmatprep.subr.mxu0 0.0
      %5857 = vmatpush2.msra.mxu0 0.0
      %5858 = vmatprep.subr.mxu0 0.0
      %5859 = vmatpush2.msra.mxu0 0.0
      %5860 = vmatprep.mubr.f32.mxu0 0.0
      %5861 = vmatmul.mubr.f32.gmra.mxu0 %v5791
      %v5862 = vpop.f32.mrf.mxu0
      %v5863 = vadd.f32 %v5782, %v5862
      %v5864 = vpop.f32.mrf.mxu0
      %5865 = vmatprep.mubr.f32.mxu0 0.0
      %5866 = vmatmul.mubr.f32.gmra.mxu0 %v5794
      %v5867 = vpop.f32.mrf.mxu0
      %v5868 = vadd.f32 %v5787, %v5867
      %v5869 = vpop.f32.mrf.mxu0
      %5870 = vdwg.mxu0
      %v5871 = vld [vmem:[%s15] sm:$0x3]
      %v5872 = vlaneseq
      %v5873 = vshrl.u32 %v5872, 7
      %v5874 = vsub.s32 0, %v5873
      %v5875 = vrot.slane %v5871, %v5874
      %v5876 = vadd.f32 %v5863, %v5875
      %v5877 = vadd.f32 %v5868, %v5875
      %v5878 = vld [vmem:[%s12] sm:$0xff]
      %v5879 = vld [vmem:[%s12 + $0x8] sm:$0xff]
      %v5880 = vld [vmem:[%s12 + $0x10] sm:$0xff]
      %v5881 = vld [vmem:[%s12 + $0x18] sm:$0xff]
      %v5882 = vld [vmem:[%s13] sm:$0x1]
      %v5884 = vlaneseq
      %v5885 = vshrl.u32 %v5884, 7
      %v5886 = vsub.s32 0, %v5885
      %v5887 = vrot.slane %v5882, %v5886
      %v5890 = vsel %vm710, %v5876, 0
      %v5893 = vsel %vm710, %v5877, 0
      %5895 = vmatprep.subr.mxu0 0.0
      %5896 = vmatpush1.msra.mxu0 0.0
      %5897 = vmatprep.subr.mxu0 0.0
      %5898 = vmatpush1.msra.mxu0 0.0
      %5899 = vmatprep.subr.mxu0 0.0
      %5900 = vmatpush1.msra.mxu0 0.0
      %5901 = vmatprep.subr.mxu0 0.0
      %5902 = vmatpush1.msra.mxu0 0.0
      %5903 = vmatprep.subr.mxu0 0.0
      %5904 = vmatpush1.msra.mxu0 0.0
      %5905 = vmatprep.subr.mxu0 0.0
      %5906 = vmatpush1.msra.mxu0 0.0
      %5907 = vmatprep.subr.mxu0 0.0
      %5908 = vmatpush1.msra.mxu0 0.0
      %5909 = vmatprep.subr.mxu0 0.0
      %5910 = vmatpush1.msra.mxu0 0.0
      %5911 = vmatprep.subr.mxu0 0.0
      %5912 = vmatpush1.msra.mxu0 0.0
      %5913 = vmatprep.subr.mxu0 0.0
      %5914 = vmatpush1.msra.mxu0 0.0
      %5915 = vmatprep.subr.mxu0 0.0
      %5916 = vmatpush1.msra.mxu0 0.0
      %5917 = vmatprep.subr.mxu0 0.0
      %5918 = vmatpush1.msra.mxu0 0.0
      %5919 = vmatprep.subr.mxu0 0.0
      %5920 = vmatpush1.msra.mxu0 %v5881
      %5921 = vmatprep.subr.mxu0 0.0
      %5922 = vmatpush1.msra.mxu0 %v5880
      %5923 = vmatprep.subr.mxu0 0.0
      %5924 = vmatpush1.msra.mxu0 %v5879
      %5925 = vmatprep.subr.mxu0 0.0
      %5926 = vmatpush1.msra.mxu0 %v5878
      %5927 = vmatprep.subr.mxu0 0.0
      %5928 = vmatpush2.msra.mxu0 0.0
      %5929 = vmatprep.subr.mxu0 0.0
      %5930 = vmatpush2.msra.mxu0 0.0
      %5931 = vmatprep.subr.mxu0 0.0
      %5932 = vmatpush2.msra.mxu0 0.0
      %5933 = vmatprep.subr.mxu0 0.0
      %5934 = vmatpush2.msra.mxu0 0.0
      %5935 = vmatprep.subr.mxu0 0.0
      %5936 = vmatpush2.msra.mxu0 0.0
      %5937 = vmatprep.subr.mxu0 0.0
      %5938 = vmatpush2.msra.mxu0 0.0
      %5939 = vmatprep.subr.mxu0 0.0
      %5940 = vmatpush2.msra.mxu0 0.0
      %5941 = vmatprep.subr.mxu0 0.0
      %5942 = vmatpush2.msra.mxu0 0.0
      %5943 = vmatprep.subr.mxu0 0.0
      %5944 = vmatpush2.msra.mxu0 0.0
      %5945 = vmatprep.subr.mxu0 0.0
      %5946 = vmatpush2.msra.mxu0 0.0
      %5947 = vmatprep.subr.mxu0 0.0
      %5948 = vmatpush2.msra.mxu0 0.0
      %5949 = vmatprep.subr.mxu0 0.0
      %5950 = vmatpush2.msra.mxu0 0.0
      %5951 = vmatprep.subr.mxu0 0.0
      %5952 = vmatpush2.msra.mxu0 0.0
      %5953 = vmatprep.subr.mxu0 0.0
      %5954 = vmatpush2.msra.mxu0 0.0
      %5955 = vmatprep.subr.mxu0 0.0
      %5956 = vmatpush2.msra.mxu0 0.0
      %5957 = vmatprep.subr.mxu0 0.0
      %5958 = vmatpush2.msra.mxu0 0.0
      %5959 = vmatprep.mubr.f32.mxu0 0.0
      %5960 = vmatmul.mubr.f32.gmra.mxu0 %v5890
      %v5961 = vpop.f32.mrf.mxu0
      %v5962 = vadd.f32 %v5887, %v5961
      %v5963 = vpop.f32.mrf.mxu0
      %5964 = vmatprep.mubr.f32.mxu0 0.0
      %5965 = vmatmul.mubr.f32.gmra.mxu0 %v5893
      %v5966 = vpop.f32.mrf.mxu0
      %v5967 = vadd.f32 %v5887, %v5966
      %v5968 = vpop.f32.mrf.mxu0
      %5969 = vdwg.mxu0
      %v5970 = vmul.f32 %v5962, %v5962
      %v5971 = vmul.f32 %v5967, %v5967
      %v5972 = vmul.f32 %v5962, %v5970
      %v5973 = vmul.f32 %v5967, %v5971
      %v5974 = vmul.f32 %v5972, 0.044715
      %v5975 = vmul.f32 %v5973, 0.044715
      %v5976 = vadd.f32 %v5962, %v5974
      %v5977 = vadd.f32 %v5967, %v5975
      %v5978 = vmul.f32 %v5976, 0.7978846
      %v5979 = vmul.f32 %v5977, 0.7978846
      %v5980 = vtanh.pop %v5978
      %v5981 = vtanh.pop %v5979
      %v5982 = vadd.f32 %v5980, 1.0
      %v5983 = vadd.f32 %v5981, 1.0
      %v5984 = vmul.f32 %v5982, 0.5
      %v5985 = vmul.f32 %v5983, 0.5
      %v5986 = vmul.f32 %v5962, %v5984
      %v5987 = vmul.f32 %v5967, %v5985
      %v5988 = vld [vmem:[%s14] sm:$0xff]
      %v5989 = vld [vmem:[%s14 + $0x8] sm:$0xff]
      %v5990 = vld [vmem:[%s14 + $0x10] sm:$0xff]
      %v5991 = vld [vmem:[%s14 + $0x18] sm:$0xff]
      %v5992 = vld [vmem:[%s14 + $0x20] sm:$0xff]
      %v5993 = vld [vmem:[%s14 + $0x28] sm:$0xff]
      %v5994 = vld [vmem:[%s14 + $0x30] sm:$0xff]
      %v5995 = vld [vmem:[%s14 + $0x38] sm:$0xff]
      %v5996 = vld [vmem:[%s14 + $0x40] sm:$0xff]
      %v5997 = vld [vmem:[%s14 + $0x48] sm:$0xff]
      %v5998 = vld [vmem:[%s14 + $0x50] sm:$0xff]
      %v5999 = vld [vmem:[%s14 + $0x58] sm:$0xff]
      %v6000 = vld [vmem:[%s14 + $0x60] sm:$0xff]
      %v6001 = vld [vmem:[%s14 + $0x68] sm:$0xff]
      %v6002 = vld [vmem:[%s14 + $0x70] sm:$0xff]
      %v6003 = vld [vmem:[%s14 + $0x78] sm:$0xff]
      %6004 = vmatprep.subr.mxu0 0.0
      %6005 = vmatpush1.msra.mxu0 %v6003
      %6006 = vmatprep.subr.mxu0 0.0
      %6007 = vmatpush1.msra.mxu0 %v6002
      %6008 = vmatprep.subr.mxu0 0.0
      %6009 = vmatpush1.msra.mxu0 %v6001
      %6010 = vmatprep.subr.mxu0 0.0
      %6011 = vmatpush1.msra.mxu0 %v6000
      %6012 = vmatprep.subr.mxu0 0.0
      %6013 = vmatpush1.msra.mxu0 %v5999
      %6014 = vmatprep.subr.mxu0 0.0
      %6015 = vmatpush1.msra.mxu0 %v5998
      %6016 = vmatprep.subr.mxu0 0.0
      %6017 = vmatpush1.msra.mxu0 %v5997
      %6018 = vmatprep.subr.mxu0 0.0
      %6019 = vmatpush1.msra.mxu0 %v5996
      %6020 = vmatprep.subr.mxu0 0.0
      %6021 = vmatpush1.msra.mxu0 %v5995
      %6022 = vmatprep.subr.mxu0 0.0
      %6023 = vmatpush1.msra.mxu0 %v5994
      %6024 = vmatprep.subr.mxu0 0.0
      %6025 = vmatpush1.msra.mxu0 %v5993
      %6026 = vmatprep.subr.mxu0 0.0
      %6027 = vmatpush1.msra.mxu0 %v5992
      %6028 = vmatprep.subr.mxu0 0.0
      %6029 = vmatpush1.msra.mxu0 %v5991
      %6030 = vmatprep.subr.mxu0 0.0
      %6031 = vmatpush1.msra.mxu0 %v5990
      %6032 = vmatprep.subr.mxu0 0.0
      %6033 = vmatpush1.msra.mxu0 %v5989
      %6034 = vmatprep.subr.mxu0 0.0
      %6035 = vmatpush1.msra.mxu0 %v5988
      %6036 = vmatprep.subr.mxu0 0.0
      %6037 = vmatpush2.msra.mxu0 0.0
      %6038 = vmatprep.subr.mxu0 0.0
      %6039 = vmatpush2.msra.mxu0 0.0
      %6040 = vmatprep.subr.mxu0 0.0
      %6041 = vmatpush2.msra.mxu0 0.0
      %6042 = vmatprep.subr.mxu0 0.0
      %6043 = vmatpush2.msra.mxu0 0.0
      %6044 = vmatprep.subr.mxu0 0.0
      %6045 = vmatpush2.msra.mxu0 0.0
      %6046 = vmatprep.subr.mxu0 0.0
      %6047 = vmatpush2.msra.mxu0 0.0
      %6048 = vmatprep.subr.mxu0 0.0
      %6049 = vmatpush2.msra.mxu0 0.0
      %6050 = vmatprep.subr.mxu0 0.0
      %6051 = vmatpush2.msra.mxu0 0.0
      %6052 = vmatprep.subr.mxu0 0.0
      %6053 = vmatpush2.msra.mxu0 0.0
      %6054 = vmatprep.subr.mxu0 0.0
      %6055 = vmatpush2.msra.mxu0 0.0
      %6056 = vmatprep.subr.mxu0 0.0
      %6057 = vmatpush2.msra.mxu0 0.0
      %6058 = vmatprep.subr.mxu0 0.0
      %6059 = vmatpush2.msra.mxu0 0.0
      %6060 = vmatprep.subr.mxu0 0.0
      %6061 = vmatpush2.msra.mxu0 0.0
      %6062 = vmatprep.subr.mxu0 0.0
      %6063 = vmatpush2.msra.mxu0 0.0
      %6064 = vmatprep.subr.mxu0 0.0
      %6065 = vmatpush2.msra.mxu0 0.0
      %6066 = vmatprep.subr.mxu0 0.0
      %6067 = vmatpush2.msra.mxu0 0.0
      %6068 = vmatprep.mubr.f32.mxu0 0.0
      %6069 = vmatmul.mubr.f32.gmra.mxu0 %v5986
      %v6070 = vpop.f32.mrf.mxu0
      %v6071 = vadd.f32 0.0, %v6070
      %v6072 = vpop.f32.mrf.mxu0
      %6073 = vmatprep.mubr.f32.mxu0 0.0
      %6074 = vmatmul.mubr.f32.gmra.mxu0 %v5987
      %v6075 = vpop.f32.mrf.mxu0
      %v6076 = vadd.f32 0.0, %v6075
      %v6077 = vpop.f32.mrf.mxu0
      %6078 = vdwg.mxu0
      %v6079 = vadd.f32 %v5876, %v6071
      %v6080 = vadd.f32 %v5877, %v6076
      %v6081 = vlaneseq
      %v6082 = vshrl.u32 %v6081, 7
      %v6083 = vsub.s32 1, %v6082
      %v6084 = vrot.slane %v5871, %v6083
      %v6085 = vadd.f32 %v6079, %v6084
      %v6086 = vadd.f32 %v6080, %v6084
      %v6087 = vld [vmem:[%s22] sm:$0x3f]
      %v6088 = vsel %vm710, %v6085, 0.0
      %6089 = vadd.xlane.f32.xlu0 %v6088
      %v6090 = vpop.xlane.xlu0 %6089
      %v6091 = vsel %vm710, %v6086, 0.0
      %6092 = vadd.xlane.f32.xlu0 %v6091
      %v6093 = vpop.xlane.xlu0 %6092
      %v6094 = vmul.f32 %v6090, %v714
      %v6095 = vmul.f32 %v6093, %v714
      %v6096 = vsub.f32 %v6085, %v6094
      %v6097 = vsub.f32 %v6086, %v6095
      %v6098 = vmul.f32 %v6096, %v6096
      %v6099 = vmul.f32 %v6097, %v6097
      %v6100 = vsel %vm710, %v6098, 0.0
      %6101 = vadd.xlane.f32.xlu0 %v6100
      %v6102 = vpop.xlane.xlu0 %6101
      %v6103 = vsel %vm710, %v6099, 0.0
      %6104 = vadd.xlane.f32.xlu0 %v6103
      %v6105 = vpop.xlane.xlu0 %6104
      %v6106 = vmul.f32 %v6102, %v714
      %v6107 = vmul.f32 %v6105, %v714
      %v6108 = vadd.f32 %v6106, 1e-05
      %v6109 = vadd.f32 %v6107, 1e-05
      %v6110 = vrsqrt.pop %v6108
      %v6111 = vrsqrt.pop %v6109
      %v6112 = vmul.f32 %v6096, %v6110
      %v6113 = vmul.f32 %v6097, %v6111
      %v6114 = vlaneseq
      %v6115 = vshrl.u32 %v6114, 7
      %v6116 = vsub.s32 0, %v6115
      %v6117 = vrot.slane %v6087, %v6116
      %v6118 = vmul.f32 %v6112, %v6117
      %v6119 = vmul.f32 %v6113, %v6117
      %v6120 = vlaneseq
      %v6121 = vshrl.u32 %v6120, 7
      %v6122 = vsub.s32 1, %v6121
      %v6123 = vrot.slane %v6087, %v6122
      %v6124 = vadd.f32 %v6118, %v6123
      %v6125 = vadd.f32 %v6119, %v6123
      %v6126 = vld [vmem:[%s17] sm:$0x7]
      %v6127 = vld [vmem:[%s16] sm:$0xff]
      %v6128 = vld [vmem:[%s16 + $0x8] sm:$0xff]
      %v6129 = vld [vmem:[%s16 + $0x10] sm:$0xff]
      %v6130 = vld [vmem:[%s16 + $0x18] sm:$0xff]
      %v6131 = vlaneseq
      %v6132 = vshrl.u32 %v6131, 7
      %v6133 = vsub.s32 0, %v6132
      %v6134 = vrot.slane %v6126, %v6133
      %v6136 = vsel %vm710, %v6124, 0
      %v6139 = vsel %vm710, %v6125, 0
      %6141 = vmatprep.subr.mxu0 0.0
      %6142 = vmatpush1.msra.mxu0 0.0
      %6143 = vmatprep.subr.mxu0 0.0
      %6144 = vmatpush1.msra.mxu0 0.0
      %6145 = vmatprep.subr.mxu0 0.0
      %6146 = vmatpush1.msra.mxu0 0.0
      %6147 = vmatprep.subr.mxu0 0.0
      %6148 = vmatpush1.msra.mxu0 0.0
      %6149 = vmatprep.subr.mxu0 0.0
      %6150 = vmatpush1.msra.mxu0 0.0
      %6151 = vmatprep.subr.mxu0 0.0
      %6152 = vmatpush1.msra.mxu0 0.0
      %6153 = vmatprep.subr.mxu0 0.0
      %6154 = vmatpush1.msra.mxu0 0.0
      %6155 = vmatprep.subr.mxu0 0.0
      %6156 = vmatpush1.msra.mxu0 0.0
      %6157 = vmatprep.subr.mxu0 0.0
      %6158 = vmatpush1.msra.mxu0 0.0
      %6159 = vmatprep.subr.mxu0 0.0
      %6160 = vmatpush1.msra.mxu0 0.0
      %6161 = vmatprep.subr.mxu0 0.0
      %6162 = vmatpush1.msra.mxu0 0.0
      %6163 = vmatprep.subr.mxu0 0.0
      %6164 = vmatpush1.msra.mxu0 0.0
      %6165 = vmatprep.subr.mxu0 0.0
      %6166 = vmatpush1.msra.mxu0 %v6130
      %6167 = vmatprep.subr.mxu0 0.0
      %6168 = vmatpush1.msra.mxu0 %v6129
      %6169 = vmatprep.subr.mxu0 0.0
      %6170 = vmatpush1.msra.mxu0 %v6128
      %6171 = vmatprep.subr.mxu0 0.0
      %6172 = vmatpush1.msra.mxu0 %v6127
      %6173 = vmatprep.subr.mxu0 0.0
      %6174 = vmatpush2.msra.mxu0 0.0
      %6175 = vmatprep.subr.mxu0 0.0
      %6176 = vmatpush2.msra.mxu0 0.0
      %6177 = vmatprep.subr.mxu0 0.0
      %6178 = vmatpush2.msra.mxu0 0.0
      %6179 = vmatprep.subr.mxu0 0.0
      %6180 = vmatpush2.msra.mxu0 0.0
      %6181 = vmatprep.subr.mxu0 0.0
      %6182 = vmatpush2.msra.mxu0 0.0
      %6183 = vmatprep.subr.mxu0 0.0
      %6184 = vmatpush2.msra.mxu0 0.0
      %6185 = vmatprep.subr.mxu0 0.0
      %6186 = vmatpush2.msra.mxu0 0.0
      %6187 = vmatprep.subr.mxu0 0.0
      %6188 = vmatpush2.msra.mxu0 0.0
      %6189 = vmatprep.subr.mxu0 0.0
      %6190 = vmatpush2.msra.mxu0 0.0
      %6191 = vmatprep.subr.mxu0 0.0
      %6192 = vmatpush2.msra.mxu0 0.0
      %6193 = vmatprep.subr.mxu0 0.0
      %6194 = vmatpush2.msra.mxu0 0.0
      %6195 = vmatprep.subr.mxu0 0.0
      %6196 = vmatpush2.msra.mxu0 0.0
      %6197 = vmatprep.subr.mxu0 0.0
      %6198 = vmatpush2.msra.mxu0 0.0
      %6199 = vmatprep.subr.mxu0 0.0
      %6200 = vmatpush2.msra.mxu0 0.0
      %6201 = vmatprep.subr.mxu0 0.0
      %6202 = vmatpush2.msra.mxu0 0.0
      %6203 = vmatprep.subr.mxu0 0.0
      %6204 = vmatpush2.msra.mxu0 0.0
      %6205 = vmatprep.mubr.f32.mxu0 0.0
      %6206 = vmatmul.mubr.f32.gmra.mxu0 %v6136
      %v6207 = vpop.f32.mrf.mxu0
      %v6208 = vadd.f32 %v6134, %v6207
      %v6209 = vpop.f32.mrf.mxu0
      %6210 = vmatprep.mubr.f32.mxu0 0.0
      %6211 = vmatmul.mubr.f32.gmra.mxu0 %v6139
      %v6212 = vpop.f32.mrf.mxu0
      %v6213 = vadd.f32 %v6134, %v6212
      %v6214 = vpop.f32.mrf.mxu0
      %6215 = vdwg.mxu0
      %s6216 = scalar_lea.vmem %s16, 32
      %v6217 = vld [vmem:[%s6216] sm:$0xff]
      %v6218 = vld [vmem:[%s6216 + $0x8] sm:$0xff]
      %v6219 = vld [vmem:[%s6216 + $0x10] sm:$0xff]
      %v6220 = vld [vmem:[%s6216 + $0x18] sm:$0xff]
      %v6221 = vlaneseq
      %v6222 = vshrl.u32 %v6221, 7
      %v6223 = vsub.s32 1, %v6222
      %v6224 = vrot.slane %v6126, %v6223
      %6225 = vmatprep.subr.mxu0 0.0
      %6226 = vmatpush1.msra.mxu0 0.0
      %6227 = vmatprep.subr.mxu0 0.0
      %6228 = vmatpush1.msra.mxu0 0.0
      %6229 = vmatprep.subr.mxu0 0.0
      %6230 = vmatpush1.msra.mxu0 0.0
      %6231 = vmatprep.subr.mxu0 0.0
      %6232 = vmatpush1.msra.mxu0 0.0
      %6233 = vmatprep.subr.mxu0 0.0
      %6234 = vmatpush1.msra.mxu0 0.0
      %6235 = vmatprep.subr.mxu0 0.0
      %6236 = vmatpush1.msra.mxu0 0.0
      %6237 = vmatprep.subr.mxu0 0.0
      %6238 = vmatpush1.msra.mxu0 0.0
      %6239 = vmatprep.subr.mxu0 0.0
      %6240 = vmatpush1.msra.mxu0 0.0
      %6241 = vmatprep.subr.mxu0 0.0
      %6242 = vmatpush1.msra.mxu0 0.0
      %6243 = vmatprep.subr.mxu0 0.0
      %6244 = vmatpush1.msra.mxu0 0.0
      %6245 = vmatprep.subr.mxu0 0.0
      %6246 = vmatpush1.msra.mxu0 0.0
      %6247 = vmatprep.subr.mxu0 0.0
      %6248 = vmatpush1.msra.mxu0 0.0
      %6249 = vmatprep.subr.mxu0 0.0
      %6250 = vmatpush1.msra.mxu0 %v6220
      %6251 = vmatprep.subr.mxu0 0.0
      %6252 = vmatpush1.msra.mxu0 %v6219
      %6253 = vmatprep.subr.mxu0 0.0
      %6254 = vmatpush1.msra.mxu0 %v6218
      %6255 = vmatprep.subr.mxu0 0.0
      %6256 = vmatpush1.msra.mxu0 %v6217
      %6257 = vmatprep.subr.mxu0 0.0
      %6258 = vmatpush2.msra.mxu0 0.0
      %6259 = vmatprep.subr.mxu0 0.0
      %6260 = vmatpush2.msra.mxu0 0.0
      %6261 = vmatprep.subr.mxu0 0.0
      %6262 = vmatpush2.msra.mxu0 0.0
      %6263 = vmatprep.subr.mxu0 0.0
      %6264 = vmatpush2.msra.mxu0 0.0
      %6265 = vmatprep.subr.mxu0 0.0
      %6266 = vmatpush2.msra.mxu0 0.0
      %6267 = vmatprep.subr.mxu0 0.0
      %6268 = vmatpush2.msra.mxu0 0.0
      %6269 = vmatprep.subr.mxu0 0.0
      %6270 = vmatpush2.msra.mxu0 0.0
      %6271 = vmatprep.subr.mxu0 0.0
      %6272 = vmatpush2.msra.mxu0 0.0
      %6273 = vmatprep.subr.mxu0 0.0
      %6274 = vmatpush2.msra.mxu0 0.0
      %6275 = vmatprep.subr.mxu0 0.0
      %6276 = vmatpush2.msra.mxu0 0.0
      %6277 = vmatprep.subr.mxu0 0.0
      %6278 = vmatpush2.msra.mxu0 0.0
      %6279 = vmatprep.subr.mxu0 0.0
      %6280 = vmatpush2.msra.mxu0 0.0
      %6281 = vmatprep.subr.mxu0 0.0
      %6282 = vmatpush2.msra.mxu0 0.0
      %6283 = vmatprep.subr.mxu0 0.0
      %6284 = vmatpush2.msra.mxu0 0.0
      %6285 = vmatprep.subr.mxu0 0.0
      %6286 = vmatpush2.msra.mxu0 0.0
      %6287 = vmatprep.subr.mxu0 0.0
      %6288 = vmatpush2.msra.mxu0 0.0
      %6289 = vmatprep.mubr.f32.mxu0 0.0
      %6290 = vmatmul.mubr.f32.gmra.mxu0 %v6136
      %v6291 = vpop.f32.mrf.mxu0
      %v6292 = vadd.f32 %v6224, %v6291
      %v6293 = vpop.f32.mrf.mxu0
      %6294 = vmatprep.mubr.f32.mxu0 0.0
      %6295 = vmatmul.mubr.f32.gmra.mxu0 %v6139
      %v6296 = vpop.f32.mrf.mxu0
      %v6297 = vadd.f32 %v6224, %v6296
      %v6298 = vpop.f32.mrf.mxu0
      %6299 = vdwg.mxu0
      %s6300 = scalar_lea.vmem %s16, 64
      %v6301 = vld [vmem:[%s6300] sm:$0xff]
      %v6302 = vld [vmem:[%s6300 + $0x8] sm:$0xff]
      %v6303 = vld [vmem:[%s6300 + $0x10] sm:$0xff]
      %v6304 = vld [vmem:[%s6300 + $0x18] sm:$0xff]
      %v6305 = vlaneseq
      %v6306 = vshrl.u32 %v6305, 7
      %v6307 = vsub.s32 2, %v6306
      %v6308 = vrot.slane %v6126, %v6307
      %6309 = vmatprep.subr.mxu0 0.0
      %6310 = vmatpush1.msra.mxu0 0.0
      %6311 = vmatprep.subr.mxu0 0.0
      %6312 = vmatpush1.msra.mxu0 0.0
      %6313 = vmatprep.subr.mxu0 0.0
      %6314 = vmatpush1.msra.mxu0 0.0
      %6315 = vmatprep.subr.mxu0 0.0
      %6316 = vmatpush1.msra.mxu0 0.0
      %6317 = vmatprep.subr.mxu0 0.0
      %6318 = vmatpush1.msra.mxu0 0.0
      %6319 = vmatprep.subr.mxu0 0.0
      %6320 = vmatpush1.msra.mxu0 0.0
      %6321 = vmatprep.subr.mxu0 0.0
      %6322 = vmatpush1.msra.mxu0 0.0
      %6323 = vmatprep.subr.mxu0 0.0
      %6324 = vmatpush1.msra.mxu0 0.0
      %6325 = vmatprep.subr.mxu0 0.0
      %6326 = vmatpush1.msra.mxu0 0.0
      %6327 = vmatprep.subr.mxu0 0.0
      %6328 = vmatpush1.msra.mxu0 0.0
      %6329 = vmatprep.subr.mxu0 0.0
      %6330 = vmatpush1.msra.mxu0 0.0
      %6331 = vmatprep.subr.mxu0 0.0
      %6332 = vmatpush1.msra.mxu0 0.0
      %6333 = vmatprep.subr.mxu0 0.0
      %6334 = vmatpush1.msra.mxu0 %v6304
      %6335 = vmatprep.subr.mxu0 0.0
      %6336 = vmatpush1.msra.mxu0 %v6303
      %6337 = vmatprep.subr.mxu0 0.0
      %6338 = vmatpush1.msra.mxu0 %v6302
      %6339 = vmatprep.subr.mxu0 0.0
      %6340 = vmatpush1.msra.mxu0 %v6301
      %6341 = vmatprep.subr.mxu0 0.0
      %6342 = vmatpush2.msra.mxu0 0.0
      %6343 = vmatprep.subr.mxu0 0.0
      %6344 = vmatpush2.msra.mxu0 0.0
      %6345 = vmatprep.subr.mxu0 0.0
      %6346 = vmatpush2.msra.mxu0 0.0
      %6347 = vmatprep.subr.mxu0 0.0
      %6348 = vmatpush2.msra.mxu0 0.0
      %6349 = vmatprep.subr.mxu0 0.0
      %6350 = vmatpush2.msra.mxu0 0.0
      %6351 = vmatprep.subr.mxu0 0.0
      %6352 = vmatpush2.msra.mxu0 0.0
      %6353 = vmatprep.subr.mxu0 0.0
      %6354 = vmatpush2.msra.mxu0 0.0
      %6355 = vmatprep.subr.mxu0 0.0
      %6356 = vmatpush2.msra.mxu0 0.0
      %6357 = vmatprep.subr.mxu0 0.0
      %6358 = vmatpush2.msra.mxu0 0.0
      %6359 = vmatprep.subr.mxu0 0.0
      %6360 = vmatpush2.msra.mxu0 0.0
      %6361 = vmatprep.subr.mxu0 0.0
      %6362 = vmatpush2.msra.mxu0 0.0
      %6363 = vmatprep.subr.mxu0 0.0
      %6364 = vmatpush2.msra.mxu0 0.0
      %6365 = vmatprep.subr.mxu0 0.0
      %6366 = vmatpush2.msra.mxu0 0.0
      %6367 = vmatprep.subr.mxu0 0.0
      %6368 = vmatpush2.msra.mxu0 0.0
      %6369 = vmatprep.subr.mxu0 0.0
      %6370 = vmatpush2.msra.mxu0 0.0
      %6371 = vmatprep.subr.mxu0 0.0
      %6372 = vmatpush2.msra.mxu0 0.0
      %6373 = vmatprep.mubr.f32.mxu0 0.0
      %6374 = vmatmul.mubr.f32.gmra.mxu0 %v6136
      %v6375 = vpop.f32.mrf.mxu0
      %v6376 = vadd.f32 %v6308, %v6375
      %v6377 = vpop.f32.mrf.mxu0
      %6378 = vmatprep.mubr.f32.mxu0 0.0
      %6379 = vmatmul.mubr.f32.gmra.mxu0 %v6139
      %v6380 = vpop.f32.mrf.mxu0
      %v6381 = vadd.f32 %v6308, %v6380
      %v6382 = vpop.f32.mrf.mxu0
      %6383 = vdwg.mxu0
      %v6385 = vsel %vm975, %v6208, 0
      %v6388 = vsel %vm975, %v6213, 0
      %v6391 = vsel %vm975, %v6292, 0
      %v6394 = vsel %vm975, %v6297, 0
      %6396 = vmatprep.subr.mxu0 0.0
      %6397 = vmatpush1.xpose.msra.mxu0 0.0
      %6398 = vmatprep.subr.mxu0 0.0
      %6399 = vmatpush1.xpose.msra.mxu0 0.0
      %6400 = vmatprep.subr.mxu0 0.0
      %6401 = vmatpush1.xpose.msra.mxu0 0.0
      %6402 = vmatprep.subr.mxu0 0.0
      %6403 = vmatpush1.xpose.msra.mxu0 0.0
      %6404 = vmatprep.subr.mxu0 0.0
      %6405 = vmatpush1.xpose.msra.mxu0 0.0
      %6406 = vmatprep.subr.mxu0 0.0
      %6407 = vmatpush1.xpose.msra.mxu0 0.0
      %6408 = vmatprep.subr.mxu0 0.0
      %6409 = vmatpush1.xpose.msra.mxu0 0.0
      %6410 = vmatprep.subr.mxu0 0.0
      %6411 = vmatpush1.xpose.msra.mxu0 0.0
      %6412 = vmatprep.subr.mxu0 0.0
      %6413 = vmatpush1.xpose.msra.mxu0 0.0
      %6414 = vmatprep.subr.mxu0 0.0
      %6415 = vmatpush1.xpose.msra.mxu0 0.0
      %6416 = vmatprep.subr.mxu0 0.0
      %6417 = vmatpush1.xpose.msra.mxu0 0.0
      %6418 = vmatprep.subr.mxu0 0.0
      %6419 = vmatpush1.xpose.msra.mxu0 0.0
      %6420 = vmatprep.subr.mxu0 0.0
      %6421 = vmatpush1.xpose.msra.mxu0 0.0
      %6422 = vmatprep.subr.mxu0 0.0
      %6423 = vmatpush1.xpose.msra.mxu0 0.0
      %6424 = vmatprep.subr.mxu0 0.0
      %6425 = vmatpush1.xpose.msra.mxu0 %v6394
      %6426 = vmatprep.subr.mxu0 0.0
      %6427 = vmatpush1.xpose.msra.mxu0 %v6391
      %6428 = vmatprep.subr.mxu0 0.0
      %6429 = vmatpush2.xpose.msra.mxu0 0.0
      %6430 = vmatprep.subr.mxu0 0.0
      %6431 = vmatpush2.xpose.msra.mxu0 0.0
      %6432 = vmatprep.subr.mxu0 0.0
      %6433 = vmatpush2.xpose.msra.mxu0 0.0
      %6434 = vmatprep.subr.mxu0 0.0
      %6435 = vmatpush2.xpose.msra.mxu0 0.0
      %6436 = vmatprep.subr.mxu0 0.0
      %6437 = vmatpush2.xpose.msra.mxu0 0.0
      %6438 = vmatprep.subr.mxu0 0.0
      %6439 = vmatpush2.xpose.msra.mxu0 0.0
      %6440 = vmatprep.subr.mxu0 0.0
      %6441 = vmatpush2.xpose.msra.mxu0 0.0
      %6442 = vmatprep.subr.mxu0 0.0
      %6443 = vmatpush2.xpose.msra.mxu0 0.0
      %6444 = vmatprep.subr.mxu0 0.0
      %6445 = vmatpush2.xpose.msra.mxu0 0.0
      %6446 = vmatprep.subr.mxu0 0.0
      %6447 = vmatpush2.xpose.msra.mxu0 0.0
      %6448 = vmatprep.subr.mxu0 0.0
      %6449 = vmatpush2.xpose.msra.mxu0 0.0
      %6450 = vmatprep.subr.mxu0 0.0
      %6451 = vmatpush2.xpose.msra.mxu0 0.0
      %6452 = vmatprep.subr.mxu0 0.0
      %6453 = vmatpush2.xpose.msra.mxu0 0.0
      %6454 = vmatprep.subr.mxu0 0.0
      %6455 = vmatpush2.xpose.msra.mxu0 0.0
      %6456 = vmatprep.subr.mxu0 0.0
      %6457 = vmatpush2.xpose.msra.mxu0 0.0
      %6458 = vmatprep.subr.mxu0 0.0
      %6459 = vmatpush2.xpose.msra.mxu0 0.0
      %6460 = vmatprep.mubr.f32.mxu0 0.0
      %6461 = vmatmul.mubr.f32.gmra.mxu0 %v6385
      %v6462 = vpop.f32.mrf.mxu0
      %v6463 = vadd.f32 0.0, %v6462
      %v6464 = vpop.f32.mrf.mxu0
      %6465 = vmatprep.mubr.f32.mxu0 0.0
      %6466 = vmatmul.mubr.f32.gmra.mxu0 %v6388
      %v6467 = vpop.f32.mrf.mxu0
      %v6468 = vadd.f32 0.0, %v6467
      %v6469 = vpop.f32.mrf.mxu0
      %6470 = vdwg.mxu0
      %v6471 = vmul.f32 %v6463, 0.35355338
      %v6472 = vmul.f32 %v6468, 0.35355338
      %v6473 = vsel %vm5162, %v6471, -inf
      %6474 = vmax.xlane.f32.xlu0 %v6473
      %v6475 = vpop.xlane.xlu0 %6474
      %v6476 = vsel %vm5162, %v6472, -inf
      %6477 = vmax.xlane.f32.xlu0 %v6476
      %v6478 = vpop.xlane.xlu0 %6477
      %v6479 = vsub.f32 %v6471, %v6475
      %v6480 = vsub.f32 %v6472, %v6478
      %v6481 = vmul.f32 %v6479, 1.442695
      %v6482 = vpow.pop %v6481
      %v6483 = vmul.f32 %v6480, 1.442695
      %v6484 = vpow.pop %v6483
      %v6485 = vsel %vm5162, %v6482, 0.0
      %6486 = vadd.xlane.f32.xlu0 %v6485
      %v6487 = vpop.xlane.xlu0 %6486
      %v6488 = vsel %vm5162, %v6484, 0.0
      %6489 = vadd.xlane.f32.xlu0 %v6488
      %v6490 = vpop.xlane.xlu0 %6489
      %v6491 = vrcp.pop %v6487
      %v6492 = vmul.f32 %v6482, %v6491
      %v6493 = vrcp.pop %v6490
      %v6494 = vmul.f32 %v6484, %v6493
      %v6496 = vsel %vm5162, %v6492, 0
      %v6499 = vsel %vm5162, %v6494, 0
      %6501 = vmatprep.subr.mxu0 0.0
      %6502 = vmatpush1.msra.mxu0 0.0
      %6503 = vmatprep.subr.mxu0 0.0
      %6504 = vmatpush1.msra.mxu0 0.0
      %6505 = vmatprep.subr.mxu0 0.0
      %6506 = vmatpush1.msra.mxu0 0.0
      %6507 = vmatprep.subr.mxu0 0.0
      %6508 = vmatpush1.msra.mxu0 0.0
      %6509 = vmatprep.subr.mxu0 0.0
      %6510 = vmatpush1.msra.mxu0 0.0
      %6511 = vmatprep.subr.mxu0 0.0
      %6512 = vmatpush1.msra.mxu0 0.0
      %6513 = vmatprep.subr.mxu0 0.0
      %6514 = vmatpush1.msra.mxu0 0.0
      %6515 = vmatprep.subr.mxu0 0.0
      %6516 = vmatpush1.msra.mxu0 0.0
      %6517 = vmatprep.subr.mxu0 0.0
      %6518 = vmatpush1.msra.mxu0 0.0
      %6519 = vmatprep.subr.mxu0 0.0
      %6520 = vmatpush1.msra.mxu0 0.0
      %6521 = vmatprep.subr.mxu0 0.0
      %6522 = vmatpush1.msra.mxu0 0.0
      %6523 = vmatprep.subr.mxu0 0.0
      %6524 = vmatpush1.msra.mxu0 0.0
      %6525 = vmatprep.subr.mxu0 0.0
      %6526 = vmatpush1.msra.mxu0 0.0
      %6527 = vmatprep.subr.mxu0 0.0
      %6528 = vmatpush1.msra.mxu0 0.0
      %6529 = vmatprep.subr.mxu0 0.0
      %6530 = vmatpush1.msra.mxu0 %v6381
      %6531 = vmatprep.subr.mxu0 0.0
      %6532 = vmatpush1.msra.mxu0 %v6376
      %6533 = vmatprep.subr.mxu0 0.0
      %6534 = vmatpush2.msra.mxu0 0.0
      %6535 = vmatprep.subr.mxu0 0.0
      %6536 = vmatpush2.msra.mxu0 0.0
      %6537 = vmatprep.subr.mxu0 0.0
      %6538 = vmatpush2.msra.mxu0 0.0
      %6539 = vmatprep.subr.mxu0 0.0
      %6540 = vmatpush2.msra.mxu0 0.0
      %6541 = vmatprep.subr.mxu0 0.0
      %6542 = vmatpush2.msra.mxu0 0.0
      %6543 = vmatprep.subr.mxu0 0.0
      %6544 = vmatpush2.msra.mxu0 0.0
      %6545 = vmatprep.subr.mxu0 0.0
      %6546 = vmatpush2.msra.mxu0 0.0
      %6547 = vmatprep.subr.mxu0 0.0
      %6548 = vmatpush2.msra.mxu0 0.0
      %6549 = vmatprep.subr.mxu0 0.0
      %6550 = vmatpush2.msra.mxu0 0.0
      %6551 = vmatprep.subr.mxu0 0.0
      %6552 = vmatpush2.msra.mxu0 0.0
      %6553 = vmatprep.subr.mxu0 0.0
      %6554 = vmatpush2.msra.mxu0 0.0
      %6555 = vmatprep.subr.mxu0 0.0
      %6556 = vmatpush2.msra.mxu0 0.0
      %6557 = vmatprep.subr.mxu0 0.0
      %6558 = vmatpush2.msra.mxu0 0.0
      %6559 = vmatprep.subr.mxu0 0.0
      %6560 = vmatpush2.msra.mxu0 0.0
      %6561 = vmatprep.subr.mxu0 0.0
      %6562 = vmatpush2.msra.mxu0 0.0
      %6563 = vmatprep.subr.mxu0 0.0
      %6564 = vmatpush2.msra.mxu0 0.0
      %6565 = vmatprep.mubr.f32.mxu0 0.0
      %6566 = vmatmul.mubr.f32.gmra.mxu0 %v6496
      %v6567 = vpop.f32.mrf.mxu0
      %v6568 = vadd.f32 0.0, %v6567
      %v6569 = vpop.f32.mrf.mxu0
      %6570 = vmatprep.mubr.f32.mxu0 0.0
      %6571 = vmatmul.mubr.f32.gmra.mxu0 %v6499
      %v6572 = vpop.f32.mrf.mxu0
      %v6573 = vadd.f32 0.0, %v6572
      %v6574 = vpop.f32.mrf.mxu0
      %6575 = vdwg.mxu0
      %v6576 = vld [vmem:[%s18] sm:$0xff]
      %s6577 = scalar_lea.vmem %s17, 4
      %v6578 = vld [vmem:[%s6577] sm:$0x7]
      %s6579 = scalar_lea.vmem %s16, 96
      %v6580 = vld [vmem:[%s6579] sm:$0xff]
      %v6581 = vld [vmem:[%s6579 + $0x8] sm:$0xff]
      %v6582 = vld [vmem:[%s6579 + $0x10] sm:$0xff]
      %v6583 = vld [vmem:[%s6579 + $0x18] sm:$0xff]
      %v6584 = vlaneseq
      %v6585 = vshrl.u32 %v6584, 7
      %v6586 = vsub.s32 0, %v6585
      %v6587 = vrot.slane %v6578, %v6586
      %6588 = vmatprep.subr.mxu0 0.0
      %6589 = vmatpush1.msra.mxu0 0.0
      %6590 = vmatprep.subr.mxu0 0.0
      %6591 = vmatpush1.msra.mxu0 0.0
      %6592 = vmatprep.subr.mxu0 0.0
      %6593 = vmatpush1.msra.mxu0 0.0
      %6594 = vmatprep.subr.mxu0 0.0
      %6595 = vmatpush1.msra.mxu0 0.0
      %6596 = vmatprep.subr.mxu0 0.0
      %6597 = vmatpush1.msra.mxu0 0.0
      %6598 = vmatprep.subr.mxu0 0.0
      %6599 = vmatpush1.msra.mxu0 0.0
      %6600 = vmatprep.subr.mxu0 0.0
      %6601 = vmatpush1.msra.mxu0 0.0
      %6602 = vmatprep.subr.mxu0 0.0
      %6603 = vmatpush1.msra.mxu0 0.0
      %6604 = vmatprep.subr.mxu0 0.0
      %6605 = vmatpush1.msra.mxu0 0.0
      %6606 = vmatprep.subr.mxu0 0.0
      %6607 = vmatpush1.msra.mxu0 0.0
      %6608 = vmatprep.subr.mxu0 0.0
      %6609 = vmatpush1.msra.mxu0 0.0
      %6610 = vmatprep.subr.mxu0 0.0
      %6611 = vmatpush1.msra.mxu0 0.0
      %6612 = vmatprep.subr.mxu0 0.0
      %6613 = vmatpush1.msra.mxu0 %v6583
      %6614 = vmatprep.subr.mxu0 0.0
      %6615 = vmatpush1.msra.mxu0 %v6582
      %6616 = vmatprep.subr.mxu0 0.0
      %6617 = vmatpush1.msra.mxu0 %v6581
      %6618 = vmatprep.subr.mxu0 0.0
      %6619 = vmatpush1.msra.mxu0 %v6580
      %6620 = vmatprep.subr.mxu0 0.0
      %6621 = vmatpush2.msra.mxu0 0.0
      %6622 = vmatprep.subr.mxu0 0.0
      %6623 = vmatpush2.msra.mxu0 0.0
      %6624 = vmatprep.subr.mxu0 0.0
      %6625 = vmatpush2.msra.mxu0 0.0
      %6626 = vmatprep.subr.mxu0 0.0
      %6627 = vmatpush2.msra.mxu0 0.0
      %6628 = vmatprep.subr.mxu0 0.0
      %6629 = vmatpush2.msra.mxu0 0.0
      %6630 = vmatprep.subr.mxu0 0.0
      %6631 = vmatpush2.msra.mxu0 0.0
      %6632 = vmatprep.subr.mxu0 0.0
      %6633 = vmatpush2.msra.mxu0 0.0
      %6634 = vmatprep.subr.mxu0 0.0
      %6635 = vmatpush2.msra.mxu0 0.0
      %6636 = vmatprep.subr.mxu0 0.0
      %6637 = vmatpush2.msra.mxu0 0.0
      %6638 = vmatprep.subr.mxu0 0.0
      %6639 = vmatpush2.msra.mxu0 0.0
      %6640 = vmatprep.subr.mxu0 0.0
      %6641 = vmatpush2.msra.mxu0 0.0
      %6642 = vmatprep.subr.mxu0 0.0
      %6643 = vmatpush2.msra.mxu0 0.0
      %6644 = vmatprep.subr.mxu0 0.0
      %6645 = vmatpush2.msra.mxu0 0.0
      %6646 = vmatprep.subr.mxu0 0.0
      %6647 = vmatpush2.msra.mxu0 0.0
      %6648 = vmatprep.subr.mxu0 0.0
      %6649 = vmatpush2.msra.mxu0 0.0
      %6650 = vmatprep.subr.mxu0 0.0
      %6651 = vmatpush2.msra.mxu0 0.0
      %6652 = vmatprep.mubr.f32.mxu0 0.0
      %6653 = vmatmul.mubr.f32.gmra.mxu0 %v6136
      %v6654 = vpop.f32.mrf.mxu0
      %v6655 = vadd.f32 %v6587, %v6654
      %v6656 = vpop.f32.mrf.mxu0
      %6657 = vmatprep.mubr.f32.mxu0 0.0
      %6658 = vmatmul.mubr.f32.gmra.mxu0 %v6139
      %v6659 = vpop.f32.mrf.mxu0
      %v6660 = vadd.f32 %v6587, %v6659
      %v6661 = vpop.f32.mrf.mxu0
      %6662 = vdwg.mxu0
      %s6663 = scalar_lea.vmem %s16, 128
      %v6664 = vld [vmem:[%s6663] sm:$0xff]
      %v6665 = vld [vmem:[%s6663 + $0x8] sm:$0xff]
      %v6666 = vld [vmem:[%s6663 + $0x10] sm:$0xff]
      %v6667 = vld [vmem:[%s6663 + $0x18] sm:$0xff]
      %v6668 = vlaneseq
      %v6669 = vshrl.u32 %v6668, 7
      %v6670 = vsub.s32 1, %v6669
      %v6671 = vrot.slane %v6578, %v6670
      %6672 = vmatprep.subr.mxu0 0.0
      %6673 = vmatpush1.msra.mxu0 0.0
      %6674 = vmatprep.subr.mxu0 0.0
      %6675 = vmatpush1.msra.mxu0 0.0
      %6676 = vmatprep.subr.mxu0 0.0
      %6677 = vmatpush1.msra.mxu0 0.0
      %6678 = vmatprep.subr.mxu0 0.0
      %6679 = vmatpush1.msra.mxu0 0.0
      %6680 = vmatprep.subr.mxu0 0.0
      %6681 = vmatpush1.msra.mxu0 0.0
      %6682 = vmatprep.subr.mxu0 0.0
      %6683 = vmatpush1.msra.mxu0 0.0
      %6684 = vmatprep.subr.mxu0 0.0
      %6685 = vmatpush1.msra.mxu0 0.0
      %6686 = vmatprep.subr.mxu0 0.0
      %6687 = vmatpush1.msra.mxu0 0.0
      %6688 = vmatprep.subr.mxu0 0.0
      %6689 = vmatpush1.msra.mxu0 0.0
      %6690 = vmatprep.subr.mxu0 0.0
      %6691 = vmatpush1.msra.mxu0 0.0
      %6692 = vmatprep.subr.mxu0 0.0
      %6693 = vmatpush1.msra.mxu0 0.0
      %6694 = vmatprep.subr.mxu0 0.0
      %6695 = vmatpush1.msra.mxu0 0.0
      %6696 = vmatprep.subr.mxu0 0.0
      %6697 = vmatpush1.msra.mxu0 %v6667
      %6698 = vmatprep.subr.mxu0 0.0
      %6699 = vmatpush1.msra.mxu0 %v6666
      %6700 = vmatprep.subr.mxu0 0.0
      %6701 = vmatpush1.msra.mxu0 %v6665
      %6702 = vmatprep.subr.mxu0 0.0
      %6703 = vmatpush1.msra.mxu0 %v6664
      %6704 = vmatprep.subr.mxu0 0.0
      %6705 = vmatpush2.msra.mxu0 0.0
      %6706 = vmatprep.subr.mxu0 0.0
      %6707 = vmatpush2.msra.mxu0 0.0
      %6708 = vmatprep.subr.mxu0 0.0
      %6709 = vmatpush2.msra.mxu0 0.0
      %6710 = vmatprep.subr.mxu0 0.0
      %6711 = vmatpush2.msra.mxu0 0.0
      %6712 = vmatprep.subr.mxu0 0.0
      %6713 = vmatpush2.msra.mxu0 0.0
      %6714 = vmatprep.subr.mxu0 0.0
      %6715 = vmatpush2.msra.mxu0 0.0
      %6716 = vmatprep.subr.mxu0 0.0
      %6717 = vmatpush2.msra.mxu0 0.0
      %6718 = vmatprep.subr.mxu0 0.0
      %6719 = vmatpush2.msra.mxu0 0.0
      %6720 = vmatprep.subr.mxu0 0.0
      %6721 = vmatpush2.msra.mxu0 0.0
      %6722 = vmatprep.subr.mxu0 0.0
      %6723 = vmatpush2.msra.mxu0 0.0
      %6724 = vmatprep.subr.mxu0 0.0
      %6725 = vmatpush2.msra.mxu0 0.0
      %6726 = vmatprep.subr.mxu0 0.0
      %6727 = vmatpush2.msra.mxu0 0.0
      %6728 = vmatprep.subr.mxu0 0.0
      %6729 = vmatpush2.msra.mxu0 0.0
      %6730 = vmatprep.subr.mxu0 0.0
      %6731 = vmatpush2.msra.mxu0 0.0
      %6732 = vmatprep.subr.mxu0 0.0
      %6733 = vmatpush2.msra.mxu0 0.0
      %6734 = vmatprep.subr.mxu0 0.0
      %6735 = vmatpush2.msra.mxu0 0.0
      %6736 = vmatprep.mubr.f32.mxu0 0.0
      %6737 = vmatmul.mubr.f32.gmra.mxu0 %v6136
      %v6738 = vpop.f32.mrf.mxu0
      %v6739 = vadd.f32 %v6671, %v6738
      %v6740 = vpop.f32.mrf.mxu0
      %6741 = vmatprep.mubr.f32.mxu0 0.0
      %6742 = vmatmul.mubr.f32.gmra.mxu0 %v6139
      %v6743 = vpop.f32.mrf.mxu0
      %v6744 = vadd.f32 %v6671, %v6743
      %v6745 = vpop.f32.mrf.mxu0
      %6746 = vdwg.mxu0
      %s6747 = scalar_lea.vmem %s16, 160
      %v6748 = vld [vmem:[%s6747] sm:$0xff]
      %v6749 = vld [vmem:[%s6747 + $0x8] sm:$0xff]
      %v6750 = vld [vmem:[%s6747 + $0x10] sm:$0xff]
      %v6751 = vld [vmem:[%s6747 + $0x18] sm:$0xff]
      %v6752 = vlaneseq
      %v6753 = vshrl.u32 %v6752, 7
      %v6754 = vsub.s32 2, %v6753
      %v6755 = vrot.slane %v6578, %v6754
      %6756 = vmatprep.subr.mxu0 0.0
      %6757 = vmatpush1.msra.mxu0 0.0
      %6758 = vmatprep.subr.mxu0 0.0
      %6759 = vmatpush1.msra.mxu0 0.0
      %6760 = vmatprep.subr.mxu0 0.0
      %6761 = vmatpush1.msra.mxu0 0.0
      %6762 = vmatprep.subr.mxu0 0.0
      %6763 = vmatpush1.msra.mxu0 0.0
      %6764 = vmatprep.subr.mxu0 0.0
      %6765 = vmatpush1.msra.mxu0 0.0
      %6766 = vmatprep.subr.mxu0 0.0
      %6767 = vmatpush1.msra.mxu0 0.0
      %6768 = vmatprep.subr.mxu0 0.0
      %6769 = vmatpush1.msra.mxu0 0.0
      %6770 = vmatprep.subr.mxu0 0.0
      %6771 = vmatpush1.msra.mxu0 0.0
      %6772 = vmatprep.subr.mxu0 0.0
      %6773 = vmatpush1.msra.mxu0 0.0
      %6774 = vmatprep.subr.mxu0 0.0
      %6775 = vmatpush1.msra.mxu0 0.0
      %6776 = vmatprep.subr.mxu0 0.0
      %6777 = vmatpush1.msra.mxu0 0.0
      %6778 = vmatprep.subr.mxu0 0.0
      %6779 = vmatpush1.msra.mxu0 0.0
      %6780 = vmatprep.subr.mxu0 0.0
      %6781 = vmatpush1.msra.mxu0 %v6751
      %6782 = vmatprep.subr.mxu0 0.0
      %6783 = vmatpush1.msra.mxu0 %v6750
      %6784 = vmatprep.subr.mxu0 0.0
      %6785 = vmatpush1.msra.mxu0 %v6749
      %6786 = vmatprep.subr.mxu0 0.0
      %6787 = vmatpush1.msra.mxu0 %v6748
      %6788 = vmatprep.subr.mxu0 0.0
      %6789 = vmatpush2.msra.mxu0 0.0
      %6790 = vmatprep.subr.mxu0 0.0
      %6791 = vmatpush2.msra.mxu0 0.0
      %6792 = vmatprep.subr.mxu0 0.0
      %6793 = vmatpush2.msra.mxu0 0.0
      %6794 = vmatprep.subr.mxu0 0.0
      %6795 = vmatpush2.msra.mxu0 0.0
      %6796 = vmatprep.subr.mxu0 0.0
      %6797 = vmatpush2.msra.mxu0 0.0
      %6798 = vmatprep.subr.mxu0 0.0
      %6799 = vmatpush2.msra.mxu0 0.0
      %6800 = vmatprep.subr.mxu0 0.0
      %6801 = vmatpush2.msra.mxu0 0.0
      %6802 = vmatprep.subr.mxu0 0.0
      %6803 = vmatpush2.msra.mxu0 0.0
      %6804 = vmatprep.subr.mxu0 0.0
      %6805 = vmatpush2.msra.mxu0 0.0
      %6806 = vmatprep.subr.mxu0 0.0
      %6807 = vmatpush2.msra.mxu0 0.0
      %6808 = vmatprep.subr.mxu0 0.0
      %6809 = vmatpush2.msra.mxu0 0.0
      %6810 = vmatprep.subr.mxu0 0.0
      %6811 = vmatpush2.msra.mxu0 0.0
      %6812 = vmatprep.subr.mxu0 0.0
      %6813 = vmatpush2.msra.mxu0 0.0
      %6814 = vmatprep.subr.mxu0 0.0
      %6815 = vmatpush2.msra.mxu0 0.0
      %6816 = vmatprep.subr.mxu0 0.0
      %6817 = vmatpush2.msra.mxu0 0.0
      %6818 = vmatprep.subr.mxu0 0.0
      %6819 = vmatpush2.msra.mxu0 0.0
      %6820 = vmatprep.mubr.f32.mxu0 0.0
      %6821 = vmatmul.mubr.f32.gmra.mxu0 %v6136
      %v6822 = vpop.f32.mrf.mxu0
      %v6823 = vadd.f32 %v6755, %v6822
      %v6824 = vpop.f32.mrf.mxu0
      %6825 = vmatprep.mubr.f32.mxu0 0.0
      %6826 = vmatmul.mubr.f32.gmra.mxu0 %v6139
      %v6827 = vpop.f32.mrf.mxu0
      %v6828 = vadd.f32 %v6755, %v6827
      %v6829 = vpop.f32.mrf.mxu0
      %6830 = vdwg.mxu0
      %v6832 = vsel %vm975, %v6655, 0
      %v6835 = vsel %vm975, %v6660, 0
      %v6838 = vsel %vm975, %v6739, 0
      %v6841 = vsel %vm975, %v6744, 0
      %6843 = vmatprep.subr.mxu0 0.0
      %6844 = vmatpush1.xpose.msra.mxu0 0.0
      %6845 = vmatprep.subr.mxu0 0.0
      %6846 = vmatpush1.xpose.msra.mxu0 0.0
      %6847 = vmatprep.subr.mxu0 0.0
      %6848 = vmatpush1.xpose.msra.mxu0 0.0
      %6849 = vmatprep.subr.mxu0 0.0
      %6850 = vmatpush1.xpose.msra.mxu0 0.0
      %6851 = vmatprep.subr.mxu0 0.0
      %6852 = vmatpush1.xpose.msra.mxu0 0.0
      %6853 = vmatprep.subr.mxu0 0.0
      %6854 = vmatpush1.xpose.msra.mxu0 0.0
      %6855 = vmatprep.subr.mxu0 0.0
      %6856 = vmatpush1.xpose.msra.mxu0 0.0
      %6857 = vmatprep.subr.mxu0 0.0
      %6858 = vmatpush1.xpose.msra.mxu0 0.0
      %6859 = vmatprep.subr.mxu0 0.0
      %6860 = vmatpush1.xpose.msra.mxu0 0.0
      %6861 = vmatprep.subr.mxu0 0.0
      %6862 = vmatpush1.xpose.msra.mxu0 0.0
      %6863 = vmatprep.subr.mxu0 0.0
      %6864 = vmatpush1.xpose.msra.mxu0 0.0
      %6865 = vmatprep.subr.mxu0 0.0
      %6866 = vmatpush1.xpose.msra.mxu0 0.0
      %6867 = vmatprep.subr.mxu0 0.0
      %6868 = vmatpush1.xpose.msra.mxu0 0.0
      %6869 = vmatprep.subr.mxu0 0.0
      %6870 = vmatpush1.xpose.msra.mxu0 0.0
      %6871 = vmatprep.subr.mxu0 0.0
      %6872 = vmatpush1.xpose.msra.mxu0 %v6841
      %6873 = vmatprep.subr.mxu0 0.0
      %6874 = vmatpush1.xpose.msra.mxu0 %v6838
      %6875 = vmatprep.subr.mxu0 0.0
      %6876 = vmatpush2.xpose.msra.mxu0 0.0
      %6877 = vmatprep.subr.mxu0 0.0
      %6878 = vmatpush2.xpose.msra.mxu0 0.0
      %6879 = vmatprep.subr.mxu0 0.0
      %6880 = vmatpush2.xpose.msra.mxu0 0.0
      %6881 = vmatprep.subr.mxu0 0.0
      %6882 = vmatpush2.xpose.msra.mxu0 0.0
      %6883 = vmatprep.subr.mxu0 0.0
      %6884 = vmatpush2.xpose.msra.mxu0 0.0
      %6885 = vmatprep.subr.mxu0 0.0
      %6886 = vmatpush2.xpose.msra.mxu0 0.0
      %6887 = vmatprep.subr.mxu0 0.0
      %6888 = vmatpush2.xpose.msra.mxu0 0.0
      %6889 = vmatprep.subr.mxu0 0.0
      %6890 = vmatpush2.xpose.msra.mxu0 0.0
      %6891 = vmatprep.subr.mxu0 0.0
      %6892 = vmatpush2.xpose.msra.mxu0 0.0
      %6893 = vmatprep.subr.mxu0 0.0
      %6894 = vmatpush2.xpose.msra.mxu0 0.0
      %6895 = vmatprep.subr.mxu0 0.0
      %6896 = vmatpush2.xpose.msra.mxu0 0.0
      %6897 = vmatprep.subr.mxu0 0.0
      %6898 = vmatpush2.xpose.msra.mxu0 0.0
      %6899 = vmatprep.subr.mxu0 0.0
      %6900 = vmatpush2.xpose.msra.mxu0 0.0
      %6901 = vmatprep.subr.mxu0 0.0
      %6902 = vmatpush2.xpose.msra.mxu0 0.0
      %6903 = vmatprep.subr.mxu0 0.0
      %6904 = vmatpush2.xpose.msra.mxu0 0.0
      %6905 = vmatprep.subr.mxu0 0.0
      %6906 = vmatpush2.xpose.msra.mxu0 0.0
      %6907 = vmatprep.mubr.f32.mxu0 0.0
      %6908 = vmatmul.mubr.f32.gmra.mxu0 %v6832
      %v6909 = vpop.f32.mrf.mxu0
      %v6910 = vadd.f32 0.0, %v6909
      %v6911 = vpop.f32.mrf.mxu0
      %6912 = vmatprep.mubr.f32.mxu0 0.0
      %6913 = vmatmul.mubr.f32.gmra.mxu0 %v6835
      %v6914 = vpop.f32.mrf.mxu0
      %v6915 = vadd.f32 0.0, %v6914
      %v6916 = vpop.f32.mrf.mxu0
      %6917 = vdwg.mxu0
      %v6918 = vmul.f32 %v6910, 0.35355338
      %v6919 = vmul.f32 %v6915, 0.35355338
      %v6920 = vsel %vm5162, %v6918, -inf
      %6921 = vmax.xlane.f32.xlu0 %v6920
      %v6922 = vpop.xlane.xlu0 %6921
      %v6923 = vsel %vm5162, %v6919, -inf
      %6924 = vmax.xlane.f32.xlu0 %v6923
      %v6925 = vpop.xlane.xlu0 %6924
      %v6926 = vsub.f32 %v6918, %v6922
      %v6927 = vsub.f32 %v6919, %v6925
      %v6928 = vmul.f32 %v6926, 1.442695
      %v6929 = vpow.pop %v6928
      %v6930 = vmul.f32 %v6927, 1.442695
      %v6931 = vpow.pop %v6930
      %v6932 = vsel %vm5162, %v6929, 0.0
      %6933 = vadd.xlane.f32.xlu0 %v6932
      %v6934 = vpop.xlane.xlu0 %6933
      %v6935 = vsel %vm5162, %v6931, 0.0
      %6936 = vadd.xlane.f32.xlu0 %v6935
      %v6937 = vpop.xlane.xlu0 %6936
      %v6938 = vrcp.pop %v6934
      %v6939 = vmul.f32 %v6929, %v6938
      %v6940 = vrcp.pop %v6937
      %v6941 = vmul.f32 %v6931, %v6940
      %v6943 = vsel %vm5162, %v6939, 0
      %v6946 = vsel %vm5162, %v6941, 0
      %6948 = vmatprep.subr.mxu0 0.0
      %6949 = vmatpush1.msra.mxu0 0.0
      %6950 = vmatprep.subr.mxu0 0.0
      %6951 = vmatpush1.msra.mxu0 0.0
      %6952 = vmatprep.subr.mxu0 0.0
      %6953 = vmatpush1.msra.mxu0 0.0
      %6954 = vmatprep.subr.mxu0 0.0
      %6955 = vmatpush1.msra.mxu0 0.0
      %6956 = vmatprep.subr.mxu0 0.0
      %6957 = vmatpush1.msra.mxu0 0.0
      %6958 = vmatprep.subr.mxu0 0.0
      %6959 = vmatpush1.msra.mxu0 0.0
      %6960 = vmatprep.subr.mxu0 0.0
      %6961 = vmatpush1.msra.mxu0 0.0
      %6962 = vmatprep.subr.mxu0 0.0
      %6963 = vmatpush1.msra.mxu0 0.0
      %6964 = vmatprep.subr.mxu0 0.0
      %6965 = vmatpush1.msra.mxu0 0.0
      %6966 = vmatprep.subr.mxu0 0.0
      %6967 = vmatpush1.msra.mxu0 0.0
      %6968 = vmatprep.subr.mxu0 0.0
      %6969 = vmatpush1.msra.mxu0 0.0
      %6970 = vmatprep.subr.mxu0 0.0
      %6971 = vmatpush1.msra.mxu0 0.0
      %6972 = vmatprep.subr.mxu0 0.0
      %6973 = vmatpush1.msra.mxu0 0.0
      %6974 = vmatprep.subr.mxu0 0.0
      %6975 = vmatpush1.msra.mxu0 0.0
      %6976 = vmatprep.subr.mxu0 0.0
      %6977 = vmatpush1.msra.mxu0 %v6828
      %6978 = vmatprep.subr.mxu0 0.0
      %6979 = vmatpush1.msra.mxu0 %v6823
      %6980 = vmatprep.subr.mxu0 0.0
      %6981 = vmatpush2.msra.mxu0 0.0
      %6982 = vmatprep.subr.mxu0 0.0
      %6983 = vmatpush2.msra.mxu0 0.0
      %6984 = vmatprep.subr.mxu0 0.0
      %6985 = vmatpush2.msra.mxu0 0.0
      %6986 = vmatprep.subr.mxu0 0.0
      %6987 = vmatpush2.msra.mxu0 0.0
      %6988 = vmatprep.subr.mxu0 0.0
      %6989 = vmatpush2.msra.mxu0 0.0
      %6990 = vmatprep.subr.mxu0 0.0
      %6991 = vmatpush2.msra.mxu0 0.0
      %6992 = vmatprep.subr.mxu0 0.0
      %6993 = vmatpush2.msra.mxu0 0.0
      %6994 = vmatprep.subr.mxu0 0.0
      %6995 = vmatpush2.msra.mxu0 0.0
      %6996 = vmatprep.subr.mxu0 0.0
      %6997 = vmatpush2.msra.mxu0 0.0
      %6998 = vmatprep.subr.mxu0 0.0
      %6999 = vmatpush2.msra.mxu0 0.0
      %7000 = vmatprep.subr.mxu0 0.0
      %7001 = vmatpush2.msra.mxu0 0.0
      %7002 = vmatprep.subr.mxu0 0.0
      %7003 = vmatpush2.msra.mxu0 0.0
      %7004 = vmatprep.subr.mxu0 0.0
      %7005 = vmatpush2.msra.mxu0 0.0
      %7006 = vmatprep.subr.mxu0 0.0
      %7007 = vmatpush2.msra.mxu0 0.0
      %7008 = vmatprep.subr.mxu0 0.0
      %7009 = vmatpush2.msra.mxu0 0.0
      %7010 = vmatprep.subr.mxu0 0.0
      %7011 = vmatpush2.msra.mxu0 0.0
      %7012 = vmatprep.mubr.f32.mxu0 0.0
      %7013 = vmatmul.mubr.f32.gmra.mxu0 %v6943
      %v7014 = vpop.f32.mrf.mxu0
      %v7015 = vadd.f32 0.0, %v7014
      %v7016 = vpop.f32.mrf.mxu0
      %7017 = vmatprep.mubr.f32.mxu0 0.0
      %7018 = vmatmul.mubr.f32.gmra.mxu0 %v6946
      %v7019 = vpop.f32.mrf.mxu0
      %v7020 = vadd.f32 0.0, %v7019
      %v7021 = vpop.f32.mrf.mxu0
      %7022 = vdwg.mxu0
      %s7023 = scalar_lea.vmem %s18, 8
      %v7024 = vld [vmem:[%s7023] sm:$0xff]
      %v7026 = vsel %vm975, %v7015, 0
      %v7029 = vsel %vm975, %v7020, 0
      %7031 = vmatprep.subr.mxu0 0.0
      %7032 = vmatpush1.msra.mxu0 0.0
      %7033 = vmatprep.subr.mxu0 0.0
      %7034 = vmatpush1.msra.mxu0 0.0
      %7035 = vmatprep.subr.mxu0 0.0
      %7036 = vmatpush1.msra.mxu0 0.0
      %7037 = vmatprep.subr.mxu0 0.0
      %7038 = vmatpush1.msra.mxu0 0.0
      %7039 = vmatprep.subr.mxu0 0.0
      %7040 = vmatpush1.msra.mxu0 0.0
      %7041 = vmatprep.subr.mxu0 0.0
      %7042 = vmatpush1.msra.mxu0 0.0
      %7043 = vmatprep.subr.mxu0 0.0
      %7044 = vmatpush1.msra.mxu0 0.0
      %7045 = vmatprep.subr.mxu0 0.0
      %7046 = vmatpush1.msra.mxu0 0.0
      %7047 = vmatprep.subr.mxu0 0.0
      %7048 = vmatpush1.msra.mxu0 0.0
      %7049 = vmatprep.subr.mxu0 0.0
      %7050 = vmatpush1.msra.mxu0 0.0
      %7051 = vmatprep.subr.mxu0 0.0
      %7052 = vmatpush1.msra.mxu0 0.0
      %7053 = vmatprep.subr.mxu0 0.0
      %7054 = vmatpush1.msra.mxu0 0.0
      %7055 = vmatprep.subr.mxu0 0.0
      %7056 = vmatpush1.msra.mxu0 0.0
      %7057 = vmatprep.subr.mxu0 0.0
      %7058 = vmatpush1.msra.mxu0 0.0
      %7059 = vmatprep.subr.mxu0 0.0
      %7060 = vmatpush1.msra.mxu0 0.0
      %7061 = vmatprep.subr.mxu0 0.0
      %7062 = vmatpush1.msra.mxu0 %v7024
      %7063 = vmatprep.subr.mxu0 0.0
      %7064 = vmatpush2.msra.mxu0 0.0
      %7065 = vmatprep.subr.mxu0 0.0
      %7066 = vmatpush2.msra.mxu0 0.0
      %7067 = vmatprep.subr.mxu0 0.0
      %7068 = vmatpush2.msra.mxu0 0.0
      %7069 = vmatprep.subr.mxu0 0.0
      %7070 = vmatpush2.msra.mxu0 0.0
      %7071 = vmatprep.subr.mxu0 0.0
      %7072 = vmatpush2.msra.mxu0 0.0
      %7073 = vmatprep.subr.mxu0 0.0
      %7074 = vmatpush2.msra.mxu0 0.0
      %7075 = vmatprep.subr.mxu0 0.0
      %7076 = vmatpush2.msra.mxu0 0.0
      %7077 = vmatprep.subr.mxu0 0.0
      %7078 = vmatpush2.msra.mxu0 0.0
      %7079 = vmatprep.subr.mxu0 0.0
      %7080 = vmatpush2.msra.mxu0 0.0
      %7081 = vmatprep.subr.mxu0 0.0
      %7082 = vmatpush2.msra.mxu0 0.0
      %7083 = vmatprep.subr.mxu0 0.0
      %7084 = vmatpush2.msra.mxu0 0.0
      %7085 = vmatprep.subr.mxu0 0.0
      %7086 = vmatpush2.msra.mxu0 0.0
      %7087 = vmatprep.subr.mxu0 0.0
      %7088 = vmatpush2.msra.mxu0 0.0
      %7089 = vmatprep.subr.mxu0 0.0
      %7090 = vmatpush2.msra.mxu0 0.0
      %7091 = vmatprep.subr.mxu0 0.0
      %7092 = vmatpush2.msra.mxu0 0.0
      %7093 = vmatprep.subr.mxu0 0.0
      %7094 = vmatpush2.msra.mxu0 0.0
      %7095 = vmatprep.mubr.f32.mxu0 0.0
      %7096 = vmatmul.mubr.f32.gmra.mxu0 %v7026
      %v7097 = vpop.f32.mrf.mxu0
      %v7098 = vadd.f32 0.0, %v7097
      %v7099 = vpop.f32.mrf.mxu0
      %7100 = vmatprep.mubr.f32.mxu0 0.0
      %7101 = vmatmul.mubr.f32.gmra.mxu0 %v7029
      %v7102 = vpop.f32.mrf.mxu0
      %v7103 = vadd.f32 0.0, %v7102
      %v7104 = vpop.f32.mrf.mxu0
      %7105 = vdwg.mxu0
      %v7107 = vsel %vm975, %v6568, 0
      %v7110 = vsel %vm975, %v6573, 0
      %7112 = vmatprep.subr.mxu0 0.0
      %7113 = vmatpush1.msra.mxu0 0.0
      %7114 = vmatprep.subr.mxu0 0.0
      %7115 = vmatpush1.msra.mxu0 0.0
      %7116 = vmatprep.subr.mxu0 0.0
      %7117 = vmatpush1.msra.mxu0 0.0
      %7118 = vmatprep.subr.mxu0 0.0
      %7119 = vmatpush1.msra.mxu0 0.0
      %7120 = vmatprep.subr.mxu0 0.0
      %7121 = vmatpush1.msra.mxu0 0.0
      %7122 = vmatprep.subr.mxu0 0.0
      %7123 = vmatpush1.msra.mxu0 0.0
      %7124 = vmatprep.subr.mxu0 0.0
      %7125 = vmatpush1.msra.mxu0 0.0
      %7126 = vmatprep.subr.mxu0 0.0
      %7127 = vmatpush1.msra.mxu0 0.0
      %7128 = vmatprep.subr.mxu0 0.0
      %7129 = vmatpush1.msra.mxu0 0.0
      %7130 = vmatprep.subr.mxu0 0.0
      %7131 = vmatpush1.msra.mxu0 0.0
      %7132 = vmatprep.subr.mxu0 0.0
      %7133 = vmatpush1.msra.mxu0 0.0
      %7134 = vmatprep.subr.mxu0 0.0
      %7135 = vmatpush1.msra.mxu0 0.0
      %7136 = vmatprep.subr.mxu0 0.0
      %7137 = vmatpush1.msra.mxu0 0.0
      %7138 = vmatprep.subr.mxu0 0.0
      %7139 = vmatpush1.msra.mxu0 0.0
      %7140 = vmatprep.subr.mxu0 0.0
      %7141 = vmatpush1.msra.mxu0 0.0
      %7142 = vmatprep.subr.mxu0 0.0
      %7143 = vmatpush1.msra.mxu0 %v6576
      %7144 = vmatprep.subr.mxu0 0.0
      %7145 = vmatpush2.msra.mxu0 0.0
      %7146 = vmatprep.subr.mxu0 0.0
      %7147 = vmatpush2.msra.mxu0 0.0
      %7148 = vmatprep.subr.mxu0 0.0
      %7149 = vmatpush2.msra.mxu0 0.0
      %7150 = vmatprep.subr.mxu0 0.0
      %7151 = vmatpush2.msra.mxu0 0.0
      %7152 = vmatprep.subr.mxu0 0.0
      %7153 = vmatpush2.msra.mxu0 0.0
      %7154 = vmatprep.subr.mxu0 0.0
      %7155 = vmatpush2.msra.mxu0 0.0
      %7156 = vmatprep.subr.mxu0 0.0
      %7157 = vmatpush2.msra.mxu0 0.0
      %7158 = vmatprep.subr.mxu0 0.0
      %7159 = vmatpush2.msra.mxu0 0.0
      %7160 = vmatprep.subr.mxu0 0.0
      %7161 = vmatpush2.msra.mxu0 0.0
      %7162 = vmatprep.subr.mxu0 0.0
      %7163 = vmatpush2.msra.mxu0 0.0
      %7164 = vmatprep.subr.mxu0 0.0
      %7165 = vmatpush2.msra.mxu0 0.0
      %7166 = vmatprep.subr.mxu0 0.0
      %7167 = vmatpush2.msra.mxu0 0.0
      %7168 = vmatprep.subr.mxu0 0.0
      %7169 = vmatpush2.msra.mxu0 0.0
      %7170 = vmatprep.subr.mxu0 0.0
      %7171 = vmatpush2.msra.mxu0 0.0
      %7172 = vmatprep.subr.mxu0 0.0
      %7173 = vmatpush2.msra.mxu0 0.0
      %7174 = vmatprep.subr.mxu0 0.0
      %7175 = vmatpush2.msra.mxu0 0.0
      %7176 = vmatprep.mubr.f32.mxu0 0.0
      %7177 = vmatmul.mubr.f32.gmra.mxu0 %v7107
      %v7178 = vpop.f32.mrf.mxu0
      %v7179 = vadd.f32 %v7098, %v7178
      %v7180 = vpop.f32.mrf.mxu0
      %7181 = vmatprep.mubr.f32.mxu0 0.0
      %7182 = vmatmul.mubr.f32.gmra.mxu0 %v7110
      %v7183 = vpop.f32.mrf.mxu0
      %v7184 = vadd.f32 %v7103, %v7183
      %v7185 = vpop.f32.mrf.mxu0
      %7186 = vdwg.mxu0
      %s7187 = scalar_lea.vmem %s17, 8
      %v7188 = vld [vmem:[%s7187] sm:$0x7]
      %s7189 = scalar_lea.vmem %s16, 192
      %v7190 = vld [vmem:[%s7189] sm:$0xff]
      %v7191 = vld [vmem:[%s7189 + $0x8] sm:$0xff]
      %v7192 = vld [vmem:[%s7189 + $0x10] sm:$0xff]
      %v7193 = vld [vmem:[%s7189 + $0x18] sm:$0xff]
      %v7194 = vlaneseq
      %v7195 = vshrl.u32 %v7194, 7
      %v7196 = vsub.s32 0, %v7195
      %v7197 = vrot.slane %v7188, %v7196
      %7198 = vmatprep.subr.mxu0 0.0
      %7199 = vmatpush1.msra.mxu0 0.0
      %7200 = vmatprep.subr.mxu0 0.0
      %7201 = vmatpush1.msra.mxu0 0.0
      %7202 = vmatprep.subr.mxu0 0.0
      %7203 = vmatpush1.msra.mxu0 0.0
      %7204 = vmatprep.subr.mxu0 0.0
      %7205 = vmatpush1.msra.mxu0 0.0
      %7206 = vmatprep.subr.mxu0 0.0
      %7207 = vmatpush1.msra.mxu0 0.0
      %7208 = vmatprep.subr.mxu0 0.0
      %7209 = vmatpush1.msra.mxu0 0.0
      %7210 = vmatprep.subr.mxu0 0.0
      %7211 = vmatpush1.msra.mxu0 0.0
      %7212 = vmatprep.subr.mxu0 0.0
      %7213 = vmatpush1.msra.mxu0 0.0
      %7214 = vmatprep.subr.mxu0 0.0
      %7215 = vmatpush1.msra.mxu0 0.0
      %7216 = vmatprep.subr.mxu0 0.0
      %7217 = vmatpush1.msra.mxu0 0.0
      %7218 = vmatprep.subr.mxu0 0.0
      %7219 = vmatpush1.msra.mxu0 0.0
      %7220 = vmatprep.subr.mxu0 0.0
      %7221 = vmatpush1.msra.mxu0 0.0
      %7222 = vmatprep.subr.mxu0 0.0
      %7223 = vmatpush1.msra.mxu0 %v7193
      %7224 = vmatprep.subr.mxu0 0.0
      %7225 = vmatpush1.msra.mxu0 %v7192
      %7226 = vmatprep.subr.mxu0 0.0
      %7227 = vmatpush1.msra.mxu0 %v7191
      %7228 = vmatprep.subr.mxu0 0.0
      %7229 = vmatpush1.msra.mxu0 %v7190
      %7230 = vmatprep.subr.mxu0 0.0
      %7231 = vmatpush2.msra.mxu0 0.0
      %7232 = vmatprep.subr.mxu0 0.0
      %7233 = vmatpush2.msra.mxu0 0.0
      %7234 = vmatprep.subr.mxu0 0.0
      %7235 = vmatpush2.msra.mxu0 0.0
      %7236 = vmatprep.subr.mxu0 0.0
      %7237 = vmatpush2.msra.mxu0 0.0
      %7238 = vmatprep.subr.mxu0 0.0
      %7239 = vmatpush2.msra.mxu0 0.0
      %7240 = vmatprep.subr.mxu0 0.0
      %7241 = vmatpush2.msra.mxu0 0.0
      %7242 = vmatprep.subr.mxu0 0.0
      %7243 = vmatpush2.msra.mxu0 0.0
      %7244 = vmatprep.subr.mxu0 0.0
      %7245 = vmatpush2.msra.mxu0 0.0
      %7246 = vmatprep.subr.mxu0 0.0
      %7247 = vmatpush2.msra.mxu0 0.0
      %7248 = vmatprep.subr.mxu0 0.0
      %7249 = vmatpush2.msra.mxu0 0.0
      %7250 = vmatprep.subr.mxu0 0.0
      %7251 = vmatpush2.msra.mxu0 0.0
      %7252 = vmatprep.subr.mxu0 0.0
      %7253 = vmatpush2.msra.mxu0 0.0
      %7254 = vmatprep.subr.mxu0 0.0
      %7255 = vmatpush2.msra.mxu0 0.0
      %7256 = vmatprep.subr.mxu0 0.0
      %7257 = vmatpush2.msra.mxu0 0.0
      %7258 = vmatprep.subr.mxu0 0.0
      %7259 = vmatpush2.msra.mxu0 0.0
      %7260 = vmatprep.subr.mxu0 0.0
      %7261 = vmatpush2.msra.mxu0 0.0
      %7262 = vmatprep.mubr.f32.mxu0 0.0
      %7263 = vmatmul.mubr.f32.gmra.mxu0 %v6136
      %v7264 = vpop.f32.mrf.mxu0
      %v7265 = vadd.f32 %v7197, %v7264
      %v7266 = vpop.f32.mrf.mxu0
      %7267 = vmatprep.mubr.f32.mxu0 0.0
      %7268 = vmatmul.mubr.f32.gmra.mxu0 %v6139
      %v7269 = vpop.f32.mrf.mxu0
      %v7270 = vadd.f32 %v7197, %v7269
      %v7271 = vpop.f32.mrf.mxu0
      %7272 = vdwg.mxu0
      %s7273 = scalar_lea.vmem %s16, 224
      %v7274 = vld [vmem:[%s7273] sm:$0xff]
      %v7275 = vld [vmem:[%s7273 + $0x8] sm:$0xff]
      %v7276 = vld [vmem:[%s7273 + $0x10] sm:$0xff]
      %v7277 = vld [vmem:[%s7273 + $0x18] sm:$0xff]
      %v7278 = vlaneseq
      %v7279 = vshrl.u32 %v7278, 7
      %v7280 = vsub.s32 1, %v7279
      %v7281 = vrot.slane %v7188, %v7280
      %7282 = vmatprep.subr.mxu0 0.0
      %7283 = vmatpush1.msra.mxu0 0.0
      %7284 = vmatprep.subr.mxu0 0.0
      %7285 = vmatpush1.msra.mxu0 0.0
      %7286 = vmatprep.subr.mxu0 0.0
      %7287 = vmatpush1.msra.mxu0 0.0
      %7288 = vmatprep.subr.mxu0 0.0
      %7289 = vmatpush1.msra.mxu0 0.0
      %7290 = vmatprep.subr.mxu0 0.0
      %7291 = vmatpush1.msra.mxu0 0.0
      %7292 = vmatprep.subr.mxu0 0.0
      %7293 = vmatpush1.msra.mxu0 0.0
      %7294 = vmatprep.subr.mxu0 0.0
      %7295 = vmatpush1.msra.mxu0 0.0
      %7296 = vmatprep.subr.mxu0 0.0
      %7297 = vmatpush1.msra.mxu0 0.0
      %7298 = vmatprep.subr.mxu0 0.0
      %7299 = vmatpush1.msra.mxu0 0.0
      %7300 = vmatprep.subr.mxu0 0.0
      %7301 = vmatpush1.msra.mxu0 0.0
      %7302 = vmatprep.subr.mxu0 0.0
      %7303 = vmatpush1.msra.mxu0 0.0
      %7304 = vmatprep.subr.mxu0 0.0
      %7305 = vmatpush1.msra.mxu0 0.0
      %7306 = vmatprep.subr.mxu0 0.0
      %7307 = vmatpush1.msra.mxu0 %v7277
      %7308 = vmatprep.subr.mxu0 0.0
      %7309 = vmatpush1.msra.mxu0 %v7276
      %7310 = vmatprep.subr.mxu0 0.0
      %7311 = vmatpush1.msra.mxu0 %v7275
      %7312 = vmatprep.subr.mxu0 0.0
      %7313 = vmatpush1.msra.mxu0 %v7274
      %7314 = vmatprep.subr.mxu0 0.0
      %7315 = vmatpush2.msra.mxu0 0.0
      %7316 = vmatprep.subr.mxu0 0.0
      %7317 = vmatpush2.msra.mxu0 0.0
      %7318 = vmatprep.subr.mxu0 0.0
      %7319 = vmatpush2.msra.mxu0 0.0
      %7320 = vmatprep.subr.mxu0 0.0
      %7321 = vmatpush2.msra.mxu0 0.0
      %7322 = vmatprep.subr.mxu0 0.0
      %7323 = vmatpush2.msra.mxu0 0.0
      %7324 = vmatprep.subr.mxu0 0.0
      %7325 = vmatpush2.msra.mxu0 0.0
      %7326 = vmatprep.subr.mxu0 0.0
      %7327 = vmatpush2.msra.mxu0 0.0
      %7328 = vmatprep.subr.mxu0 0.0
      %7329 = vmatpush2.msra.mxu0 0.0
      %7330 = vmatprep.subr.mxu0 0.0
      %7331 = vmatpush2.msra.mxu0 0.0
      %7332 = vmatprep.subr.mxu0 0.0
      %7333 = vmatpush2.msra.mxu0 0.0
      %7334 = vmatprep.subr.mxu0 0.0
      %7335 = vmatpush2.msra.mxu0 0.0
      %7336 = vmatprep.subr.mxu0 0.0
      %7337 = vmatpush2.msra.mxu0 0.0
      %7338 = vmatprep.subr.mxu0 0.0
      %7339 = vmatpush2.msra.mxu0 0.0
      %7340 = vmatprep.subr.mxu0 0.0
      %7341 = vmatpush2.msra.mxu0 0.0
      %7342 = vmatprep.subr.mxu0 0.0
      %7343 = vmatpush2.msra.mxu0 0.0
      %7344 = vmatprep.subr.mxu0 0.0
      %7345 = vmatpush2.msra.mxu0 0.0
      %7346 = vmatprep.mubr.f32.mxu0 0.0
      %7347 = vmatmul.mubr.f32.gmra.mxu0 %v6136
      %v7348 = vpop.f32.mrf.mxu0
      %v7349 = vadd.f32 %v7281, %v7348
      %v7350 = vpop.f32.mrf.mxu0
      %7351 = vmatprep.mubr.f32.mxu0 0.0
      %7352 = vmatmul.mubr.f32.gmra.mxu0 %v6139
      %v7353 = vpop.f32.mrf.mxu0
      %v7354 = vadd.f32 %v7281, %v7353
      %v7355 = vpop.f32.mrf.mxu0
      %7356 = vdwg.mxu0
      %s7357 = scalar_lea.vmem %s16, 256
      %v7358 = vld [vmem:[%s7357] sm:$0xff]
      %v7359 = vld [vmem:[%s7357 + $0x8] sm:$0xff]
      %v7360 = vld [vmem:[%s7357 + $0x10] sm:$0xff]
      %v7361 = vld [vmem:[%s7357 + $0x18] sm:$0xff]
      %v7362 = vlaneseq
      %v7363 = vshrl.u32 %v7362, 7
      %v7364 = vsub.s32 2, %v7363
      %v7365 = vrot.slane %v7188, %v7364
      %7366 = vmatprep.subr.mxu0 0.0
      %7367 = vmatpush1.msra.mxu0 0.0
      %7368 = vmatprep.subr.mxu0 0.0
      %7369 = vmatpush1.msra.mxu0 0.0
      %7370 = vmatprep.subr.mxu0 0.0
      %7371 = vmatpush1.msra.mxu0 0.0
      %7372 = vmatprep.subr.mxu0 0.0
      %7373 = vmatpush1.msra.mxu0 0.0
      %7374 = vmatprep.subr.mxu0 0.0
      %7375 = vmatpush1.msra.mxu0 0.0
      %7376 = vmatprep.subr.mxu0 0.0
      %7377 = vmatpush1.msra.mxu0 0.0
      %7378 = vmatprep.subr.mxu0 0.0
      %7379 = vmatpush1.msra.mxu0 0.0
      %7380 = vmatprep.subr.mxu0 0.0
      %7381 = vmatpush1.msra.mxu0 0.0
      %7382 = vmatprep.subr.mxu0 0.0
      %7383 = vmatpush1.msra.mxu0 0.0
      %7384 = vmatprep.subr.mxu0 0.0
      %7385 = vmatpush1.msra.mxu0 0.0
      %7386 = vmatprep.subr.mxu0 0.0
      %7387 = vmatpush1.msra.mxu0 0.0
      %7388 = vmatprep.subr.mxu0 0.0
      %7389 = vmatpush1.msra.mxu0 0.0
      %7390 = vmatprep.subr.mxu0 0.0
      %7391 = vmatpush1.msra.mxu0 %v7361
      %7392 = vmatprep.subr.mxu0 0.0
      %7393 = vmatpush1.msra.mxu0 %v7360
      %7394 = vmatprep.subr.mxu0 0.0
      %7395 = vmatpush1.msra.mxu0 %v7359
      %7396 = vmatprep.subr.mxu0 0.0
      %7397 = vmatpush1.msra.mxu0 %v7358
      %7398 = vmatprep.subr.mxu0 0.0
      %7399 = vmatpush2.msra.mxu0 0.0
      %7400 = vmatprep.subr.mxu0 0.0
      %7401 = vmatpush2.msra.mxu0 0.0
      %7402 = vmatprep.subr.mxu0 0.0
      %7403 = vmatpush2.msra.mxu0 0.0
      %7404 = vmatprep.subr.mxu0 0.0
      %7405 = vmatpush2.msra.mxu0 0.0
      %7406 = vmatprep.subr.mxu0 0.0
      %7407 = vmatpush2.msra.mxu0 0.0
      %7408 = vmatprep.subr.mxu0 0.0
      %7409 = vmatpush2.msra.mxu0 0.0
      %7410 = vmatprep.subr.mxu0 0.0
      %7411 = vmatpush2.msra.mxu0 0.0
      %7412 = vmatprep.subr.mxu0 0.0
      %7413 = vmatpush2.msra.mxu0 0.0
      %7414 = vmatprep.subr.mxu0 0.0
      %7415 = vmatpush2.msra.mxu0 0.0
      %7416 = vmatprep.subr.mxu0 0.0
      %7417 = vmatpush2.msra.mxu0 0.0
      %7418 = vmatprep.subr.mxu0 0.0
      %7419 = vmatpush2.msra.mxu0 0.0
      %7420 = vmatprep.subr.mxu0 0.0
      %7421 = vmatpush2.msra.mxu0 0.0
      %7422 = vmatprep.subr.mxu0 0.0
      %7423 = vmatpush2.msra.mxu0 0.0
      %7424 = vmatprep.subr.mxu0 0.0
      %7425 = vmatpush2.msra.mxu0 0.0
      %7426 = vmatprep.subr.mxu0 0.0
      %7427 = vmatpush2.msra.mxu0 0.0
      %7428 = vmatprep.subr.mxu0 0.0
      %7429 = vmatpush2.msra.mxu0 0.0
      %7430 = vmatprep.mubr.f32.mxu0 0.0
      %7431 = vmatmul.mubr.f32.gmra.mxu0 %v6136
      %v7432 = vpop.f32.mrf.mxu0
      %v7433 = vadd.f32 %v7365, %v7432
      %v7434 = vpop.f32.mrf.mxu0
      %7435 = vmatprep.mubr.f32.mxu0 0.0
      %7436 = vmatmul.mubr.f32.gmra.mxu0 %v6139
      %v7437 = vpop.f32.mrf.mxu0
      %v7438 = vadd.f32 %v7365, %v7437
      %v7439 = vpop.f32.mrf.mxu0
      %7440 = vdwg.mxu0
      %v7442 = vsel %vm975, %v7265, 0
      %v7445 = vsel %vm975, %v7270, 0
      %v7448 = vsel %vm975, %v7349, 0
      %v7451 = vsel %vm975, %v7354, 0
      %7453 = vmatprep.subr.mxu0 0.0
      %7454 = vmatpush1.xpose.msra.mxu0 0.0
      %7455 = vmatprep.subr.mxu0 0.0
      %7456 = vmatpush1.xpose.msra.mxu0 0.0
      %7457 = vmatprep.subr.mxu0 0.0
      %7458 = vmatpush1.xpose.msra.mxu0 0.0
      %7459 = vmatprep.subr.mxu0 0.0
      %7460 = vmatpush1.xpose.msra.mxu0 0.0
      %7461 = vmatprep.subr.mxu0 0.0
      %7462 = vmatpush1.xpose.msra.mxu0 0.0
      %7463 = vmatprep.subr.mxu0 0.0
      %7464 = vmatpush1.xpose.msra.mxu0 0.0
      %7465 = vmatprep.subr.mxu0 0.0
      %7466 = vmatpush1.xpose.msra.mxu0 0.0
      %7467 = vmatprep.subr.mxu0 0.0
      %7468 = vmatpush1.xpose.msra.mxu0 0.0
      %7469 = vmatprep.subr.mxu0 0.0
      %7470 = vmatpush1.xpose.msra.mxu0 0.0
      %7471 = vmatprep.subr.mxu0 0.0
      %7472 = vmatpush1.xpose.msra.mxu0 0.0
      %7473 = vmatprep.subr.mxu0 0.0
      %7474 = vmatpush1.xpose.msra.mxu0 0.0
      %7475 = vmatprep.subr.mxu0 0.0
      %7476 = vmatpush1.xpose.msra.mxu0 0.0
      %7477 = vmatprep.subr.mxu0 0.0
      %7478 = vmatpush1.xpose.msra.mxu0 0.0
      %7479 = vmatprep.subr.mxu0 0.0
      %7480 = vmatpush1.xpose.msra.mxu0 0.0
      %7481 = vmatprep.subr.mxu0 0.0
      %7482 = vmatpush1.xpose.msra.mxu0 %v7451
      %7483 = vmatprep.subr.mxu0 0.0
      %7484 = vmatpush1.xpose.msra.mxu0 %v7448
      %7485 = vmatprep.subr.mxu0 0.0
      %7486 = vmatpush2.xpose.msra.mxu0 0.0
      %7487 = vmatprep.subr.mxu0 0.0
      %7488 = vmatpush2.xpose.msra.mxu0 0.0
      %7489 = vmatprep.subr.mxu0 0.0
      %7490 = vmatpush2.xpose.msra.mxu0 0.0
      %7491 = vmatprep.subr.mxu0 0.0
      %7492 = vmatpush2.xpose.msra.mxu0 0.0
      %7493 = vmatprep.subr.mxu0 0.0
      %7494 = vmatpush2.xpose.msra.mxu0 0.0
      %7495 = vmatprep.subr.mxu0 0.0
      %7496 = vmatpush2.xpose.msra.mxu0 0.0
      %7497 = vmatprep.subr.mxu0 0.0
      %7498 = vmatpush2.xpose.msra.mxu0 0.0
      %7499 = vmatprep.subr.mxu0 0.0
      %7500 = vmatpush2.xpose.msra.mxu0 0.0
      %7501 = vmatprep.subr.mxu0 0.0
      %7502 = vmatpush2.xpose.msra.mxu0 0.0
      %7503 = vmatprep.subr.mxu0 0.0
      %7504 = vmatpush2.xpose.msra.mxu0 0.0
      %7505 = vmatprep.subr.mxu0 0.0
      %7506 = vmatpush2.xpose.msra.mxu0 0.0
      %7507 = vmatprep.subr.mxu0 0.0
      %7508 = vmatpush2.xpose.msra.mxu0 0.0
      %7509 = vmatprep.subr.mxu0 0.0
      %7510 = vmatpush2.xpose.msra.mxu0 0.0
      %7511 = vmatprep.subr.mxu0 0.0
      %7512 = vmatpush2.xpose.msra.mxu0 0.0
      %7513 = vmatprep.subr.mxu0 0.0
      %7514 = vmatpush2.xpose.msra.mxu0 0.0
      %7515 = vmatprep.subr.mxu0 0.0
      %7516 = vmatpush2.xpose.msra.mxu0 0.0
      %7517 = vmatprep.mubr.f32.mxu0 0.0
      %7518 = vmatmul.mubr.f32.gmra.mxu0 %v7442
      %v7519 = vpop.f32.mrf.mxu0
      %v7520 = vadd.f32 0.0, %v7519
      %v7521 = vpop.f32.mrf.mxu0
      %7522 = vmatprep.mubr.f32.mxu0 0.0
      %7523 = vmatmul.mubr.f32.gmra.mxu0 %v7445
      %v7524 = vpop.f32.mrf.mxu0
      %v7525 = vadd.f32 0.0, %v7524
      %v7526 = vpop.f32.mrf.mxu0
      %7527 = vdwg.mxu0
      %v7528 = vmul.f32 %v7520, 0.35355338
      %v7529 = vmul.f32 %v7525, 0.35355338
      %v7530 = vsel %vm5162, %v7528, -inf
      %7531 = vmax.xlane.f32.xlu0 %v7530
      %v7532 = vpop.xlane.xlu0 %7531
      %v7533 = vsel %vm5162, %v7529, -inf
      %7534 = vmax.xlane.f32.xlu0 %v7533
      %v7535 = vpop.xlane.xlu0 %7534
      %v7536 = vsub.f32 %v7528, %v7532
      %v7537 = vsub.f32 %v7529, %v7535
      %v7538 = vmul.f32 %v7536, 1.442695
      %v7539 = vpow.pop %v7538
      %v7540 = vmul.f32 %v7537, 1.442695
      %v7541 = vpow.pop %v7540
      %v7542 = vsel %vm5162, %v7539, 0.0
      %7543 = vadd.xlane.f32.xlu0 %v7542
      %v7544 = vpop.xlane.xlu0 %7543
      %v7545 = vsel %vm5162, %v7541, 0.0
      %7546 = vadd.xlane.f32.xlu0 %v7545
      %v7547 = vpop.xlane.xlu0 %7546
      %v7548 = vrcp.pop %v7544
      %v7549 = vmul.f32 %v7539, %v7548
      %v7550 = vrcp.pop %v7547
      %v7551 = vmul.f32 %v7541, %v7550
      %v7553 = vsel %vm5162, %v7549, 0
      %v7556 = vsel %vm5162, %v7551, 0
      %7558 = vmatprep.subr.mxu0 0.0
      %7559 = vmatpush1.msra.mxu0 0.0
      %7560 = vmatprep.subr.mxu0 0.0
      %7561 = vmatpush1.msra.mxu0 0.0
      %7562 = vmatprep.subr.mxu0 0.0
      %7563 = vmatpush1.msra.mxu0 0.0
      %7564 = vmatprep.subr.mxu0 0.0
      %7565 = vmatpush1.msra.mxu0 0.0
      %7566 = vmatprep.subr.mxu0 0.0
      %7567 = vmatpush1.msra.mxu0 0.0
      %7568 = vmatprep.subr.mxu0 0.0
      %7569 = vmatpush1.msra.mxu0 0.0
      %7570 = vmatprep.subr.mxu0 0.0
      %7571 = vmatpush1.msra.mxu0 0.0
      %7572 = vmatprep.subr.mxu0 0.0
      %7573 = vmatpush1.msra.mxu0 0.0
      %7574 = vmatprep.subr.mxu0 0.0
      %7575 = vmatpush1.msra.mxu0 0.0
      %7576 = vmatprep.subr.mxu0 0.0
      %7577 = vmatpush1.msra.mxu0 0.0
      %7578 = vmatprep.subr.mxu0 0.0
      %7579 = vmatpush1.msra.mxu0 0.0
      %7580 = vmatprep.subr.mxu0 0.0
      %7581 = vmatpush1.msra.mxu0 0.0
      %7582 = vmatprep.subr.mxu0 0.0
      %7583 = vmatpush1.msra.mxu0 0.0
      %7584 = vmatprep.subr.mxu0 0.0
      %7585 = vmatpush1.msra.mxu0 0.0
      %7586 = vmatprep.subr.mxu0 0.0
      %7587 = vmatpush1.msra.mxu0 %v7438
      %7588 = vmatprep.subr.mxu0 0.0
      %7589 = vmatpush1.msra.mxu0 %v7433
      %7590 = vmatprep.subr.mxu0 0.0
      %7591 = vmatpush2.msra.mxu0 0.0
      %7592 = vmatprep.subr.mxu0 0.0
      %7593 = vmatpush2.msra.mxu0 0.0
      %7594 = vmatprep.subr.mxu0 0.0
      %7595 = vmatpush2.msra.mxu0 0.0
      %7596 = vmatprep.subr.mxu0 0.0
      %7597 = vmatpush2.msra.mxu0 0.0
      %7598 = vmatprep.subr.mxu0 0.0
      %7599 = vmatpush2.msra.mxu0 0.0
      %7600 = vmatprep.subr.mxu0 0.0
      %7601 = vmatpush2.msra.mxu0 0.0
      %7602 = vmatprep.subr.mxu0 0.0
      %7603 = vmatpush2.msra.mxu0 0.0
      %7604 = vmatprep.subr.mxu0 0.0
      %7605 = vmatpush2.msra.mxu0 0.0
      %7606 = vmatprep.subr.mxu0 0.0
      %7607 = vmatpush2.msra.mxu0 0.0
      %7608 = vmatprep.subr.mxu0 0.0
      %7609 = vmatpush2.msra.mxu0 0.0
      %7610 = vmatprep.subr.mxu0 0.0
      %7611 = vmatpush2.msra.mxu0 0.0
      %7612 = vmatprep.subr.mxu0 0.0
      %7613 = vmatpush2.msra.mxu0 0.0
      %7614 = vmatprep.subr.mxu0 0.0
      %7615 = vmatpush2.msra.mxu0 0.0
      %7616 = vmatprep.subr.mxu0 0.0
      %7617 = vmatpush2.msra.mxu0 0.0
      %7618 = vmatprep.subr.mxu0 0.0
      %7619 = vmatpush2.msra.mxu0 0.0
      %7620 = vmatprep.subr.mxu0 0.0
      %7621 = vmatpush2.msra.mxu0 0.0
      %7622 = vmatprep.mubr.f32.mxu0 0.0
      %7623 = vmatmul.mubr.f32.gmra.mxu0 %v7553
      %v7624 = vpop.f32.mrf.mxu0
      %v7625 = vadd.f32 0.0, %v7624
      %v7626 = vpop.f32.mrf.mxu0
      %7627 = vmatprep.mubr.f32.mxu0 0.0
      %7628 = vmatmul.mubr.f32.gmra.mxu0 %v7556
      %v7629 = vpop.f32.mrf.mxu0
      %v7630 = vadd.f32 0.0, %v7629
      %v7631 = vpop.f32.mrf.mxu0
      %7632 = vdwg.mxu0
      %s7633 = scalar_lea.vmem %s18, 16
      %v7634 = vld [vmem:[%s7633] sm:$0xff]
      %v7636 = vsel %vm975, %v7625, 0
      %v7639 = vsel %vm975, %v7630, 0
      %7641 = vmatprep.subr.mxu0 0.0
      %7642 = vmatpush1.msra.mxu0 0.0
      %7643 = vmatprep.subr.mxu0 0.0
      %7644 = vmatpush1.msra.mxu0 0.0
      %7645 = vmatprep.subr.mxu0 0.0
      %7646 = vmatpush1.msra.mxu0 0.0
      %7647 = vmatprep.subr.mxu0 0.0
      %7648 = vmatpush1.msra.mxu0 0.0
      %7649 = vmatprep.subr.mxu0 0.0
      %7650 = vmatpush1.msra.mxu0 0.0
      %7651 = vmatprep.subr.mxu0 0.0
      %7652 = vmatpush1.msra.mxu0 0.0
      %7653 = vmatprep.subr.mxu0 0.0
      %7654 = vmatpush1.msra.mxu0 0.0
      %7655 = vmatprep.subr.mxu0 0.0
      %7656 = vmatpush1.msra.mxu0 0.0
      %7657 = vmatprep.subr.mxu0 0.0
      %7658 = vmatpush1.msra.mxu0 0.0
      %7659 = vmatprep.subr.mxu0 0.0
      %7660 = vmatpush1.msra.mxu0 0.0
      %7661 = vmatprep.subr.mxu0 0.0
      %7662 = vmatpush1.msra.mxu0 0.0
      %7663 = vmatprep.subr.mxu0 0.0
      %7664 = vmatpush1.msra.mxu0 0.0
      %7665 = vmatprep.subr.mxu0 0.0
      %7666 = vmatpush1.msra.mxu0 0.0
      %7667 = vmatprep.subr.mxu0 0.0
      %7668 = vmatpush1.msra.mxu0 0.0
      %7669 = vmatprep.subr.mxu0 0.0
      %7670 = vmatpush1.msra.mxu0 0.0
      %7671 = vmatprep.subr.mxu0 0.0
      %7672 = vmatpush1.msra.mxu0 %v7634
      %7673 = vmatprep.subr.mxu0 0.0
      %7674 = vmatpush2.msra.mxu0 0.0
      %7675 = vmatprep.subr.mxu0 0.0
      %7676 = vmatpush2.msra.mxu0 0.0
      %7677 = vmatprep.subr.mxu0 0.0
      %7678 = vmatpush2.msra.mxu0 0.0
      %7679 = vmatprep.subr.mxu0 0.0
      %7680 = vmatpush2.msra.mxu0 0.0
      %7681 = vmatprep.subr.mxu0 0.0
      %7682 = vmatpush2.msra.mxu0 0.0
      %7683 = vmatprep.subr.mxu0 0.0
      %7684 = vmatpush2.msra.mxu0 0.0
      %7685 = vmatprep.subr.mxu0 0.0
      %7686 = vmatpush2.msra.mxu0 0.0
      %7687 = vmatprep.subr.mxu0 0.0
      %7688 = vmatpush2.msra.mxu0 0.0
      %7689 = vmatprep.subr.mxu0 0.0
      %7690 = vmatpush2.msra.mxu0 0.0
      %7691 = vmatprep.subr.mxu0 0.0
      %7692 = vmatpush2.msra.mxu0 0.0
      %7693 = vmatprep.subr.mxu0 0.0
      %7694 = vmatpush2.msra.mxu0 0.0
      %7695 = vmatprep.subr.mxu0 0.0
      %7696 = vmatpush2.msra.mxu0 0.0
      %7697 = vmatprep.subr.mxu0 0.0
      %7698 = vmatpush2.msra.mxu0 0.0
      %7699 = vmatprep.subr.mxu0 0.0
      %7700 = vmatpush2.msra.mxu0 0.0
      %7701 = vmatprep.subr.mxu0 0.0
      %7702 = vmatpush2.msra.mxu0 0.0
      %7703 = vmatprep.subr.mxu0 0.0
      %7704 = vmatpush2.msra.mxu0 0.0
      %7705 = vmatprep.mubr.f32.mxu0 0.0
      %7706 = vmatmul.mubr.f32.gmra.mxu0 %v7636
      %v7707 = vpop.f32.mrf.mxu0
      %v7708 = vadd.f32 0.0, %v7707
      %v7709 = vpop.f32.mrf.mxu0
      %7710 = vmatprep.mubr.f32.mxu0 0.0
      %7711 = vmatmul.mubr.f32.gmra.mxu0 %v7639
      %v7712 = vpop.f32.mrf.mxu0
      %v7713 = vadd.f32 0.0, %v7712
      %v7714 = vpop.f32.mrf.mxu0
      %7715 = vdwg.mxu0
      %v7716 = vadd.f32 %v7179, %v7708
      %v7717 = vadd.f32 %v7184, %v7713
      %s7718 = scalar_lea.vmem %s17, 12
      %v7719 = vld [vmem:[%s7718] sm:$0x7]
      %s7720 = scalar_lea.vmem %s16, 288
      %v7721 = vld [vmem:[%s7720] sm:$0xff]
      %v7722 = vld [vmem:[%s7720 + $0x8] sm:$0xff]
      %v7723 = vld [vmem:[%s7720 + $0x10] sm:$0xff]
      %v7724 = vld [vmem:[%s7720 + $0x18] sm:$0xff]
      %v7725 = vlaneseq
      %v7726 = vshrl.u32 %v7725, 7
      %v7727 = vsub.s32 0, %v7726
      %v7728 = vrot.slane %v7719, %v7727
      %7729 = vmatprep.subr.mxu0 0.0
      %7730 = vmatpush1.msra.mxu0 0.0
      %7731 = vmatprep.subr.mxu0 0.0
      %7732 = vmatpush1.msra.mxu0 0.0
      %7733 = vmatprep.subr.mxu0 0.0
      %7734 = vmatpush1.msra.mxu0 0.0
      %7735 = vmatprep.subr.mxu0 0.0
      %7736 = vmatpush1.msra.mxu0 0.0
      %7737 = vmatprep.subr.mxu0 0.0
      %7738 = vmatpush1.msra.mxu0 0.0
      %7739 = vmatprep.subr.mxu0 0.0
      %7740 = vmatpush1.msra.mxu0 0.0
      %7741 = vmatprep.subr.mxu0 0.0
      %7742 = vmatpush1.msra.mxu0 0.0
      %7743 = vmatprep.subr.mxu0 0.0
      %7744 = vmatpush1.msra.mxu0 0.0
      %7745 = vmatprep.subr.mxu0 0.0
      %7746 = vmatpush1.msra.mxu0 0.0
      %7747 = vmatprep.subr.mxu0 0.0
      %7748 = vmatpush1.msra.mxu0 0.0
      %7749 = vmatprep.subr.mxu0 0.0
      %7750 = vmatpush1.msra.mxu0 0.0
      %7751 = vmatprep.subr.mxu0 0.0
      %7752 = vmatpush1.msra.mxu0 0.0
      %7753 = vmatprep.subr.mxu0 0.0
      %7754 = vmatpush1.msra.mxu0 %v7724
      %7755 = vmatprep.subr.mxu0 0.0
      %7756 = vmatpush1.msra.mxu0 %v7723
      %7757 = vmatprep.subr.mxu0 0.0
      %7758 = vmatpush1.msra.mxu0 %v7722
      %7759 = vmatprep.subr.mxu0 0.0
      %7760 = vmatpush1.msra.mxu0 %v7721
      %7761 = vmatprep.subr.mxu0 0.0
      %7762 = vmatpush2.msra.mxu0 0.0
      %7763 = vmatprep.subr.mxu0 0.0
      %7764 = vmatpush2.msra.mxu0 0.0
      %7765 = vmatprep.subr.mxu0 0.0
      %7766 = vmatpush2.msra.mxu0 0.0
      %7767 = vmatprep.subr.mxu0 0.0
      %7768 = vmatpush2.msra.mxu0 0.0
      %7769 = vmatprep.subr.mxu0 0.0
      %7770 = vmatpush2.msra.mxu0 0.0
      %7771 = vmatprep.subr.mxu0 0.0
      %7772 = vmatpush2.msra.mxu0 0.0
      %7773 = vmatprep.subr.mxu0 0.0
      %7774 = vmatpush2.msra.mxu0 0.0
      %7775 = vmatprep.subr.mxu0 0.0
      %7776 = vmatpush2.msra.mxu0 0.0
      %7777 = vmatprep.subr.mxu0 0.0
      %7778 = vmatpush2.msra.mxu0 0.0
      %7779 = vmatprep.subr.mxu0 0.0
      %7780 = vmatpush2.msra.mxu0 0.0
      %7781 = vmatprep.subr.mxu0 0.0
      %7782 = vmatpush2.msra.mxu0 0.0
      %7783 = vmatprep.subr.mxu0 0.0
      %7784 = vmatpush2.msra.mxu0 0.0
      %7785 = vmatprep.subr.mxu0 0.0
      %7786 = vmatpush2.msra.mxu0 0.0
      %7787 = vmatprep.subr.mxu0 0.0
      %7788 = vmatpush2.msra.mxu0 0.0
      %7789 = vmatprep.subr.mxu0 0.0
      %7790 = vmatpush2.msra.mxu0 0.0
      %7791 = vmatprep.subr.mxu0 0.0
      %7792 = vmatpush2.msra.mxu0 0.0
      %7793 = vmatprep.mubr.f32.mxu0 0.0
      %7794 = vmatmul.mubr.f32.gmra.mxu0 %v6136
      %v7795 = vpop.f32.mrf.mxu0
      %v7796 = vadd.f32 %v7728, %v7795
      %v7797 = vpop.f32.mrf.mxu0
      %7798 = vmatprep.mubr.f32.mxu0 0.0
      %7799 = vmatmul.mubr.f32.gmra.mxu0 %v6139
      %v7800 = vpop.f32.mrf.mxu0
      %v7801 = vadd.f32 %v7728, %v7800
      %v7802 = vpop.f32.mrf.mxu0
      %7803 = vdwg.mxu0
      %s7804 = scalar_lea.vmem %s16, 320
      %v7805 = vld [vmem:[%s7804] sm:$0xff]
      %v7806 = vld [vmem:[%s7804 + $0x8] sm:$0xff]
      %v7807 = vld [vmem:[%s7804 + $0x10] sm:$0xff]
      %v7808 = vld [vmem:[%s7804 + $0x18] sm:$0xff]
      %v7809 = vlaneseq
      %v7810 = vshrl.u32 %v7809, 7
      %v7811 = vsub.s32 1, %v7810
      %v7812 = vrot.slane %v7719, %v7811
      %7813 = vmatprep.subr.mxu0 0.0
      %7814 = vmatpush1.msra.mxu0 0.0
      %7815 = vmatprep.subr.mxu0 0.0
      %7816 = vmatpush1.msra.mxu0 0.0
      %7817 = vmatprep.subr.mxu0 0.0
      %7818 = vmatpush1.msra.mxu0 0.0
      %7819 = vmatprep.subr.mxu0 0.0
      %7820 = vmatpush1.msra.mxu0 0.0
      %7821 = vmatprep.subr.mxu0 0.0
      %7822 = vmatpush1.msra.mxu0 0.0
      %7823 = vmatprep.subr.mxu0 0.0
      %7824 = vmatpush1.msra.mxu0 0.0
      %7825 = vmatprep.subr.mxu0 0.0
      %7826 = vmatpush1.msra.mxu0 0.0
      %7827 = vmatprep.subr.mxu0 0.0
      %7828 = vmatpush1.msra.mxu0 0.0
      %7829 = vmatprep.subr.mxu0 0.0
      %7830 = vmatpush1.msra.mxu0 0.0
      %7831 = vmatprep.subr.mxu0 0.0
      %7832 = vmatpush1.msra.mxu0 0.0
      %7833 = vmatprep.subr.mxu0 0.0
      %7834 = vmatpush1.msra.mxu0 0.0
      %7835 = vmatprep.subr.mxu0 0.0
      %7836 = vmatpush1.msra.mxu0 0.0
      %7837 = vmatprep.subr.mxu0 0.0
      %7838 = vmatpush1.msra.mxu0 %v7808
      %7839 = vmatprep.subr.mxu0 0.0
      %7840 = vmatpush1.msra.mxu0 %v7807
      %7841 = vmatprep.subr.mxu0 0.0
      %7842 = vmatpush1.msra.mxu0 %v7806
      %7843 = vmatprep.subr.mxu0 0.0
      %7844 = vmatpush1.msra.mxu0 %v7805
      %7845 = vmatprep.subr.mxu0 0.0
      %7846 = vmatpush2.msra.mxu0 0.0
      %7847 = vmatprep.subr.mxu0 0.0
      %7848 = vmatpush2.msra.mxu0 0.0
      %7849 = vmatprep.subr.mxu0 0.0
      %7850 = vmatpush2.msra.mxu0 0.0
      %7851 = vmatprep.subr.mxu0 0.0
      %7852 = vmatpush2.msra.mxu0 0.0
      %7853 = vmatprep.subr.mxu0 0.0
      %7854 = vmatpush2.msra.mxu0 0.0
      %7855 = vmatprep.subr.mxu0 0.0
      %7856 = vmatpush2.msra.mxu0 0.0
      %7857 = vmatprep.subr.mxu0 0.0
      %7858 = vmatpush2.msra.mxu0 0.0
      %7859 = vmatprep.subr.mxu0 0.0
      %7860 = vmatpush2.msra.mxu0 0.0
      %7861 = vmatprep.subr.mxu0 0.0
      %7862 = vmatpush2.msra.mxu0 0.0
      %7863 = vmatprep.subr.mxu0 0.0
      %7864 = vmatpush2.msra.mxu0 0.0
      %7865 = vmatprep.subr.mxu0 0.0
      %7866 = vmatpush2.msra.mxu0 0.0
      %7867 = vmatprep.subr.mxu0 0.0
      %7868 = vmatpush2.msra.mxu0 0.0
      %7869 = vmatprep.subr.mxu0 0.0
      %7870 = vmatpush2.msra.mxu0 0.0
      %7871 = vmatprep.subr.mxu0 0.0
      %7872 = vmatpush2.msra.mxu0 0.0
      %7873 = vmatprep.subr.mxu0 0.0
      %7874 = vmatpush2.msra.mxu0 0.0
      %7875 = vmatprep.subr.mxu0 0.0
      %7876 = vmatpush2.msra.mxu0 0.0
      %7877 = vmatprep.mubr.f32.mxu0 0.0
      %7878 = vmatmul.mubr.f32.gmra.mxu0 %v6136
      %v7879 = vpop.f32.mrf.mxu0
      %v7880 = vadd.f32 %v7812, %v7879
      %v7881 = vpop.f32.mrf.mxu0
      %7882 = vmatprep.mubr.f32.mxu0 0.0
      %7883 = vmatmul.mubr.f32.gmra.mxu0 %v6139
      %v7884 = vpop.f32.mrf.mxu0
      %v7885 = vadd.f32 %v7812, %v7884
      %v7886 = vpop.f32.mrf.mxu0
      %7887 = vdwg.mxu0
      %s7888 = scalar_lea.vmem %s16, 352
      %v7889 = vld [vmem:[%s7888] sm:$0xff]
      %v7890 = vld [vmem:[%s7888 + $0x8] sm:$0xff]
      %v7891 = vld [vmem:[%s7888 + $0x10] sm:$0xff]
      %v7892 = vld [vmem:[%s7888 + $0x18] sm:$0xff]
      %v7893 = vlaneseq
      %v7894 = vshrl.u32 %v7893, 7
      %v7895 = vsub.s32 2, %v7894
      %v7896 = vrot.slane %v7719, %v7895
      %7897 = vmatprep.subr.mxu0 0.0
      %7898 = vmatpush1.msra.mxu0 0.0
      %7899 = vmatprep.subr.mxu0 0.0
      %7900 = vmatpush1.msra.mxu0 0.0
      %7901 = vmatprep.subr.mxu0 0.0
      %7902 = vmatpush1.msra.mxu0 0.0
      %7903 = vmatprep.subr.mxu0 0.0
      %7904 = vmatpush1.msra.mxu0 0.0
      %7905 = vmatprep.subr.mxu0 0.0
      %7906 = vmatpush1.msra.mxu0 0.0
      %7907 = vmatprep.subr.mxu0 0.0
      %7908 = vmatpush1.msra.mxu0 0.0
      %7909 = vmatprep.subr.mxu0 0.0
      %7910 = vmatpush1.msra.mxu0 0.0
      %7911 = vmatprep.subr.mxu0 0.0
      %7912 = vmatpush1.msra.mxu0 0.0
      %7913 = vmatprep.subr.mxu0 0.0
      %7914 = vmatpush1.msra.mxu0 0.0
      %7915 = vmatprep.subr.mxu0 0.0
      %7916 = vmatpush1.msra.mxu0 0.0
      %7917 = vmatprep.subr.mxu0 0.0
      %7918 = vmatpush1.msra.mxu0 0.0
      %7919 = vmatprep.subr.mxu0 0.0
      %7920 = vmatpush1.msra.mxu0 0.0
      %7921 = vmatprep.subr.mxu0 0.0
      %7922 = vmatpush1.msra.mxu0 %v7892
      %7923 = vmatprep.subr.mxu0 0.0
      %7924 = vmatpush1.msra.mxu0 %v7891
      %7925 = vmatprep.subr.mxu0 0.0
      %7926 = vmatpush1.msra.mxu0 %v7890
      %7927 = vmatprep.subr.mxu0 0.0
      %7928 = vmatpush1.msra.mxu0 %v7889
      %7929 = vmatprep.subr.mxu0 0.0
      %7930 = vmatpush2.msra.mxu0 0.0
      %7931 = vmatprep.subr.mxu0 0.0
      %7932 = vmatpush2.msra.mxu0 0.0
      %7933 = vmatprep.subr.mxu0 0.0
      %7934 = vmatpush2.msra.mxu0 0.0
      %7935 = vmatprep.subr.mxu0 0.0
      %7936 = vmatpush2.msra.mxu0 0.0
      %7937 = vmatprep.subr.mxu0 0.0
      %7938 = vmatpush2.msra.mxu0 0.0
      %7939 = vmatprep.subr.mxu0 0.0
      %7940 = vmatpush2.msra.mxu0 0.0
      %7941 = vmatprep.subr.mxu0 0.0
      %7942 = vmatpush2.msra.mxu0 0.0
      %7943 = vmatprep.subr.mxu0 0.0
      %7944 = vmatpush2.msra.mxu0 0.0
      %7945 = vmatprep.subr.mxu0 0.0
      %7946 = vmatpush2.msra.mxu0 0.0
      %7947 = vmatprep.subr.mxu0 0.0
      %7948 = vmatpush2.msra.mxu0 0.0
      %7949 = vmatprep.subr.mxu0 0.0
      %7950 = vmatpush2.msra.mxu0 0.0
      %7951 = vmatprep.subr.mxu0 0.0
      %7952 = vmatpush2.msra.mxu0 0.0
      %7953 = vmatprep.subr.mxu0 0.0
      %7954 = vmatpush2.msra.mxu0 0.0
      %7955 = vmatprep.subr.mxu0 0.0
      %7956 = vmatpush2.msra.mxu0 0.0
      %7957 = vmatprep.subr.mxu0 0.0
      %7958 = vmatpush2.msra.mxu0 0.0
      %7959 = vmatprep.subr.mxu0 0.0
      %7960 = vmatpush2.msra.mxu0 0.0
      %7961 = vmatprep.mubr.f32.mxu0 0.0
      %7962 = vmatmul.mubr.f32.gmra.mxu0 %v6136
      %v7963 = vpop.f32.mrf.mxu0
      %v7964 = vadd.f32 %v7896, %v7963
      %v7965 = vpop.f32.mrf.mxu0
      %7966 = vmatprep.mubr.f32.mxu0 0.0
      %7967 = vmatmul.mubr.f32.gmra.mxu0 %v6139
      %v7968 = vpop.f32.mrf.mxu0
      %v7969 = vadd.f32 %v7896, %v7968
      %v7970 = vpop.f32.mrf.mxu0
      %7971 = vdwg.mxu0
      %v7973 = vsel %vm975, %v7796, 0
      %v7976 = vsel %vm975, %v7801, 0
      %v7979 = vsel %vm975, %v7880, 0
      %v7982 = vsel %vm975, %v7885, 0
      %7984 = vmatprep.subr.mxu0 0.0
      %7985 = vmatpush1.xpose.msra.mxu0 0.0
      %7986 = vmatprep.subr.mxu0 0.0
      %7987 = vmatpush1.xpose.msra.mxu0 0.0
      %7988 = vmatprep.subr.mxu0 0.0
      %7989 = vmatpush1.xpose.msra.mxu0 0.0
      %7990 = vmatprep.subr.mxu0 0.0
      %7991 = vmatpush1.xpose.msra.mxu0 0.0
      %7992 = vmatprep.subr.mxu0 0.0
      %7993 = vmatpush1.xpose.msra.mxu0 0.0
      %7994 = vmatprep.subr.mxu0 0.0
      %7995 = vmatpush1.xpose.msra.mxu0 0.0
      %7996 = vmatprep.subr.mxu0 0.0
      %7997 = vmatpush1.xpose.msra.mxu0 0.0
      %7998 = vmatprep.subr.mxu0 0.0
      %7999 = vmatpush1.xpose.msra.mxu0 0.0
      %8000 = vmatprep.subr.mxu0 0.0
      %8001 = vmatpush1.xpose.msra.mxu0 0.0
      %8002 = vmatprep.subr.mxu0 0.0
      %8003 = vmatpush1.xpose.msra.mxu0 0.0
      %8004 = vmatprep.subr.mxu0 0.0
      %8005 = vmatpush1.xpose.msra.mxu0 0.0
      %8006 = vmatprep.subr.mxu0 0.0
      %8007 = vmatpush1.xpose.msra.mxu0 0.0
      %8008 = vmatprep.subr.mxu0 0.0
      %8009 = vmatpush1.xpose.msra.mxu0 0.0
      %8010 = vmatprep.subr.mxu0 0.0
      %8011 = vmatpush1.xpose.msra.mxu0 0.0
      %8012 = vmatprep.subr.mxu0 0.0
      %8013 = vmatpush1.xpose.msra.mxu0 %v7982
      %8014 = vmatprep.subr.mxu0 0.0
      %8015 = vmatpush1.xpose.msra.mxu0 %v7979
      %8016 = vmatprep.subr.mxu0 0.0
      %8017 = vmatpush2.xpose.msra.mxu0 0.0
      %8018 = vmatprep.subr.mxu0 0.0
      %8019 = vmatpush2.xpose.msra.mxu0 0.0
      %8020 = vmatprep.subr.mxu0 0.0
      %8021 = vmatpush2.xpose.msra.mxu0 0.0
      %8022 = vmatprep.subr.mxu0 0.0
      %8023 = vmatpush2.xpose.msra.mxu0 0.0
      %8024 = vmatprep.subr.mxu0 0.0
      %8025 = vmatpush2.xpose.msra.mxu0 0.0
      %8026 = vmatprep.subr.mxu0 0.0
      %8027 = vmatpush2.xpose.msra.mxu0 0.0
      %8028 = vmatprep.subr.mxu0 0.0
      %8029 = vmatpush2.xpose.msra.mxu0 0.0
      %8030 = vmatprep.subr.mxu0 0.0
      %8031 = vmatpush2.xpose.msra.mxu0 0.0
      %8032 = vmatprep.subr.mxu0 0.0
      %8033 = vmatpush2.xpose.msra.mxu0 0.0
      %8034 = vmatprep.subr.mxu0 0.0
      %8035 = vmatpush2.xpose.msra.mxu0 0.0
      %8036 = vmatprep.subr.mxu0 0.0
      %8037 = vmatpush2.xpose.msra.mxu0 0.0
      %8038 = vmatprep.subr.mxu0 0.0
      %8039 = vmatpush2.xpose.msra.mxu0 0.0
      %8040 = vmatprep.subr.mxu0 0.0
      %8041 = vmatpush2.xpose.msra.mxu0 0.0
      %8042 = vmatprep.subr.mxu0 0.0
      %8043 = vmatpush2.xpose.msra.mxu0 0.0
      %8044 = vmatprep.subr.mxu0 0.0
      %8045 = vmatpush2.xpose.msra.mxu0 0.0
      %8046 = vmatprep.subr.mxu0 0.0
      %8047 = vmatpush2.xpose.msra.mxu0 0.0
      %8048 = vmatprep.mubr.f32.mxu0 0.0
      %8049 = vmatmul.mubr.f32.gmra.mxu0 %v7973
      %v8050 = vpop.f32.mrf.mxu0
      %v8051 = vadd.f32 0.0, %v8050
      %v8052 = vpop.f32.mrf.mxu0
      %8053 = vmatprep.mubr.f32.mxu0 0.0
      %8054 = vmatmul.mubr.f32.gmra.mxu0 %v7976
      %v8055 = vpop.f32.mrf.mxu0
      %v8056 = vadd.f32 0.0, %v8055
      %v8057 = vpop.f32.mrf.mxu0
      %8058 = vdwg.mxu0
      %v8059 = vmul.f32 %v8051, 0.35355338
      %v8060 = vmul.f32 %v8056, 0.35355338
      %v8061 = vsel %vm5162, %v8059, -inf
      %8062 = vmax.xlane.f32.xlu0 %v8061
      %v8063 = vpop.xlane.xlu0 %8062
      %v8064 = vsel %vm5162, %v8060, -inf
      %8065 = vmax.xlane.f32.xlu0 %v8064
      %v8066 = vpop.xlane.xlu0 %8065
      %v8067 = vsub.f32 %v8059, %v8063
      %v8068 = vsub.f32 %v8060, %v8066
      %v8069 = vmul.f32 %v8067, 1.442695
      %v8070 = vpow.pop %v8069
      %v8071 = vmul.f32 %v8068, 1.442695
      %v8072 = vpow.pop %v8071
      %v8073 = vsel %vm5162, %v8070, 0.0
      %8074 = vadd.xlane.f32.xlu0 %v8073
      %v8075 = vpop.xlane.xlu0 %8074
      %v8076 = vsel %vm5162, %v8072, 0.0
      %8077 = vadd.xlane.f32.xlu0 %v8076
      %v8078 = vpop.xlane.xlu0 %8077
      %v8079 = vrcp.pop %v8075
      %v8080 = vmul.f32 %v8070, %v8079
      %v8081 = vrcp.pop %v8078
      %v8082 = vmul.f32 %v8072, %v8081
      %v8084 = vsel %vm5162, %v8080, 0
      %v8087 = vsel %vm5162, %v8082, 0
      %8089 = vmatprep.subr.mxu0 0.0
      %8090 = vmatpush1.msra.mxu0 0.0
      %8091 = vmatprep.subr.mxu0 0.0
      %8092 = vmatpush1.msra.mxu0 0.0
      %8093 = vmatprep.subr.mxu0 0.0
      %8094 = vmatpush1.msra.mxu0 0.0
      %8095 = vmatprep.subr.mxu0 0.0
      %8096 = vmatpush1.msra.mxu0 0.0
      %8097 = vmatprep.subr.mxu0 0.0
      %8098 = vmatpush1.msra.mxu0 0.0
      %8099 = vmatprep.subr.mxu0 0.0
      %8100 = vmatpush1.msra.mxu0 0.0
      %8101 = vmatprep.subr.mxu0 0.0
      %8102 = vmatpush1.msra.mxu0 0.0
      %8103 = vmatprep.subr.mxu0 0.0
      %8104 = vmatpush1.msra.mxu0 0.0
      %8105 = vmatprep.subr.mxu0 0.0
      %8106 = vmatpush1.msra.mxu0 0.0
      %8107 = vmatprep.subr.mxu0 0.0
      %8108 = vmatpush1.msra.mxu0 0.0
      %8109 = vmatprep.subr.mxu0 0.0
      %8110 = vmatpush1.msra.mxu0 0.0
      %8111 = vmatprep.subr.mxu0 0.0
      %8112 = vmatpush1.msra.mxu0 0.0
      %8113 = vmatprep.subr.mxu0 0.0
      %8114 = vmatpush1.msra.mxu0 0.0
      %8115 = vmatprep.subr.mxu0 0.0
      %8116 = vmatpush1.msra.mxu0 0.0
      %8117 = vmatprep.subr.mxu0 0.0
      %8118 = vmatpush1.msra.mxu0 %v7969
      %8119 = vmatprep.subr.mxu0 0.0
      %8120 = vmatpush1.msra.mxu0 %v7964
      %8121 = vmatprep.subr.mxu0 0.0
      %8122 = vmatpush2.msra.mxu0 0.0
      %8123 = vmatprep.subr.mxu0 0.0
      %8124 = vmatpush2.msra.mxu0 0.0
      %8125 = vmatprep.subr.mxu0 0.0
      %8126 = vmatpush2.msra.mxu0 0.0
      %8127 = vmatprep.subr.mxu0 0.0
      %8128 = vmatpush2.msra.mxu0 0.0
      %8129 = vmatprep.subr.mxu0 0.0
      %8130 = vmatpush2.msra.mxu0 0.0
      %8131 = vmatprep.subr.mxu0 0.0
      %8132 = vmatpush2.msra.mxu0 0.0
      %8133 = vmatprep.subr.mxu0 0.0
      %8134 = vmatpush2.msra.mxu0 0.0
      %8135 = vmatprep.subr.mxu0 0.0
      %8136 = vmatpush2.msra.mxu0 0.0
      %8137 = vmatprep.subr.mxu0 0.0
      %8138 = vmatpush2.msra.mxu0 0.0
      %8139 = vmatprep.subr.mxu0 0.0
      %8140 = vmatpush2.msra.mxu0 0.0
      %8141 = vmatprep.subr.mxu0 0.0
      %8142 = vmatpush2.msra.mxu0 0.0
      %8143 = vmatprep.subr.mxu0 0.0
      %8144 = vmatpush2.msra.mxu0 0.0
      %8145 = vmatprep.subr.mxu0 0.0
      %8146 = vmatpush2.msra.mxu0 0.0
      %8147 = vmatprep.subr.mxu0 0.0
      %8148 = vmatpush2.msra.mxu0 0.0
      %8149 = vmatprep.subr.mxu0 0.0
      %8150 = vmatpush2.msra.mxu0 0.0
      %8151 = vmatprep.subr.mxu0 0.0
      %8152 = vmatpush2.msra.mxu0 0.0
      %8153 = vmatprep.mubr.f32.mxu0 0.0
      %8154 = vmatmul.mubr.f32.gmra.mxu0 %v8084
      %v8155 = vpop.f32.mrf.mxu0
      %v8156 = vadd.f32 0.0, %v8155
      %v8157 = vpop.f32.mrf.mxu0
      %8158 = vmatprep.mubr.f32.mxu0 0.0
      %8159 = vmatmul.mubr.f32.gmra.mxu0 %v8087
      %v8160 = vpop.f32.mrf.mxu0
      %v8161 = vadd.f32 0.0, %v8160
      %v8162 = vpop.f32.mrf.mxu0
      %8163 = vdwg.mxu0
      %s8164 = scalar_lea.vmem %s18, 24
      %v8165 = vld [vmem:[%s8164] sm:$0xff]
      %v8167 = vsel %vm975, %v8156, 0
      %v8170 = vsel %vm975, %v8161, 0
      %8172 = vmatprep.subr.mxu0 0.0
      %8173 = vmatpush1.msra.mxu0 0.0
      %8174 = vmatprep.subr.mxu0 0.0
      %8175 = vmatpush1.msra.mxu0 0.0
      %8176 = vmatprep.subr.mxu0 0.0
      %8177 = vmatpush1.msra.mxu0 0.0
      %8178 = vmatprep.subr.mxu0 0.0
      %8179 = vmatpush1.msra.mxu0 0.0
      %8180 = vmatprep.subr.mxu0 0.0
      %8181 = vmatpush1.msra.mxu0 0.0
      %8182 = vmatprep.subr.mxu0 0.0
      %8183 = vmatpush1.msra.mxu0 0.0
      %8184 = vmatprep.subr.mxu0 0.0
      %8185 = vmatpush1.msra.mxu0 0.0
      %8186 = vmatprep.subr.mxu0 0.0
      %8187 = vmatpush1.msra.mxu0 0.0
      %8188 = vmatprep.subr.mxu0 0.0
      %8189 = vmatpush1.msra.mxu0 0.0
      %8190 = vmatprep.subr.mxu0 0.0
      %8191 = vmatpush1.msra.mxu0 0.0
      %8192 = vmatprep.subr.mxu0 0.0
      %8193 = vmatpush1.msra.mxu0 0.0
      %8194 = vmatprep.subr.mxu0 0.0
      %8195 = vmatpush1.msra.mxu0 0.0
      %8196 = vmatprep.subr.mxu0 0.0
      %8197 = vmatpush1.msra.mxu0 0.0
      %8198 = vmatprep.subr.mxu0 0.0
      %8199 = vmatpush1.msra.mxu0 0.0
      %8200 = vmatprep.subr.mxu0 0.0
      %8201 = vmatpush1.msra.mxu0 0.0
      %8202 = vmatprep.subr.mxu0 0.0
      %8203 = vmatpush1.msra.mxu0 %v8165
      %8204 = vmatprep.subr.mxu0 0.0
      %8205 = vmatpush2.msra.mxu0 0.0
      %8206 = vmatprep.subr.mxu0 0.0
      %8207 = vmatpush2.msra.mxu0 0.0
      %8208 = vmatprep.subr.mxu0 0.0
      %8209 = vmatpush2.msra.mxu0 0.0
      %8210 = vmatprep.subr.mxu0 0.0
      %8211 = vmatpush2.msra.mxu0 0.0
      %8212 = vmatprep.subr.mxu0 0.0
      %8213 = vmatpush2.msra.mxu0 0.0
      %8214 = vmatprep.subr.mxu0 0.0
      %8215 = vmatpush2.msra.mxu0 0.0
      %8216 = vmatprep.subr.mxu0 0.0
      %8217 = vmatpush2.msra.mxu0 0.0
      %8218 = vmatprep.subr.mxu0 0.0
      %8219 = vmatpush2.msra.mxu0 0.0
      %8220 = vmatprep.subr.mxu0 0.0
      %8221 = vmatpush2.msra.mxu0 0.0
      %8222 = vmatprep.subr.mxu0 0.0
      %8223 = vmatpush2.msra.mxu0 0.0
      %8224 = vmatprep.subr.mxu0 0.0
      %8225 = vmatpush2.msra.mxu0 0.0
      %8226 = vmatprep.subr.mxu0 0.0
      %8227 = vmatpush2.msra.mxu0 0.0
      %8228 = vmatprep.subr.mxu0 0.0
      %8229 = vmatpush2.msra.mxu0 0.0
      %8230 = vmatprep.subr.mxu0 0.0
      %8231 = vmatpush2.msra.mxu0 0.0
      %8232 = vmatprep.subr.mxu0 0.0
      %8233 = vmatpush2.msra.mxu0 0.0
      %8234 = vmatprep.subr.mxu0 0.0
      %8235 = vmatpush2.msra.mxu0 0.0
      %8236 = vmatprep.mubr.f32.mxu0 0.0
      %8237 = vmatmul.mubr.f32.gmra.mxu0 %v8167
      %v8238 = vpop.f32.mrf.mxu0
      %v8239 = vadd.f32 0.0, %v8238
      %v8240 = vpop.f32.mrf.mxu0
      %8241 = vmatprep.mubr.f32.mxu0 0.0
      %8242 = vmatmul.mubr.f32.gmra.mxu0 %v8170
      %v8243 = vpop.f32.mrf.mxu0
      %v8244 = vadd.f32 0.0, %v8243
      %v8245 = vpop.f32.mrf.mxu0
      %8246 = vdwg.mxu0
      %v8247 = vadd.f32 %v7716, %v8239
      %v8248 = vadd.f32 %v7717, %v8244
      %v8249 = vadd.f32 %v6085, %v8247
      %v8250 = vadd.f32 %v6086, %v8248
      %v8251 = vlaneseq
      %v8252 = vshrl.u32 %v8251, 7
      %v8253 = vsub.s32 2, %v8252
      %v8254 = vrot.slane %v6087, %v8253
      %v8255 = vadd.f32 %v8249, %v8254
      %v8256 = vadd.f32 %v8250, %v8254
      %v8257 = vsel %vm710, %v8255, 0.0
      %8258 = vadd.xlane.f32.xlu0 %v8257
      %v8259 = vpop.xlane.xlu0 %8258
      %v8260 = vsel %vm710, %v8256, 0.0
      %8261 = vadd.xlane.f32.xlu0 %v8260
      %v8262 = vpop.xlane.xlu0 %8261
      %v8263 = vmul.f32 %v8259, %v714
      %v8264 = vmul.f32 %v8262, %v714
      %v8265 = vsub.f32 %v8255, %v8263
      %v8266 = vsub.f32 %v8256, %v8264
      %v8267 = vmul.f32 %v8265, %v8265
      %v8268 = vmul.f32 %v8266, %v8266
      %v8269 = vsel %vm710, %v8267, 0.0
      %8270 = vadd.xlane.f32.xlu0 %v8269
      %v8271 = vpop.xlane.xlu0 %8270
      %v8272 = vsel %vm710, %v8268, 0.0
      %8273 = vadd.xlane.f32.xlu0 %v8272
      %v8274 = vpop.xlane.xlu0 %8273
      %v8275 = vmul.f32 %v8271, %v714
      %v8276 = vmul.f32 %v8274, %v714
      %v8277 = vadd.f32 %v8275, 1e-05
      %v8278 = vadd.f32 %v8276, 1e-05
      %v8279 = vrsqrt.pop %v8277
      %v8280 = vrsqrt.pop %v8278
      %v8281 = vmul.f32 %v8265, %v8279
      %v8282 = vmul.f32 %v8266, %v8280
      %v8283 = vlaneseq
      %v8284 = vshrl.u32 %v8283, 7
      %v8285 = vsub.s32 3, %v8284
      %v8286 = vrot.slane %v6087, %v8285
      %v8287 = vmul.f32 %v8281, %v8286
      %v8288 = vmul.f32 %v8282, %v8286
      %v8289 = vlaneseq
      %v8290 = vshrl.u32 %v8289, 7
      %v8291 = vsub.s32 4, %v8290
      %v8292 = vrot.slane %v6087, %v8291
      %v8293 = vadd.f32 %v8287, %v8292
      %v8294 = vadd.f32 %v8288, %v8292
      %v8295 = vld [vmem:[%s19] sm:$0xff]
      %v8296 = vld [vmem:[%s19 + $0x8] sm:$0xff]
      %v8297 = vld [vmem:[%s19 + $0x10] sm:$0xff]
      %v8298 = vld [vmem:[%s19 + $0x18] sm:$0xff]
      %v8299 = vld [vmem:[%s20] sm:$0x1]
      %v8301 = vlaneseq
      %v8302 = vshrl.u32 %v8301, 7
      %v8303 = vsub.s32 0, %v8302
      %v8304 = vrot.slane %v8299, %v8303
      %v8307 = vsel %vm710, %v8293, 0
      %v8310 = vsel %vm710, %v8294, 0
      %8312 = vmatprep.subr.mxu0 0.0
      %8313 = vmatpush1.msra.mxu0 0.0
      %8314 = vmatprep.subr.mxu0 0.0
      %8315 = vmatpush1.msra.mxu0 0.0
      %8316 = vmatprep.subr.mxu0 0.0
      %8317 = vmatpush1.msra.mxu0 0.0
      %8318 = vmatprep.subr.mxu0 0.0
      %8319 = vmatpush1.msra.mxu0 0.0
      %8320 = vmatprep.subr.mxu0 0.0
      %8321 = vmatpush1.msra.mxu0 0.0
      %8322 = vmatprep.subr.mxu0 0.0
      %8323 = vmatpush1.msra.mxu0 0.0
      %8324 = vmatprep.subr.mxu0 0.0
      %8325 = vmatpush1.msra.mxu0 0.0
      %8326 = vmatprep.subr.mxu0 0.0
      %8327 = vmatpush1.msra.mxu0 0.0
      %8328 = vmatprep.subr.mxu0 0.0
      %8329 = vmatpush1.msra.mxu0 0.0
      %8330 = vmatprep.subr.mxu0 0.0
      %8331 = vmatpush1.msra.mxu0 0.0
      %8332 = vmatprep.subr.mxu0 0.0
      %8333 = vmatpush1.msra.mxu0 0.0
      %8334 = vmatprep.subr.mxu0 0.0
      %8335 = vmatpush1.msra.mxu0 0.0
      %8336 = vmatprep.subr.mxu0 0.0
      %8337 = vmatpush1.msra.mxu0 %v8298
      %8338 = vmatprep.subr.mxu0 0.0
      %8339 = vmatpush1.msra.mxu0 %v8297
      %8340 = vmatprep.subr.mxu0 0.0
      %8341 = vmatpush1.msra.mxu0 %v8296
      %8342 = vmatprep.subr.mxu0 0.0
      %8343 = vmatpush1.msra.mxu0 %v8295
      %8344 = vmatprep.subr.mxu0 0.0
      %8345 = vmatpush2.msra.mxu0 0.0
      %8346 = vmatprep.subr.mxu0 0.0
      %8347 = vmatpush2.msra.mxu0 0.0
      %8348 = vmatprep.subr.mxu0 0.0
      %8349 = vmatpush2.msra.mxu0 0.0
      %8350 = vmatprep.subr.mxu0 0.0
      %8351 = vmatpush2.msra.mxu0 0.0
      %8352 = vmatprep.subr.mxu0 0.0
      %8353 = vmatpush2.msra.mxu0 0.0
      %8354 = vmatprep.subr.mxu0 0.0
      %8355 = vmatpush2.msra.mxu0 0.0
      %8356 = vmatprep.subr.mxu0 0.0
      %8357 = vmatpush2.msra.mxu0 0.0
      %8358 = vmatprep.subr.mxu0 0.0
      %8359 = vmatpush2.msra.mxu0 0.0
      %8360 = vmatprep.subr.mxu0 0.0
      %8361 = vmatpush2.msra.mxu0 0.0
      %8362 = vmatprep.subr.mxu0 0.0
      %8363 = vmatpush2.msra.mxu0 0.0
      %8364 = vmatprep.subr.mxu0 0.0
      %8365 = vmatpush2.msra.mxu0 0.0
      %8366 = vmatprep.subr.mxu0 0.0
      %8367 = vmatpush2.msra.mxu0 0.0
      %8368 = vmatprep.subr.mxu0 0.0
      %8369 = vmatpush2.msra.mxu0 0.0
      %8370 = vmatprep.subr.mxu0 0.0
      %8371 = vmatpush2.msra.mxu0 0.0
      %8372 = vmatprep.subr.mxu0 0.0
      %8373 = vmatpush2.msra.mxu0 0.0
      %8374 = vmatprep.subr.mxu0 0.0
      %8375 = vmatpush2.msra.mxu0 0.0
      %8376 = vmatprep.mubr.f32.mxu0 0.0
      %8377 = vmatmul.mubr.f32.gmra.mxu0 %v8307
      %v8378 = vpop.f32.mrf.mxu0
      %v8379 = vadd.f32 %v8304, %v8378
      %v8380 = vpop.f32.mrf.mxu0
      %8381 = vmatprep.mubr.f32.mxu0 0.0
      %8382 = vmatmul.mubr.f32.gmra.mxu0 %v8310
      %v8383 = vpop.f32.mrf.mxu0
      %v8384 = vadd.f32 %v8304, %v8383
      %v8385 = vpop.f32.mrf.mxu0
      %8386 = vdwg.mxu0
      %v8387 = vmul.f32 %v8379, %v8379
      %v8388 = vmul.f32 %v8384, %v8384
      %v8389 = vmul.f32 %v8379, %v8387
      %v8390 = vmul.f32 %v8384, %v8388
      %v8391 = vmul.f32 %v8389, 0.044715
      %v8392 = vmul.f32 %v8390, 0.044715
      %v8393 = vadd.f32 %v8379, %v8391
      %v8394 = vadd.f32 %v8384, %v8392
      %v8395 = vmul.f32 %v8393, 0.7978846
      %v8396 = vmul.f32 %v8394, 0.7978846
      %v8397 = vtanh.pop %v8395
      %v8398 = vtanh.pop %v8396
      %v8399 = vadd.f32 %v8397, 1.0
      %v8400 = vadd.f32 %v8398, 1.0
      %v8401 = vmul.f32 %v8399, 0.5
      %v8402 = vmul.f32 %v8400, 0.5
      %v8403 = vmul.f32 %v8379, %v8401
      %v8404 = vmul.f32 %v8384, %v8402
      %v8405 = vld [vmem:[%s21] sm:$0xff]
      %v8406 = vld [vmem:[%s21 + $0x8] sm:$0xff]
      %v8407 = vld [vmem:[%s21 + $0x10] sm:$0xff]
      %v8408 = vld [vmem:[%s21 + $0x18] sm:$0xff]
      %v8409 = vld [vmem:[%s21 + $0x20] sm:$0xff]
      %v8410 = vld [vmem:[%s21 + $0x28] sm:$0xff]
      %v8411 = vld [vmem:[%s21 + $0x30] sm:$0xff]
      %v8412 = vld [vmem:[%s21 + $0x38] sm:$0xff]
      %v8413 = vld [vmem:[%s21 + $0x40] sm:$0xff]
      %v8414 = vld [vmem:[%s21 + $0x48] sm:$0xff]
      %v8415 = vld [vmem:[%s21 + $0x50] sm:$0xff]
      %v8416 = vld [vmem:[%s21 + $0x58] sm:$0xff]
      %v8417 = vld [vmem:[%s21 + $0x60] sm:$0xff]
      %v8418 = vld [vmem:[%s21 + $0x68] sm:$0xff]
      %v8419 = vld [vmem:[%s21 + $0x70] sm:$0xff]
      %v8420 = vld [vmem:[%s21 + $0x78] sm:$0xff]
      %8421 = vmatprep.subr.mxu0 0.0
      %8422 = vmatpush1.msra.mxu0 %v8420
      %8423 = vmatprep.subr.mxu0 0.0
      %8424 = vmatpush1.msra.mxu0 %v8419
      %8425 = vmatprep.subr.mxu0 0.0
      %8426 = vmatpush1.msra.mxu0 %v8418
      %8427 = vmatprep.subr.mxu0 0.0
      %8428 = vmatpush1.msra.mxu0 %v8417
      %8429 = vmatprep.subr.mxu0 0.0
      %8430 = vmatpush1.msra.mxu0 %v8416
      %8431 = vmatprep.subr.mxu0 0.0
      %8432 = vmatpush1.msra.mxu0 %v8415
      %8433 = vmatprep.subr.mxu0 0.0
      %8434 = vmatpush1.msra.mxu0 %v8414
      %8435 = vmatprep.subr.mxu0 0.0
      %8436 = vmatpush1.msra.mxu0 %v8413
      %8437 = vmatprep.subr.mxu0 0.0
      %8438 = vmatpush1.msra.mxu0 %v8412
      %8439 = vmatprep.subr.mxu0 0.0
      %8440 = vmatpush1.msra.mxu0 %v8411
      %8441 = vmatprep.subr.mxu0 0.0
      %8442 = vmatpush1.msra.mxu0 %v8410
      %8443 = vmatprep.subr.mxu0 0.0
      %8444 = vmatpush1.msra.mxu0 %v8409
      %8445 = vmatprep.subr.mxu0 0.0
      %8446 = vmatpush1.msra.mxu0 %v8408
      %8447 = vmatprep.subr.mxu0 0.0
      %8448 = vmatpush1.msra.mxu0 %v8407
      %8449 = vmatprep.subr.mxu0 0.0
      %8450 = vmatpush1.msra.mxu0 %v8406
      %8451 = vmatprep.subr.mxu0 0.0
      %8452 = vmatpush1.msra.mxu0 %v8405
      %8453 = vmatprep.subr.mxu0 0.0
      %8454 = vmatpush2.msra.mxu0 0.0
      %8455 = vmatprep.subr.mxu0 0.0
      %8456 = vmatpush2.msra.mxu0 0.0
      %8457 = vmatprep.subr.mxu0 0.0
      %8458 = vmatpush2.msra.mxu0 0.0
      %8459 = vmatprep.subr.mxu0 0.0
      %8460 = vmatpush2.msra.mxu0 0.0
      %8461 = vmatprep.subr.mxu0 0.0
      %8462 = vmatpush2.msra.mxu0 0.0
      %8463 = vmatprep.subr.mxu0 0.0
      %8464 = vmatpush2.msra.mxu0 0.0
      %8465 = vmatprep.subr.mxu0 0.0
      %8466 = vmatpush2.msra.mxu0 0.0
      %8467 = vmatprep.subr.mxu0 0.0
      %8468 = vmatpush2.msra.mxu0 0.0
      %8469 = vmatprep.subr.mxu0 0.0
      %8470 = vmatpush2.msra.mxu0 0.0
      %8471 = vmatprep.subr.mxu0 0.0
      %8472 = vmatpush2.msra.mxu0 0.0
      %8473 = vmatprep.subr.mxu0 0.0
      %8474 = vmatpush2.msra.mxu0 0.0
      %8475 = vmatprep.subr.mxu0 0.0
      %8476 = vmatpush2.msra.mxu0 0.0
      %8477 = vmatprep.subr.mxu0 0.0
      %8478 = vmatpush2.msra.mxu0 0.0
      %8479 = vmatprep.subr.mxu0 0.0
      %8480 = vmatpush2.msra.mxu0 0.0
      %8481 = vmatprep.subr.mxu0 0.0
      %8482 = vmatpush2.msra.mxu0 0.0
      %8483 = vmatprep.subr.mxu0 0.0
      %8484 = vmatpush2.msra.mxu0 0.0
      %8485 = vmatprep.mubr.f32.mxu0 0.0
      %8486 = vmatmul.mubr.f32.gmra.mxu0 %v8403
      %v8487 = vpop.f32.mrf.mxu0
      %v8488 = vadd.f32 0.0, %v8487
      %v8489 = vpop.f32.mrf.mxu0
      %8490 = vmatprep.mubr.f32.mxu0 0.0
      %8491 = vmatmul.mubr.f32.gmra.mxu0 %v8404
      %v8492 = vpop.f32.mrf.mxu0
      %v8493 = vadd.f32 0.0, %v8492
      %v8494 = vpop.f32.mrf.mxu0
      %8495 = vdwg.mxu0
      %v8496 = vadd.f32 %v8255, %v8488
      %v8497 = vadd.f32 %v8256, %v8493
      %v8498 = vlaneseq
      %v8499 = vshrl.u32 %v8498, 7
      %v8500 = vsub.s32 5, %v8499
      %v8501 = vrot.slane %v6087, %v8500
      %v8502 = vadd.f32 %v8496, %v8501
      %v8503 = vadd.f32 %v8497, %v8501
      %8504 = vst.msk [vmem:[%s707] sm:$0xff] %vm710, %v8502
      %8505 = vst.msk [vmem:[%s707 + $0x8] sm:$0xff] %vm710, %v8503
      %p8506 = scmp.lt.s32.totalorder %s34, 1
      %s8507 = scalar_select %p8506, %s34, 1
      %s8508 = smul.addr %s8507, 2
      %s8509 = smul.addr %s8508, 8
      %s8510 = scalar_lea.vmem %s23, %s8509
      // Predicated region
      $region113: #{permutation_encoder_forward.1} parent=111 // pred_check
        %p8511 = pneg %p540
      $region114: #{permutation_encoder_forward.1} parent=111 // pred_check_branch
        %8513 = sbr.rel (%p8511) target = $region116
      $region115: #{permutation_encoder_forward.1} parent=111 // pred_region
        _
      $region116: #{permutation_encoder_forward.1} parent=111 // pred_fallthru
        _
    $region112: #{permutation_encoder_forward.1} parent=5 // pred_fallthru
      _
    %p8514 = scmp.le.s32.totalorder 2, %s29
    // Predicated region
    $region117: #{permutation_encoder_forward.1} parent=5 // pred_check
      %p8515 = pneg %p8514
    $region118: #{permutation_encoder_forward.1} parent=5 // pred_check_branch
      %8517 = sbr.rel (%p8515) target = $region120
    $region119: #{permutation_encoder_forward.1} parent=5 // pred_region
      %s8518 = ssub.s32 %s29, 2
      // Predicated region
      $region121: #{permutation_encoder_forward.1} parent=119 // pred_check
        %p8519 = pneg %p546
      $region122: #{permutation_encoder_forward.1} parent=119 // pred_check_branch
        %8521 = sbr.rel (%p8519) target = $region124
      $region123: #{permutation_encoder_forward.1} parent=119 // pred_region
        %p8522 = scmp.lt.s32.totalorder %s35, 1
        %s8523 = scalar_select %p8522, %s35, 1
        %s8524 = smul.addr %s8523, 2
        %s8525 = smul.addr %s8524, 8
        %s8526 = scalar_lea.vmem %s23, %s8525
      $region124: #{permutation_encoder_forward.1} parent=119 // pred_fallthru
        _
    $region120: #{permutation_encoder_forward.1} parent=5 // pred_fallthru
      _
  $region6: #{permutation_encoder_forward.1} parent=0 // loop_footer
    %s33 = sadd.s32 1, %s29
  $region7: #{permutation_encoder_forward.1} parent=0 // loop_footer_branch
    %28 = sbr.rel target = $region3
  $region8: #{permutation_encoder_forward.1} parent=0 // loop_exit
    _

</llo_original>
